<compile_context>
chip_gen: v6e
topology: v6e:2x2x1
jax: 0.10.0
libtpu: 0.0.40
codegen_flags: <defaults>
</compile_context>

<pallas_src>
import math
from functools import partial

import jax
import jax.numpy as jnp
from jax import lax
from jax.experimental import pallas as pl
from jax.experimental.pallas import tpu as pltpu


# ----------------------------------------------------------------------------
# LSTM forward over one tile of PBT independent (pass x batch) rows
# ----------------------------------------------------------------------------
def _make_lstm_mc_kernel(T, D, H, PBT):
    """Kernel refs:
      xm  (T, PBT, D) bf16  pre-masked inputs (pass 0 rows = eval, mask==1)
      wih (D, 4H)    bf16
      whh (H, 4H)    bf16
      b   (1, 4H)    f32
      wout(1, H)     f32
      bout(1, 1)     f32
      out (PBT, 1)   f32
    """

    def kernel(xm_ref, wih_ref, whh_ref, b_ref, wout_ref, bout_ref, out_ref):
        wih = wih_ref[...]                       # loop-invariant, hoisted
        whh = whh_ref[...]
        b = b_ref[...]

        h = jnp.zeros((PBT, H), jnp.float32)
        c = jnp.zeros((PBT, H), jnp.float32)

        # Static unroll (T small): the whole recurrence is one basic block, so
        # the scheduler can hide step t+1's input projection (MXU slot) under
        # step t's gate math (VPU/EUP slots).
        for t in range(T):
            xm_t = xm_ref[t]                     # (PBT, D) bf16, static slice
            proj = jnp.dot(xm_t, wih, preferred_element_type=jnp.float32)
            rec = jnp.dot(h.astype(jnp.bfloat16), whh,
                          preferred_element_type=jnp.float32)
            gates = proj + rec + b               # (PBT, 4H) f32

            # Full-width sigmoid (i, f, o quarters need it); tanh only on the
            # g-gate quarter -> ~half the EUP pushes per step.
            s_all = jax.nn.sigmoid(gates)
            i_g = s_all[:, 0:H]
            f_g = s_all[:, H:2 * H]
            o_g = s_all[:, 3 * H:4 * H]
            g_g = jnp.tanh(gates[:, 2 * H:3 * H])

            c = f_g * c + i_g * g_g
            h = o_g * jnp.tanh(c)

        # Head: VPU multiply + lane reduction instead of a 1-column MXU matmul
        # (removes an MXU push+drain from the tail of the serial chain).
        out_ref[...] = (jnp.sum(h * wout_ref[...], axis=-1, keepdims=True)
                        + bout_ref[...])

    return kernel


def lstm_mc_passes(x, params, key, n_passes, dropout_fraction):
    """x: (T, B, D) f32. Returns per-pass logits (n_passes, B); pass 0 = eval."""
    T, B, D = x.shape
    H = params["whh"].shape[0]
    P = n_passes
    PB = P * B
    keep = 1.0 - float(dropout_fraction)

    # Inverted-dropout masks for the K stochastic passes; pass 0 is the
    # deterministic eval pass (mask == 1).
    # TODO(synk): on real TPU these bits could be drawn in-kernel with
    # pltpu.prng_random_bits (no HBM mask tensor), but that primitive has no
    # interpret-mode lowering, so the masks are generated with jax.random here.
    drop = (jax.random.uniform(key, (T, P - 1, B, D)) < keep).astype(jnp.float32)
    drop = drop * jnp.float32(1.0 / keep)
    mask = jnp.concatenate([jnp.ones((T, 1, B, D), jnp.float32), drop], axis=1)

    # Pre-masked bf16 matmul operand (f32 accumulation inside the kernel);
    # bf16 halves the HBM/VMEM footprint of the P-folded input.
    xm = (x[:, None, :, :] * mask).astype(jnp.bfloat16).reshape(T, PB, D)

    # Tile the independent pass*batch rows: 2 tiles when the fold is large
    # (v7x megacore; bounds per-tile VMEM as calibration batches grow),
    # a single tile for small forward calls (avoids per-grid-step overhead).
    pbt = PB
    if PB >= 128 and (PB // 2) % 8 == 0:
        pbt = PB // 2
    grid = (PB // pbt,)

    kernel = _make_lstm_mc_kernel(T=T, D=D, H=H, PBT=pbt)
    out = pl.pallas_call(
        kernel,
        out_shape=jax.ShapeDtypeStruct((PB, 1), jnp.float32),
        grid=grid,
        in_specs=[
            pl.BlockSpec((T, pbt, D), lambda i: (0, i, 0)),
            pl.BlockSpec((D, 4 * H), lambda i: (0, 0)),
            pl.BlockSpec((H, 4 * H), lambda i: (0, 0)),
            pl.BlockSpec((1, 4 * H), lambda i: (0, 0)),
            pl.BlockSpec((1, H), lambda i: (0, 0)),
            pl.BlockSpec((1, 1), lambda i: (0, 0)),
        ],
        out_specs=pl.BlockSpec((pbt, 1), lambda i: (i, 0)),
        compiler_params=pltpu.CompilerParams(
            dimension_semantics=("parallel",)),
    )(
        xm,
        params["wih"].astype(jnp.bfloat16),
        params["whh"].astype(jnp.bfloat16),
        params["b"],
        params["wout"].reshape(1, H),
        params["bout"],
    )
    return out[:, 0].reshape(P, B)


# ----------------------------------------------------------------------------
# Model (logits) + MC-dropout std  (== get_lstm_model_std(x, dropout_fraction))
# ----------------------------------------------------------------------------
def _model_logits_and_std(x, params, key, n_passes, dropout_fraction):
    per_pass = lstm_mc_passes(x, params, key, n_passes, dropout_fraction)
    logits = per_pass[0]                           # pass 0: eval (no dropout)
    std = jnp.std(per_pass[1:], axis=0, ddof=1)    # unbiased, like torch.std
    return logits, std


@partial(jax.jit, static_argnames=("n_passes", "dropout_fraction"))
def model_logits_and_std(x, params, key, *, n_passes, dropout_fraction):
    return _model_logits_and_std(x, params, key, n_passes, dropout_fraction)


@partial(jax.jit, static_argnames=("n_passes", "dropout_fraction"))
def conformal_forward(x, params, key, qhat, *, n_passes, dropout_fraction):
    logits, std = _model_logits_and_std(x, params, key, n_passes, dropout_fraction)
    half = std * qhat
    # Tiny elementwise epilogue left to XLA (a separate pallas_call would be
    # pure launch overhead at this size).
    return logits - half, logits + half


# ----------------------------------------------------------------------------
# ConformalForcast
# ----------------------------------------------------------------------------
class ConformalForcastPallas:
    def __init__(self, params, calib_batches, alpha, key,
                 mc_passes=8, dropout_fraction=0.3):
        self.params = params
        self.alpha = alpha
        self.K = mc_passes
        self.p = dropout_fraction
        self.Qhat = self.conformal_calibration(calib_batches, key)

    def conformal_calibration(self, calib_batches, key):
        # Batch the whole calibration set into ONE folded kernel launch.
        xs = jnp.concatenate([xb for xb, _ in calib_batches], axis=1)   # (T, NB*B, D)
        targets = jnp.concatenate([tb for _, tb in calib_batches], axis=0)
        logits, std = model_logits_and_std(xs, self.params, key,
                                           n_passes=self.K + 1,
                                           dropout_fraction=self.p)
        # |logits - target| / std  (eps guards degenerate std == 0)
        scores = jnp.abs(logits - targets) / jnp.maximum(std, 1e-12)
        n = int(scores.shape[0])
        cor_alpha = min(math.ceil((n + 1) * (1.0 - self.alpha)) / n, 1.0)
        # TODO(synk): quantile (requires a sort) stays in plain JAX; matches
        # torch.quantile's default linear interpolation.
        return float(jnp.quantile(scores, cor_alpha))   # single host sync

    def forward(self, x, key):
        lo, hi = conformal_forward(x, self.params, key, jnp.float32(self.Qhat),
                                   n_passes=self.K + 1, dropout_fraction=self.p)
        return [lo, hi]                                  # S = [lower, upper]


def init_params(key, D, H):
    k1, k2, k3, k4 = jax.random.split(key, 4)
    scale = 1.0 / math.sqrt(H)
    return {
        "wih": (jax.random.normal(k1, (D, 4 * H), jnp.float32) * scale),
        "whh": (jax.random.normal(k2, (H, 4 * H), jnp.float32) * scale),
        "b": (jax.random.normal(k3, (1, 4 * H), jnp.float32) * scale),
        "wout": (jax.random.normal(k4, (H, 1), jnp.float32) * scale),
        "bout": jnp.zeros((1, 1), jnp.float32),
    }


if __name__ == "__main__":
    T, B, D, H = 8, 8, 32, 32          # seq, batch, feature, hidden
    K = 8                              # MC-dropout passes
    alpha = 0.1
    n_calib_batches = 4

    root = jax.random.PRNGKey(0)
    k_param, k_calib, k_test, k_mc = jax.random.split(root, 4)
    params = init_params(k_param, D, H)

    # Synthetic calibration "loader": list of (x, targets) batches.
    calib_batches = []
    for i in range(n_calib_batches):
        kx, kt = jax.random.split(jax.random.fold_in(k_calib, i))
        xb = jax.random.normal(kx, (T, B, D), jnp.float32)
        tb = jax.random.normal(kt, (B,), jnp.float32)
        calib_batches.append((xb, tb))

    cf = ConformalForcastPallas(params, calib_batches, alpha, k_mc,
                                mc_passes=K, dropout_fraction=0.3)

    x_test = jax.random.normal(k_test, (T, B, D), jnp.float32)
    S = cf.forward(x_test, jax.random.fold_in(k_mc, 1234))
    lower, upper = S
    jax.block_until_ready(lower)
    jax.block_until_ready(upper)

    assert lower.shape == (B,) and upper.shape == (B,)
    assert bool(jnp.all(upper >= lower))
    print("KERNEL_OK")
</pallas_src>

<mosaic_0001>
module attributes {stable_mosaic.version = 11 : i64} {
  func.func @kernel(%arg0: i32, %arg1: memref<8x144x32xbf16, #tpu.memory_space<vmem>>, %arg2: memref<32x128xbf16, #tpu.memory_space<vmem>>, %arg3: memref<32x128xbf16, #tpu.memory_space<vmem>>, %arg4: memref<1x128xf32, #tpu.memory_space<vmem>>, %arg5: memref<1x32xf32, #tpu.memory_space<vmem>>, %arg6: memref<1x1xf32, #tpu.memory_space<vmem>>, %arg7: memref<144x1xf32, #tpu.memory_space<vmem>>) attributes {dimension_semantics = [#tpu.dimension_semantics<parallel>], iteration_bounds = array<i64: 2>, scalar_prefetch = 0 : i64, scratch_operands = 0 : i64, tpu.core_type = #tpu.core_type<tc>, window_params = [{transform_indices = @transform_0, window_bounds = array<i64: 8, 144, 32>}, {pipeline_mode = #tpu.pipeline_mode<synchronous>, transform_indices = @transform_1, window_bounds = array<i64: 32, 128>}, {pipeline_mode = #tpu.pipeline_mode<synchronous>, transform_indices = @transform_2, window_bounds = array<i64: 32, 128>}, {pipeline_mode = #tpu.pipeline_mode<synchronous>, transform_indices = @transform_3, window_bounds = array<i64: 1, 128>}, {pipeline_mode = #tpu.pipeline_mode<synchronous>, transform_indices = @transform_4, window_bounds = array<i64: 1, 32>}, {pipeline_mode = #tpu.pipeline_mode<synchronous>, transform_indices = @transform_5, window_bounds = array<i64: 1, 1>}, {transform_indices = @transform_6, window_bounds = array<i64: 144, 1>}]} {
    %c0 = arith.constant 0 : index
    %c0_0 = arith.constant 0 : index
    %0 = vector.load %arg2[%c0, %c0_0] : memref<32x128xbf16, #tpu.memory_space<vmem>>, vector<32x128xbf16>
    %c0_1 = arith.constant 0 : index
    %c0_2 = arith.constant 0 : index
    %1 = vector.load %arg3[%c0_1, %c0_2] : memref<32x128xbf16, #tpu.memory_space<vmem>>, vector<32x128xbf16>
    %c0_3 = arith.constant 0 : index
    %c0_4 = arith.constant 0 : index
    %2 = vector.load %arg4[%c0_3, %c0_4] : memref<1x128xf32, #tpu.memory_space<vmem>>, vector<1x128xf32>
    %cst = arith.constant 0.000000e+00 : f32
    %3 = vector.broadcast %cst : f32 to vector<144x32xf32>
    %cst_5 = arith.constant 0.000000e+00 : f32
    %4 = vector.broadcast %cst_5 : f32 to vector<144x32xf32>
    %c0_6 = arith.constant 0 : index
    %c0_7 = arith.constant 0 : index
    %c0_8 = arith.constant 0 : index
    %5 = vector.load %arg1[%c0_6, %c0_7, %c0_8] : memref<8x144x32xbf16, #tpu.memory_space<vmem>>, vector<1x144x32xbf16>
    %6 = vector.shape_cast %5 : vector<1x144x32xbf16> to vector<144x32xbf16>
    %cst_9 = arith.constant dense<0.000000e+00> : vector<144x128xf32>
    %7 = tpu.matmul %6, %0, %cst_9 {dimension_numbers = #tpu.dot_dimension_numbers<[1], [0], [0], [1], [0, 0, 1, 1], [], []>} : vector<144x32xbf16>, vector<32x128xbf16>, vector<144x128xf32> -> vector<144x128xf32>
    %8 = arith.truncf %3 : vector<144x32xf32> to vector<144x32xbf16>
    %cst_10 = arith.constant dense<0.000000e+00> : vector<144x128xf32>
    %9 = tpu.matmul %8, %1, %cst_10 {dimension_numbers = #tpu.dot_dimension_numbers<[1], [0], [0], [1], [0, 0, 1, 1], [], []>} : vector<144x32xbf16>, vector<32x128xbf16>, vector<144x128xf32> -> vector<144x128xf32>
    %10 = arith.addf %7, %9 : vector<144x128xf32>
    %11 = vector.broadcast %2 : vector<1x128xf32> to vector<144x128xf32>
    %12 = arith.addf %10, %11 : vector<144x128xf32>
    %13 = arith.negf %12 : vector<144x128xf32>
    %14 = math.exp %13 : vector<144x128xf32>
    %cst_11 = arith.constant 1.000000e+00 : f32
    %15 = vector.broadcast %cst_11 : f32 to vector<144x128xf32>
    %16 = arith.addf %15, %14 : vector<144x128xf32>
    %17 = arith.divf %15, %16 : vector<144x128xf32>
    %18 = vector.extract_strided_slice %17 {offsets = [0, 0], sizes = [144, 32], strides = [1, 1]} : vector<144x128xf32> to vector<144x32xf32>
    %19 = vector.extract_strided_slice %17 {offsets = [0, 32], sizes = [144, 32], strides = [1, 1]} : vector<144x128xf32> to vector<144x32xf32>
    %20 = vector.extract_strided_slice %17 {offsets = [0, 96], sizes = [144, 32], strides = [1, 1]} : vector<144x128xf32> to vector<144x32xf32>
    %21 = vector.extract_strided_slice %12 {offsets = [0, 64], sizes = [144, 32], strides = [1, 1]} : vector<144x128xf32> to vector<144x32xf32>
    %22 = math.tanh %21 : vector<144x32xf32>
    %23 = arith.mulf %19, %4 : vector<144x32xf32>
    %24 = arith.mulf %18, %22 : vector<144x32xf32>
    %25 = arith.addf %23, %24 : vector<144x32xf32>
    %26 = math.tanh %25 : vector<144x32xf32>
    %27 = arith.mulf %20, %26 : vector<144x32xf32>
    %c1 = arith.constant 1 : index
    %c0_12 = arith.constant 0 : index
    %c0_13 = arith.constant 0 : index
    %28 = vector.load %arg1[%c1, %c0_12, %c0_13] : memref<8x144x32xbf16, #tpu.memory_space<vmem>>, vector<1x144x32xbf16>
    %29 = vector.shape_cast %28 : vector<1x144x32xbf16> to vector<144x32xbf16>
    %cst_14 = arith.constant dense<0.000000e+00> : vector<144x128xf32>
    %30 = tpu.matmul %29, %0, %cst_14 {dimension_numbers = #tpu.dot_dimension_numbers<[1], [0], [0], [1], [0, 0, 1, 1], [], []>} : vector<144x32xbf16>, vector<32x128xbf16>, vector<144x128xf32> -> vector<144x128xf32>
    %31 = arith.truncf %27 : vector<144x32xf32> to vector<144x32xbf16>
    %cst_15 = arith.constant dense<0.000000e+00> : vector<144x128xf32>
    %32 = tpu.matmul %31, %1, %cst_15 {dimension_numbers = #tpu.dot_dimension_numbers<[1], [0], [0], [1], [0, 0, 1, 1], [], []>} : vector<144x32xbf16>, vector<32x128xbf16>, vector<144x128xf32> -> vector<144x128xf32>
    %33 = arith.addf %30, %32 : vector<144x128xf32>
    %34 = vector.broadcast %2 : vector<1x128xf32> to vector<144x128xf32>
    %35 = arith.addf %33, %34 : vector<144x128xf32>
    %36 = arith.negf %35 : vector<144x128xf32>
    %37 = math.exp %36 : vector<144x128xf32>
    %cst_16 = arith.constant 1.000000e+00 : f32
    %38 = vector.broadcast %cst_16 : f32 to vector<144x128xf32>
    %39 = arith.addf %38, %37 : vector<144x128xf32>
    %40 = arith.divf %38, %39 : vector<144x128xf32>
    %41 = vector.extract_strided_slice %40 {offsets = [0, 0], sizes = [144, 32], strides = [1, 1]} : vector<144x128xf32> to vector<144x32xf32>
    %42 = vector.extract_strided_slice %40 {offsets = [0, 32], sizes = [144, 32], strides = [1, 1]} : vector<144x128xf32> to vector<144x32xf32>
    %43 = vector.extract_strided_slice %40 {offsets = [0, 96], sizes = [144, 32], strides = [1, 1]} : vector<144x128xf32> to vector<144x32xf32>
    %44 = vector.extract_strided_slice %35 {offsets = [0, 64], sizes = [144, 32], strides = [1, 1]} : vector<144x128xf32> to vector<144x32xf32>
    %45 = math.tanh %44 : vector<144x32xf32>
    %46 = arith.mulf %42, %25 : vector<144x32xf32>
    %47 = arith.mulf %41, %45 : vector<144x32xf32>
    %48 = arith.addf %46, %47 : vector<144x32xf32>
    %49 = math.tanh %48 : vector<144x32xf32>
    %50 = arith.mulf %43, %49 : vector<144x32xf32>
    %c2 = arith.constant 2 : index
    %c0_17 = arith.constant 0 : index
    %c0_18 = arith.constant 0 : index
    %51 = vector.load %arg1[%c2, %c0_17, %c0_18] : memref<8x144x32xbf16, #tpu.memory_space<vmem>>, vector<1x144x32xbf16>
    %52 = vector.shape_cast %51 : vector<1x144x32xbf16> to vector<144x32xbf16>
    %cst_19 = arith.constant dense<0.000000e+00> : vector<144x128xf32>
    %53 = tpu.matmul %52, %0, %cst_19 {dimension_numbers = #tpu.dot_dimension_numbers<[1], [0], [0], [1], [0, 0, 1, 1], [], []>} : vector<144x32xbf16>, vector<32x128xbf16>, vector<144x128xf32> -> vector<144x128xf32>
    %54 = arith.truncf %50 : vector<144x32xf32> to vector<144x32xbf16>
    %cst_20 = arith.constant dense<0.000000e+00> : vector<144x128xf32>
    %55 = tpu.matmul %54, %1, %cst_20 {dimension_numbers = #tpu.dot_dimension_numbers<[1], [0], [0], [1], [0, 0, 1, 1], [], []>} : vector<144x32xbf16>, vector<32x128xbf16>, vector<144x128xf32> -> vector<144x128xf32>
    %56 = arith.addf %53, %55 : vector<144x128xf32>
    %57 = vector.broadcast %2 : vector<1x128xf32> to vector<144x128xf32>
    %58 = arith.addf %56, %57 : vector<144x128xf32>
    %59 = arith.negf %58 : vector<144x128xf32>
    %60 = math.exp %59 : vector<144x128xf32>
    %cst_21 = arith.constant 1.000000e+00 : f32
    %61 = vector.broadcast %cst_21 : f32 to vector<144x128xf32>
    %62 = arith.addf %61, %60 : vector<144x128xf32>
    %63 = arith.divf %61, %62 : vector<144x128xf32>
    %64 = vector.extract_strided_slice %63 {offsets = [0, 0], sizes = [144, 32], strides = [1, 1]} : vector<144x128xf32> to vector<144x32xf32>
    %65 = vector.extract_strided_slice %63 {offsets = [0, 32], sizes = [144, 32], strides = [1, 1]} : vector<144x128xf32> to vector<144x32xf32>
    %66 = vector.extract_strided_slice %63 {offsets = [0, 96], sizes = [144, 32], strides = [1, 1]} : vector<144x128xf32> to vector<144x32xf32>
    %67 = vector.extract_strided_slice %58 {offsets = [0, 64], sizes = [144, 32], strides = [1, 1]} : vector<144x128xf32> to vector<144x32xf32>
    %68 = math.tanh %67 : vector<144x32xf32>
    %69 = arith.mulf %65, %48 : vector<144x32xf32>
    %70 = arith.mulf %64, %68 : vector<144x32xf32>
    %71 = arith.addf %69, %70 : vector<144x32xf32>
    %72 = math.tanh %71 : vector<144x32xf32>
    %73 = arith.mulf %66, %72 : vector<144x32xf32>
    %c3 = arith.constant 3 : index
    %c0_22 = arith.constant 0 : index
    %c0_23 = arith.constant 0 : index
    %74 = vector.load %arg1[%c3, %c0_22, %c0_23] : memref<8x144x32xbf16, #tpu.memory_space<vmem>>, vector<1x144x32xbf16>
    %75 = vector.shape_cast %74 : vector<1x144x32xbf16> to vector<144x32xbf16>
    %cst_24 = arith.constant dense<0.000000e+00> : vector<144x128xf32>
    %76 = tpu.matmul %75, %0, %cst_24 {dimension_numbers = #tpu.dot_dimension_numbers<[1], [0], [0], [1], [0, 0, 1, 1], [], []>} : vector<144x32xbf16>, vector<32x128xbf16>, vector<144x128xf32> -> vector<144x128xf32>
    %77 = arith.truncf %73 : vector<144x32xf32> to vector<144x32xbf16>
    %cst_25 = arith.constant dense<0.000000e+00> : vector<144x128xf32>
    %78 = tpu.matmul %77, %1, %cst_25 {dimension_numbers = #tpu.dot_dimension_numbers<[1], [0], [0], [1], [0, 0, 1, 1], [], []>} : vector<144x32xbf16>, vector<32x128xbf16>, vector<144x128xf32> -> vector<144x128xf32>
    %79 = arith.addf %76, %78 : vector<144x128xf32>
    %80 = vector.broadcast %2 : vector<1x128xf32> to vector<144x128xf32>
    %81 = arith.addf %79, %80 : vector<144x128xf32>
    %82 = arith.negf %81 : vector<144x128xf32>
    %83 = math.exp %82 : vector<144x128xf32>
    %cst_26 = arith.constant 1.000000e+00 : f32
    %84 = vector.broadcast %cst_26 : f32 to vector<144x128xf32>
    %85 = arith.addf %84, %83 : vector<144x128xf32>
    %86 = arith.divf %84, %85 : vector<144x128xf32>
    %87 = vector.extract_strided_slice %86 {offsets = [0, 0], sizes = [144, 32], strides = [1, 1]} : vector<144x128xf32> to vector<144x32xf32>
    %88 = vector.extract_strided_slice %86 {offsets = [0, 32], sizes = [144, 32], strides = [1, 1]} : vector<144x128xf32> to vector<144x32xf32>
    %89 = vector.extract_strided_slice %86 {offsets = [0, 96], sizes = [144, 32], strides = [1, 1]} : vector<144x128xf32> to vector<144x32xf32>
    %90 = vector.extract_strided_slice %81 {offsets = [0, 64], sizes = [144, 32], strides = [1, 1]} : vector<144x128xf32> to vector<144x32xf32>
    %91 = math.tanh %90 : vector<144x32xf32>
    %92 = arith.mulf %88, %71 : vector<144x32xf32>
    %93 = arith.mulf %87, %91 : vector<144x32xf32>
    %94 = arith.addf %92, %93 : vector<144x32xf32>
    %95 = math.tanh %94 : vector<144x32xf32>
    %96 = arith.mulf %89, %95 : vector<144x32xf32>
    %c4 = arith.constant 4 : index
    %c0_27 = arith.constant 0 : index
    %c0_28 = arith.constant 0 : index
    %97 = vector.load %arg1[%c4, %c0_27, %c0_28] : memref<8x144x32xbf16, #tpu.memory_space<vmem>>, vector<1x144x32xbf16>
    %98 = vector.shape_cast %97 : vector<1x144x32xbf16> to vector<144x32xbf16>
    %cst_29 = arith.constant dense<0.000000e+00> : vector<144x128xf32>
    %99 = tpu.matmul %98, %0, %cst_29 {dimension_numbers = #tpu.dot_dimension_numbers<[1], [0], [0], [1], [0, 0, 1, 1], [], []>} : vector<144x32xbf16>, vector<32x128xbf16>, vector<144x128xf32> -> vector<144x128xf32>
    %100 = arith.truncf %96 : vector<144x32xf32> to vector<144x32xbf16>
    %cst_30 = arith.constant dense<0.000000e+00> : vector<144x128xf32>
    %101 = tpu.matmul %100, %1, %cst_30 {dimension_numbers = #tpu.dot_dimension_numbers<[1], [0], [0], [1], [0, 0, 1, 1], [], []>} : vector<144x32xbf16>, vector<32x128xbf16>, vector<144x128xf32> -> vector<144x128xf32>
    %102 = arith.addf %99, %101 : vector<144x128xf32>
    %103 = vector.broadcast %2 : vector<1x128xf32> to vector<144x128xf32>
    %104 = arith.addf %102, %103 : vector<144x128xf32>
    %105 = arith.negf %104 : vector<144x128xf32>
    %106 = math.exp %105 : vector<144x128xf32>
    %cst_31 = arith.constant 1.000000e+00 : f32
    %107 = vector.broadcast %cst_31 : f32 to vector<144x128xf32>
    %108 = arith.addf %107, %106 : vector<144x128xf32>
    %109 = arith.divf %107, %108 : vector<144x128xf32>
    %110 = vector.extract_strided_slice %109 {offsets = [0, 0], sizes = [144, 32], strides = [1, 1]} : vector<144x128xf32> to vector<144x32xf32>
    %111 = vector.extract_strided_slice %109 {offsets = [0, 32], sizes = [144, 32], strides = [1, 1]} : vector<144x128xf32> to vector<144x32xf32>
    %112 = vector.extract_strided_slice %109 {offsets = [0, 96], sizes = [144, 32], strides = [1, 1]} : vector<144x128xf32> to vector<144x32xf32>
    %113 = vector.extract_strided_slice %104 {offsets = [0, 64], sizes = [144, 32], strides = [1, 1]} : vector<144x128xf32> to vector<144x32xf32>
    %114 = math.tanh %113 : vector<144x32xf32>
    %115 = arith.mulf %111, %94 : vector<144x32xf32>
    %116 = arith.mulf %110, %114 : vector<144x32xf32>
    %117 = arith.addf %115, %116 : vector<144x32xf32>
    %118 = math.tanh %117 : vector<144x32xf32>
    %119 = arith.mulf %112, %118 : vector<144x32xf32>
    %c5 = arith.constant 5 : index
    %c0_32 = arith.constant 0 : index
    %c0_33 = arith.constant 0 : index
    %120 = vector.load %arg1[%c5, %c0_32, %c0_33] : memref<8x144x32xbf16, #tpu.memory_space<vmem>>, vector<1x144x32xbf16>
    %121 = vector.shape_cast %120 : vector<1x144x32xbf16> to vector<144x32xbf16>
    %cst_34 = arith.constant dense<0.000000e+00> : vector<144x128xf32>
    %122 = tpu.matmul %121, %0, %cst_34 {dimension_numbers = #tpu.dot_dimension_numbers<[1], [0], [0], [1], [0, 0, 1, 1], [], []>} : vector<144x32xbf16>, vector<32x128xbf16>, vector<144x128xf32> -> vector<144x128xf32>
    %123 = arith.truncf %119 : vector<144x32xf32> to vector<144x32xbf16>
    %cst_35 = arith.constant dense<0.000000e+00> : vector<144x128xf32>
    %124 = tpu.matmul %123, %1, %cst_35 {dimension_numbers = #tpu.dot_dimension_numbers<[1], [0], [0], [1], [0, 0, 1, 1], [], []>} : vector<144x32xbf16>, vector<32x128xbf16>, vector<144x128xf32> -> vector<144x128xf32>
    %125 = arith.addf %122, %124 : vector<144x128xf32>
    %126 = vector.broadcast %2 : vector<1x128xf32> to vector<144x128xf32>
    %127 = arith.addf %125, %126 : vector<144x128xf32>
    %128 = arith.negf %127 : vector<144x128xf32>
    %129 = math.exp %128 : vector<144x128xf32>
    %cst_36 = arith.constant 1.000000e+00 : f32
    %130 = vector.broadcast %cst_36 : f32 to vector<144x128xf32>
    %131 = arith.addf %130, %129 : vector<144x128xf32>
    %132 = arith.divf %130, %131 : vector<144x128xf32>
    %133 = vector.extract_strided_slice %132 {offsets = [0, 0], sizes = [144, 32], strides = [1, 1]} : vector<144x128xf32> to vector<144x32xf32>
    %134 = vector.extract_strided_slice %132 {offsets = [0, 32], sizes = [144, 32], strides = [1, 1]} : vector<144x128xf32> to vector<144x32xf32>
    %135 = vector.extract_strided_slice %132 {offsets = [0, 96], sizes = [144, 32], strides = [1, 1]} : vector<144x128xf32> to vector<144x32xf32>
    %136 = vector.extract_strided_slice %127 {offsets = [0, 64], sizes = [144, 32], strides = [1, 1]} : vector<144x128xf32> to vector<144x32xf32>
    %137 = math.tanh %136 : vector<144x32xf32>
    %138 = arith.mulf %134, %117 : vector<144x32xf32>
    %139 = arith.mulf %133, %137 : vector<144x32xf32>
    %140 = arith.addf %138, %139 : vector<144x32xf32>
    %141 = math.tanh %140 : vector<144x32xf32>
    %142 = arith.mulf %135, %141 : vector<144x32xf32>
    %c6 = arith.constant 6 : index
    %c0_37 = arith.constant 0 : index
    %c0_38 = arith.constant 0 : index
    %143 = vector.load %arg1[%c6, %c0_37, %c0_38] : memref<8x144x32xbf16, #tpu.memory_space<vmem>>, vector<1x144x32xbf16>
    %144 = vector.shape_cast %143 : vector<1x144x32xbf16> to vector<144x32xbf16>
    %cst_39 = arith.constant dense<0.000000e+00> : vector<144x128xf32>
    %145 = tpu.matmul %144, %0, %cst_39 {dimension_numbers = #tpu.dot_dimension_numbers<[1], [0], [0], [1], [0, 0, 1, 1], [], []>} : vector<144x32xbf16>, vector<32x128xbf16>, vector<144x128xf32> -> vector<144x128xf32>
    %146 = arith.truncf %142 : vector<144x32xf32> to vector<144x32xbf16>
    %cst_40 = arith.constant dense<0.000000e+00> : vector<144x128xf32>
    %147 = tpu.matmul %146, %1, %cst_40 {dimension_numbers = #tpu.dot_dimension_numbers<[1], [0], [0], [1], [0, 0, 1, 1], [], []>} : vector<144x32xbf16>, vector<32x128xbf16>, vector<144x128xf32> -> vector<144x128xf32>
    %148 = arith.addf %145, %147 : vector<144x128xf32>
    %149 = vector.broadcast %2 : vector<1x128xf32> to vector<144x128xf32>
    %150 = arith.addf %148, %149 : vector<144x128xf32>
    %151 = arith.negf %150 : vector<144x128xf32>
    %152 = math.exp %151 : vector<144x128xf32>
    %cst_41 = arith.constant 1.000000e+00 : f32
    %153 = vector.broadcast %cst_41 : f32 to vector<144x128xf32>
    %154 = arith.addf %153, %152 : vector<144x128xf32>
    %155 = arith.divf %153, %154 : vector<144x128xf32>
    %156 = vector.extract_strided_slice %155 {offsets = [0, 0], sizes = [144, 32], strides = [1, 1]} : vector<144x128xf32> to vector<144x32xf32>
    %157 = vector.extract_strided_slice %155 {offsets = [0, 32], sizes = [144, 32], strides = [1, 1]} : vector<144x128xf32> to vector<144x32xf32>
    %158 = vector.extract_strided_slice %155 {offsets = [0, 96], sizes = [144, 32], strides = [1, 1]} : vector<144x128xf32> to vector<144x32xf32>
    %159 = vector.extract_strided_slice %150 {offsets = [0, 64], sizes = [144, 32], strides = [1, 1]} : vector<144x128xf32> to vector<144x32xf32>
    %160 = math.tanh %159 : vector<144x32xf32>
    %161 = arith.mulf %157, %140 : vector<144x32xf32>
    %162 = arith.mulf %156, %160 : vector<144x32xf32>
    %163 = arith.addf %161, %162 : vector<144x32xf32>
    %164 = math.tanh %163 : vector<144x32xf32>
    %165 = arith.mulf %158, %164 : vector<144x32xf32>
    %c7 = arith.constant 7 : index
    %c0_42 = arith.constant 0 : index
    %c0_43 = arith.constant 0 : index
    %166 = vector.load %arg1[%c7, %c0_42, %c0_43] : memref<8x144x32xbf16, #tpu.memory_space<vmem>>, vector<1x144x32xbf16>
    %167 = vector.shape_cast %166 : vector<1x144x32xbf16> to vector<144x32xbf16>
    %cst_44 = arith.constant dense<0.000000e+00> : vector<144x128xf32>
    %168 = tpu.matmul %167, %0, %cst_44 {dimension_numbers = #tpu.dot_dimension_numbers<[1], [0], [0], [1], [0, 0, 1, 1], [], []>} : vector<144x32xbf16>, vector<32x128xbf16>, vector<144x128xf32> -> vector<144x128xf32>
    %169 = arith.truncf %165 : vector<144x32xf32> to vector<144x32xbf16>
    %cst_45 = arith.constant dense<0.000000e+00> : vector<144x128xf32>
    %170 = tpu.matmul %169, %1, %cst_45 {dimension_numbers = #tpu.dot_dimension_numbers<[1], [0], [0], [1], [0, 0, 1, 1], [], []>} : vector<144x32xbf16>, vector<32x128xbf16>, vector<144x128xf32> -> vector<144x128xf32>
    %171 = arith.addf %168, %170 : vector<144x128xf32>
    %172 = vector.broadcast %2 : vector<1x128xf32> to vector<144x128xf32>
    %173 = arith.addf %171, %172 : vector<144x128xf32>
    %174 = arith.negf %173 : vector<144x128xf32>
    %175 = math.exp %174 : vector<144x128xf32>
    %cst_46 = arith.constant 1.000000e+00 : f32
    %176 = vector.broadcast %cst_46 : f32 to vector<144x128xf32>
    %177 = arith.addf %176, %175 : vector<144x128xf32>
    %178 = arith.divf %176, %177 : vector<144x128xf32>
    %179 = vector.extract_strided_slice %178 {offsets = [0, 0], sizes = [144, 32], strides = [1, 1]} : vector<144x128xf32> to vector<144x32xf32>
    %180 = vector.extract_strided_slice %178 {offsets = [0, 32], sizes = [144, 32], strides = [1, 1]} : vector<144x128xf32> to vector<144x32xf32>
    %181 = vector.extract_strided_slice %178 {offsets = [0, 96], sizes = [144, 32], strides = [1, 1]} : vector<144x128xf32> to vector<144x32xf32>
    %182 = vector.extract_strided_slice %173 {offsets = [0, 64], sizes = [144, 32], strides = [1, 1]} : vector<144x128xf32> to vector<144x32xf32>
    %183 = math.tanh %182 : vector<144x32xf32>
    %184 = arith.mulf %180, %163 : vector<144x32xf32>
    %185 = arith.mulf %179, %183 : vector<144x32xf32>
    %186 = arith.addf %184, %185 : vector<144x32xf32>
    %187 = math.tanh %186 : vector<144x32xf32>
    %188 = arith.mulf %181, %187 : vector<144x32xf32>
    %c0_47 = arith.constant 0 : index
    %c0_48 = arith.constant 0 : index
    %189 = vector.load %arg5[%c0_47, %c0_48] : memref<1x32xf32, #tpu.memory_space<vmem>>, vector<1x32xf32>
    %190 = vector.broadcast %189 : vector<1x32xf32> to vector<144x32xf32>
    %191 = arith.mulf %188, %190 : vector<144x32xf32>
    %cst_49 = arith.constant dense<0.000000e+00> : vector<144xf32>
    %192 = vector.multi_reduction <add>, %191, %cst_49 [1] : vector<144x32xf32> to vector<144xf32>
    %193 = vector.shape_cast %192 : vector<144xf32> to vector<144x1xf32>
    %c0_50 = arith.constant 0 : index
    %c0_51 = arith.constant 0 : index
    %194 = vector.load %arg6[%c0_50, %c0_51] : memref<1x1xf32, #tpu.memory_space<vmem>>, vector<1x1xf32>
    %195 = vector.broadcast %194 : vector<1x1xf32> to vector<144x1xf32>
    %196 = arith.addf %193, %195 : vector<144x1xf32>
    %c0_52 = arith.constant 0 : index
    %c0_53 = arith.constant 0 : index
    %197 = vector.load %arg7[%c0_52, %c0_53] : memref<144x1xf32, #tpu.memory_space<vmem>>, vector<144x1xf32>
    tpu.vector_store %arg7[%c0_52, %c0_53], %196 {strides = array<i32>} : memref<144x1xf32, #tpu.memory_space<vmem>>, vector<144x1xf32>,
    return
  }
  func.func @transform_0(%arg0: i32) -> (i32, i32, i32) {
    %c0_i32 = arith.constant 0 : i32
    %c0_i32_0 = arith.constant 0 : i32
    %c0_i32_1 = arith.constant 0 : i32
    return %c0_i32, %arg0, %c0_i32_0 : i32, i32, i32
  }
  func.func @transform_1(%arg0: i32) -> (i32, i32) {
    %c0_i32 = arith.constant 0 : i32
    %c0_i32_0 = arith.constant 0 : i32
    %c0_i32_1 = arith.constant 0 : i32
    return %c0_i32, %c0_i32_0 : i32, i32
  }
  func.func @transform_2(%arg0: i32) -> (i32, i32) {
    %c0_i32 = arith.constant 0 : i32
    %c0_i32_0 = arith.constant 0 : i32
    %c0_i32_1 = arith.constant 0 : i32
    return %c0_i32, %c0_i32_0 : i32, i32
  }
  func.func @transform_3(%arg0: i32) -> (i32, i32) {
    %c0_i32 = arith.constant 0 : i32
    %c0_i32_0 = arith.constant 0 : i32
    %c0_i32_1 = arith.constant 0 : i32
    return %c0_i32, %c0_i32_0 : i32, i32
  }
  func.func @transform_4(%arg0: i32) -> (i32, i32) {
    %c0_i32 = arith.constant 0 : i32
    %c0_i32_0 = arith.constant 0 : i32
    %c0_i32_1 = arith.constant 0 : i32
    return %c0_i32, %c0_i32_0 : i32, i32
  }
  func.func @transform_5(%arg0: i32) -> (i32, i32) {
    %c0_i32 = arith.constant 0 : i32
    %c0_i32_0 = arith.constant 0 : i32
    %c0_i32_1 = arith.constant 0 : i32
    return %c0_i32, %c0_i32_0 : i32, i32
  }
  func.func @transform_6(%arg0: i32) -> (i32, i32) {
    %c0_i32 = arith.constant 0 : i32
    %c0_i32_0 = arith.constant 0 : i32
    return %arg0, %c0_i32 : i32, i32
  }
}

</mosaic_0001>

<llo_original>
// kernel: squeeze.6
$region0: #{squeeze.6}
  %s0 = inlined_call_operand.vmem [shape: f32[288], index: 0, kind: input, shape index: {}]
  %s1 = inlined_call_operand.vmem [shape: f32[9,32], index: 1, kind: output, shape index: {}]
  $region1: #{squeeze.6} parent=0
    #allocation0 [shape = 'u8[4096]{0}', space=vmem, size = 0x1000, scoped, tag = 'scoped mem for input reshape']
    %s3 = sshll.u32 1, 4
    %s4 = ssub.s32 %s3, 1
    %v5 = vld [vmem:[%s0] sm:%s4]
    %6 = vst [vmem:[#allocation0] sm:%s4] %v5
    %v7 = vld [vmem:[#allocation0] sm:$0x7]
    %vm8 = vcmask 261120
    %9 = vst.msk [vmem:[%s1] ss:$4 sm:$0x7] %vm8, %v7
    %v10 = vld [vmem:[#allocation0] sm:$0x3]
    %11 = vrot.lane.b32.xlu0 %v10, 96
    %v12 = vpop.permute.xlu0 %11
    %vm13 = vcmask 261120
    %s14 = scalar_lea.vmem %s1, 1
    %15 = vst.msk [vmem:[%s14] ss:$4 sm:$0x3] %vm13, %v12
    %v16 = vld [vmem:[#allocation0] sm:$0x3]
    %17 = vrot.lane.b32.xlu0 %v16, 64
    %v18 = vpop.permute.xlu0 %17
    %vm19 = vcmask 261120
    %s20 = scalar_lea.vmem %s1, 2
    %21 = vst.msk [vmem:[%s20] ss:$4 sm:$0x3] %vm19, %v18
    %v22 = vld [vmem:[#allocation0] sm:$0x3]
    %23 = vrot.lane.b32.xlu0 %v22, 32
    %v24 = vpop.permute.xlu0 %23
    %vm25 = vcmask 261120
    %s26 = scalar_lea.vmem %s1, 3
    %27 = vst.msk [vmem:[%s26] ss:$4 sm:$0x3] %vm25, %v24

// kernel: model_logits_and_std.1
$region0: #{model_logits_and_std.1}
  #allocation0 [shape = 'u32[]', space=smem, size = 0x4, offset = 0x4, fixed_abs, tag = 'smem constant byte address 0x4 - core index']
  #allocation1 [shape = 'u32[144,128]{1,0:T(1,128)}', space=vmem, size = 0x12000, scoped, tag = 'internal scratch']
  #allocation2 [shape = 'f32[1,1]{1,0:T(1,128)S(1)}', space=vmem, size = 0x200, scoped, tag = 'scoped memory for model_logits_and_std.1']
  %s0 = inlined_call_operand.vmem [shape: bf16[8,288,32], index: 0, kind: input, shape index: {}]
  %s1 = inlined_call_operand.vmem [shape: bf16[32,128], index: 1, kind: input, shape index: {}]
  %s2 = inlined_call_operand.vmem [shape: bf16[32,128], index: 2, kind: input, shape index: {}]
  %s3 = inlined_call_operand.vmem [shape: f32[1,128], index: 3, kind: input, shape index: {}]
  %s4 = inlined_call_operand.vmem [shape: f32[1,32], index: 4, kind: input, shape index: {}]
  %s5 = inlined_call_operand.<no memory space> [shape: f32[1,1], index: 5, kind: input, shape index: {}]
  %s6 = inlined_call_operand.vmem [shape: f32[288,1], index: 6, kind: output, shape index: {}]
  %s7 = sld [smem:[#allocation0]]
  $region98: #{model_logits_and_std.1} parent=0
    _
  %s9 = ssub.s32 1, %s7
  %s10 = scalar_select 0, %s9, %s7
  %v11 = vstv %s5
  %12 = vst [vmem:[#allocation2] sm:$0x1] %v11
  $region1: #{model_logits_and_std.1} parent=0
    #allocation3 [shape = 'u8[589824]{0}', space=vmem, size = 0x90000, scoped, tag = 'input window, operand 0']
    loop: start=0, step=1, limit=4
    $region2: #{model_logits_and_std.1} parent=1 // loop_pre_header
      _
    $region3: #{model_logits_and_std.1} parent=1 // loop_header
      %s14 = sphi 0, %s18
      %p15 = scmp.ge.s32.totalorder %s14, 4
      %s24 = sphi 0, %s26
      %s27 = sphi 0, %s24
      %s28 = sphi 0, %s27
      %s44 = sphi 0, %s28
      %s48 = sphi 0, %s48
      %s50 = sphi 0, %s48
      %s51 = sphi 0, %s50
      %s65 = sphi 0, %s51
      %s69 = sphi 0, %s69
      %s71 = sphi 0, %s69
      %s72 = sphi 0, %s71
      %s86 = sphi 0, %s72
      %s90 = sphi 0, %s90
      %s92 = sphi 0, %s90
      %s93 = sphi 0, %s92
      %s107 = sphi 0, %s93
      %s111 = sphi 0, %s111
      %s113 = sphi 0, %s111
      %s114 = sphi 0, %s113
      %s128 = sphi 0, %s114
      %s132 = sphi 0, %s132
      %s134 = sphi 0, %s132
      %s135 = sphi 0, %s134
      %s149 = sphi 0, %s135
      %s155 = sphi 0, %s157
      %s158 = sphi 0, %s155
      %s159 = sphi 0, %s158
      %s175 = sphi 0, %s159
    $region4: #{model_logits_and_std.1} parent=1 // loop_header_branch
      %17 = sbr.rel (%p15) target = $region8
    $region5: #{model_logits_and_std.1} parent=1 // loop_body
      %s19 = ssub.s32 %s14, 1
      %s20 = ssub.s32 %s14, 2
      %s21 = sadd.s32 %s14, 1
      %s22 = ssub.s32 %s14, %s21
      %p23 = scmp.eq.s32.totalorder %s22, 0
      %s25 = sadd.s32 %s24, 1
      %s26 = scalar_select %p23, %s24, %s25
      %p29 = pneg %p23
      %p30 = scmp.eq.s32.totalorder %s14, 1
      %p31 = por %p29, %p30
      %p32 = scmp.ne.s32.totalorder %s24, %s27
      %p33 = scmp.eq.s32.totalorder %s14, 0
      %p34 = por %p32, %p33
      %p35 = scmp.ne.s32.totalorder %s24, %s27
      %p36 = scmp.eq.s32.totalorder %s19, 1
      %p37 = por %p35, %p36
      %p38 = scmp.ne.s32.totalorder %s27, %s28
      %p39 = scmp.eq.s32.totalorder %s19, 0
      %p40 = por %p38, %p39
      %p41 = scmp.ne.s32.totalorder %s27, %s28
      %p42 = scmp.eq.s32.totalorder %s20, 1
      %p43 = por %p41, %p42
      %p45 = scmp.ne.s32.totalorder %s28, %s44
      %p46 = scmp.eq.s32.totalorder %s20, 0
      %p47 = por %p45, %p46
      %s49 = sadd.s32 %s48, 1
      %p52 = scmp.eq.s32.totalorder %s14, 1
      %p53 = scmp.ne.s32.totalorder %s48, %s50
      %p54 = scmp.eq.s32.totalorder %s14, 0
      %p55 = por %p53, %p54
      %p56 = scmp.ne.s32.totalorder %s48, %s50
      %p57 = scmp.eq.s32.totalorder %s19, 1
      %p58 = por %p56, %p57
      %p59 = scmp.ne.s32.totalorder %s50, %s51
      %p60 = scmp.eq.s32.totalorder %s19, 0
      %p61 = por %p59, %p60
      %p62 = scmp.ne.s32.totalorder %s50, %s51
      %p63 = scmp.eq.s32.totalorder %s20, 1
      %p64 = por %p62, %p63
      %p66 = scmp.ne.s32.totalorder %s51, %s65
      %p67 = scmp.eq.s32.totalorder %s20, 0
      %p68 = por %p66, %p67
      %s70 = sadd.s32 %s69, 1
      %p73 = scmp.eq.s32.totalorder %s14, 1
      %p74 = scmp.ne.s32.totalorder %s69, %s71
      %p75 = scmp.eq.s32.totalorder %s14, 0
      %p76 = por %p74, %p75
      %p77 = scmp.ne.s32.totalorder %s69, %s71
      %p78 = scmp.eq.s32.totalorder %s19, 1
      %p79 = por %p77, %p78
      %p80 = scmp.ne.s32.totalorder %s71, %s72
      %p81 = scmp.eq.s32.totalorder %s19, 0
      %p82 = por %p80, %p81
      %p83 = scmp.ne.s32.totalorder %s71, %s72
      %p84 = scmp.eq.s32.totalorder %s20, 1
      %p85 = por %p83, %p84
      %p87 = scmp.ne.s32.totalorder %s72, %s86
      %p88 = scmp.eq.s32.totalorder %s20, 0
      %p89 = por %p87, %p88
      %s91 = sadd.s32 %s90, 1
      %p94 = scmp.eq.s32.totalorder %s14, 1
      %p95 = scmp.ne.s32.totalorder %s90, %s92
      %p96 = scmp.eq.s32.totalorder %s14, 0
      %p97 = por %p95, %p96
      %p98 = scmp.ne.s32.totalorder %s90, %s92
      %p99 = scmp.eq.s32.totalorder %s19, 1
      %p100 = por %p98, %p99
      %p101 = scmp.ne.s32.totalorder %s92, %s93
      %p102 = scmp.eq.s32.totalorder %s19, 0
      %p103 = por %p101, %p102
      %p104 = scmp.ne.s32.totalorder %s92, %s93
      %p105 = scmp.eq.s32.totalorder %s20, 1
      %p106 = por %p104, %p105
      %p108 = scmp.ne.s32.totalorder %s93, %s107
      %p109 = scmp.eq.s32.totalorder %s20, 0
      %p110 = por %p108, %p109
      %s112 = sadd.s32 %s111, 1
      %p115 = scmp.eq.s32.totalorder %s14, 1
      %p116 = scmp.ne.s32.totalorder %s111, %s113
      %p117 = scmp.eq.s32.totalorder %s14, 0
      %p118 = por %p116, %p117
      %p119 = scmp.ne.s32.totalorder %s111, %s113
      %p120 = scmp.eq.s32.totalorder %s19, 1
      %p121 = por %p119, %p120
      %p122 = scmp.ne.s32.totalorder %s113, %s114
      %p123 = scmp.eq.s32.totalorder %s19, 0
      %p124 = por %p122, %p123
      %p125 = scmp.ne.s32.totalorder %s113, %s114
      %p126 = scmp.eq.s32.totalorder %s20, 1
      %p127 = por %p125, %p126
      %p129 = scmp.ne.s32.totalorder %s114, %s128
      %p130 = scmp.eq.s32.totalorder %s20, 0
      %p131 = por %p129, %p130
      %s133 = sadd.s32 %s132, 1
      %p136 = scmp.eq.s32.totalorder %s14, 1
      %p137 = scmp.ne.s32.totalorder %s132, %s134
      %p138 = scmp.eq.s32.totalorder %s14, 0
      %p139 = por %p137, %p138
      %p140 = scmp.ne.s32.totalorder %s132, %s134
      %p141 = scmp.eq.s32.totalorder %s19, 1
      %p142 = por %p140, %p141
      %p143 = scmp.ne.s32.totalorder %s134, %s135
      %p144 = scmp.eq.s32.totalorder %s19, 0
      %p145 = por %p143, %p144
      %p146 = scmp.ne.s32.totalorder %s134, %s135
      %p147 = scmp.eq.s32.totalorder %s20, 1
      %p148 = por %p146, %p147
      %p150 = scmp.ne.s32.totalorder %s135, %s149
      %p151 = scmp.eq.s32.totalorder %s20, 0
      %p152 = por %p150, %p151
      %s153 = ssub.s32 %s14, %s21
      %p154 = scmp.eq.s32.totalorder %s153, 0
      %s156 = sadd.s32 %s155, 1
      %s157 = scalar_select %p154, %s155, %s156
      %p160 = pneg %p154
      %p161 = scmp.eq.s32.totalorder %s14, 1
      %p162 = por %p160, %p161
      %p163 = scmp.ne.s32.totalorder %s155, %s158
      %p164 = scmp.eq.s32.totalorder %s14, 0
      %p165 = por %p163, %p164
      %p166 = scmp.ne.s32.totalorder %s155, %s158
      %p167 = scmp.eq.s32.totalorder %s19, 1
      %p168 = por %p166, %p167
      %p169 = scmp.ne.s32.totalorder %s158, %s159
      %p170 = scmp.eq.s32.totalorder %s19, 0
      %p171 = por %p169, %p170
      %p172 = scmp.ne.s32.totalorder %s158, %s159
      %p173 = scmp.eq.s32.totalorder %s20, 1
      %p174 = por %p172, %p173
      %p176 = scmp.ne.s32.totalorder %s159, %s175
      %p177 = scmp.eq.s32.totalorder %s20, 0
      %p178 = por %p176, %p177
      %p179 = scmp.le.s32.totalorder 1, %s14
      %p180 = scmp.lt.s32.totalorder %s14, 3
      %p181 = pnand %p179, %p180
      %p182 = pneg %p181
      // Predicated region
      $region9: #{model_logits_and_std.1} parent=5 // pred_check
        _
      $region10: #{model_logits_and_std.1} parent=5 // pred_check_branch
        %184 = sbr.rel (%p181) target = $region12
      $region11: #{model_logits_and_std.1} parent=5 // pred_region
        %s185 = ssub.s32 %s14, 1
        // Predicated region
        $region13: #{model_logits_and_std.1} parent=11 // pred_check
          %p186 = pneg %p61
        $region14: #{model_logits_and_std.1} parent=11 // pred_check_branch
          %188 = sbr.rel (%p186) target = $region16
        $region15: #{model_logits_and_std.1} parent=11 // pred_region
          _
        $region16: #{model_logits_and_std.1} parent=11 // pred_fallthru
          _
        // Predicated region
        $region17: #{model_logits_and_std.1} parent=11 // pred_check
          %p189 = pneg %p82
        $region18: #{model_logits_and_std.1} parent=11 // pred_check_branch
          %191 = sbr.rel (%p189) target = $region20
        $region19: #{model_logits_and_std.1} parent=11 // pred_region
          _
        $region20: #{model_logits_and_std.1} parent=11 // pred_fallthru
          _
        // Predicated region
        $region21: #{model_logits_and_std.1} parent=11 // pred_check
          %p192 = pneg %p103
        $region22: #{model_logits_and_std.1} parent=11 // pred_check_branch
          %194 = sbr.rel (%p192) target = $region24
        $region23: #{model_logits_and_std.1} parent=11 // pred_region
          _
        $region24: #{model_logits_and_std.1} parent=11 // pred_fallthru
          _
        // Predicated region
        $region25: #{model_logits_and_std.1} parent=11 // pred_check
          %p195 = pneg %p124
        $region26: #{model_logits_and_std.1} parent=11 // pred_check_branch
          %197 = sbr.rel (%p195) target = $region28
        $region27: #{model_logits_and_std.1} parent=11 // pred_region
          _
        $region28: #{model_logits_and_std.1} parent=11 // pred_fallthru
          _
        // Predicated region
        $region29: #{model_logits_and_std.1} parent=11 // pred_check
          %p198 = pneg %p145
        $region30: #{model_logits_and_std.1} parent=11 // pred_check_branch
          %200 = sbr.rel (%p198) target = $region32
        $region31: #{model_logits_and_std.1} parent=11 // pred_region
          _
        $region32: #{model_logits_and_std.1} parent=11 // pred_fallthru
          _
      $region12: #{model_logits_and_std.1} parent=5 // pred_fallthru
        _
      %p201 = scmp.lt.s32.totalorder %s14, 2
      // Predicated region
      $region33: #{model_logits_and_std.1} parent=5 // pred_check
        %p202 = pneg %p201
      $region34: #{model_logits_and_std.1} parent=5 // pred_check_branch
        %204 = sbr.rel (%p202) target = $region36
      $region35: #{model_logits_and_std.1} parent=5 // pred_region
        // Predicated region
        $region37: #{model_logits_and_std.1} parent=35 // pred_check
          %p205 = pneg %p34
        $region38: #{model_logits_and_std.1} parent=35 // pred_check_branch
          %207 = sbr.rel (%p205) target = $region40
        $region39: #{model_logits_and_std.1} parent=35 // pred_region
          %s208 = sand.u32 %s24, 1
          %s209 = sand.u32 %s24, 1
          %s210 = smul.addr %s209, 576
          %s211 = scalar_lea.vmem [#allocation3], %s210
          %s212 = smul.u32 18, %s14
          %s213 = smul.addr %s212, 4
          %s214 = scalar_lea.vmem %s0, %s213
          // Predicated region
          $region41: #{model_logits_and_std.1} parent=39 // pred_check
            _
          $region42: #{model_logits_and_std.1} parent=39 // pred_check_branch
            %216 = sbr.rel (0) target = $region44
          $region43: #{model_logits_and_std.1} parent=39 // pred_region
            // Predicated region
            $region45: #{model_logits_and_std.1} parent=43 // pred_check
              _
            $region46: #{model_logits_and_std.1} parent=43 // pred_check_branch
              %218 = sbr.rel target = $region48
            $region47: #{model_logits_and_std.1} parent=43 // pred_region
              // Predicated region
              $region60: #{model_logits_and_std.1} parent=47 // pred_check
                _
              $region61: #{model_logits_and_std.1} parent=47 // pred_check_branch
                %520 = sbr.rel (0) target = $region63
              $region62: #{model_logits_and_std.1} parent=47 // pred_region
                loop: start=0, step=1, limit=1
                $region64: #{model_logits_and_std.1} parent=62 // loop_pre_header
                  _
                $region65: #{model_logits_and_std.1} parent=62 // loop_header
                  %s522 = sphi 0, %s526
                  %p523 = scmp.ge.s32.totalorder %s522, 1
                  %s527 = sphi %s214, %s214
                  %s528 = sphi %s211, %s211
                $region66: #{model_logits_and_std.1} parent=62 // loop_header_branch
                  %525 = sbr.rel (%p523) target = $region70
                $region67: #{model_logits_and_std.1} parent=62 // loop_body
                  _
                $region68: #{model_logits_and_std.1} parent=62 // loop_footer
                  %s526 = sadd.s32 1, %s522
                $region69: #{model_logits_and_std.1} parent=62 // loop_footer_branch
                  %521 = sbr.rel target = $region65
                $region70: #{model_logits_and_std.1} parent=62 // loop_exit
                  _
                %s530 = ssub.s32 16, 1
                loop: start=0, step=1, limit=1
                $region71: #{model_logits_and_std.1} parent=62 // loop_pre_header
                  _
                $region72: #{model_logits_and_std.1} parent=62 // loop_header
                  %s532 = sphi 0, %s536
                  %p533 = scmp.ge.s32.totalorder %s532, 1
                  %s537 = sphi %s214, %s214
                  %s538 = sphi %s211, %s211
                $region73: #{model_logits_and_std.1} parent=62 // loop_header_branch
                  %535 = sbr.rel (%p533) target = $region77
                $region74: #{model_logits_and_std.1} parent=62 // loop_body
                  %v539 = vld [vmem:[%s537] sm:%s530]
                  %540 = vst [vmem:[%s538] sm:%s530] %v539
                  %v541 = vld [vmem:[%s537 + $0x4] sm:%s530]
                  %542 = vst [vmem:[%s538 + $0x4] sm:%s530] %v541
                  %v543 = vld [vmem:[%s537 + $0x8] sm:%s530]
                  %544 = vst [vmem:[%s538 + $0x8] sm:%s530] %v543
                  %v545 = vld [vmem:[%s537 + $0xc] sm:%s530]
                  %546 = vst [vmem:[%s538 + $0xc] sm:%s530] %v545
                  %v547 = vld [vmem:[%s537 + $0x10] sm:%s530]
                  %548 = vst [vmem:[%s538 + $0x10] sm:%s530] %v547
                  %v549 = vld [vmem:[%s537 + $0x14] sm:%s530]
                  %550 = vst [vmem:[%s538 + $0x14] sm:%s530] %v549
                  %v551 = vld [vmem:[%s537 + $0x18] sm:%s530]
                  %552 = vst [vmem:[%s538 + $0x18] sm:%s530] %v551
                  %v553 = vld [vmem:[%s537 + $0x1c] sm:%s530]
                  %554 = vst [vmem:[%s538 + $0x1c] sm:%s530] %v553
                  %v555 = vld [vmem:[%s537 + $0x20] sm:%s530]
                  %556 = vst [vmem:[%s538 + $0x20] sm:%s530] %v555
                  %v557 = vld [vmem:[%s537 + $0x24] sm:%s530]
                  %558 = vst [vmem:[%s538 + $0x24] sm:%s530] %v557
                  %v559 = vld [vmem:[%s537 + $0x28] sm:%s530]
                  %560 = vst [vmem:[%s538 + $0x28] sm:%s530] %v559
                  %v561 = vld [vmem:[%s537 + $0x2c] sm:%s530]
                  %562 = vst [vmem:[%s538 + $0x2c] sm:%s530] %v561
                  %v563 = vld [vmem:[%s537 + $0x30] sm:%s530]
                  %564 = vst [vmem:[%s538 + $0x30] sm:%s530] %v563
                  %v565 = vld [vmem:[%s537 + $0x34] sm:%s530]
                  %566 = vst [vmem:[%s538 + $0x34] sm:%s530] %v565
                  %v567 = vld [vmem:[%s537 + $0x38] sm:%s530]
                  %568 = vst [vmem:[%s538 + $0x38] sm:%s530] %v567
                  %v569 = vld [vmem:[%s537 + $0x3c] sm:%s530]
                  %570 = vst [vmem:[%s538 + $0x3c] sm:%s530] %v569
                  %v571 = vld [vmem:[%s537 + $0x40] sm:%s530]
                  %572 = vst [vmem:[%s538 + $0x40] sm:%s530] %v571
                  %v573 = vld [vmem:[%s537 + $0x44] sm:%s530]
                  %574 = vst [vmem:[%s538 + $0x44] sm:%s530] %v573
                  %v575 = vld [vmem:[%s537 + $0x90] sm:%s530]
                  %576 = vst [vmem:[%s538 + $0x48] sm:%s530] %v575
                  %v577 = vld [vmem:[%s537 + $0x94] sm:%s530]
                  %578 = vst [vmem:[%s538 + $0x4c] sm:%s530] %v577
                  %v579 = vld [vmem:[%s537 + $0x98] sm:%s530]
                  %580 = vst [vmem:[%s538 + $0x50] sm:%s530] %v579
                  %v581 = vld [vmem:[%s537 + $0x9c] sm:%s530]
                  %582 = vst [vmem:[%s538 + $0x54] sm:%s530] %v581
                  %v583 = vld [vmem:[%s537 + $0xa0] sm:%s530]
                  %584 = vst [vmem:[%s538 + $0x58] sm:%s530] %v583
                  %v585 = vld [vmem:[%s537 + $0xa4] sm:%s530]
                  %586 = vst [vmem:[%s538 + $0x5c] sm:%s530] %v585
                  %v587 = vld [vmem:[%s537 + $0xa8] sm:%s530]
                  %588 = vst [vmem:[%s538 + $0x60] sm:%s530] %v587
                  %v589 = vld [vmem:[%s537 + $0xac] sm:%s530]
                  %590 = vst [vmem:[%s538 + $0x64] sm:%s530] %v589
                  %v591 = vld [vmem:[%s537 + $0xb0] sm:%s530]
                  %592 = vst [vmem:[%s538 + $0x68] sm:%s530] %v591
                  %v593 = vld [vmem:[%s537 + $0xb4] sm:%s530]
                  %594 = vst [vmem:[%s538 + $0x6c] sm:%s530] %v593
                  %v595 = vld [vmem:[%s537 + $0xb8] sm:%s530]
                  %596 = vst [vmem:[%s538 + $0x70] sm:%s530] %v595
                  %v597 = vld [vmem:[%s537 + $0xbc] sm:%s530]
                  %598 = vst [vmem:[%s538 + $0x74] sm:%s530] %v597
                  %v599 = vld [vmem:[%s537 + $0xc0] sm:%s530]
                  %600 = vst [vmem:[%s538 + $0x78] sm:%s530] %v599
                  %v601 = vld [vmem:[%s537 + $0xc4] sm:%s530]
                  %602 = vst [vmem:[%s538 + $0x7c] sm:%s530] %v601
                  %v603 = vld [vmem:[%s537 + $0xc8] sm:%s530]
                  %604 = vst [vmem:[%s538 + $0x80] sm:%s530] %v603
                  %v605 = vld [vmem:[%s537 + $0xcc] sm:%s530]
                  %606 = vst [vmem:[%s538 + $0x84] sm:%s530] %v605
                  %v607 = vld [vmem:[%s537 + $0xd0] sm:%s530]
                  %608 = vst [vmem:[%s538 + $0x88] sm:%s530] %v607
                  %v609 = vld [vmem:[%s537 + $0xd4] sm:%s530]
                  %610 = vst [vmem:[%s538 + $0x8c] sm:%s530] %v609
                  %v611 = vld [vmem:[%s537 + $0x120] sm:%s530]
                  %612 = vst [vmem:[%s538 + $0x90] sm:%s530] %v611
                  %v613 = vld [vmem:[%s537 + $0x124] sm:%s530]
                  %614 = vst [vmem:[%s538 + $0x94] sm:%s530] %v613
                  %v615 = vld [vmem:[%s537 + $0x128] sm:%s530]
                  %616 = vst [vmem:[%s538 + $0x98] sm:%s530] %v615
                  %v617 = vld [vmem:[%s537 + $0x12c] sm:%s530]
                  %618 = vst [vmem:[%s538 + $0x9c] sm:%s530] %v617
                  %v619 = vld [vmem:[%s537 + $0x130] sm:%s530]
                  %620 = vst [vmem:[%s538 + $0xa0] sm:%s530] %v619
                  %v621 = vld [vmem:[%s537 + $0x134] sm:%s530]
                  %622 = vst [vmem:[%s538 + $0xa4] sm:%s530] %v621
                  %v623 = vld [vmem:[%s537 + $0x138] sm:%s530]
                  %624 = vst [vmem:[%s538 + $0xa8] sm:%s530] %v623
                  %v625 = vld [vmem:[%s537 + $0x13c] sm:%s530]
                  %626 = vst [vmem:[%s538 + $0xac] sm:%s530] %v625
                  %v627 = vld [vmem:[%s537 + $0x140] sm:%s530]
                  %628 = vst [vmem:[%s538 + $0xb0] sm:%s530] %v627
                  %v629 = vld [vmem:[%s537 + $0x144] sm:%s530]
                  %630 = vst [vmem:[%s538 + $0xb4] sm:%s530] %v629
                  %v631 = vld [vmem:[%s537 + $0x148] sm:%s530]
                  %632 = vst [vmem:[%s538 + $0xb8] sm:%s530] %v631
                  %v633 = vld [vmem:[%s537 + $0x14c] sm:%s530]
                  %634 = vst [vmem:[%s538 + $0xbc] sm:%s530] %v633
                  %v635 = vld [vmem:[%s537 + $0x150] sm:%s530]
                  %636 = vst [vmem:[%s538 + $0xc0] sm:%s530] %v635
                  %v637 = vld [vmem:[%s537 + $0x154] sm:%s530]
                  %638 = vst [vmem:[%s538 + $0xc4] sm:%s530] %v637
                  %v639 = vld [vmem:[%s537 + $0x158] sm:%s530]
                  %640 = vst [vmem:[%s538 + $0xc8] sm:%s530] %v639
                  %v641 = vld [vmem:[%s537 + $0x15c] sm:%s530]
                  %642 = vst [vmem:[%s538 + $0xcc] sm:%s530] %v641
                  %v643 = vld [vmem:[%s537 + $0x160] sm:%s530]
                  %644 = vst [vmem:[%s538 + $0xd0] sm:%s530] %v643
                  %v645 = vld [vmem:[%s537 + $0x164] sm:%s530]
                  %646 = vst [vmem:[%s538 + $0xd4] sm:%s530] %v645
                  %v647 = vld [vmem:[%s537 + $0x1b0] sm:%s530]
                  %648 = vst [vmem:[%s538 + $0xd8] sm:%s530] %v647
                  %v649 = vld [vmem:[%s537 + $0x1b4] sm:%s530]
                  %650 = vst [vmem:[%s538 + $0xdc] sm:%s530] %v649
                  %v651 = vld [vmem:[%s537 + $0x1b8] sm:%s530]
                  %652 = vst [vmem:[%s538 + $0xe0] sm:%s530] %v651
                  %v653 = vld [vmem:[%s537 + $0x1bc] sm:%s530]
                  %654 = vst [vmem:[%s538 + $0xe4] sm:%s530] %v653
                  %v655 = vld [vmem:[%s537 + $0x1c0] sm:%s530]
                  %656 = vst [vmem:[%s538 + $0xe8] sm:%s530] %v655
                  %v657 = vld [vmem:[%s537 + $0x1c4] sm:%s530]
                  %658 = vst [vmem:[%s538 + $0xec] sm:%s530] %v657
                  %v659 = vld [vmem:[%s537 + $0x1c8] sm:%s530]
                  %660 = vst [vmem:[%s538 + $0xf0] sm:%s530] %v659
                  %v661 = vld [vmem:[%s537 + $0x1cc] sm:%s530]
                  %662 = vst [vmem:[%s538 + $0xf4] sm:%s530] %v661
                  %v663 = vld [vmem:[%s537 + $0x1d0] sm:%s530]
                  %664 = vst [vmem:[%s538 + $0xf8] sm:%s530] %v663
                  %v665 = vld [vmem:[%s537 + $0x1d4] sm:%s530]
                  %666 = vst [vmem:[%s538 + $0xfc] sm:%s530] %v665
                  %v667 = vld [vmem:[%s537 + $0x1d8] sm:%s530]
                  %668 = vst [vmem:[%s538 + $0x100] sm:%s530] %v667
                  %v669 = vld [vmem:[%s537 + $0x1dc] sm:%s530]
                  %670 = vst [vmem:[%s538 + $0x104] sm:%s530] %v669
                  %v671 = vld [vmem:[%s537 + $0x1e0] sm:%s530]
                  %672 = vst [vmem:[%s538 + $0x108] sm:%s530] %v671
                  %v673 = vld [vmem:[%s537 + $0x1e4] sm:%s530]
                  %674 = vst [vmem:[%s538 + $0x10c] sm:%s530] %v673
                  %v675 = vld [vmem:[%s537 + $0x1e8] sm:%s530]
                  %676 = vst [vmem:[%s538 + $0x110] sm:%s530] %v675
                  %v677 = vld [vmem:[%s537 + $0x1ec] sm:%s530]
                  %678 = vst [vmem:[%s538 + $0x114] sm:%s530] %v677
                  %v679 = vld [vmem:[%s537 + $0x1f0] sm:%s530]
                  %680 = vst [vmem:[%s538 + $0x118] sm:%s530] %v679
                  %v681 = vld [vmem:[%s537 + $0x1f4] sm:%s530]
                  %682 = vst [vmem:[%s538 + $0x11c] sm:%s530] %v681
                  %v683 = vld [vmem:[%s537 + $0x240] sm:%s530]
                  %684 = vst [vmem:[%s538 + $0x120] sm:%s530] %v683
                  %v685 = vld [vmem:[%s537 + $0x244] sm:%s530]
                  %686 = vst [vmem:[%s538 + $0x124] sm:%s530] %v685
                  %v687 = vld [vmem:[%s537 + $0x248] sm:%s530]
                  %688 = vst [vmem:[%s538 + $0x128] sm:%s530] %v687
                  %v689 = vld [vmem:[%s537 + $0x24c] sm:%s530]
                  %690 = vst [vmem:[%s538 + $0x12c] sm:%s530] %v689
                  %v691 = vld [vmem:[%s537 + $0x250] sm:%s530]
                  %692 = vst [vmem:[%s538 + $0x130] sm:%s530] %v691
                  %v693 = vld [vmem:[%s537 + $0x254] sm:%s530]
                  %694 = vst [vmem:[%s538 + $0x134] sm:%s530] %v693
                  %v695 = vld [vmem:[%s537 + $0x258] sm:%s530]
                  %696 = vst [vmem:[%s538 + $0x138] sm:%s530] %v695
                  %v697 = vld [vmem:[%s537 + $0x25c] sm:%s530]
                  %698 = vst [vmem:[%s538 + $0x13c] sm:%s530] %v697
                  %v699 = vld [vmem:[%s537 + $0x260] sm:%s530]
                  %700 = vst [vmem:[%s538 + $0x140] sm:%s530] %v699
                  %v701 = vld [vmem:[%s537 + $0x264] sm:%s530]
                  %702 = vst [vmem:[%s538 + $0x144] sm:%s530] %v701
                  %v703 = vld [vmem:[%s537 + $0x268] sm:%s530]
                  %704 = vst [vmem:[%s538 + $0x148] sm:%s530] %v703
                  %v705 = vld [vmem:[%s537 + $0x26c] sm:%s530]
                  %706 = vst [vmem:[%s538 + $0x14c] sm:%s530] %v705
                  %v707 = vld [vmem:[%s537 + $0x270] sm:%s530]
                  %708 = vst [vmem:[%s538 + $0x150] sm:%s530] %v707
                  %v709 = vld [vmem:[%s537 + $0x274] sm:%s530]
                  %710 = vst [vmem:[%s538 + $0x154] sm:%s530] %v709
                  %v711 = vld [vmem:[%s537 + $0x278] sm:%s530]
                  %712 = vst [vmem:[%s538 + $0x158] sm:%s530] %v711
                  %v713 = vld [vmem:[%s537 + $0x27c] sm:%s530]
                  %714 = vst [vmem:[%s538 + $0x15c] sm:%s530] %v713
                  %v715 = vld [vmem:[%s537 + $0x280] sm:%s530]
                  %716 = vst [vmem:[%s538 + $0x160] sm:%s530] %v715
                  %v717 = vld [vmem:[%s537 + $0x284] sm:%s530]
                  %718 = vst [vmem:[%s538 + $0x164] sm:%s530] %v717
                  %v719 = vld [vmem:[%s537 + $0x2d0] sm:%s530]
                  %720 = vst [vmem:[%s538 + $0x168] sm:%s530] %v719
                  %v721 = vld [vmem:[%s537 + $0x2d4] sm:%s530]
                  %722 = vst [vmem:[%s538 + $0x16c] sm:%s530] %v721
                  %v723 = vld [vmem:[%s537 + $0x2d8] sm:%s530]
                  %724 = vst [vmem:[%s538 + $0x170] sm:%s530] %v723
                  %v725 = vld [vmem:[%s537 + $0x2dc] sm:%s530]
                  %726 = vst [vmem:[%s538 + $0x174] sm:%s530] %v725
                  %v727 = vld [vmem:[%s537 + $0x2e0] sm:%s530]
                  %728 = vst [vmem:[%s538 + $0x178] sm:%s530] %v727
                  %v729 = vld [vmem:[%s537 + $0x2e4] sm:%s530]
                  %730 = vst [vmem:[%s538 + $0x17c] sm:%s530] %v729
                  %v731 = vld [vmem:[%s537 + $0x2e8] sm:%s530]
                  %732 = vst [vmem:[%s538 + $0x180] sm:%s530] %v731
                  %v733 = vld [vmem:[%s537 + $0x2ec] sm:%s530]
                  %734 = vst [vmem:[%s538 + $0x184] sm:%s530] %v733
                  %v735 = vld [vmem:[%s537 + $0x2f0] sm:%s530]
                  %736 = vst [vmem:[%s538 + $0x188] sm:%s530] %v735
                  %v737 = vld [vmem:[%s537 + $0x2f4] sm:%s530]
                  %738 = vst [vmem:[%s538 + $0x18c] sm:%s530] %v737
                  %v739 = vld [vmem:[%s537 + $0x2f8] sm:%s530]
                  %740 = vst [vmem:[%s538 + $0x190] sm:%s530] %v739
                  %v741 = vld [vmem:[%s537 + $0x2fc] sm:%s530]
                  %742 = vst [vmem:[%s538 + $0x194] sm:%s530] %v741
                  %v743 = vld [vmem:[%s537 + $0x300] sm:%s530]
                  %744 = vst [vmem:[%s538 + $0x198] sm:%s530] %v743
                  %v745 = vld [vmem:[%s537 + $0x304] sm:%s530]
                  %746 = vst [vmem:[%s538 + $0x19c] sm:%s530] %v745
                  %v747 = vld [vmem:[%s537 + $0x308] sm:%s530]
                  %748 = vst [vmem:[%s538 + $0x1a0] sm:%s530] %v747
                  %v749 = vld [vmem:[%s537 + $0x30c] sm:%s530]
                  %750 = vst [vmem:[%s538 + $0x1a4] sm:%s530] %v749
                  %v751 = vld [vmem:[%s537 + $0x310] sm:%s530]
                  %752 = vst [vmem:[%s538 + $0x1a8] sm:%s530] %v751
                  %v753 = vld [vmem:[%s537 + $0x314] sm:%s530]
                  %754 = vst [vmem:[%s538 + $0x1ac] sm:%s530] %v753
                  %v755 = vld [vmem:[%s537 + $0x360] sm:%s530]
                  %756 = vst [vmem:[%s538 + $0x1b0] sm:%s530] %v755
                  %v757 = vld [vmem:[%s537 + $0x364] sm:%s530]
                  %758 = vst [vmem:[%s538 + $0x1b4] sm:%s530] %v757
                  %v759 = vld [vmem:[%s537 + $0x368] sm:%s530]
                  %760 = vst [vmem:[%s538 + $0x1b8] sm:%s530] %v759
                  %v761 = vld [vmem:[%s537 + $0x36c] sm:%s530]
                  %762 = vst [vmem:[%s538 + $0x1bc] sm:%s530] %v761
                  %v763 = vld [vmem:[%s537 + $0x370] sm:%s530]
                  %764 = vst [vmem:[%s538 + $0x1c0] sm:%s530] %v763
                  %v765 = vld [vmem:[%s537 + $0x374] sm:%s530]
                  %766 = vst [vmem:[%s538 + $0x1c4] sm:%s530] %v765
                  %v767 = vld [vmem:[%s537 + $0x378] sm:%s530]
                  %768 = vst [vmem:[%s538 + $0x1c8] sm:%s530] %v767
                  %v769 = vld [vmem:[%s537 + $0x37c] sm:%s530]
                  %770 = vst [vmem:[%s538 + $0x1cc] sm:%s530] %v769
                  %v771 = vld [vmem:[%s537 + $0x380] sm:%s530]
                  %772 = vst [vmem:[%s538 + $0x1d0] sm:%s530] %v771
                  %v773 = vld [vmem:[%s537 + $0x384] sm:%s530]
                  %774 = vst [vmem:[%s538 + $0x1d4] sm:%s530] %v773
                  %v775 = vld [vmem:[%s537 + $0x388] sm:%s530]
                  %776 = vst [vmem:[%s538 + $0x1d8] sm:%s530] %v775
                  %v777 = vld [vmem:[%s537 + $0x38c] sm:%s530]
                  %778 = vst [vmem:[%s538 + $0x1dc] sm:%s530] %v777
                  %v779 = vld [vmem:[%s537 + $0x390] sm:%s530]
                  %780 = vst [vmem:[%s538 + $0x1e0] sm:%s530] %v779
                  %v781 = vld [vmem:[%s537 + $0x394] sm:%s530]
                  %782 = vst [vmem:[%s538 + $0x1e4] sm:%s530] %v781
                  %v783 = vld [vmem:[%s537 + $0x398] sm:%s530]
                  %784 = vst [vmem:[%s538 + $0x1e8] sm:%s530] %v783
                  %v785 = vld [vmem:[%s537 + $0x39c] sm:%s530]
                  %786 = vst [vmem:[%s538 + $0x1ec] sm:%s530] %v785
                  %v787 = vld [vmem:[%s537 + $0x3a0] sm:%s530]
                  %788 = vst [vmem:[%s538 + $0x1f0] sm:%s530] %v787
                  %v789 = vld [vmem:[%s537 + $0x3a4] sm:%s530]
                  %790 = vst [vmem:[%s538 + $0x1f4] sm:%s530] %v789
                  %v791 = vld [vmem:[%s537 + $0x3f0] sm:%s530]
                  %792 = vst [vmem:[%s538 + $0x1f8] sm:%s530] %v791
                  %v793 = vld [vmem:[%s537 + $0x3f4] sm:%s530]
                  %794 = vst [vmem:[%s538 + $0x1fc] sm:%s530] %v793
                  %v795 = vld [vmem:[%s537 + $0x3f8] sm:%s530]
                  %796 = vst [vmem:[%s538 + $0x200] sm:%s530] %v795
                  %v797 = vld [vmem:[%s537 + $0x3fc] sm:%s530]
                  %798 = vst [vmem:[%s538 + $0x204] sm:%s530] %v797
                  %v799 = vld [vmem:[%s537 + $0x400] sm:%s530]
                  %800 = vst [vmem:[%s538 + $0x208] sm:%s530] %v799
                  %v801 = vld [vmem:[%s537 + $0x404] sm:%s530]
                  %802 = vst [vmem:[%s538 + $0x20c] sm:%s530] %v801
                  %v803 = vld [vmem:[%s537 + $0x408] sm:%s530]
                  %804 = vst [vmem:[%s538 + $0x210] sm:%s530] %v803
                  %v805 = vld [vmem:[%s537 + $0x40c] sm:%s530]
                  %806 = vst [vmem:[%s538 + $0x214] sm:%s530] %v805
                  %v807 = vld [vmem:[%s537 + $0x410] sm:%s530]
                  %808 = vst [vmem:[%s538 + $0x218] sm:%s530] %v807
                  %v809 = vld [vmem:[%s537 + $0x414] sm:%s530]
                  %810 = vst [vmem:[%s538 + $0x21c] sm:%s530] %v809
                  %v811 = vld [vmem:[%s537 + $0x418] sm:%s530]
                  %812 = vst [vmem:[%s538 + $0x220] sm:%s530] %v811
                  %v813 = vld [vmem:[%s537 + $0x41c] sm:%s530]
                  %814 = vst [vmem:[%s538 + $0x224] sm:%s530] %v813
                  %v815 = vld [vmem:[%s537 + $0x420] sm:%s530]
                  %816 = vst [vmem:[%s538 + $0x228] sm:%s530] %v815
                  %v817 = vld [vmem:[%s537 + $0x424] sm:%s530]
                  %818 = vst [vmem:[%s538 + $0x22c] sm:%s530] %v817
                  %v819 = vld [vmem:[%s537 + $0x428] sm:%s530]
                  %820 = vst [vmem:[%s538 + $0x230] sm:%s530] %v819
                  %v821 = vld [vmem:[%s537 + $0x42c] sm:%s530]
                  %822 = vst [vmem:[%s538 + $0x234] sm:%s530] %v821
                  %v823 = vld [vmem:[%s537 + $0x430] sm:%s530]
                  %824 = vst [vmem:[%s538 + $0x238] sm:%s530] %v823
                  %v825 = vld [vmem:[%s537 + $0x434] sm:%s530]
                  %826 = vst [vmem:[%s538 + $0x23c] sm:%s530] %v825
                $region75: #{model_logits_and_std.1} parent=62 // loop_footer
                  %s536 = sadd.s32 1, %s532
                $region76: #{model_logits_and_std.1} parent=62 // loop_footer_branch
                  %531 = sbr.rel target = $region72
                $region77: #{model_logits_and_std.1} parent=62 // loop_exit
                  _
              $region63: #{model_logits_and_std.1} parent=47 // pred_fallthru
                _
            $region48: #{model_logits_and_std.1} parent=43 // pred_fallthru
              _
            // Predicated region
            $region49: #{model_logits_and_std.1} parent=43 // pred_check
              _
            $region50: #{model_logits_and_std.1} parent=43 // pred_check_branch
              %220 = sbr.rel (0) target = $region52
            $region51: #{model_logits_and_std.1} parent=43 // pred_region
              %s222 = ssub.s32 16, 1
              loop: start=0, step=1, limit=1
              $region53: #{model_logits_and_std.1} parent=51 // loop_pre_header
                _
              $region54: #{model_logits_and_std.1} parent=51 // loop_header
                %s224 = sphi 0, %s228
                %p225 = scmp.ge.s32.totalorder %s224, 1
                %s229 = sphi %s214, %s214
                %s230 = sphi %s211, %s211
              $region55: #{model_logits_and_std.1} parent=51 // loop_header_branch
                %227 = sbr.rel (%p225) target = $region59
              $region56: #{model_logits_and_std.1} parent=51 // loop_body
                %v231 = vld [vmem:[%s229] sm:%s222]
                %232 = vst [vmem:[%s230] sm:%s222] %v231
                %v233 = vld [vmem:[%s229 + $0x4] sm:%s222]
                %234 = vst [vmem:[%s230 + $0x4] sm:%s222] %v233
                %v235 = vld [vmem:[%s229 + $0x8] sm:%s222]
                %236 = vst [vmem:[%s230 + $0x8] sm:%s222] %v235
                %v237 = vld [vmem:[%s229 + $0xc] sm:%s222]
                %238 = vst [vmem:[%s230 + $0xc] sm:%s222] %v237
                %v239 = vld [vmem:[%s229 + $0x10] sm:%s222]
                %240 = vst [vmem:[%s230 + $0x10] sm:%s222] %v239
                %v241 = vld [vmem:[%s229 + $0x14] sm:%s222]
                %242 = vst [vmem:[%s230 + $0x14] sm:%s222] %v241
                %v243 = vld [vmem:[%s229 + $0x18] sm:%s222]
                %244 = vst [vmem:[%s230 + $0x18] sm:%s222] %v243
                %v245 = vld [vmem:[%s229 + $0x1c] sm:%s222]
                %246 = vst [vmem:[%s230 + $0x1c] sm:%s222] %v245
                %v247 = vld [vmem:[%s229 + $0x20] sm:%s222]
                %248 = vst [vmem:[%s230 + $0x20] sm:%s222] %v247
                %v249 = vld [vmem:[%s229 + $0x24] sm:%s222]
                %250 = vst [vmem:[%s230 + $0x24] sm:%s222] %v249
                %v251 = vld [vmem:[%s229 + $0x28] sm:%s222]
                %252 = vst [vmem:[%s230 + $0x28] sm:%s222] %v251
                %v253 = vld [vmem:[%s229 + $0x2c] sm:%s222]
                %254 = vst [vmem:[%s230 + $0x2c] sm:%s222] %v253
                %v255 = vld [vmem:[%s229 + $0x30] sm:%s222]
                %256 = vst [vmem:[%s230 + $0x30] sm:%s222] %v255
                %v257 = vld [vmem:[%s229 + $0x34] sm:%s222]
                %258 = vst [vmem:[%s230 + $0x34] sm:%s222] %v257
                %v259 = vld [vmem:[%s229 + $0x38] sm:%s222]
                %260 = vst [vmem:[%s230 + $0x38] sm:%s222] %v259
                %v261 = vld [vmem:[%s229 + $0x3c] sm:%s222]
                %262 = vst [vmem:[%s230 + $0x3c] sm:%s222] %v261
                %v263 = vld [vmem:[%s229 + $0x40] sm:%s222]
                %264 = vst [vmem:[%s230 + $0x40] sm:%s222] %v263
                %v265 = vld [vmem:[%s229 + $0x44] sm:%s222]
                %266 = vst [vmem:[%s230 + $0x44] sm:%s222] %v265
                %v267 = vld [vmem:[%s229 + $0x90] sm:%s222]
                %268 = vst [vmem:[%s230 + $0x48] sm:%s222] %v267
                %v269 = vld [vmem:[%s229 + $0x94] sm:%s222]
                %270 = vst [vmem:[%s230 + $0x4c] sm:%s222] %v269
                %v271 = vld [vmem:[%s229 + $0x98] sm:%s222]
                %272 = vst [vmem:[%s230 + $0x50] sm:%s222] %v271
                %v273 = vld [vmem:[%s229 + $0x9c] sm:%s222]
                %274 = vst [vmem:[%s230 + $0x54] sm:%s222] %v273
                %v275 = vld [vmem:[%s229 + $0xa0] sm:%s222]
                %276 = vst [vmem:[%s230 + $0x58] sm:%s222] %v275
                %v277 = vld [vmem:[%s229 + $0xa4] sm:%s222]
                %278 = vst [vmem:[%s230 + $0x5c] sm:%s222] %v277
                %v279 = vld [vmem:[%s229 + $0xa8] sm:%s222]
                %280 = vst [vmem:[%s230 + $0x60] sm:%s222] %v279
                %v281 = vld [vmem:[%s229 + $0xac] sm:%s222]
                %282 = vst [vmem:[%s230 + $0x64] sm:%s222] %v281
                %v283 = vld [vmem:[%s229 + $0xb0] sm:%s222]
                %284 = vst [vmem:[%s230 + $0x68] sm:%s222] %v283
                %v285 = vld [vmem:[%s229 + $0xb4] sm:%s222]
                %286 = vst [vmem:[%s230 + $0x6c] sm:%s222] %v285
                %v287 = vld [vmem:[%s229 + $0xb8] sm:%s222]
                %288 = vst [vmem:[%s230 + $0x70] sm:%s222] %v287
                %v289 = vld [vmem:[%s229 + $0xbc] sm:%s222]
                %290 = vst [vmem:[%s230 + $0x74] sm:%s222] %v289
                %v291 = vld [vmem:[%s229 + $0xc0] sm:%s222]
                %292 = vst [vmem:[%s230 + $0x78] sm:%s222] %v291
                %v293 = vld [vmem:[%s229 + $0xc4] sm:%s222]
                %294 = vst [vmem:[%s230 + $0x7c] sm:%s222] %v293
                %v295 = vld [vmem:[%s229 + $0xc8] sm:%s222]
                %296 = vst [vmem:[%s230 + $0x80] sm:%s222] %v295
                %v297 = vld [vmem:[%s229 + $0xcc] sm:%s222]
                %298 = vst [vmem:[%s230 + $0x84] sm:%s222] %v297
                %v299 = vld [vmem:[%s229 + $0xd0] sm:%s222]
                %300 = vst [vmem:[%s230 + $0x88] sm:%s222] %v299
                %v301 = vld [vmem:[%s229 + $0xd4] sm:%s222]
                %302 = vst [vmem:[%s230 + $0x8c] sm:%s222] %v301
                %v303 = vld [vmem:[%s229 + $0x120] sm:%s222]
                %304 = vst [vmem:[%s230 + $0x90] sm:%s222] %v303
                %v305 = vld [vmem:[%s229 + $0x124] sm:%s222]
                %306 = vst [vmem:[%s230 + $0x94] sm:%s222] %v305
                %v307 = vld [vmem:[%s229 + $0x128] sm:%s222]
                %308 = vst [vmem:[%s230 + $0x98] sm:%s222] %v307
                %v309 = vld [vmem:[%s229 + $0x12c] sm:%s222]
                %310 = vst [vmem:[%s230 + $0x9c] sm:%s222] %v309
                %v311 = vld [vmem:[%s229 + $0x130] sm:%s222]
                %312 = vst [vmem:[%s230 + $0xa0] sm:%s222] %v311
                %v313 = vld [vmem:[%s229 + $0x134] sm:%s222]
                %314 = vst [vmem:[%s230 + $0xa4] sm:%s222] %v313
                %v315 = vld [vmem:[%s229 + $0x138] sm:%s222]
                %316 = vst [vmem:[%s230 + $0xa8] sm:%s222] %v315
                %v317 = vld [vmem:[%s229 + $0x13c] sm:%s222]
                %318 = vst [vmem:[%s230 + $0xac] sm:%s222] %v317
                %v319 = vld [vmem:[%s229 + $0x140] sm:%s222]
                %320 = vst [vmem:[%s230 + $0xb0] sm:%s222] %v319
                %v321 = vld [vmem:[%s229 + $0x144] sm:%s222]
                %322 = vst [vmem:[%s230 + $0xb4] sm:%s222] %v321
                %v323 = vld [vmem:[%s229 + $0x148] sm:%s222]
                %324 = vst [vmem:[%s230 + $0xb8] sm:%s222] %v323
                %v325 = vld [vmem:[%s229 + $0x14c] sm:%s222]
                %326 = vst [vmem:[%s230 + $0xbc] sm:%s222] %v325
                %v327 = vld [vmem:[%s229 + $0x150] sm:%s222]
                %328 = vst [vmem:[%s230 + $0xc0] sm:%s222] %v327
                %v329 = vld [vmem:[%s229 + $0x154] sm:%s222]
                %330 = vst [vmem:[%s230 + $0xc4] sm:%s222] %v329
                %v331 = vld [vmem:[%s229 + $0x158] sm:%s222]
                %332 = vst [vmem:[%s230 + $0xc8] sm:%s222] %v331
                %v333 = vld [vmem:[%s229 + $0x15c] sm:%s222]
                %334 = vst [vmem:[%s230 + $0xcc] sm:%s222] %v333
                %v335 = vld [vmem:[%s229 + $0x160] sm:%s222]
                %336 = vst [vmem:[%s230 + $0xd0] sm:%s222] %v335
                %v337 = vld [vmem:[%s229 + $0x164] sm:%s222]
                %338 = vst [vmem:[%s230 + $0xd4] sm:%s222] %v337
                %v339 = vld [vmem:[%s229 + $0x1b0] sm:%s222]
                %340 = vst [vmem:[%s230 + $0xd8] sm:%s222] %v339
                %v341 = vld [vmem:[%s229 + $0x1b4] sm:%s222]
                %342 = vst [vmem:[%s230 + $0xdc] sm:%s222] %v341
                %v343 = vld [vmem:[%s229 + $0x1b8] sm:%s222]
                %344 = vst [vmem:[%s230 + $0xe0] sm:%s222] %v343
                %v345 = vld [vmem:[%s229 + $0x1bc] sm:%s222]
                %346 = vst [vmem:[%s230 + $0xe4] sm:%s222] %v345
                %v347 = vld [vmem:[%s229 + $0x1c0] sm:%s222]
                %348 = vst [vmem:[%s230 + $0xe8] sm:%s222] %v347
                %v349 = vld [vmem:[%s229 + $0x1c4] sm:%s222]
                %350 = vst [vmem:[%s230 + $0xec] sm:%s222] %v349
                %v351 = vld [vmem:[%s229 + $0x1c8] sm:%s222]
                %352 = vst [vmem:[%s230 + $0xf0] sm:%s222] %v351
                %v353 = vld [vmem:[%s229 + $0x1cc] sm:%s222]
                %354 = vst [vmem:[%s230 + $0xf4] sm:%s222] %v353
                %v355 = vld [vmem:[%s229 + $0x1d0] sm:%s222]
                %356 = vst [vmem:[%s230 + $0xf8] sm:%s222] %v355
                %v357 = vld [vmem:[%s229 + $0x1d4] sm:%s222]
                %358 = vst [vmem:[%s230 + $0xfc] sm:%s222] %v357
                %v359 = vld [vmem:[%s229 + $0x1d8] sm:%s222]
                %360 = vst [vmem:[%s230 + $0x100] sm:%s222] %v359
                %v361 = vld [vmem:[%s229 + $0x1dc] sm:%s222]
                %362 = vst [vmem:[%s230 + $0x104] sm:%s222] %v361
                %v363 = vld [vmem:[%s229 + $0x1e0] sm:%s222]
                %364 = vst [vmem:[%s230 + $0x108] sm:%s222] %v363
                %v365 = vld [vmem:[%s229 + $0x1e4] sm:%s222]
                %366 = vst [vmem:[%s230 + $0x10c] sm:%s222] %v365
                %v367 = vld [vmem:[%s229 + $0x1e8] sm:%s222]
                %368 = vst [vmem:[%s230 + $0x110] sm:%s222] %v367
                %v369 = vld [vmem:[%s229 + $0x1ec] sm:%s222]
                %370 = vst [vmem:[%s230 + $0x114] sm:%s222] %v369
                %v371 = vld [vmem:[%s229 + $0x1f0] sm:%s222]
                %372 = vst [vmem:[%s230 + $0x118] sm:%s222] %v371
                %v373 = vld [vmem:[%s229 + $0x1f4] sm:%s222]
                %374 = vst [vmem:[%s230 + $0x11c] sm:%s222] %v373
                %v375 = vld [vmem:[%s229 + $0x240] sm:%s222]
                %376 = vst [vmem:[%s230 + $0x120] sm:%s222] %v375
                %v377 = vld [vmem:[%s229 + $0x244] sm:%s222]
                %378 = vst [vmem:[%s230 + $0x124] sm:%s222] %v377
                %v379 = vld [vmem:[%s229 + $0x248] sm:%s222]
                %380 = vst [vmem:[%s230 + $0x128] sm:%s222] %v379
                %v381 = vld [vmem:[%s229 + $0x24c] sm:%s222]
                %382 = vst [vmem:[%s230 + $0x12c] sm:%s222] %v381
                %v383 = vld [vmem:[%s229 + $0x250] sm:%s222]
                %384 = vst [vmem:[%s230 + $0x130] sm:%s222] %v383
                %v385 = vld [vmem:[%s229 + $0x254] sm:%s222]
                %386 = vst [vmem:[%s230 + $0x134] sm:%s222] %v385
                %v387 = vld [vmem:[%s229 + $0x258] sm:%s222]
                %388 = vst [vmem:[%s230 + $0x138] sm:%s222] %v387
                %v389 = vld [vmem:[%s229 + $0x25c] sm:%s222]
                %390 = vst [vmem:[%s230 + $0x13c] sm:%s222] %v389
                %v391 = vld [vmem:[%s229 + $0x260] sm:%s222]
                %392 = vst [vmem:[%s230 + $0x140] sm:%s222] %v391
                %v393 = vld [vmem:[%s229 + $0x264] sm:%s222]
                %394 = vst [vmem:[%s230 + $0x144] sm:%s222] %v393
                %v395 = vld [vmem:[%s229 + $0x268] sm:%s222]
                %396 = vst [vmem:[%s230 + $0x148] sm:%s222] %v395
                %v397 = vld [vmem:[%s229 + $0x26c] sm:%s222]
                %398 = vst [vmem:[%s230 + $0x14c] sm:%s222] %v397
                %v399 = vld [vmem:[%s229 + $0x270] sm:%s222]
                %400 = vst [vmem:[%s230 + $0x150] sm:%s222] %v399
                %v401 = vld [vmem:[%s229 + $0x274] sm:%s222]
                %402 = vst [vmem:[%s230 + $0x154] sm:%s222] %v401
                %v403 = vld [vmem:[%s229 + $0x278] sm:%s222]
                %404 = vst [vmem:[%s230 + $0x158] sm:%s222] %v403
                %v405 = vld [vmem:[%s229 + $0x27c] sm:%s222]
                %406 = vst [vmem:[%s230 + $0x15c] sm:%s222] %v405
                %v407 = vld [vmem:[%s229 + $0x280] sm:%s222]
                %408 = vst [vmem:[%s230 + $0x160] sm:%s222] %v407
                %v409 = vld [vmem:[%s229 + $0x284] sm:%s222]
                %410 = vst [vmem:[%s230 + $0x164] sm:%s222] %v409
                %v411 = vld [vmem:[%s229 + $0x2d0] sm:%s222]
                %412 = vst [vmem:[%s230 + $0x168] sm:%s222] %v411
                %v413 = vld [vmem:[%s229 + $0x2d4] sm:%s222]
                %414 = vst [vmem:[%s230 + $0x16c] sm:%s222] %v413
                %v415 = vld [vmem:[%s229 + $0x2d8] sm:%s222]
                %416 = vst [vmem:[%s230 + $0x170] sm:%s222] %v415
                %v417 = vld [vmem:[%s229 + $0x2dc] sm:%s222]
                %418 = vst [vmem:[%s230 + $0x174] sm:%s222] %v417
                %v419 = vld [vmem:[%s229 + $0x2e0] sm:%s222]
                %420 = vst [vmem:[%s230 + $0x178] sm:%s222] %v419
                %v421 = vld [vmem:[%s229 + $0x2e4] sm:%s222]
                %422 = vst [vmem:[%s230 + $0x17c] sm:%s222] %v421
                %v423 = vld [vmem:[%s229 + $0x2e8] sm:%s222]
                %424 = vst [vmem:[%s230 + $0x180] sm:%s222] %v423
                %v425 = vld [vmem:[%s229 + $0x2ec] sm:%s222]
                %426 = vst [vmem:[%s230 + $0x184] sm:%s222] %v425
                %v427 = vld [vmem:[%s229 + $0x2f0] sm:%s222]
                %428 = vst [vmem:[%s230 + $0x188] sm:%s222] %v427
                %v429 = vld [vmem:[%s229 + $0x2f4] sm:%s222]
                %430 = vst [vmem:[%s230 + $0x18c] sm:%s222] %v429
                %v431 = vld [vmem:[%s229 + $0x2f8] sm:%s222]
                %432 = vst [vmem:[%s230 + $0x190] sm:%s222] %v431
                %v433 = vld [vmem:[%s229 + $0x2fc] sm:%s222]
                %434 = vst [vmem:[%s230 + $0x194] sm:%s222] %v433
                %v435 = vld [vmem:[%s229 + $0x300] sm:%s222]
                %436 = vst [vmem:[%s230 + $0x198] sm:%s222] %v435
                %v437 = vld [vmem:[%s229 + $0x304] sm:%s222]
                %438 = vst [vmem:[%s230 + $0x19c] sm:%s222] %v437
                %v439 = vld [vmem:[%s229 + $0x308] sm:%s222]
                %440 = vst [vmem:[%s230 + $0x1a0] sm:%s222] %v439
                %v441 = vld [vmem:[%s229 + $0x30c] sm:%s222]
                %442 = vst [vmem:[%s230 + $0x1a4] sm:%s222] %v441
                %v443 = vld [vmem:[%s229 + $0x310] sm:%s222]
                %444 = vst [vmem:[%s230 + $0x1a8] sm:%s222] %v443
                %v445 = vld [vmem:[%s229 + $0x314] sm:%s222]
                %446 = vst [vmem:[%s230 + $0x1ac] sm:%s222] %v445
                %v447 = vld [vmem:[%s229 + $0x360] sm:%s222]
                %448 = vst [vmem:[%s230 + $0x1b0] sm:%s222] %v447
                %v449 = vld [vmem:[%s229 + $0x364] sm:%s222]
                %450 = vst [vmem:[%s230 + $0x1b4] sm:%s222] %v449
                %v451 = vld [vmem:[%s229 + $0x368] sm:%s222]
                %452 = vst [vmem:[%s230 + $0x1b8] sm:%s222] %v451
                %v453 = vld [vmem:[%s229 + $0x36c] sm:%s222]
                %454 = vst [vmem:[%s230 + $0x1bc] sm:%s222] %v453
                %v455 = vld [vmem:[%s229 + $0x370] sm:%s222]
                %456 = vst [vmem:[%s230 + $0x1c0] sm:%s222] %v455
                %v457 = vld [vmem:[%s229 + $0x374] sm:%s222]
                %458 = vst [vmem:[%s230 + $0x1c4] sm:%s222] %v457
                %v459 = vld [vmem:[%s229 + $0x378] sm:%s222]
                %460 = vst [vmem:[%s230 + $0x1c8] sm:%s222] %v459
                %v461 = vld [vmem:[%s229 + $0x37c] sm:%s222]
                %462 = vst [vmem:[%s230 + $0x1cc] sm:%s222] %v461
                %v463 = vld [vmem:[%s229 + $0x380] sm:%s222]
                %464 = vst [vmem:[%s230 + $0x1d0] sm:%s222] %v463
                %v465 = vld [vmem:[%s229 + $0x384] sm:%s222]
                %466 = vst [vmem:[%s230 + $0x1d4] sm:%s222] %v465
                %v467 = vld [vmem:[%s229 + $0x388] sm:%s222]
                %468 = vst [vmem:[%s230 + $0x1d8] sm:%s222] %v467
                %v469 = vld [vmem:[%s229 + $0x38c] sm:%s222]
                %470 = vst [vmem:[%s230 + $0x1dc] sm:%s222] %v469
                %v471 = vld [vmem:[%s229 + $0x390] sm:%s222]
                %472 = vst [vmem:[%s230 + $0x1e0] sm:%s222] %v471
                %v473 = vld [vmem:[%s229 + $0x394] sm:%s222]
                %474 = vst [vmem:[%s230 + $0x1e4] sm:%s222] %v473
                %v475 = vld [vmem:[%s229 + $0x398] sm:%s222]
                %476 = vst [vmem:[%s230 + $0x1e8] sm:%s222] %v475
                %v477 = vld [vmem:[%s229 + $0x39c] sm:%s222]
                %478 = vst [vmem:[%s230 + $0x1ec] sm:%s222] %v477
                %v479 = vld [vmem:[%s229 + $0x3a0] sm:%s222]
                %480 = vst [vmem:[%s230 + $0x1f0] sm:%s222] %v479
                %v481 = vld [vmem:[%s229 + $0x3a4] sm:%s222]
                %482 = vst [vmem:[%s230 + $0x1f4] sm:%s222] %v481
                %v483 = vld [vmem:[%s229 + $0x3f0] sm:%s222]
                %484 = vst [vmem:[%s230 + $0x1f8] sm:%s222] %v483
                %v485 = vld [vmem:[%s229 + $0x3f4] sm:%s222]
                %486 = vst [vmem:[%s230 + $0x1fc] sm:%s222] %v485
                %v487 = vld [vmem:[%s229 + $0x3f8] sm:%s222]
                %488 = vst [vmem:[%s230 + $0x200] sm:%s222] %v487
                %v489 = vld [vmem:[%s229 + $0x3fc] sm:%s222]
                %490 = vst [vmem:[%s230 + $0x204] sm:%s222] %v489
                %v491 = vld [vmem:[%s229 + $0x400] sm:%s222]
                %492 = vst [vmem:[%s230 + $0x208] sm:%s222] %v491
                %v493 = vld [vmem:[%s229 + $0x404] sm:%s222]
                %494 = vst [vmem:[%s230 + $0x20c] sm:%s222] %v493
                %v495 = vld [vmem:[%s229 + $0x408] sm:%s222]
                %496 = vst [vmem:[%s230 + $0x210] sm:%s222] %v495
                %v497 = vld [vmem:[%s229 + $0x40c] sm:%s222]
                %498 = vst [vmem:[%s230 + $0x214] sm:%s222] %v497
                %v499 = vld [vmem:[%s229 + $0x410] sm:%s222]
                %500 = vst [vmem:[%s230 + $0x218] sm:%s222] %v499
                %v501 = vld [vmem:[%s229 + $0x414] sm:%s222]
                %502 = vst [vmem:[%s230 + $0x21c] sm:%s222] %v501
                %v503 = vld [vmem:[%s229 + $0x418] sm:%s222]
                %504 = vst [vmem:[%s230 + $0x220] sm:%s222] %v503
                %v505 = vld [vmem:[%s229 + $0x41c] sm:%s222]
                %506 = vst [vmem:[%s230 + $0x224] sm:%s222] %v505
                %v507 = vld [vmem:[%s229 + $0x420] sm:%s222]
                %508 = vst [vmem:[%s230 + $0x228] sm:%s222] %v507
                %v509 = vld [vmem:[%s229 + $0x424] sm:%s222]
                %510 = vst [vmem:[%s230 + $0x22c] sm:%s222] %v509
                %v511 = vld [vmem:[%s229 + $0x428] sm:%s222]
                %512 = vst [vmem:[%s230 + $0x230] sm:%s222] %v511
                %v513 = vld [vmem:[%s229 + $0x42c] sm:%s222]
                %514 = vst [vmem:[%s230 + $0x234] sm:%s222] %v513
                %v515 = vld [vmem:[%s229 + $0x430] sm:%s222]
                %516 = vst [vmem:[%s230 + $0x238] sm:%s222] %v515
                %v517 = vld [vmem:[%s229 + $0x434] sm:%s222]
                %518 = vst [vmem:[%s230 + $0x23c] sm:%s222] %v517
              $region57: #{model_logits_and_std.1} parent=51 // loop_footer
                %s228 = sadd.s32 1, %s224
              $region58: #{model_logits_and_std.1} parent=51 // loop_footer_branch
                %223 = sbr.rel target = $region54
              $region59: #{model_logits_and_std.1} parent=51 // loop_exit
                _
            $region52: #{model_logits_and_std.1} parent=43 // pred_fallthru
              _
          $region44: #{model_logits_and_std.1} parent=39 // pred_fallthru
            _
          %827 = vnop
        $region40: #{model_logits_and_std.1} parent=35 // pred_fallthru
          _
      $region36: #{model_logits_and_std.1} parent=5 // pred_fallthru
        _
      %p828 = scmp.le.s32.totalorder 1, %s14
      %p829 = scmp.lt.s32.totalorder %s14, 3
      %p830 = pnand %p828, %p829
      %p831 = pneg %p830
      // Predicated region
      $region78: #{model_logits_and_std.1} parent=5 // pred_check
        _
      $region79: #{model_logits_and_std.1} parent=5 // pred_check_branch
        %833 = sbr.rel (%p830) target = $region81
      $region80: #{model_logits_and_std.1} parent=5 // pred_region
        %s834 = ssub.s32 %s14, 1
        %s835 = sand.u32 %s27, 1
        %s836 = sand.u32 %s27, 1
        %s837 = smul.addr %s836, 576
        %s838 = scalar_lea.vmem [#allocation3], %s837
        // Predicated region
        $region82: #{model_logits_and_std.1} parent=80 // pred_check
          %p839 = pneg %p40
        $region83: #{model_logits_and_std.1} parent=80 // pred_check_branch
          %841 = sbr.rel (%p839) target = $region85
        $region84: #{model_logits_and_std.1} parent=80 // pred_region
          _
        $region85: #{model_logits_and_std.1} parent=80 // pred_fallthru
          _
        %s842 = sand.u32 %s27, 1
        %s843 = sand.u32 %s27, 1
        %s844 = smul.addr %s843, 576
        %s845 = scalar_lea.vmem [#allocation3], %s844
        %p846 = pneg %p40
        %p847 = pneg %p37
        %p848 = pneg %p61
        %p849 = pneg %p58
        %p850 = pneg %p82
        %p851 = pneg %p79
        %p852 = pneg %p103
        %p853 = pneg %p100
        %p854 = pneg %p124
        %p855 = pneg %p121
        %p856 = pneg %p145
        %p857 = pneg %p142
        %p858 = pneg %p171
        %p859 = pneg %p168
        %s860 = smul.u32 18, %s19
        %p861 = scmp.lt.s32.totalorder %s860, 35
        %s862 = scalar_select %p861, %s860, 35
        %s863 = smul.addr %s862, 8
        %s864 = scalar_lea.vmem %s6, %s863
        %s865 = smul.u32 18, %s19
        %s866 = smul.u32 18, %s19
        %p867 = scmp.lt.s32.totalorder %s866, 35
        %s868 = scalar_select %p867, %s866, 35
        %s869 = smul.addr %s868, 8
        %s870 = scalar_lea.vmem %s6, %s869
        %s871 = smul.u32 18, %s19
        %v873 = vld [vmem:[%s1] sm:$0xf]
        %v874 = vld [vmem:[%s1 + $0x4] sm:$0xf]
        %v875 = vld [vmem:[%s1 + $0x8] sm:$0xf]
        %v876 = vld [vmem:[%s1 + $0xc] sm:$0xf]
        %v877 = vld [vmem:[%s2] sm:$0xf]
        %v878 = vld [vmem:[%s2 + $0x4] sm:$0xf]
        %v879 = vld [vmem:[%s2 + $0x8] sm:$0xf]
        %v880 = vld [vmem:[%s2 + $0xc] sm:$0xf]
        %v881 = vld [vmem:[%s3] sm:$0x1]
        %v882 = vld [vmem:[%s838] sm:$0xf]
        %v883 = vld [vmem:[%s838 + $0x4] sm:$0xf]
        %v884 = vld [vmem:[%s838 + $0x8] sm:$0xf]
        %v885 = vld [vmem:[%s838 + $0xc] sm:$0xf]
        %v886 = vld [vmem:[%s838 + $0x10] sm:$0xf]
        %v887 = vld [vmem:[%s838 + $0x14] sm:$0xf]
        %v888 = vld [vmem:[%s838 + $0x18] sm:$0xf]
        %v889 = vld [vmem:[%s838 + $0x1c] sm:$0xf]
        %v890 = vld [vmem:[%s838 + $0x20] sm:$0xf]
        %v891 = vld [vmem:[%s838 + $0x24] sm:$0xf]
        %v892 = vld [vmem:[%s838 + $0x28] sm:$0xf]
        %v893 = vld [vmem:[%s838 + $0x2c] sm:$0xf]
        %v894 = vld [vmem:[%s838 + $0x30] sm:$0xf]
        %v895 = vld [vmem:[%s838 + $0x34] sm:$0xf]
        %v896 = vld [vmem:[%s838 + $0x38] sm:$0xf]
        %v897 = vld [vmem:[%s838 + $0x3c] sm:$0xf]
        %v898 = vld [vmem:[%s838 + $0x40] sm:$0xf]
        %v899 = vld [vmem:[%s838 + $0x44] sm:$0xf]
        %v904 = vunpack.c.l.b16 %v877
        %v905 = vunpack.c.l.b16 %v878
        %v906 = vunpack.c.l.b16 %v879
        %v907 = vunpack.c.l.b16 %v880
        %v908 = vpack.c.b16 %v905, %v904
        %v909 = vpack.c.b16 %v907, %v906
        %vm912 = vcmask 261120
        %v914 = vsel %vm912, 0, 0
        %916 = vmatprep.subr.bf16.mxu0 0
        %917 = vmatpush1.bf16.msra.mxu0 0
        %918 = vmatprep.subr.bf16.mxu0 0
        %919 = vmatpush1.bf16.msra.mxu0 0
        %920 = vmatprep.subr.bf16.mxu0 0
        %921 = vmatpush1.bf16.msra.mxu0 0
        %922 = vmatprep.subr.bf16.mxu0 0
        %923 = vmatpush1.bf16.msra.mxu0 0
        %924 = vmatprep.subr.bf16.mxu0 0
        %925 = vmatpush1.bf16.msra.mxu0 0
        %926 = vmatprep.subr.bf16.mxu0 0
        %927 = vmatpush1.bf16.msra.mxu0 0
        %928 = vmatprep.subr.bf16.mxu0 0
        %929 = vmatpush1.bf16.msra.mxu0 %v909
        %930 = vmatprep.subr.bf16.mxu0 0
        %931 = vmatpush1.bf16.msra.mxu0 %v908
        %932 = vmatprep.subr.bf16.mxu0 0
        %933 = vmatpush2.bf16.msra.mxu0 0
        %934 = vmatprep.subr.bf16.mxu0 0
        %935 = vmatpush2.bf16.msra.mxu0 0
        %936 = vmatprep.subr.bf16.mxu0 0
        %937 = vmatpush2.bf16.msra.mxu0 0
        %938 = vmatprep.subr.bf16.mxu0 0
        %939 = vmatpush2.bf16.msra.mxu0 0
        %940 = vmatprep.subr.bf16.mxu0 0
        %941 = vmatpush2.bf16.msra.mxu0 0
        %942 = vmatprep.subr.bf16.mxu0 0
        %943 = vmatpush2.bf16.msra.mxu0 0
        %944 = vmatprep.subr.bf16.mxu0 0
        %945 = vmatpush2.bf16.msra.mxu0 0
        %946 = vmatprep.subr.bf16.mxu0 0
        %947 = vmatpush2.bf16.msra.mxu0 0
        %948 = vmatprep.mubr.bf16.mxu0 0
        %949 = vmatmul.mubr.bf16.gmra.mxu0 %v914
        %v950 = vpop.f32.mrf.mxu0
        %v951 = vadd.f32 0.0, %v950
        %v952 = vpop.f32.mrf.mxu0
        %v953 = vpop.f32.mrf.mxu0
        %v954 = vadd.f32 0.0, %v953
        %v955 = vpop.f32.mrf.mxu0
        %956 = vmatprep.mubr.bf16.mxu0 0
        %957 = vmatmul.mubr.bf16.gmra.mxu0 %v914
        %v958 = vpop.f32.mrf.mxu0
        %v959 = vadd.f32 0.0, %v958
        %v960 = vpop.f32.mrf.mxu0
        %v961 = vpop.f32.mrf.mxu0
        %v962 = vadd.f32 0.0, %v961
        %v963 = vpop.f32.mrf.mxu0
        %964 = vmatprep.mubr.bf16.mxu0 0
        %965 = vmatmul.mubr.bf16.gmra.mxu0 %v914
        %v966 = vpop.f32.mrf.mxu0
        %v967 = vadd.f32 0.0, %v966
        %v968 = vpop.f32.mrf.mxu0
        %v969 = vpop.f32.mrf.mxu0
        %v970 = vadd.f32 0.0, %v969
        %v971 = vpop.f32.mrf.mxu0
        %972 = vmatprep.mubr.bf16.mxu0 0
        %973 = vmatmul.mubr.bf16.gmra.mxu0 %v914
        %v974 = vpop.f32.mrf.mxu0
        %v975 = vadd.f32 0.0, %v974
        %v976 = vpop.f32.mrf.mxu0
        %v977 = vpop.f32.mrf.mxu0
        %v978 = vadd.f32 0.0, %v977
        %v979 = vpop.f32.mrf.mxu0
        %980 = vmatprep.mubr.bf16.mxu0 0
        %981 = vmatmul.mubr.bf16.gmra.mxu0 %v914
        %v982 = vpop.f32.mrf.mxu0
        %v983 = vadd.f32 0.0, %v982
        %v984 = vpop.f32.mrf.mxu0
        %v985 = vpop.f32.mrf.mxu0
        %v986 = vadd.f32 0.0, %v985
        %v987 = vpop.f32.mrf.mxu0
        %988 = vmatprep.mubr.bf16.mxu0 0
        %989 = vmatmul.mubr.bf16.gmra.mxu0 %v914
        %v990 = vpop.f32.mrf.mxu0
        %v991 = vadd.f32 0.0, %v990
        %v992 = vpop.f32.mrf.mxu0
        %v993 = vpop.f32.mrf.mxu0
        %v994 = vadd.f32 0.0, %v993
        %v995 = vpop.f32.mrf.mxu0
        %996 = vmatprep.mubr.bf16.mxu0 0
        %997 = vmatmul.mubr.bf16.gmra.mxu0 %v914
        %v998 = vpop.f32.mrf.mxu0
        %v999 = vadd.f32 0.0, %v998
        %v1000 = vpop.f32.mrf.mxu0
        %v1001 = vpop.f32.mrf.mxu0
        %v1002 = vadd.f32 0.0, %v1001
        %v1003 = vpop.f32.mrf.mxu0
        %1004 = vmatprep.mubr.bf16.mxu0 0
        %1005 = vmatmul.mubr.bf16.gmra.mxu0 %v914
        %v1006 = vpop.f32.mrf.mxu0
        %v1007 = vadd.f32 0.0, %v1006
        %v1008 = vpop.f32.mrf.mxu0
        %v1009 = vpop.f32.mrf.mxu0
        %v1010 = vadd.f32 0.0, %v1009
        %v1011 = vpop.f32.mrf.mxu0
        %1012 = vmatprep.mubr.bf16.mxu0 0
        %1013 = vmatmul.mubr.bf16.gmra.mxu0 %v914
        %v1014 = vpop.f32.mrf.mxu0
        %v1015 = vadd.f32 0.0, %v1014
        %v1016 = vpop.f32.mrf.mxu0
        %v1017 = vpop.f32.mrf.mxu0
        %v1018 = vadd.f32 0.0, %v1017
        %v1019 = vpop.f32.mrf.mxu0
        %1020 = vdwg.mxu0
        %v1039 = vunpack.c.l.b16 %v882
        %v1040 = vunpack.c.l.b16 %v883
        %v1041 = vunpack.c.l.b16 %v884
        %v1042 = vunpack.c.l.b16 %v885
        %v1043 = vunpack.c.l.b16 %v886
        %v1044 = vunpack.c.l.b16 %v887
        %v1045 = vunpack.c.l.b16 %v888
        %v1046 = vunpack.c.l.b16 %v889
        %v1047 = vunpack.c.l.b16 %v890
        %v1048 = vunpack.c.l.b16 %v891
        %v1049 = vunpack.c.l.b16 %v892
        %v1050 = vunpack.c.l.b16 %v893
        %v1051 = vunpack.c.l.b16 %v894
        %v1052 = vunpack.c.l.b16 %v895
        %v1053 = vunpack.c.l.b16 %v896
        %v1054 = vunpack.c.l.b16 %v897
        %v1055 = vunpack.c.l.b16 %v898
        %v1056 = vunpack.c.l.b16 %v899
        %v1057 = vpack.c.b16 %v1040, %v1039
        %v1058 = vpack.c.b16 %v1042, %v1041
        %v1059 = vpack.c.b16 %v1044, %v1043
        %v1060 = vpack.c.b16 %v1046, %v1045
        %v1061 = vpack.c.b16 %v1048, %v1047
        %v1062 = vpack.c.b16 %v1050, %v1049
        %v1063 = vpack.c.b16 %v1052, %v1051
        %v1064 = vpack.c.b16 %v1054, %v1053
        %v1065 = vpack.c.b16 %v1056, %v1055
        %v1070 = vunpack.c.l.b16 %v873
        %v1071 = vunpack.c.l.b16 %v874
        %v1072 = vunpack.c.l.b16 %v875
        %v1073 = vunpack.c.l.b16 %v876
        %v1074 = vpack.c.b16 %v1071, %v1070
        %v1075 = vpack.c.b16 %v1073, %v1072
        %v1079 = vsel %vm912, %v1057, 0
        %v1082 = vsel %vm912, %v1058, 0
        %v1085 = vsel %vm912, %v1059, 0
        %v1088 = vsel %vm912, %v1060, 0
        %v1091 = vsel %vm912, %v1061, 0
        %v1094 = vsel %vm912, %v1062, 0
        %v1097 = vsel %vm912, %v1063, 0
        %v1100 = vsel %vm912, %v1064, 0
        %v1103 = vsel %vm912, %v1065, 0
        %1105 = vmatprep.subr.bf16.mxu0 0
        %1106 = vmatpush1.bf16.msra.mxu0 0
        %1107 = vmatprep.subr.bf16.mxu0 0
        %1108 = vmatpush1.bf16.msra.mxu0 0
        %1109 = vmatprep.subr.bf16.mxu0 0
        %1110 = vmatpush1.bf16.msra.mxu0 0
        %1111 = vmatprep.subr.bf16.mxu0 0
        %1112 = vmatpush1.bf16.msra.mxu0 0
        %1113 = vmatprep.subr.bf16.mxu0 0
        %1114 = vmatpush1.bf16.msra.mxu0 0
        %1115 = vmatprep.subr.bf16.mxu0 0
        %1116 = vmatpush1.bf16.msra.mxu0 0
        %1117 = vmatprep.subr.bf16.mxu0 0
        %1118 = vmatpush1.bf16.msra.mxu0 %v1075
        %1119 = vmatprep.subr.bf16.mxu0 0
        %1120 = vmatpush1.bf16.msra.mxu0 %v1074
        %1121 = vmatprep.subr.bf16.mxu0 0
        %1122 = vmatpush2.bf16.msra.mxu0 0
        %1123 = vmatprep.subr.bf16.mxu0 0
        %1124 = vmatpush2.bf16.msra.mxu0 0
        %1125 = vmatprep.subr.bf16.mxu0 0
        %1126 = vmatpush2.bf16.msra.mxu0 0
        %1127 = vmatprep.subr.bf16.mxu0 0
        %1128 = vmatpush2.bf16.msra.mxu0 0
        %1129 = vmatprep.subr.bf16.mxu0 0
        %1130 = vmatpush2.bf16.msra.mxu0 0
        %1131 = vmatprep.subr.bf16.mxu0 0
        %1132 = vmatpush2.bf16.msra.mxu0 0
        %1133 = vmatprep.subr.bf16.mxu0 0
        %1134 = vmatpush2.bf16.msra.mxu0 0
        %1135 = vmatprep.subr.bf16.mxu0 0
        %1136 = vmatpush2.bf16.msra.mxu0 0
        %1137 = vmatprep.mubr.bf16.mxu0 0
        %1138 = vmatmul.mubr.bf16.gmra.mxu0 %v1079
        %v1139 = vpop.f32.mrf.mxu0
        %v1140 = vadd.f32 %v951, %v1139
        %v1141 = vpop.f32.mrf.mxu0
        %v1142 = vpop.f32.mrf.mxu0
        %v1143 = vadd.f32 %v954, %v1142
        %v1144 = vpop.f32.mrf.mxu0
        %1145 = vmatprep.mubr.bf16.mxu0 0
        %1146 = vmatmul.mubr.bf16.gmra.mxu0 %v1082
        %v1147 = vpop.f32.mrf.mxu0
        %v1148 = vadd.f32 %v959, %v1147
        %v1149 = vpop.f32.mrf.mxu0
        %v1150 = vpop.f32.mrf.mxu0
        %v1151 = vadd.f32 %v962, %v1150
        %v1152 = vpop.f32.mrf.mxu0
        %1153 = vmatprep.mubr.bf16.mxu0 0
        %1154 = vmatmul.mubr.bf16.gmra.mxu0 %v1085
        %v1155 = vpop.f32.mrf.mxu0
        %v1156 = vadd.f32 %v967, %v1155
        %v1157 = vpop.f32.mrf.mxu0
        %v1158 = vpop.f32.mrf.mxu0
        %v1159 = vadd.f32 %v970, %v1158
        %v1160 = vpop.f32.mrf.mxu0
        %1161 = vmatprep.mubr.bf16.mxu0 0
        %1162 = vmatmul.mubr.bf16.gmra.mxu0 %v1088
        %v1163 = vpop.f32.mrf.mxu0
        %v1164 = vadd.f32 %v975, %v1163
        %v1165 = vpop.f32.mrf.mxu0
        %v1166 = vpop.f32.mrf.mxu0
        %v1167 = vadd.f32 %v978, %v1166
        %v1168 = vpop.f32.mrf.mxu0
        %1169 = vmatprep.mubr.bf16.mxu0 0
        %1170 = vmatmul.mubr.bf16.gmra.mxu0 %v1091
        %v1171 = vpop.f32.mrf.mxu0
        %v1172 = vadd.f32 %v983, %v1171
        %v1173 = vpop.f32.mrf.mxu0
        %v1174 = vpop.f32.mrf.mxu0
        %v1175 = vadd.f32 %v986, %v1174
        %v1176 = vpop.f32.mrf.mxu0
        %1177 = vmatprep.mubr.bf16.mxu0 0
        %1178 = vmatmul.mubr.bf16.gmra.mxu0 %v1094
        %v1179 = vpop.f32.mrf.mxu0
        %v1180 = vadd.f32 %v991, %v1179
        %v1181 = vpop.f32.mrf.mxu0
        %v1182 = vpop.f32.mrf.mxu0
        %v1183 = vadd.f32 %v994, %v1182
        %v1184 = vpop.f32.mrf.mxu0
        %1185 = vmatprep.mubr.bf16.mxu0 0
        %1186 = vmatmul.mubr.bf16.gmra.mxu0 %v1097
        %v1187 = vpop.f32.mrf.mxu0
        %v1188 = vadd.f32 %v999, %v1187
        %v1189 = vpop.f32.mrf.mxu0
        %v1190 = vpop.f32.mrf.mxu0
        %v1191 = vadd.f32 %v1002, %v1190
        %v1192 = vpop.f32.mrf.mxu0
        %1193 = vmatprep.mubr.bf16.mxu0 0
        %1194 = vmatmul.mubr.bf16.gmra.mxu0 %v1100
        %v1195 = vpop.f32.mrf.mxu0
        %v1196 = vadd.f32 %v1007, %v1195
        %v1197 = vpop.f32.mrf.mxu0
        %v1198 = vpop.f32.mrf.mxu0
        %v1199 = vadd.f32 %v1010, %v1198
        %v1200 = vpop.f32.mrf.mxu0
        %1201 = vmatprep.mubr.bf16.mxu0 0
        %1202 = vmatmul.mubr.bf16.gmra.mxu0 %v1103
        %v1203 = vpop.f32.mrf.mxu0
        %v1204 = vadd.f32 %v1015, %v1203
        %v1205 = vpop.f32.mrf.mxu0
        %v1206 = vpop.f32.mrf.mxu0
        %v1207 = vadd.f32 %v1018, %v1206
        %v1208 = vpop.f32.mrf.mxu0
        %1209 = vdwg.mxu0
        %v1211 = vlaneseq
        %v1212 = vshrl.u32 %v1211, 7
        %v1213 = vsub.s32 0, %v1212
        %v1214 = vrot.slane %v881, %v1213
        %v1216 = vadd.f32 %v1140, %v1214
        %v1217 = vadd.f32 %v1143, %v1214
        %v1218 = vadd.f32 %v1148, %v1214
        %v1219 = vadd.f32 %v1151, %v1214
        %v1220 = vadd.f32 %v1156, %v1214
        %v1221 = vadd.f32 %v1159, %v1214
        %v1222 = vadd.f32 %v1164, %v1214
        %v1223 = vadd.f32 %v1167, %v1214
        %v1224 = vadd.f32 %v1172, %v1214
        %v1225 = vadd.f32 %v1175, %v1214
        %v1226 = vadd.f32 %v1180, %v1214
        %v1227 = vadd.f32 %v1183, %v1214
        %v1228 = vadd.f32 %v1188, %v1214
        %v1229 = vadd.f32 %v1191, %v1214
        %v1230 = vadd.f32 %v1196, %v1214
        %v1231 = vadd.f32 %v1199, %v1214
        %v1232 = vadd.f32 %v1204, %v1214
        %v1233 = vadd.f32 %v1207, %v1214
        %v1234 = vxor.u32 %v1216, 2147483648
        %v1235 = vxor.u32 %v1217, 2147483648
        %v1236 = vxor.u32 %v1218, 2147483648
        %v1237 = vxor.u32 %v1219, 2147483648
        %v1238 = vxor.u32 %v1220, 2147483648
        %v1239 = vxor.u32 %v1221, 2147483648
        %v1240 = vxor.u32 %v1222, 2147483648
        %v1241 = vxor.u32 %v1223, 2147483648
        %v1242 = vxor.u32 %v1224, 2147483648
        %v1243 = vxor.u32 %v1225, 2147483648
        %v1244 = vxor.u32 %v1226, 2147483648
        %v1245 = vxor.u32 %v1227, 2147483648
        %v1246 = vxor.u32 %v1228, 2147483648
        %v1247 = vxor.u32 %v1229, 2147483648
        %v1248 = vxor.u32 %v1230, 2147483648
        %v1249 = vxor.u32 %v1231, 2147483648
        %v1250 = vxor.u32 %v1232, 2147483648
        %v1251 = vxor.u32 %v1233, 2147483648
        %v1252 = vmul.f32 %v1234, 1.442695
        %v1253 = vpow.pop %v1252
        %v1254 = vmul.f32 %v1235, 1.442695
        %v1255 = vpow.pop %v1254
        %v1256 = vmul.f32 %v1236, 1.442695
        %v1257 = vpow.pop %v1256
        %v1258 = vmul.f32 %v1237, 1.442695
        %v1259 = vpow.pop %v1258
        %v1260 = vmul.f32 %v1238, 1.442695
        %v1261 = vpow.pop %v1260
        %v1262 = vmul.f32 %v1239, 1.442695
        %v1263 = vpow.pop %v1262
        %v1264 = vmul.f32 %v1240, 1.442695
        %v1265 = vpow.pop %v1264
        %v1266 = vmul.f32 %v1241, 1.442695
        %v1267 = vpow.pop %v1266
        %v1268 = vmul.f32 %v1242, 1.442695
        %v1269 = vpow.pop %v1268
        %v1270 = vmul.f32 %v1243, 1.442695
        %v1271 = vpow.pop %v1270
        %v1272 = vmul.f32 %v1244, 1.442695
        %v1273 = vpow.pop %v1272
        %v1274 = vmul.f32 %v1245, 1.442695
        %v1275 = vpow.pop %v1274
        %v1276 = vmul.f32 %v1246, 1.442695
        %v1277 = vpow.pop %v1276
        %v1278 = vmul.f32 %v1247, 1.442695
        %v1279 = vpow.pop %v1278
        %v1280 = vmul.f32 %v1248, 1.442695
        %v1281 = vpow.pop %v1280
        %v1282 = vmul.f32 %v1249, 1.442695
        %v1283 = vpow.pop %v1282
        %v1284 = vmul.f32 %v1250, 1.442695
        %v1285 = vpow.pop %v1284
        %v1286 = vmul.f32 %v1251, 1.442695
        %v1287 = vpow.pop %v1286
        %v1288 = vadd.f32 %v1253, 1.0
        %v1289 = vadd.f32 %v1255, 1.0
        %v1290 = vadd.f32 %v1257, 1.0
        %v1291 = vadd.f32 %v1259, 1.0
        %v1292 = vadd.f32 %v1261, 1.0
        %v1293 = vadd.f32 %v1263, 1.0
        %v1294 = vadd.f32 %v1265, 1.0
        %v1295 = vadd.f32 %v1267, 1.0
        %v1296 = vadd.f32 %v1269, 1.0
        %v1297 = vadd.f32 %v1271, 1.0
        %v1298 = vadd.f32 %v1273, 1.0
        %v1299 = vadd.f32 %v1275, 1.0
        %v1300 = vadd.f32 %v1277, 1.0
        %v1301 = vadd.f32 %v1279, 1.0
        %v1302 = vadd.f32 %v1281, 1.0
        %v1303 = vadd.f32 %v1283, 1.0
        %v1304 = vadd.f32 %v1285, 1.0
        %v1305 = vadd.f32 %v1287, 1.0
        %v1306 = vrcp.pop %v1288
        %v1307 = vmul.f32 1.0, %v1306
        %v1308 = vrcp.pop %v1289
        %v1309 = vmul.f32 1.0, %v1308
        %v1310 = vrcp.pop %v1290
        %v1311 = vmul.f32 1.0, %v1310
        %v1312 = vrcp.pop %v1291
        %v1313 = vmul.f32 1.0, %v1312
        %v1314 = vrcp.pop %v1292
        %v1315 = vmul.f32 1.0, %v1314
        %v1316 = vrcp.pop %v1293
        %v1317 = vmul.f32 1.0, %v1316
        %v1318 = vrcp.pop %v1294
        %v1319 = vmul.f32 1.0, %v1318
        %v1320 = vrcp.pop %v1295
        %v1321 = vmul.f32 1.0, %v1320
        %v1322 = vrcp.pop %v1296
        %v1323 = vmul.f32 1.0, %v1322
        %v1324 = vrcp.pop %v1297
        %v1325 = vmul.f32 1.0, %v1324
        %v1326 = vrcp.pop %v1298
        %v1327 = vmul.f32 1.0, %v1326
        %v1328 = vrcp.pop %v1299
        %v1329 = vmul.f32 1.0, %v1328
        %v1330 = vrcp.pop %v1300
        %v1331 = vmul.f32 1.0, %v1330
        %v1332 = vrcp.pop %v1301
        %v1333 = vmul.f32 1.0, %v1332
        %v1334 = vrcp.pop %v1302
        %v1335 = vmul.f32 1.0, %v1334
        %v1336 = vrcp.pop %v1303
        %v1337 = vmul.f32 1.0, %v1336
        %v1338 = vrcp.pop %v1304
        %v1339 = vmul.f32 1.0, %v1338
        %v1340 = vrcp.pop %v1305
        %v1341 = vmul.f32 1.0, %v1340
        %v1342 = vtanh.pop %v1216
        %v1343 = vtanh.pop %v1217
        %v1344 = vtanh.pop %v1218
        %v1345 = vtanh.pop %v1219
        %v1346 = vtanh.pop %v1220
        %v1347 = vtanh.pop %v1221
        %v1348 = vtanh.pop %v1222
        %v1349 = vtanh.pop %v1223
        %v1350 = vtanh.pop %v1224
        %v1351 = vtanh.pop %v1225
        %v1352 = vtanh.pop %v1226
        %v1353 = vtanh.pop %v1227
        %v1354 = vtanh.pop %v1228
        %v1355 = vtanh.pop %v1229
        %v1356 = vtanh.pop %v1230
        %v1357 = vtanh.pop %v1231
        %v1358 = vtanh.pop %v1232
        %v1359 = vtanh.pop %v1233
        %v1360 = vmul.f32 %v1307, 0.0
        %v1361 = vmul.f32 %v1309, 0.0
        %v1362 = vmul.f32 %v1311, 0.0
        %v1363 = vmul.f32 %v1313, 0.0
        %v1364 = vmul.f32 %v1315, 0.0
        %v1365 = vmul.f32 %v1317, 0.0
        %v1366 = vmul.f32 %v1319, 0.0
        %v1367 = vmul.f32 %v1321, 0.0
        %v1368 = vmul.f32 %v1323, 0.0
        %v1369 = vmul.f32 %v1325, 0.0
        %v1370 = vmul.f32 %v1327, 0.0
        %v1371 = vmul.f32 %v1329, 0.0
        %v1372 = vmul.f32 %v1331, 0.0
        %v1373 = vmul.f32 %v1333, 0.0
        %v1374 = vmul.f32 %v1335, 0.0
        %v1375 = vmul.f32 %v1337, 0.0
        %v1376 = vmul.f32 %v1339, 0.0
        %v1377 = vmul.f32 %v1341, 0.0
        %1396 = vrot.lane.b32.xlu0 %v1342, 64
        %v1397 = vpop.permute.xlu0 %1396
        %1398 = vrot.lane.b32.xlu0 %v1343, 64
        %v1399 = vpop.permute.xlu0 %1398
        %1400 = vrot.lane.b32.xlu0 %v1344, 64
        %v1401 = vpop.permute.xlu0 %1400
        %1402 = vrot.lane.b32.xlu0 %v1345, 64
        %v1403 = vpop.permute.xlu0 %1402
        %1404 = vrot.lane.b32.xlu0 %v1346, 64
        %v1405 = vpop.permute.xlu0 %1404
        %1406 = vrot.lane.b32.xlu0 %v1347, 64
        %v1407 = vpop.permute.xlu0 %1406
        %1408 = vrot.lane.b32.xlu0 %v1348, 64
        %v1409 = vpop.permute.xlu0 %1408
        %1410 = vrot.lane.b32.xlu0 %v1349, 64
        %v1411 = vpop.permute.xlu0 %1410
        %1412 = vrot.lane.b32.xlu0 %v1350, 64
        %v1413 = vpop.permute.xlu0 %1412
        %1414 = vrot.lane.b32.xlu0 %v1351, 64
        %v1415 = vpop.permute.xlu0 %1414
        %1416 = vrot.lane.b32.xlu0 %v1352, 64
        %v1417 = vpop.permute.xlu0 %1416
        %1418 = vrot.lane.b32.xlu0 %v1353, 64
        %v1419 = vpop.permute.xlu0 %1418
        %1420 = vrot.lane.b32.xlu0 %v1354, 64
        %v1421 = vpop.permute.xlu0 %1420
        %1422 = vrot.lane.b32.xlu0 %v1355, 64
        %v1423 = vpop.permute.xlu0 %1422
        %1424 = vrot.lane.b32.xlu0 %v1356, 64
        %v1425 = vpop.permute.xlu0 %1424
        %1426 = vrot.lane.b32.xlu0 %v1357, 64
        %v1427 = vpop.permute.xlu0 %1426
        %1428 = vrot.lane.b32.xlu0 %v1358, 64
        %v1429 = vpop.permute.xlu0 %1428
        %1430 = vrot.lane.b32.xlu0 %v1359, 64
        %v1431 = vpop.permute.xlu0 %1430
        %v1450 = vmul.f32 %v1307, %v1397
        %v1451 = vmul.f32 %v1309, %v1399
        %v1452 = vmul.f32 %v1311, %v1401
        %v1453 = vmul.f32 %v1313, %v1403
        %v1454 = vmul.f32 %v1315, %v1405
        %v1455 = vmul.f32 %v1317, %v1407
        %v1456 = vmul.f32 %v1319, %v1409
        %v1457 = vmul.f32 %v1321, %v1411
        %v1458 = vmul.f32 %v1323, %v1413
        %v1459 = vmul.f32 %v1325, %v1415
        %v1460 = vmul.f32 %v1327, %v1417
        %v1461 = vmul.f32 %v1329, %v1419
        %v1462 = vmul.f32 %v1331, %v1421
        %v1463 = vmul.f32 %v1333, %v1423
        %v1464 = vmul.f32 %v1335, %v1425
        %v1465 = vmul.f32 %v1337, %v1427
        %v1466 = vmul.f32 %v1339, %v1429
        %v1467 = vmul.f32 %v1341, %v1431
        %1486 = vrot.lane.b32.xlu0 %v1450, 32
        %v1487 = vpop.permute.xlu0 %1486
        %1488 = vrot.lane.b32.xlu0 %v1451, 32
        %v1489 = vpop.permute.xlu0 %1488
        %1490 = vrot.lane.b32.xlu0 %v1452, 32
        %v1491 = vpop.permute.xlu0 %1490
        %1492 = vrot.lane.b32.xlu0 %v1453, 32
        %v1493 = vpop.permute.xlu0 %1492
        %1494 = vrot.lane.b32.xlu0 %v1454, 32
        %v1495 = vpop.permute.xlu0 %1494
        %1496 = vrot.lane.b32.xlu0 %v1455, 32
        %v1497 = vpop.permute.xlu0 %1496
        %1498 = vrot.lane.b32.xlu0 %v1456, 32
        %v1499 = vpop.permute.xlu0 %1498
        %1500 = vrot.lane.b32.xlu0 %v1457, 32
        %v1501 = vpop.permute.xlu0 %1500
        %1502 = vrot.lane.b32.xlu0 %v1458, 32
        %v1503 = vpop.permute.xlu0 %1502
        %1504 = vrot.lane.b32.xlu0 %v1459, 32
        %v1505 = vpop.permute.xlu0 %1504
        %1506 = vrot.lane.b32.xlu0 %v1460, 32
        %v1507 = vpop.permute.xlu0 %1506
        %1508 = vrot.lane.b32.xlu0 %v1461, 32
        %v1509 = vpop.permute.xlu0 %1508
        %1510 = vrot.lane.b32.xlu0 %v1462, 32
        %v1511 = vpop.permute.xlu0 %1510
        %1512 = vrot.lane.b32.xlu0 %v1463, 32
        %v1513 = vpop.permute.xlu0 %1512
        %1514 = vrot.lane.b32.xlu0 %v1464, 32
        %v1515 = vpop.permute.xlu0 %1514
        %1516 = vrot.lane.b32.xlu0 %v1465, 32
        %v1517 = vpop.permute.xlu0 %1516
        %1518 = vrot.lane.b32.xlu0 %v1466, 32
        %v1519 = vpop.permute.xlu0 %1518
        %1520 = vrot.lane.b32.xlu0 %v1467, 32
        %v1521 = vpop.permute.xlu0 %1520
        %v1540 = vadd.f32 %v1360, %v1487
        %v1541 = vadd.f32 %v1361, %v1489
        %v1542 = vadd.f32 %v1362, %v1491
        %v1543 = vadd.f32 %v1363, %v1493
        %v1544 = vadd.f32 %v1364, %v1495
        %v1545 = vadd.f32 %v1365, %v1497
        %v1546 = vadd.f32 %v1366, %v1499
        %v1547 = vadd.f32 %v1367, %v1501
        %v1548 = vadd.f32 %v1368, %v1503
        %v1549 = vadd.f32 %v1369, %v1505
        %v1550 = vadd.f32 %v1370, %v1507
        %v1551 = vadd.f32 %v1371, %v1509
        %v1552 = vadd.f32 %v1372, %v1511
        %v1553 = vadd.f32 %v1373, %v1513
        %v1554 = vadd.f32 %v1374, %v1515
        %v1555 = vadd.f32 %v1375, %v1517
        %v1556 = vadd.f32 %v1376, %v1519
        %v1557 = vadd.f32 %v1377, %v1521
        %v1558 = vtanh.pop %v1540
        %v1559 = vtanh.pop %v1541
        %v1560 = vtanh.pop %v1542
        %v1561 = vtanh.pop %v1543
        %v1562 = vtanh.pop %v1544
        %v1563 = vtanh.pop %v1545
        %v1564 = vtanh.pop %v1546
        %v1565 = vtanh.pop %v1547
        %v1566 = vtanh.pop %v1548
        %v1567 = vtanh.pop %v1549
        %v1568 = vtanh.pop %v1550
        %v1569 = vtanh.pop %v1551
        %v1570 = vtanh.pop %v1552
        %v1571 = vtanh.pop %v1553
        %v1572 = vtanh.pop %v1554
        %v1573 = vtanh.pop %v1555
        %v1574 = vtanh.pop %v1556
        %v1575 = vtanh.pop %v1557
        %1594 = vrot.lane.b32.xlu0 %v1558, 64
        %v1595 = vpop.permute.xlu0 %1594
        %1596 = vrot.lane.b32.xlu0 %v1559, 64
        %v1597 = vpop.permute.xlu0 %1596
        %1598 = vrot.lane.b32.xlu0 %v1560, 64
        %v1599 = vpop.permute.xlu0 %1598
        %1600 = vrot.lane.b32.xlu0 %v1561, 64
        %v1601 = vpop.permute.xlu0 %1600
        %1602 = vrot.lane.b32.xlu0 %v1562, 64
        %v1603 = vpop.permute.xlu0 %1602
        %1604 = vrot.lane.b32.xlu0 %v1563, 64
        %v1605 = vpop.permute.xlu0 %1604
        %1606 = vrot.lane.b32.xlu0 %v1564, 64
        %v1607 = vpop.permute.xlu0 %1606
        %1608 = vrot.lane.b32.xlu0 %v1565, 64
        %v1609 = vpop.permute.xlu0 %1608
        %1610 = vrot.lane.b32.xlu0 %v1566, 64
        %v1611 = vpop.permute.xlu0 %1610
        %1612 = vrot.lane.b32.xlu0 %v1567, 64
        %v1613 = vpop.permute.xlu0 %1612
        %1614 = vrot.lane.b32.xlu0 %v1568, 64
        %v1615 = vpop.permute.xlu0 %1614
        %1616 = vrot.lane.b32.xlu0 %v1569, 64
        %v1617 = vpop.permute.xlu0 %1616
        %1618 = vrot.lane.b32.xlu0 %v1570, 64
        %v1619 = vpop.permute.xlu0 %1618
        %1620 = vrot.lane.b32.xlu0 %v1571, 64
        %v1621 = vpop.permute.xlu0 %1620
        %1622 = vrot.lane.b32.xlu0 %v1572, 64
        %v1623 = vpop.permute.xlu0 %1622
        %1624 = vrot.lane.b32.xlu0 %v1573, 64
        %v1625 = vpop.permute.xlu0 %1624
        %1626 = vrot.lane.b32.xlu0 %v1574, 64
        %v1627 = vpop.permute.xlu0 %1626
        %1628 = vrot.lane.b32.xlu0 %v1575, 64
        %v1629 = vpop.permute.xlu0 %1628
        %v1648 = vmul.f32 %v1307, %v1595
        %v1649 = vmul.f32 %v1309, %v1597
        %v1650 = vmul.f32 %v1311, %v1599
        %v1651 = vmul.f32 %v1313, %v1601
        %v1652 = vmul.f32 %v1315, %v1603
        %v1653 = vmul.f32 %v1317, %v1605
        %v1654 = vmul.f32 %v1319, %v1607
        %v1655 = vmul.f32 %v1321, %v1609
        %v1656 = vmul.f32 %v1323, %v1611
        %v1657 = vmul.f32 %v1325, %v1613
        %v1658 = vmul.f32 %v1327, %v1615
        %v1659 = vmul.f32 %v1329, %v1617
        %v1660 = vmul.f32 %v1331, %v1619
        %v1661 = vmul.f32 %v1333, %v1621
        %v1662 = vmul.f32 %v1335, %v1623
        %v1663 = vmul.f32 %v1337, %v1625
        %v1664 = vmul.f32 %v1339, %v1627
        %v1665 = vmul.f32 %v1341, %v1629
        %s1666 = scalar_lea.vmem %s838, 72 [#allocation3]
        %v1667 = vld [vmem:[%s1666] sm:$0xf]
        %v1668 = vld [vmem:[%s1666 + $0x4] sm:$0xf]
        %v1669 = vld [vmem:[%s1666 + $0x8] sm:$0xf]
        %v1670 = vld [vmem:[%s1666 + $0xc] sm:$0xf]
        %v1671 = vld [vmem:[%s1666 + $0x10] sm:$0xf]
        %v1672 = vld [vmem:[%s1666 + $0x14] sm:$0xf]
        %v1673 = vld [vmem:[%s1666 + $0x18] sm:$0xf]
        %v1674 = vld [vmem:[%s1666 + $0x1c] sm:$0xf]
        %v1675 = vld [vmem:[%s1666 + $0x20] sm:$0xf]
        %v1676 = vld [vmem:[%s1666 + $0x24] sm:$0xf]
        %v1677 = vld [vmem:[%s1666 + $0x28] sm:$0xf]
        %v1678 = vld [vmem:[%s1666 + $0x2c] sm:$0xf]
        %v1679 = vld [vmem:[%s1666 + $0x30] sm:$0xf]
        %v1680 = vld [vmem:[%s1666 + $0x34] sm:$0xf]
        %v1681 = vld [vmem:[%s1666 + $0x38] sm:$0xf]
        %v1682 = vld [vmem:[%s1666 + $0x3c] sm:$0xf]
        %v1683 = vld [vmem:[%s1666 + $0x40] sm:$0xf]
        %v1684 = vld [vmem:[%s1666 + $0x44] sm:$0xf]
        %v1685 = vpack.c.bf16 %v1649, %v1648
        %v1686 = vpack.c.bf16 %v1651, %v1650
        %v1687 = vpack.c.bf16 %v1653, %v1652
        %v1688 = vpack.c.bf16 %v1655, %v1654
        %v1689 = vpack.c.bf16 %v1657, %v1656
        %v1690 = vpack.c.bf16 %v1659, %v1658
        %v1691 = vpack.c.bf16 %v1661, %v1660
        %v1692 = vpack.c.bf16 %v1663, %v1662
        %v1693 = vpack.c.bf16 %v1665, %v1664
        %1703 = vrot.lane.b32.xlu0 %v1685, 32
        %v1704 = vpop.permute.xlu0 %1703
        %1705 = vrot.lane.b32.xlu0 %v1686, 32
        %v1706 = vpop.permute.xlu0 %1705
        %1707 = vrot.lane.b32.xlu0 %v1687, 32
        %v1708 = vpop.permute.xlu0 %1707
        %1709 = vrot.lane.b32.xlu0 %v1688, 32
        %v1710 = vpop.permute.xlu0 %1709
        %1711 = vrot.lane.b32.xlu0 %v1689, 32
        %v1712 = vpop.permute.xlu0 %1711
        %1713 = vrot.lane.b32.xlu0 %v1690, 32
        %v1714 = vpop.permute.xlu0 %1713
        %1715 = vrot.lane.b32.xlu0 %v1691, 32
        %v1716 = vpop.permute.xlu0 %1715
        %1717 = vrot.lane.b32.xlu0 %v1692, 32
        %v1718 = vpop.permute.xlu0 %1717
        %1719 = vrot.lane.b32.xlu0 %v1693, 32
        %v1720 = vpop.permute.xlu0 %1719
        %v1722 = vsel %vm912, %v1704, 0
        %v1725 = vsel %vm912, %v1706, 0
        %v1728 = vsel %vm912, %v1708, 0
        %v1731 = vsel %vm912, %v1710, 0
        %v1734 = vsel %vm912, %v1712, 0
        %v1737 = vsel %vm912, %v1714, 0
        %v1740 = vsel %vm912, %v1716, 0
        %v1743 = vsel %vm912, %v1718, 0
        %v1746 = vsel %vm912, %v1720, 0
        %1748 = vmatprep.subr.bf16.mxu0 0
        %1749 = vmatpush1.bf16.msra.mxu0 0
        %1750 = vmatprep.subr.bf16.mxu0 0
        %1751 = vmatpush1.bf16.msra.mxu0 0
        %1752 = vmatprep.subr.bf16.mxu0 0
        %1753 = vmatpush1.bf16.msra.mxu0 0
        %1754 = vmatprep.subr.bf16.mxu0 0
        %1755 = vmatpush1.bf16.msra.mxu0 0
        %1756 = vmatprep.subr.bf16.mxu0 0
        %1757 = vmatpush1.bf16.msra.mxu0 0
        %1758 = vmatprep.subr.bf16.mxu0 0
        %1759 = vmatpush1.bf16.msra.mxu0 0
        %1760 = vmatprep.subr.bf16.mxu0 0
        %1761 = vmatpush1.bf16.msra.mxu0 %v909
        %1762 = vmatprep.subr.bf16.mxu0 0
        %1763 = vmatpush1.bf16.msra.mxu0 %v908
        %1764 = vmatprep.subr.bf16.mxu0 0
        %1765 = vmatpush2.bf16.msra.mxu0 0
        %1766 = vmatprep.subr.bf16.mxu0 0
        %1767 = vmatpush2.bf16.msra.mxu0 0
        %1768 = vmatprep.subr.bf16.mxu0 0
        %1769 = vmatpush2.bf16.msra.mxu0 0
        %1770 = vmatprep.subr.bf16.mxu0 0
        %1771 = vmatpush2.bf16.msra.mxu0 0
        %1772 = vmatprep.subr.bf16.mxu0 0
        %1773 = vmatpush2.bf16.msra.mxu0 0
        %1774 = vmatprep.subr.bf16.mxu0 0
        %1775 = vmatpush2.bf16.msra.mxu0 0
        %1776 = vmatprep.subr.bf16.mxu0 0
        %1777 = vmatpush2.bf16.msra.mxu0 0
        %1778 = vmatprep.subr.bf16.mxu0 0
        %1779 = vmatpush2.bf16.msra.mxu0 0
        %1780 = vmatprep.mubr.bf16.mxu0 0
        %1781 = vmatmul.mubr.bf16.gmra.mxu0 %v1722
        %v1782 = vpop.f32.mrf.mxu0
        %v1783 = vadd.f32 0.0, %v1782
        %v1784 = vpop.f32.mrf.mxu0
        %v1785 = vpop.f32.mrf.mxu0
        %v1786 = vadd.f32 0.0, %v1785
        %v1787 = vpop.f32.mrf.mxu0
        %1788 = vmatprep.mubr.bf16.mxu0 0
        %1789 = vmatmul.mubr.bf16.gmra.mxu0 %v1725
        %v1790 = vpop.f32.mrf.mxu0
        %v1791 = vadd.f32 0.0, %v1790
        %v1792 = vpop.f32.mrf.mxu0
        %v1793 = vpop.f32.mrf.mxu0
        %v1794 = vadd.f32 0.0, %v1793
        %v1795 = vpop.f32.mrf.mxu0
        %1796 = vmatprep.mubr.bf16.mxu0 0
        %1797 = vmatmul.mubr.bf16.gmra.mxu0 %v1728
        %v1798 = vpop.f32.mrf.mxu0
        %v1799 = vadd.f32 0.0, %v1798
        %v1800 = vpop.f32.mrf.mxu0
        %v1801 = vpop.f32.mrf.mxu0
        %v1802 = vadd.f32 0.0, %v1801
        %v1803 = vpop.f32.mrf.mxu0
        %1804 = vmatprep.mubr.bf16.mxu0 0
        %1805 = vmatmul.mubr.bf16.gmra.mxu0 %v1731
        %v1806 = vpop.f32.mrf.mxu0
        %v1807 = vadd.f32 0.0, %v1806
        %v1808 = vpop.f32.mrf.mxu0
        %v1809 = vpop.f32.mrf.mxu0
        %v1810 = vadd.f32 0.0, %v1809
        %v1811 = vpop.f32.mrf.mxu0
        %1812 = vmatprep.mubr.bf16.mxu0 0
        %1813 = vmatmul.mubr.bf16.gmra.mxu0 %v1734
        %v1814 = vpop.f32.mrf.mxu0
        %v1815 = vadd.f32 0.0, %v1814
        %v1816 = vpop.f32.mrf.mxu0
        %v1817 = vpop.f32.mrf.mxu0
        %v1818 = vadd.f32 0.0, %v1817
        %v1819 = vpop.f32.mrf.mxu0
        %1820 = vmatprep.mubr.bf16.mxu0 0
        %1821 = vmatmul.mubr.bf16.gmra.mxu0 %v1737
        %v1822 = vpop.f32.mrf.mxu0
        %v1823 = vadd.f32 0.0, %v1822
        %v1824 = vpop.f32.mrf.mxu0
        %v1825 = vpop.f32.mrf.mxu0
        %v1826 = vadd.f32 0.0, %v1825
        %v1827 = vpop.f32.mrf.mxu0
        %1828 = vmatprep.mubr.bf16.mxu0 0
        %1829 = vmatmul.mubr.bf16.gmra.mxu0 %v1740
        %v1830 = vpop.f32.mrf.mxu0
        %v1831 = vadd.f32 0.0, %v1830
        %v1832 = vpop.f32.mrf.mxu0
        %v1833 = vpop.f32.mrf.mxu0
        %v1834 = vadd.f32 0.0, %v1833
        %v1835 = vpop.f32.mrf.mxu0
        %1836 = vmatprep.mubr.bf16.mxu0 0
        %1837 = vmatmul.mubr.bf16.gmra.mxu0 %v1743
        %v1838 = vpop.f32.mrf.mxu0
        %v1839 = vadd.f32 0.0, %v1838
        %v1840 = vpop.f32.mrf.mxu0
        %v1841 = vpop.f32.mrf.mxu0
        %v1842 = vadd.f32 0.0, %v1841
        %v1843 = vpop.f32.mrf.mxu0
        %1844 = vmatprep.mubr.bf16.mxu0 0
        %1845 = vmatmul.mubr.bf16.gmra.mxu0 %v1746
        %v1846 = vpop.f32.mrf.mxu0
        %v1847 = vadd.f32 0.0, %v1846
        %v1848 = vpop.f32.mrf.mxu0
        %v1849 = vpop.f32.mrf.mxu0
        %v1850 = vadd.f32 0.0, %v1849
        %v1851 = vpop.f32.mrf.mxu0
        %1852 = vdwg.mxu0
        %v1871 = vunpack.c.l.b16 %v1667
        %v1872 = vunpack.c.l.b16 %v1668
        %v1873 = vunpack.c.l.b16 %v1669
        %v1874 = vunpack.c.l.b16 %v1670
        %v1875 = vunpack.c.l.b16 %v1671
        %v1876 = vunpack.c.l.b16 %v1672
        %v1877 = vunpack.c.l.b16 %v1673
        %v1878 = vunpack.c.l.b16 %v1674
        %v1879 = vunpack.c.l.b16 %v1675
        %v1880 = vunpack.c.l.b16 %v1676
        %v1881 = vunpack.c.l.b16 %v1677
        %v1882 = vunpack.c.l.b16 %v1678
        %v1883 = vunpack.c.l.b16 %v1679
        %v1884 = vunpack.c.l.b16 %v1680
        %v1885 = vunpack.c.l.b16 %v1681
        %v1886 = vunpack.c.l.b16 %v1682
        %v1887 = vunpack.c.l.b16 %v1683
        %v1888 = vunpack.c.l.b16 %v1684
        %v1889 = vpack.c.b16 %v1872, %v1871
        %v1890 = vpack.c.b16 %v1874, %v1873
        %v1891 = vpack.c.b16 %v1876, %v1875
        %v1892 = vpack.c.b16 %v1878, %v1877
        %v1893 = vpack.c.b16 %v1880, %v1879
        %v1894 = vpack.c.b16 %v1882, %v1881
        %v1895 = vpack.c.b16 %v1884, %v1883
        %v1896 = vpack.c.b16 %v1886, %v1885
        %v1897 = vpack.c.b16 %v1888, %v1887
        %v1899 = vsel %vm912, %v1889, 0
        %v1902 = vsel %vm912, %v1890, 0
        %v1905 = vsel %vm912, %v1891, 0
        %v1908 = vsel %vm912, %v1892, 0
        %v1911 = vsel %vm912, %v1893, 0
        %v1914 = vsel %vm912, %v1894, 0
        %v1917 = vsel %vm912, %v1895, 0
        %v1920 = vsel %vm912, %v1896, 0
        %v1923 = vsel %vm912, %v1897, 0
        %1925 = vmatprep.subr.bf16.mxu0 0
        %1926 = vmatpush1.bf16.msra.mxu0 0
        %1927 = vmatprep.subr.bf16.mxu0 0
        %1928 = vmatpush1.bf16.msra.mxu0 0
        %1929 = vmatprep.subr.bf16.mxu0 0
        %1930 = vmatpush1.bf16.msra.mxu0 0
        %1931 = vmatprep.subr.bf16.mxu0 0
        %1932 = vmatpush1.bf16.msra.mxu0 0
        %1933 = vmatprep.subr.bf16.mxu0 0
        %1934 = vmatpush1.bf16.msra.mxu0 0
        %1935 = vmatprep.subr.bf16.mxu0 0
        %1936 = vmatpush1.bf16.msra.mxu0 0
        %1937 = vmatprep.subr.bf16.mxu0 0
        %1938 = vmatpush1.bf16.msra.mxu0 %v1075
        %1939 = vmatprep.subr.bf16.mxu0 0
        %1940 = vmatpush1.bf16.msra.mxu0 %v1074
        %1941 = vmatprep.subr.bf16.mxu0 0
        %1942 = vmatpush2.bf16.msra.mxu0 0
        %1943 = vmatprep.subr.bf16.mxu0 0
        %1944 = vmatpush2.bf16.msra.mxu0 0
        %1945 = vmatprep.subr.bf16.mxu0 0
        %1946 = vmatpush2.bf16.msra.mxu0 0
        %1947 = vmatprep.subr.bf16.mxu0 0
        %1948 = vmatpush2.bf16.msra.mxu0 0
        %1949 = vmatprep.subr.bf16.mxu0 0
        %1950 = vmatpush2.bf16.msra.mxu0 0
        %1951 = vmatprep.subr.bf16.mxu0 0
        %1952 = vmatpush2.bf16.msra.mxu0 0
        %1953 = vmatprep.subr.bf16.mxu0 0
        %1954 = vmatpush2.bf16.msra.mxu0 0
        %1955 = vmatprep.subr.bf16.mxu0 0
        %1956 = vmatpush2.bf16.msra.mxu0 0
        %1957 = vmatprep.mubr.bf16.mxu0 0
        %1958 = vmatmul.mubr.bf16.gmra.mxu0 %v1899
        %v1959 = vpop.f32.mrf.mxu0
        %v1960 = vadd.f32 %v1783, %v1959
        %v1961 = vpop.f32.mrf.mxu0
        %v1962 = vpop.f32.mrf.mxu0
        %v1963 = vadd.f32 %v1786, %v1962
        %v1964 = vpop.f32.mrf.mxu0
        %1965 = vmatprep.mubr.bf16.mxu0 0
        %1966 = vmatmul.mubr.bf16.gmra.mxu0 %v1902
        %v1967 = vpop.f32.mrf.mxu0
        %v1968 = vadd.f32 %v1791, %v1967
        %v1969 = vpop.f32.mrf.mxu0
        %v1970 = vpop.f32.mrf.mxu0
        %v1971 = vadd.f32 %v1794, %v1970
        %v1972 = vpop.f32.mrf.mxu0
        %1973 = vmatprep.mubr.bf16.mxu0 0
        %1974 = vmatmul.mubr.bf16.gmra.mxu0 %v1905
        %v1975 = vpop.f32.mrf.mxu0
        %v1976 = vadd.f32 %v1799, %v1975
        %v1977 = vpop.f32.mrf.mxu0
        %v1978 = vpop.f32.mrf.mxu0
        %v1979 = vadd.f32 %v1802, %v1978
        %v1980 = vpop.f32.mrf.mxu0
        %1981 = vmatprep.mubr.bf16.mxu0 0
        %1982 = vmatmul.mubr.bf16.gmra.mxu0 %v1908
        %v1983 = vpop.f32.mrf.mxu0
        %v1984 = vadd.f32 %v1807, %v1983
        %v1985 = vpop.f32.mrf.mxu0
        %v1986 = vpop.f32.mrf.mxu0
        %v1987 = vadd.f32 %v1810, %v1986
        %v1988 = vpop.f32.mrf.mxu0
        %1989 = vmatprep.mubr.bf16.mxu0 0
        %1990 = vmatmul.mubr.bf16.gmra.mxu0 %v1911
        %v1991 = vpop.f32.mrf.mxu0
        %v1992 = vadd.f32 %v1815, %v1991
        %v1993 = vpop.f32.mrf.mxu0
        %v1994 = vpop.f32.mrf.mxu0
        %v1995 = vadd.f32 %v1818, %v1994
        %v1996 = vpop.f32.mrf.mxu0
        %1997 = vmatprep.mubr.bf16.mxu0 0
        %1998 = vmatmul.mubr.bf16.gmra.mxu0 %v1914
        %v1999 = vpop.f32.mrf.mxu0
        %v2000 = vadd.f32 %v1823, %v1999
        %v2001 = vpop.f32.mrf.mxu0
        %v2002 = vpop.f32.mrf.mxu0
        %v2003 = vadd.f32 %v1826, %v2002
        %v2004 = vpop.f32.mrf.mxu0
        %2005 = vmatprep.mubr.bf16.mxu0 0
        %2006 = vmatmul.mubr.bf16.gmra.mxu0 %v1917
        %v2007 = vpop.f32.mrf.mxu0
        %v2008 = vadd.f32 %v1831, %v2007
        %v2009 = vpop.f32.mrf.mxu0
        %v2010 = vpop.f32.mrf.mxu0
        %v2011 = vadd.f32 %v1834, %v2010
        %v2012 = vpop.f32.mrf.mxu0
        %2013 = vmatprep.mubr.bf16.mxu0 0
        %2014 = vmatmul.mubr.bf16.gmra.mxu0 %v1920
        %v2015 = vpop.f32.mrf.mxu0
        %v2016 = vadd.f32 %v1839, %v2015
        %v2017 = vpop.f32.mrf.mxu0
        %v2018 = vpop.f32.mrf.mxu0
        %v2019 = vadd.f32 %v1842, %v2018
        %v2020 = vpop.f32.mrf.mxu0
        %2021 = vmatprep.mubr.bf16.mxu0 0
        %2022 = vmatmul.mubr.bf16.gmra.mxu0 %v1923
        %v2023 = vpop.f32.mrf.mxu0
        %v2024 = vadd.f32 %v1847, %v2023
        %v2025 = vpop.f32.mrf.mxu0
        %v2026 = vpop.f32.mrf.mxu0
        %v2027 = vadd.f32 %v1850, %v2026
        %v2028 = vpop.f32.mrf.mxu0
        %2029 = vdwg.mxu0
        %v2030 = vadd.f32 %v1960, %v1214
        %v2031 = vadd.f32 %v1963, %v1214
        %v2032 = vadd.f32 %v1968, %v1214
        %v2033 = vadd.f32 %v1971, %v1214
        %v2034 = vadd.f32 %v1976, %v1214
        %v2035 = vadd.f32 %v1979, %v1214
        %v2036 = vadd.f32 %v1984, %v1214
        %v2037 = vadd.f32 %v1987, %v1214
        %v2038 = vadd.f32 %v1992, %v1214
        %v2039 = vadd.f32 %v1995, %v1214
        %v2040 = vadd.f32 %v2000, %v1214
        %v2041 = vadd.f32 %v2003, %v1214
        %v2042 = vadd.f32 %v2008, %v1214
        %v2043 = vadd.f32 %v2011, %v1214
        %v2044 = vadd.f32 %v2016, %v1214
        %v2045 = vadd.f32 %v2019, %v1214
        %v2046 = vadd.f32 %v2024, %v1214
        %v2047 = vadd.f32 %v2027, %v1214
        %v2048 = vxor.u32 %v2030, 2147483648
        %v2049 = vxor.u32 %v2031, 2147483648
        %v2050 = vxor.u32 %v2032, 2147483648
        %v2051 = vxor.u32 %v2033, 2147483648
        %v2052 = vxor.u32 %v2034, 2147483648
        %v2053 = vxor.u32 %v2035, 2147483648
        %v2054 = vxor.u32 %v2036, 2147483648
        %v2055 = vxor.u32 %v2037, 2147483648
        %v2056 = vxor.u32 %v2038, 2147483648
        %v2057 = vxor.u32 %v2039, 2147483648
        %v2058 = vxor.u32 %v2040, 2147483648
        %v2059 = vxor.u32 %v2041, 2147483648
        %v2060 = vxor.u32 %v2042, 2147483648
        %v2061 = vxor.u32 %v2043, 2147483648
        %v2062 = vxor.u32 %v2044, 2147483648
        %v2063 = vxor.u32 %v2045, 2147483648
        %v2064 = vxor.u32 %v2046, 2147483648
        %v2065 = vxor.u32 %v2047, 2147483648
        %v2066 = vmul.f32 %v2048, 1.442695
        %v2067 = vpow.pop %v2066
        %v2068 = vmul.f32 %v2049, 1.442695
        %v2069 = vpow.pop %v2068
        %v2070 = vmul.f32 %v2050, 1.442695
        %v2071 = vpow.pop %v2070
        %v2072 = vmul.f32 %v2051, 1.442695
        %v2073 = vpow.pop %v2072
        %v2074 = vmul.f32 %v2052, 1.442695
        %v2075 = vpow.pop %v2074
        %v2076 = vmul.f32 %v2053, 1.442695
        %v2077 = vpow.pop %v2076
        %v2078 = vmul.f32 %v2054, 1.442695
        %v2079 = vpow.pop %v2078
        %v2080 = vmul.f32 %v2055, 1.442695
        %v2081 = vpow.pop %v2080
        %v2082 = vmul.f32 %v2056, 1.442695
        %v2083 = vpow.pop %v2082
        %v2084 = vmul.f32 %v2057, 1.442695
        %v2085 = vpow.pop %v2084
        %v2086 = vmul.f32 %v2058, 1.442695
        %v2087 = vpow.pop %v2086
        %v2088 = vmul.f32 %v2059, 1.442695
        %v2089 = vpow.pop %v2088
        %v2090 = vmul.f32 %v2060, 1.442695
        %v2091 = vpow.pop %v2090
        %v2092 = vmul.f32 %v2061, 1.442695
        %v2093 = vpow.pop %v2092
        %v2094 = vmul.f32 %v2062, 1.442695
        %v2095 = vpow.pop %v2094
        %v2096 = vmul.f32 %v2063, 1.442695
        %v2097 = vpow.pop %v2096
        %v2098 = vmul.f32 %v2064, 1.442695
        %v2099 = vpow.pop %v2098
        %v2100 = vmul.f32 %v2065, 1.442695
        %v2101 = vpow.pop %v2100
        %v2102 = vadd.f32 %v2067, 1.0
        %v2103 = vadd.f32 %v2069, 1.0
        %v2104 = vadd.f32 %v2071, 1.0
        %v2105 = vadd.f32 %v2073, 1.0
        %v2106 = vadd.f32 %v2075, 1.0
        %v2107 = vadd.f32 %v2077, 1.0
        %v2108 = vadd.f32 %v2079, 1.0
        %v2109 = vadd.f32 %v2081, 1.0
        %v2110 = vadd.f32 %v2083, 1.0
        %v2111 = vadd.f32 %v2085, 1.0
        %v2112 = vadd.f32 %v2087, 1.0
        %v2113 = vadd.f32 %v2089, 1.0
        %v2114 = vadd.f32 %v2091, 1.0
        %v2115 = vadd.f32 %v2093, 1.0
        %v2116 = vadd.f32 %v2095, 1.0
        %v2117 = vadd.f32 %v2097, 1.0
        %v2118 = vadd.f32 %v2099, 1.0
        %v2119 = vadd.f32 %v2101, 1.0
        %v2120 = vrcp.pop %v2102
        %v2121 = vmul.f32 1.0, %v2120
        %v2122 = vrcp.pop %v2103
        %v2123 = vmul.f32 1.0, %v2122
        %v2124 = vrcp.pop %v2104
        %v2125 = vmul.f32 1.0, %v2124
        %v2126 = vrcp.pop %v2105
        %v2127 = vmul.f32 1.0, %v2126
        %v2128 = vrcp.pop %v2106
        %v2129 = vmul.f32 1.0, %v2128
        %v2130 = vrcp.pop %v2107
        %v2131 = vmul.f32 1.0, %v2130
        %v2132 = vrcp.pop %v2108
        %v2133 = vmul.f32 1.0, %v2132
        %v2134 = vrcp.pop %v2109
        %v2135 = vmul.f32 1.0, %v2134
        %v2136 = vrcp.pop %v2110
        %v2137 = vmul.f32 1.0, %v2136
        %v2138 = vrcp.pop %v2111
        %v2139 = vmul.f32 1.0, %v2138
        %v2140 = vrcp.pop %v2112
        %v2141 = vmul.f32 1.0, %v2140
        %v2142 = vrcp.pop %v2113
        %v2143 = vmul.f32 1.0, %v2142
        %v2144 = vrcp.pop %v2114
        %v2145 = vmul.f32 1.0, %v2144
        %v2146 = vrcp.pop %v2115
        %v2147 = vmul.f32 1.0, %v2146
        %v2148 = vrcp.pop %v2116
        %v2149 = vmul.f32 1.0, %v2148
        %v2150 = vrcp.pop %v2117
        %v2151 = vmul.f32 1.0, %v2150
        %v2152 = vrcp.pop %v2118
        %v2153 = vmul.f32 1.0, %v2152
        %v2154 = vrcp.pop %v2119
        %v2155 = vmul.f32 1.0, %v2154
        %v2156 = vtanh.pop %v2030
        %v2157 = vtanh.pop %v2031
        %v2158 = vtanh.pop %v2032
        %v2159 = vtanh.pop %v2033
        %v2160 = vtanh.pop %v2034
        %v2161 = vtanh.pop %v2035
        %v2162 = vtanh.pop %v2036
        %v2163 = vtanh.pop %v2037
        %v2164 = vtanh.pop %v2038
        %v2165 = vtanh.pop %v2039
        %v2166 = vtanh.pop %v2040
        %v2167 = vtanh.pop %v2041
        %v2168 = vtanh.pop %v2042
        %v2169 = vtanh.pop %v2043
        %v2170 = vtanh.pop %v2044
        %v2171 = vtanh.pop %v2045
        %v2172 = vtanh.pop %v2046
        %v2173 = vtanh.pop %v2047
        %v2174 = vmul.f32 %v2121, %v1540
        %v2175 = vmul.f32 %v2123, %v1541
        %v2176 = vmul.f32 %v2125, %v1542
        %v2177 = vmul.f32 %v2127, %v1543
        %v2178 = vmul.f32 %v2129, %v1544
        %v2179 = vmul.f32 %v2131, %v1545
        %v2180 = vmul.f32 %v2133, %v1546
        %v2181 = vmul.f32 %v2135, %v1547
        %v2182 = vmul.f32 %v2137, %v1548
        %v2183 = vmul.f32 %v2139, %v1549
        %v2184 = vmul.f32 %v2141, %v1550
        %v2185 = vmul.f32 %v2143, %v1551
        %v2186 = vmul.f32 %v2145, %v1552
        %v2187 = vmul.f32 %v2147, %v1553
        %v2188 = vmul.f32 %v2149, %v1554
        %v2189 = vmul.f32 %v2151, %v1555
        %v2190 = vmul.f32 %v2153, %v1556
        %v2191 = vmul.f32 %v2155, %v1557
        %2210 = vrot.lane.b32.xlu0 %v2156, 64
        %v2211 = vpop.permute.xlu0 %2210
        %2212 = vrot.lane.b32.xlu0 %v2157, 64
        %v2213 = vpop.permute.xlu0 %2212
        %2214 = vrot.lane.b32.xlu0 %v2158, 64
        %v2215 = vpop.permute.xlu0 %2214
        %2216 = vrot.lane.b32.xlu0 %v2159, 64
        %v2217 = vpop.permute.xlu0 %2216
        %2218 = vrot.lane.b32.xlu0 %v2160, 64
        %v2219 = vpop.permute.xlu0 %2218
        %2220 = vrot.lane.b32.xlu0 %v2161, 64
        %v2221 = vpop.permute.xlu0 %2220
        %2222 = vrot.lane.b32.xlu0 %v2162, 64
        %v2223 = vpop.permute.xlu0 %2222
        %2224 = vrot.lane.b32.xlu0 %v2163, 64
        %v2225 = vpop.permute.xlu0 %2224
        %2226 = vrot.lane.b32.xlu0 %v2164, 64
        %v2227 = vpop.permute.xlu0 %2226
        %2228 = vrot.lane.b32.xlu0 %v2165, 64
        %v2229 = vpop.permute.xlu0 %2228
        %2230 = vrot.lane.b32.xlu0 %v2166, 64
        %v2231 = vpop.permute.xlu0 %2230
        %2232 = vrot.lane.b32.xlu0 %v2167, 64
        %v2233 = vpop.permute.xlu0 %2232
        %2234 = vrot.lane.b32.xlu0 %v2168, 64
        %v2235 = vpop.permute.xlu0 %2234
        %2236 = vrot.lane.b32.xlu0 %v2169, 64
        %v2237 = vpop.permute.xlu0 %2236
        %2238 = vrot.lane.b32.xlu0 %v2170, 64
        %v2239 = vpop.permute.xlu0 %2238
        %2240 = vrot.lane.b32.xlu0 %v2171, 64
        %v2241 = vpop.permute.xlu0 %2240
        %2242 = vrot.lane.b32.xlu0 %v2172, 64
        %v2243 = vpop.permute.xlu0 %2242
        %2244 = vrot.lane.b32.xlu0 %v2173, 64
        %v2245 = vpop.permute.xlu0 %2244
        %v2264 = vmul.f32 %v2121, %v2211
        %v2265 = vmul.f32 %v2123, %v2213
        %v2266 = vmul.f32 %v2125, %v2215
        %v2267 = vmul.f32 %v2127, %v2217
        %v2268 = vmul.f32 %v2129, %v2219
        %v2269 = vmul.f32 %v2131, %v2221
        %v2270 = vmul.f32 %v2133, %v2223
        %v2271 = vmul.f32 %v2135, %v2225
        %v2272 = vmul.f32 %v2137, %v2227
        %v2273 = vmul.f32 %v2139, %v2229
        %v2274 = vmul.f32 %v2141, %v2231
        %v2275 = vmul.f32 %v2143, %v2233
        %v2276 = vmul.f32 %v2145, %v2235
        %v2277 = vmul.f32 %v2147, %v2237
        %v2278 = vmul.f32 %v2149, %v2239
        %v2279 = vmul.f32 %v2151, %v2241
        %v2280 = vmul.f32 %v2153, %v2243
        %v2281 = vmul.f32 %v2155, %v2245
        %2300 = vrot.lane.b32.xlu0 %v2264, 32
        %v2301 = vpop.permute.xlu0 %2300
        %2302 = vrot.lane.b32.xlu0 %v2265, 32
        %v2303 = vpop.permute.xlu0 %2302
        %2304 = vrot.lane.b32.xlu0 %v2266, 32
        %v2305 = vpop.permute.xlu0 %2304
        %2306 = vrot.lane.b32.xlu0 %v2267, 32
        %v2307 = vpop.permute.xlu0 %2306
        %2308 = vrot.lane.b32.xlu0 %v2268, 32
        %v2309 = vpop.permute.xlu0 %2308
        %2310 = vrot.lane.b32.xlu0 %v2269, 32
        %v2311 = vpop.permute.xlu0 %2310
        %2312 = vrot.lane.b32.xlu0 %v2270, 32
        %v2313 = vpop.permute.xlu0 %2312
        %2314 = vrot.lane.b32.xlu0 %v2271, 32
        %v2315 = vpop.permute.xlu0 %2314
        %2316 = vrot.lane.b32.xlu0 %v2272, 32
        %v2317 = vpop.permute.xlu0 %2316
        %2318 = vrot.lane.b32.xlu0 %v2273, 32
        %v2319 = vpop.permute.xlu0 %2318
        %2320 = vrot.lane.b32.xlu0 %v2274, 32
        %v2321 = vpop.permute.xlu0 %2320
        %2322 = vrot.lane.b32.xlu0 %v2275, 32
        %v2323 = vpop.permute.xlu0 %2322
        %2324 = vrot.lane.b32.xlu0 %v2276, 32
        %v2325 = vpop.permute.xlu0 %2324
        %2326 = vrot.lane.b32.xlu0 %v2277, 32
        %v2327 = vpop.permute.xlu0 %2326
        %2328 = vrot.lane.b32.xlu0 %v2278, 32
        %v2329 = vpop.permute.xlu0 %2328
        %2330 = vrot.lane.b32.xlu0 %v2279, 32
        %v2331 = vpop.permute.xlu0 %2330
        %2332 = vrot.lane.b32.xlu0 %v2280, 32
        %v2333 = vpop.permute.xlu0 %2332
        %2334 = vrot.lane.b32.xlu0 %v2281, 32
        %v2335 = vpop.permute.xlu0 %2334
        %v2354 = vadd.f32 %v2174, %v2301
        %v2355 = vadd.f32 %v2175, %v2303
        %v2356 = vadd.f32 %v2176, %v2305
        %v2357 = vadd.f32 %v2177, %v2307
        %v2358 = vadd.f32 %v2178, %v2309
        %v2359 = vadd.f32 %v2179, %v2311
        %v2360 = vadd.f32 %v2180, %v2313
        %v2361 = vadd.f32 %v2181, %v2315
        %v2362 = vadd.f32 %v2182, %v2317
        %v2363 = vadd.f32 %v2183, %v2319
        %v2364 = vadd.f32 %v2184, %v2321
        %v2365 = vadd.f32 %v2185, %v2323
        %v2366 = vadd.f32 %v2186, %v2325
        %v2367 = vadd.f32 %v2187, %v2327
        %v2368 = vadd.f32 %v2188, %v2329
        %v2369 = vadd.f32 %v2189, %v2331
        %v2370 = vadd.f32 %v2190, %v2333
        %v2371 = vadd.f32 %v2191, %v2335
        %v2372 = vtanh.pop %v2354
        %v2373 = vtanh.pop %v2355
        %v2374 = vtanh.pop %v2356
        %v2375 = vtanh.pop %v2357
        %v2376 = vtanh.pop %v2358
        %v2377 = vtanh.pop %v2359
        %v2378 = vtanh.pop %v2360
        %v2379 = vtanh.pop %v2361
        %v2380 = vtanh.pop %v2362
        %v2381 = vtanh.pop %v2363
        %v2382 = vtanh.pop %v2364
        %v2383 = vtanh.pop %v2365
        %v2384 = vtanh.pop %v2366
        %v2385 = vtanh.pop %v2367
        %v2386 = vtanh.pop %v2368
        %v2387 = vtanh.pop %v2369
        %v2388 = vtanh.pop %v2370
        %v2389 = vtanh.pop %v2371
        %2408 = vrot.lane.b32.xlu0 %v2372, 64
        %v2409 = vpop.permute.xlu0 %2408
        %2410 = vrot.lane.b32.xlu0 %v2373, 64
        %v2411 = vpop.permute.xlu0 %2410
        %2412 = vrot.lane.b32.xlu0 %v2374, 64
        %v2413 = vpop.permute.xlu0 %2412
        %2414 = vrot.lane.b32.xlu0 %v2375, 64
        %v2415 = vpop.permute.xlu0 %2414
        %2416 = vrot.lane.b32.xlu0 %v2376, 64
        %v2417 = vpop.permute.xlu0 %2416
        %2418 = vrot.lane.b32.xlu0 %v2377, 64
        %v2419 = vpop.permute.xlu0 %2418
        %2420 = vrot.lane.b32.xlu0 %v2378, 64
        %v2421 = vpop.permute.xlu0 %2420
        %2422 = vrot.lane.b32.xlu0 %v2379, 64
        %v2423 = vpop.permute.xlu0 %2422
        %2424 = vrot.lane.b32.xlu0 %v2380, 64
        %v2425 = vpop.permute.xlu0 %2424
        %2426 = vrot.lane.b32.xlu0 %v2381, 64
        %v2427 = vpop.permute.xlu0 %2426
        %2428 = vrot.lane.b32.xlu0 %v2382, 64
        %v2429 = vpop.permute.xlu0 %2428
        %2430 = vrot.lane.b32.xlu0 %v2383, 64
        %v2431 = vpop.permute.xlu0 %2430
        %2432 = vrot.lane.b32.xlu0 %v2384, 64
        %v2433 = vpop.permute.xlu0 %2432
        %2434 = vrot.lane.b32.xlu0 %v2385, 64
        %v2435 = vpop.permute.xlu0 %2434
        %2436 = vrot.lane.b32.xlu0 %v2386, 64
        %v2437 = vpop.permute.xlu0 %2436
        %2438 = vrot.lane.b32.xlu0 %v2387, 64
        %v2439 = vpop.permute.xlu0 %2438
        %2440 = vrot.lane.b32.xlu0 %v2388, 64
        %v2441 = vpop.permute.xlu0 %2440
        %2442 = vrot.lane.b32.xlu0 %v2389, 64
        %v2443 = vpop.permute.xlu0 %2442
        %v2462 = vmul.f32 %v2121, %v2409
        %v2463 = vmul.f32 %v2123, %v2411
        %v2464 = vmul.f32 %v2125, %v2413
        %v2465 = vmul.f32 %v2127, %v2415
        %v2466 = vmul.f32 %v2129, %v2417
        %v2467 = vmul.f32 %v2131, %v2419
        %v2468 = vmul.f32 %v2133, %v2421
        %v2469 = vmul.f32 %v2135, %v2423
        %v2470 = vmul.f32 %v2137, %v2425
        %v2471 = vmul.f32 %v2139, %v2427
        %v2472 = vmul.f32 %v2141, %v2429
        %v2473 = vmul.f32 %v2143, %v2431
        %v2474 = vmul.f32 %v2145, %v2433
        %v2475 = vmul.f32 %v2147, %v2435
        %v2476 = vmul.f32 %v2149, %v2437
        %v2477 = vmul.f32 %v2151, %v2439
        %v2478 = vmul.f32 %v2153, %v2441
        %v2479 = vmul.f32 %v2155, %v2443
        %s2480 = scalar_lea.vmem %s838, 144 [#allocation3]
        %v2481 = vld [vmem:[%s2480] sm:$0xf]
        %v2482 = vld [vmem:[%s2480 + $0x4] sm:$0xf]
        %v2483 = vld [vmem:[%s2480 + $0x8] sm:$0xf]
        %v2484 = vld [vmem:[%s2480 + $0xc] sm:$0xf]
        %v2485 = vld [vmem:[%s2480 + $0x10] sm:$0xf]
        %v2486 = vld [vmem:[%s2480 + $0x14] sm:$0xf]
        %v2487 = vld [vmem:[%s2480 + $0x18] sm:$0xf]
        %v2488 = vld [vmem:[%s2480 + $0x1c] sm:$0xf]
        %v2489 = vld [vmem:[%s2480 + $0x20] sm:$0xf]
        %v2490 = vld [vmem:[%s2480 + $0x24] sm:$0xf]
        %v2491 = vld [vmem:[%s2480 + $0x28] sm:$0xf]
        %v2492 = vld [vmem:[%s2480 + $0x2c] sm:$0xf]
        %v2493 = vld [vmem:[%s2480 + $0x30] sm:$0xf]
        %v2494 = vld [vmem:[%s2480 + $0x34] sm:$0xf]
        %v2495 = vld [vmem:[%s2480 + $0x38] sm:$0xf]
        %v2496 = vld [vmem:[%s2480 + $0x3c] sm:$0xf]
        %v2497 = vld [vmem:[%s2480 + $0x40] sm:$0xf]
        %v2498 = vld [vmem:[%s2480 + $0x44] sm:$0xf]
        %v2499 = vpack.c.bf16 %v2463, %v2462
        %v2500 = vpack.c.bf16 %v2465, %v2464
        %v2501 = vpack.c.bf16 %v2467, %v2466
        %v2502 = vpack.c.bf16 %v2469, %v2468
        %v2503 = vpack.c.bf16 %v2471, %v2470
        %v2504 = vpack.c.bf16 %v2473, %v2472
        %v2505 = vpack.c.bf16 %v2475, %v2474
        %v2506 = vpack.c.bf16 %v2477, %v2476
        %v2507 = vpack.c.bf16 %v2479, %v2478
        %2517 = vrot.lane.b32.xlu0 %v2499, 32
        %v2518 = vpop.permute.xlu0 %2517
        %2519 = vrot.lane.b32.xlu0 %v2500, 32
        %v2520 = vpop.permute.xlu0 %2519
        %2521 = vrot.lane.b32.xlu0 %v2501, 32
        %v2522 = vpop.permute.xlu0 %2521
        %2523 = vrot.lane.b32.xlu0 %v2502, 32
        %v2524 = vpop.permute.xlu0 %2523
        %2525 = vrot.lane.b32.xlu0 %v2503, 32
        %v2526 = vpop.permute.xlu0 %2525
        %2527 = vrot.lane.b32.xlu0 %v2504, 32
        %v2528 = vpop.permute.xlu0 %2527
        %2529 = vrot.lane.b32.xlu0 %v2505, 32
        %v2530 = vpop.permute.xlu0 %2529
        %2531 = vrot.lane.b32.xlu0 %v2506, 32
        %v2532 = vpop.permute.xlu0 %2531
        %2533 = vrot.lane.b32.xlu0 %v2507, 32
        %v2534 = vpop.permute.xlu0 %2533
        %v2536 = vsel %vm912, %v2518, 0
        %v2539 = vsel %vm912, %v2520, 0
        %v2542 = vsel %vm912, %v2522, 0
        %v2545 = vsel %vm912, %v2524, 0
        %v2548 = vsel %vm912, %v2526, 0
        %v2551 = vsel %vm912, %v2528, 0
        %v2554 = vsel %vm912, %v2530, 0
        %v2557 = vsel %vm912, %v2532, 0
        %v2560 = vsel %vm912, %v2534, 0
        %2562 = vmatprep.subr.bf16.mxu0 0
        %2563 = vmatpush1.bf16.msra.mxu0 0
        %2564 = vmatprep.subr.bf16.mxu0 0
        %2565 = vmatpush1.bf16.msra.mxu0 0
        %2566 = vmatprep.subr.bf16.mxu0 0
        %2567 = vmatpush1.bf16.msra.mxu0 0
        %2568 = vmatprep.subr.bf16.mxu0 0
        %2569 = vmatpush1.bf16.msra.mxu0 0
        %2570 = vmatprep.subr.bf16.mxu0 0
        %2571 = vmatpush1.bf16.msra.mxu0 0
        %2572 = vmatprep.subr.bf16.mxu0 0
        %2573 = vmatpush1.bf16.msra.mxu0 0
        %2574 = vmatprep.subr.bf16.mxu0 0
        %2575 = vmatpush1.bf16.msra.mxu0 %v909
        %2576 = vmatprep.subr.bf16.mxu0 0
        %2577 = vmatpush1.bf16.msra.mxu0 %v908
        %2578 = vmatprep.subr.bf16.mxu0 0
        %2579 = vmatpush2.bf16.msra.mxu0 0
        %2580 = vmatprep.subr.bf16.mxu0 0
        %2581 = vmatpush2.bf16.msra.mxu0 0
        %2582 = vmatprep.subr.bf16.mxu0 0
        %2583 = vmatpush2.bf16.msra.mxu0 0
        %2584 = vmatprep.subr.bf16.mxu0 0
        %2585 = vmatpush2.bf16.msra.mxu0 0
        %2586 = vmatprep.subr.bf16.mxu0 0
        %2587 = vmatpush2.bf16.msra.mxu0 0
        %2588 = vmatprep.subr.bf16.mxu0 0
        %2589 = vmatpush2.bf16.msra.mxu0 0
        %2590 = vmatprep.subr.bf16.mxu0 0
        %2591 = vmatpush2.bf16.msra.mxu0 0
        %2592 = vmatprep.subr.bf16.mxu0 0
        %2593 = vmatpush2.bf16.msra.mxu0 0
        %2594 = vmatprep.mubr.bf16.mxu0 0
        %2595 = vmatmul.mubr.bf16.gmra.mxu0 %v2536
        %v2596 = vpop.f32.mrf.mxu0
        %v2597 = vadd.f32 0.0, %v2596
        %v2598 = vpop.f32.mrf.mxu0
        %v2599 = vpop.f32.mrf.mxu0
        %v2600 = vadd.f32 0.0, %v2599
        %v2601 = vpop.f32.mrf.mxu0
        %2602 = vmatprep.mubr.bf16.mxu0 0
        %2603 = vmatmul.mubr.bf16.gmra.mxu0 %v2539
        %v2604 = vpop.f32.mrf.mxu0
        %v2605 = vadd.f32 0.0, %v2604
        %v2606 = vpop.f32.mrf.mxu0
        %v2607 = vpop.f32.mrf.mxu0
        %v2608 = vadd.f32 0.0, %v2607
        %v2609 = vpop.f32.mrf.mxu0
        %2610 = vmatprep.mubr.bf16.mxu0 0
        %2611 = vmatmul.mubr.bf16.gmra.mxu0 %v2542
        %v2612 = vpop.f32.mrf.mxu0
        %v2613 = vadd.f32 0.0, %v2612
        %v2614 = vpop.f32.mrf.mxu0
        %v2615 = vpop.f32.mrf.mxu0
        %v2616 = vadd.f32 0.0, %v2615
        %v2617 = vpop.f32.mrf.mxu0
        %2618 = vmatprep.mubr.bf16.mxu0 0
        %2619 = vmatmul.mubr.bf16.gmra.mxu0 %v2545
        %v2620 = vpop.f32.mrf.mxu0
        %v2621 = vadd.f32 0.0, %v2620
        %v2622 = vpop.f32.mrf.mxu0
        %v2623 = vpop.f32.mrf.mxu0
        %v2624 = vadd.f32 0.0, %v2623
        %v2625 = vpop.f32.mrf.mxu0
        %2626 = vmatprep.mubr.bf16.mxu0 0
        %2627 = vmatmul.mubr.bf16.gmra.mxu0 %v2548
        %v2628 = vpop.f32.mrf.mxu0
        %v2629 = vadd.f32 0.0, %v2628
        %v2630 = vpop.f32.mrf.mxu0
        %v2631 = vpop.f32.mrf.mxu0
        %v2632 = vadd.f32 0.0, %v2631
        %v2633 = vpop.f32.mrf.mxu0
        %2634 = vmatprep.mubr.bf16.mxu0 0
        %2635 = vmatmul.mubr.bf16.gmra.mxu0 %v2551
        %v2636 = vpop.f32.mrf.mxu0
        %v2637 = vadd.f32 0.0, %v2636
        %v2638 = vpop.f32.mrf.mxu0
        %v2639 = vpop.f32.mrf.mxu0
        %v2640 = vadd.f32 0.0, %v2639
        %v2641 = vpop.f32.mrf.mxu0
        %2642 = vmatprep.mubr.bf16.mxu0 0
        %2643 = vmatmul.mubr.bf16.gmra.mxu0 %v2554
        %v2644 = vpop.f32.mrf.mxu0
        %v2645 = vadd.f32 0.0, %v2644
        %v2646 = vpop.f32.mrf.mxu0
        %v2647 = vpop.f32.mrf.mxu0
        %v2648 = vadd.f32 0.0, %v2647
        %v2649 = vpop.f32.mrf.mxu0
        %2650 = vmatprep.mubr.bf16.mxu0 0
        %2651 = vmatmul.mubr.bf16.gmra.mxu0 %v2557
        %v2652 = vpop.f32.mrf.mxu0
        %v2653 = vadd.f32 0.0, %v2652
        %v2654 = vpop.f32.mrf.mxu0
        %v2655 = vpop.f32.mrf.mxu0
        %v2656 = vadd.f32 0.0, %v2655
        %v2657 = vpop.f32.mrf.mxu0
        %2658 = vmatprep.mubr.bf16.mxu0 0
        %2659 = vmatmul.mubr.bf16.gmra.mxu0 %v2560
        %v2660 = vpop.f32.mrf.mxu0
        %v2661 = vadd.f32 0.0, %v2660
        %v2662 = vpop.f32.mrf.mxu0
        %v2663 = vpop.f32.mrf.mxu0
        %v2664 = vadd.f32 0.0, %v2663
        %v2665 = vpop.f32.mrf.mxu0
        %2666 = vdwg.mxu0
        %v2685 = vunpack.c.l.b16 %v2481
        %v2686 = vunpack.c.l.b16 %v2482
        %v2687 = vunpack.c.l.b16 %v2483
        %v2688 = vunpack.c.l.b16 %v2484
        %v2689 = vunpack.c.l.b16 %v2485
        %v2690 = vunpack.c.l.b16 %v2486
        %v2691 = vunpack.c.l.b16 %v2487
        %v2692 = vunpack.c.l.b16 %v2488
        %v2693 = vunpack.c.l.b16 %v2489
        %v2694 = vunpack.c.l.b16 %v2490
        %v2695 = vunpack.c.l.b16 %v2491
        %v2696 = vunpack.c.l.b16 %v2492
        %v2697 = vunpack.c.l.b16 %v2493
        %v2698 = vunpack.c.l.b16 %v2494
        %v2699 = vunpack.c.l.b16 %v2495
        %v2700 = vunpack.c.l.b16 %v2496
        %v2701 = vunpack.c.l.b16 %v2497
        %v2702 = vunpack.c.l.b16 %v2498
        %v2703 = vpack.c.b16 %v2686, %v2685
        %v2704 = vpack.c.b16 %v2688, %v2687
        %v2705 = vpack.c.b16 %v2690, %v2689
        %v2706 = vpack.c.b16 %v2692, %v2691
        %v2707 = vpack.c.b16 %v2694, %v2693
        %v2708 = vpack.c.b16 %v2696, %v2695
        %v2709 = vpack.c.b16 %v2698, %v2697
        %v2710 = vpack.c.b16 %v2700, %v2699
        %v2711 = vpack.c.b16 %v2702, %v2701
        %v2713 = vsel %vm912, %v2703, 0
        %v2716 = vsel %vm912, %v2704, 0
        %v2719 = vsel %vm912, %v2705, 0
        %v2722 = vsel %vm912, %v2706, 0
        %v2725 = vsel %vm912, %v2707, 0
        %v2728 = vsel %vm912, %v2708, 0
        %v2731 = vsel %vm912, %v2709, 0
        %v2734 = vsel %vm912, %v2710, 0
        %v2737 = vsel %vm912, %v2711, 0
        %2739 = vmatprep.subr.bf16.mxu0 0
        %2740 = vmatpush1.bf16.msra.mxu0 0
        %2741 = vmatprep.subr.bf16.mxu0 0
        %2742 = vmatpush1.bf16.msra.mxu0 0
        %2743 = vmatprep.subr.bf16.mxu0 0
        %2744 = vmatpush1.bf16.msra.mxu0 0
        %2745 = vmatprep.subr.bf16.mxu0 0
        %2746 = vmatpush1.bf16.msra.mxu0 0
        %2747 = vmatprep.subr.bf16.mxu0 0
        %2748 = vmatpush1.bf16.msra.mxu0 0
        %2749 = vmatprep.subr.bf16.mxu0 0
        %2750 = vmatpush1.bf16.msra.mxu0 0
        %2751 = vmatprep.subr.bf16.mxu0 0
        %2752 = vmatpush1.bf16.msra.mxu0 %v1075
        %2753 = vmatprep.subr.bf16.mxu0 0
        %2754 = vmatpush1.bf16.msra.mxu0 %v1074
        %2755 = vmatprep.subr.bf16.mxu0 0
        %2756 = vmatpush2.bf16.msra.mxu0 0
        %2757 = vmatprep.subr.bf16.mxu0 0
        %2758 = vmatpush2.bf16.msra.mxu0 0
        %2759 = vmatprep.subr.bf16.mxu0 0
        %2760 = vmatpush2.bf16.msra.mxu0 0
        %2761 = vmatprep.subr.bf16.mxu0 0
        %2762 = vmatpush2.bf16.msra.mxu0 0
        %2763 = vmatprep.subr.bf16.mxu0 0
        %2764 = vmatpush2.bf16.msra.mxu0 0
        %2765 = vmatprep.subr.bf16.mxu0 0
        %2766 = vmatpush2.bf16.msra.mxu0 0
        %2767 = vmatprep.subr.bf16.mxu0 0
        %2768 = vmatpush2.bf16.msra.mxu0 0
        %2769 = vmatprep.subr.bf16.mxu0 0
        %2770 = vmatpush2.bf16.msra.mxu0 0
        %2771 = vmatprep.mubr.bf16.mxu0 0
        %2772 = vmatmul.mubr.bf16.gmra.mxu0 %v2713
        %v2773 = vpop.f32.mrf.mxu0
        %v2774 = vadd.f32 %v2597, %v2773
        %v2775 = vpop.f32.mrf.mxu0
        %v2776 = vpop.f32.mrf.mxu0
        %v2777 = vadd.f32 %v2600, %v2776
        %v2778 = vpop.f32.mrf.mxu0
        %2779 = vmatprep.mubr.bf16.mxu0 0
        %2780 = vmatmul.mubr.bf16.gmra.mxu0 %v2716
        %v2781 = vpop.f32.mrf.mxu0
        %v2782 = vadd.f32 %v2605, %v2781
        %v2783 = vpop.f32.mrf.mxu0
        %v2784 = vpop.f32.mrf.mxu0
        %v2785 = vadd.f32 %v2608, %v2784
        %v2786 = vpop.f32.mrf.mxu0
        %2787 = vmatprep.mubr.bf16.mxu0 0
        %2788 = vmatmul.mubr.bf16.gmra.mxu0 %v2719
        %v2789 = vpop.f32.mrf.mxu0
        %v2790 = vadd.f32 %v2613, %v2789
        %v2791 = vpop.f32.mrf.mxu0
        %v2792 = vpop.f32.mrf.mxu0
        %v2793 = vadd.f32 %v2616, %v2792
        %v2794 = vpop.f32.mrf.mxu0
        %2795 = vmatprep.mubr.bf16.mxu0 0
        %2796 = vmatmul.mubr.bf16.gmra.mxu0 %v2722
        %v2797 = vpop.f32.mrf.mxu0
        %v2798 = vadd.f32 %v2621, %v2797
        %v2799 = vpop.f32.mrf.mxu0
        %v2800 = vpop.f32.mrf.mxu0
        %v2801 = vadd.f32 %v2624, %v2800
        %v2802 = vpop.f32.mrf.mxu0
        %2803 = vmatprep.mubr.bf16.mxu0 0
        %2804 = vmatmul.mubr.bf16.gmra.mxu0 %v2725
        %v2805 = vpop.f32.mrf.mxu0
        %v2806 = vadd.f32 %v2629, %v2805
        %v2807 = vpop.f32.mrf.mxu0
        %v2808 = vpop.f32.mrf.mxu0
        %v2809 = vadd.f32 %v2632, %v2808
        %v2810 = vpop.f32.mrf.mxu0
        %2811 = vmatprep.mubr.bf16.mxu0 0
        %2812 = vmatmul.mubr.bf16.gmra.mxu0 %v2728
        %v2813 = vpop.f32.mrf.mxu0
        %v2814 = vadd.f32 %v2637, %v2813
        %v2815 = vpop.f32.mrf.mxu0
        %v2816 = vpop.f32.mrf.mxu0
        %v2817 = vadd.f32 %v2640, %v2816
        %v2818 = vpop.f32.mrf.mxu0
        %2819 = vmatprep.mubr.bf16.mxu0 0
        %2820 = vmatmul.mubr.bf16.gmra.mxu0 %v2731
        %v2821 = vpop.f32.mrf.mxu0
        %v2822 = vadd.f32 %v2645, %v2821
        %v2823 = vpop.f32.mrf.mxu0
        %v2824 = vpop.f32.mrf.mxu0
        %v2825 = vadd.f32 %v2648, %v2824
        %v2826 = vpop.f32.mrf.mxu0
        %2827 = vmatprep.mubr.bf16.mxu0 0
        %2828 = vmatmul.mubr.bf16.gmra.mxu0 %v2734
        %v2829 = vpop.f32.mrf.mxu0
        %v2830 = vadd.f32 %v2653, %v2829
        %v2831 = vpop.f32.mrf.mxu0
        %v2832 = vpop.f32.mrf.mxu0
        %v2833 = vadd.f32 %v2656, %v2832
        %v2834 = vpop.f32.mrf.mxu0
        %2835 = vmatprep.mubr.bf16.mxu0 0
        %2836 = vmatmul.mubr.bf16.gmra.mxu0 %v2737
        %v2837 = vpop.f32.mrf.mxu0
        %v2838 = vadd.f32 %v2661, %v2837
        %v2839 = vpop.f32.mrf.mxu0
        %v2840 = vpop.f32.mrf.mxu0
        %v2841 = vadd.f32 %v2664, %v2840
        %v2842 = vpop.f32.mrf.mxu0
        %2843 = vdwg.mxu0
        %v2844 = vadd.f32 %v2774, %v1214
        %v2845 = vadd.f32 %v2777, %v1214
        %v2846 = vadd.f32 %v2782, %v1214
        %v2847 = vadd.f32 %v2785, %v1214
        %v2848 = vadd.f32 %v2790, %v1214
        %v2849 = vadd.f32 %v2793, %v1214
        %v2850 = vadd.f32 %v2798, %v1214
        %v2851 = vadd.f32 %v2801, %v1214
        %v2852 = vadd.f32 %v2806, %v1214
        %v2853 = vadd.f32 %v2809, %v1214
        %v2854 = vadd.f32 %v2814, %v1214
        %v2855 = vadd.f32 %v2817, %v1214
        %v2856 = vadd.f32 %v2822, %v1214
        %v2857 = vadd.f32 %v2825, %v1214
        %v2858 = vadd.f32 %v2830, %v1214
        %v2859 = vadd.f32 %v2833, %v1214
        %v2860 = vadd.f32 %v2838, %v1214
        %v2861 = vadd.f32 %v2841, %v1214
        %v2862 = vxor.u32 %v2844, 2147483648
        %v2863 = vxor.u32 %v2845, 2147483648
        %v2864 = vxor.u32 %v2846, 2147483648
        %v2865 = vxor.u32 %v2847, 2147483648
        %v2866 = vxor.u32 %v2848, 2147483648
        %v2867 = vxor.u32 %v2849, 2147483648
        %v2868 = vxor.u32 %v2850, 2147483648
        %v2869 = vxor.u32 %v2851, 2147483648
        %v2870 = vxor.u32 %v2852, 2147483648
        %v2871 = vxor.u32 %v2853, 2147483648
        %v2872 = vxor.u32 %v2854, 2147483648
        %v2873 = vxor.u32 %v2855, 2147483648
        %v2874 = vxor.u32 %v2856, 2147483648
        %v2875 = vxor.u32 %v2857, 2147483648
        %v2876 = vxor.u32 %v2858, 2147483648
        %v2877 = vxor.u32 %v2859, 2147483648
        %v2878 = vxor.u32 %v2860, 2147483648
        %v2879 = vxor.u32 %v2861, 2147483648
        %v2880 = vmul.f32 %v2862, 1.442695
        %v2881 = vpow.pop %v2880
        %v2882 = vmul.f32 %v2863, 1.442695
        %v2883 = vpow.pop %v2882
        %v2884 = vmul.f32 %v2864, 1.442695
        %v2885 = vpow.pop %v2884
        %v2886 = vmul.f32 %v2865, 1.442695
        %v2887 = vpow.pop %v2886
        %v2888 = vmul.f32 %v2866, 1.442695
        %v2889 = vpow.pop %v2888
        %v2890 = vmul.f32 %v2867, 1.442695
        %v2891 = vpow.pop %v2890
        %v2892 = vmul.f32 %v2868, 1.442695
        %v2893 = vpow.pop %v2892
        %v2894 = vmul.f32 %v2869, 1.442695
        %v2895 = vpow.pop %v2894
        %v2896 = vmul.f32 %v2870, 1.442695
        %v2897 = vpow.pop %v2896
        %v2898 = vmul.f32 %v2871, 1.442695
        %v2899 = vpow.pop %v2898
        %v2900 = vmul.f32 %v2872, 1.442695
        %v2901 = vpow.pop %v2900
        %v2902 = vmul.f32 %v2873, 1.442695
        %v2903 = vpow.pop %v2902
        %v2904 = vmul.f32 %v2874, 1.442695
        %v2905 = vpow.pop %v2904
        %v2906 = vmul.f32 %v2875, 1.442695
        %v2907 = vpow.pop %v2906
        %v2908 = vmul.f32 %v2876, 1.442695
        %v2909 = vpow.pop %v2908
        %v2910 = vmul.f32 %v2877, 1.442695
        %v2911 = vpow.pop %v2910
        %v2912 = vmul.f32 %v2878, 1.442695
        %v2913 = vpow.pop %v2912
        %v2914 = vmul.f32 %v2879, 1.442695
        %v2915 = vpow.pop %v2914
        %v2916 = vadd.f32 %v2881, 1.0
        %v2917 = vadd.f32 %v2883, 1.0
        %v2918 = vadd.f32 %v2885, 1.0
        %v2919 = vadd.f32 %v2887, 1.0
        %v2920 = vadd.f32 %v2889, 1.0
        %v2921 = vadd.f32 %v2891, 1.0
        %v2922 = vadd.f32 %v2893, 1.0
        %v2923 = vadd.f32 %v2895, 1.0
        %v2924 = vadd.f32 %v2897, 1.0
        %v2925 = vadd.f32 %v2899, 1.0
        %v2926 = vadd.f32 %v2901, 1.0
        %v2927 = vadd.f32 %v2903, 1.0
        %v2928 = vadd.f32 %v2905, 1.0
        %v2929 = vadd.f32 %v2907, 1.0
        %v2930 = vadd.f32 %v2909, 1.0
        %v2931 = vadd.f32 %v2911, 1.0
        %v2932 = vadd.f32 %v2913, 1.0
        %v2933 = vadd.f32 %v2915, 1.0
        %v2934 = vrcp.pop %v2916
        %v2935 = vmul.f32 1.0, %v2934
        %v2936 = vrcp.pop %v2917
        %v2937 = vmul.f32 1.0, %v2936
        %v2938 = vrcp.pop %v2918
        %v2939 = vmul.f32 1.0, %v2938
        %v2940 = vrcp.pop %v2919
        %v2941 = vmul.f32 1.0, %v2940
        %v2942 = vrcp.pop %v2920
        %v2943 = vmul.f32 1.0, %v2942
        %v2944 = vrcp.pop %v2921
        %v2945 = vmul.f32 1.0, %v2944
        %v2946 = vrcp.pop %v2922
        %v2947 = vmul.f32 1.0, %v2946
        %v2948 = vrcp.pop %v2923
        %v2949 = vmul.f32 1.0, %v2948
        %v2950 = vrcp.pop %v2924
        %v2951 = vmul.f32 1.0, %v2950
        %v2952 = vrcp.pop %v2925
        %v2953 = vmul.f32 1.0, %v2952
        %v2954 = vrcp.pop %v2926
        %v2955 = vmul.f32 1.0, %v2954
        %v2956 = vrcp.pop %v2927
        %v2957 = vmul.f32 1.0, %v2956
        %v2958 = vrcp.pop %v2928
        %v2959 = vmul.f32 1.0, %v2958
        %v2960 = vrcp.pop %v2929
        %v2961 = vmul.f32 1.0, %v2960
        %v2962 = vrcp.pop %v2930
        %v2963 = vmul.f32 1.0, %v2962
        %v2964 = vrcp.pop %v2931
        %v2965 = vmul.f32 1.0, %v2964
        %v2966 = vrcp.pop %v2932
        %v2967 = vmul.f32 1.0, %v2966
        %v2968 = vrcp.pop %v2933
        %v2969 = vmul.f32 1.0, %v2968
        %v2970 = vtanh.pop %v2844
        %v2971 = vtanh.pop %v2845
        %v2972 = vtanh.pop %v2846
        %v2973 = vtanh.pop %v2847
        %v2974 = vtanh.pop %v2848
        %v2975 = vtanh.pop %v2849
        %v2976 = vtanh.pop %v2850
        %v2977 = vtanh.pop %v2851
        %v2978 = vtanh.pop %v2852
        %v2979 = vtanh.pop %v2853
        %v2980 = vtanh.pop %v2854
        %v2981 = vtanh.pop %v2855
        %v2982 = vtanh.pop %v2856
        %v2983 = vtanh.pop %v2857
        %v2984 = vtanh.pop %v2858
        %v2985 = vtanh.pop %v2859
        %v2986 = vtanh.pop %v2860
        %v2987 = vtanh.pop %v2861
        %v2988 = vmul.f32 %v2935, %v2354
        %v2989 = vmul.f32 %v2937, %v2355
        %v2990 = vmul.f32 %v2939, %v2356
        %v2991 = vmul.f32 %v2941, %v2357
        %v2992 = vmul.f32 %v2943, %v2358
        %v2993 = vmul.f32 %v2945, %v2359
        %v2994 = vmul.f32 %v2947, %v2360
        %v2995 = vmul.f32 %v2949, %v2361
        %v2996 = vmul.f32 %v2951, %v2362
        %v2997 = vmul.f32 %v2953, %v2363
        %v2998 = vmul.f32 %v2955, %v2364
        %v2999 = vmul.f32 %v2957, %v2365
        %v3000 = vmul.f32 %v2959, %v2366
        %v3001 = vmul.f32 %v2961, %v2367
        %v3002 = vmul.f32 %v2963, %v2368
        %v3003 = vmul.f32 %v2965, %v2369
        %v3004 = vmul.f32 %v2967, %v2370
        %v3005 = vmul.f32 %v2969, %v2371
        %3024 = vrot.lane.b32.xlu0 %v2970, 64
        %v3025 = vpop.permute.xlu0 %3024
        %3026 = vrot.lane.b32.xlu0 %v2971, 64
        %v3027 = vpop.permute.xlu0 %3026
        %3028 = vrot.lane.b32.xlu0 %v2972, 64
        %v3029 = vpop.permute.xlu0 %3028
        %3030 = vrot.lane.b32.xlu0 %v2973, 64
        %v3031 = vpop.permute.xlu0 %3030
        %3032 = vrot.lane.b32.xlu0 %v2974, 64
        %v3033 = vpop.permute.xlu0 %3032
        %3034 = vrot.lane.b32.xlu0 %v2975, 64
        %v3035 = vpop.permute.xlu0 %3034
        %3036 = vrot.lane.b32.xlu0 %v2976, 64
        %v3037 = vpop.permute.xlu0 %3036
        %3038 = vrot.lane.b32.xlu0 %v2977, 64
        %v3039 = vpop.permute.xlu0 %3038
        %3040 = vrot.lane.b32.xlu0 %v2978, 64
        %v3041 = vpop.permute.xlu0 %3040
        %3042 = vrot.lane.b32.xlu0 %v2979, 64
        %v3043 = vpop.permute.xlu0 %3042
        %3044 = vrot.lane.b32.xlu0 %v2980, 64
        %v3045 = vpop.permute.xlu0 %3044
        %3046 = vrot.lane.b32.xlu0 %v2981, 64
        %v3047 = vpop.permute.xlu0 %3046
        %3048 = vrot.lane.b32.xlu0 %v2982, 64
        %v3049 = vpop.permute.xlu0 %3048
        %3050 = vrot.lane.b32.xlu0 %v2983, 64
        %v3051 = vpop.permute.xlu0 %3050
        %3052 = vrot.lane.b32.xlu0 %v2984, 64
        %v3053 = vpop.permute.xlu0 %3052
        %3054 = vrot.lane.b32.xlu0 %v2985, 64
        %v3055 = vpop.permute.xlu0 %3054
        %3056 = vrot.lane.b32.xlu0 %v2986, 64
        %v3057 = vpop.permute.xlu0 %3056
        %3058 = vrot.lane.b32.xlu0 %v2987, 64
        %v3059 = vpop.permute.xlu0 %3058
        %v3078 = vmul.f32 %v2935, %v3025
        %v3079 = vmul.f32 %v2937, %v3027
        %v3080 = vmul.f32 %v2939, %v3029
        %v3081 = vmul.f32 %v2941, %v3031
        %v3082 = vmul.f32 %v2943, %v3033
        %v3083 = vmul.f32 %v2945, %v3035
        %v3084 = vmul.f32 %v2947, %v3037
        %v3085 = vmul.f32 %v2949, %v3039
        %v3086 = vmul.f32 %v2951, %v3041
        %v3087 = vmul.f32 %v2953, %v3043
        %v3088 = vmul.f32 %v2955, %v3045
        %v3089 = vmul.f32 %v2957, %v3047
        %v3090 = vmul.f32 %v2959, %v3049
        %v3091 = vmul.f32 %v2961, %v3051
        %v3092 = vmul.f32 %v2963, %v3053
        %v3093 = vmul.f32 %v2965, %v3055
        %v3094 = vmul.f32 %v2967, %v3057
        %v3095 = vmul.f32 %v2969, %v3059
        %3114 = vrot.lane.b32.xlu0 %v3078, 32
        %v3115 = vpop.permute.xlu0 %3114
        %3116 = vrot.lane.b32.xlu0 %v3079, 32
        %v3117 = vpop.permute.xlu0 %3116
        %3118 = vrot.lane.b32.xlu0 %v3080, 32
        %v3119 = vpop.permute.xlu0 %3118
        %3120 = vrot.lane.b32.xlu0 %v3081, 32
        %v3121 = vpop.permute.xlu0 %3120
        %3122 = vrot.lane.b32.xlu0 %v3082, 32
        %v3123 = vpop.permute.xlu0 %3122
        %3124 = vrot.lane.b32.xlu0 %v3083, 32
        %v3125 = vpop.permute.xlu0 %3124
        %3126 = vrot.lane.b32.xlu0 %v3084, 32
        %v3127 = vpop.permute.xlu0 %3126
        %3128 = vrot.lane.b32.xlu0 %v3085, 32
        %v3129 = vpop.permute.xlu0 %3128
        %3130 = vrot.lane.b32.xlu0 %v3086, 32
        %v3131 = vpop.permute.xlu0 %3130
        %3132 = vrot.lane.b32.xlu0 %v3087, 32
        %v3133 = vpop.permute.xlu0 %3132
        %3134 = vrot.lane.b32.xlu0 %v3088, 32
        %v3135 = vpop.permute.xlu0 %3134
        %3136 = vrot.lane.b32.xlu0 %v3089, 32
        %v3137 = vpop.permute.xlu0 %3136
        %3138 = vrot.lane.b32.xlu0 %v3090, 32
        %v3139 = vpop.permute.xlu0 %3138
        %3140 = vrot.lane.b32.xlu0 %v3091, 32
        %v3141 = vpop.permute.xlu0 %3140
        %3142 = vrot.lane.b32.xlu0 %v3092, 32
        %v3143 = vpop.permute.xlu0 %3142
        %3144 = vrot.lane.b32.xlu0 %v3093, 32
        %v3145 = vpop.permute.xlu0 %3144
        %3146 = vrot.lane.b32.xlu0 %v3094, 32
        %v3147 = vpop.permute.xlu0 %3146
        %3148 = vrot.lane.b32.xlu0 %v3095, 32
        %v3149 = vpop.permute.xlu0 %3148
        %v3168 = vadd.f32 %v2988, %v3115
        %v3169 = vadd.f32 %v2989, %v3117
        %v3170 = vadd.f32 %v2990, %v3119
        %v3171 = vadd.f32 %v2991, %v3121
        %v3172 = vadd.f32 %v2992, %v3123
        %v3173 = vadd.f32 %v2993, %v3125
        %v3174 = vadd.f32 %v2994, %v3127
        %v3175 = vadd.f32 %v2995, %v3129
        %v3176 = vadd.f32 %v2996, %v3131
        %v3177 = vadd.f32 %v2997, %v3133
        %v3178 = vadd.f32 %v2998, %v3135
        %v3179 = vadd.f32 %v2999, %v3137
        %v3180 = vadd.f32 %v3000, %v3139
        %v3181 = vadd.f32 %v3001, %v3141
        %v3182 = vadd.f32 %v3002, %v3143
        %v3183 = vadd.f32 %v3003, %v3145
        %v3184 = vadd.f32 %v3004, %v3147
        %v3185 = vadd.f32 %v3005, %v3149
        %v3186 = vtanh.pop %v3168
        %v3187 = vtanh.pop %v3169
        %v3188 = vtanh.pop %v3170
        %v3189 = vtanh.pop %v3171
        %v3190 = vtanh.pop %v3172
        %v3191 = vtanh.pop %v3173
        %v3192 = vtanh.pop %v3174
        %v3193 = vtanh.pop %v3175
        %v3194 = vtanh.pop %v3176
        %v3195 = vtanh.pop %v3177
        %v3196 = vtanh.pop %v3178
        %v3197 = vtanh.pop %v3179
        %v3198 = vtanh.pop %v3180
        %v3199 = vtanh.pop %v3181
        %v3200 = vtanh.pop %v3182
        %v3201 = vtanh.pop %v3183
        %v3202 = vtanh.pop %v3184
        %v3203 = vtanh.pop %v3185
        %3222 = vrot.lane.b32.xlu0 %v3186, 64
        %v3223 = vpop.permute.xlu0 %3222
        %3224 = vrot.lane.b32.xlu0 %v3187, 64
        %v3225 = vpop.permute.xlu0 %3224
        %3226 = vrot.lane.b32.xlu0 %v3188, 64
        %v3227 = vpop.permute.xlu0 %3226
        %3228 = vrot.lane.b32.xlu0 %v3189, 64
        %v3229 = vpop.permute.xlu0 %3228
        %3230 = vrot.lane.b32.xlu0 %v3190, 64
        %v3231 = vpop.permute.xlu0 %3230
        %3232 = vrot.lane.b32.xlu0 %v3191, 64
        %v3233 = vpop.permute.xlu0 %3232
        %3234 = vrot.lane.b32.xlu0 %v3192, 64
        %v3235 = vpop.permute.xlu0 %3234
        %3236 = vrot.lane.b32.xlu0 %v3193, 64
        %v3237 = vpop.permute.xlu0 %3236
        %3238 = vrot.lane.b32.xlu0 %v3194, 64
        %v3239 = vpop.permute.xlu0 %3238
        %3240 = vrot.lane.b32.xlu0 %v3195, 64
        %v3241 = vpop.permute.xlu0 %3240
        %3242 = vrot.lane.b32.xlu0 %v3196, 64
        %v3243 = vpop.permute.xlu0 %3242
        %3244 = vrot.lane.b32.xlu0 %v3197, 64
        %v3245 = vpop.permute.xlu0 %3244
        %3246 = vrot.lane.b32.xlu0 %v3198, 64
        %v3247 = vpop.permute.xlu0 %3246
        %3248 = vrot.lane.b32.xlu0 %v3199, 64
        %v3249 = vpop.permute.xlu0 %3248
        %3250 = vrot.lane.b32.xlu0 %v3200, 64
        %v3251 = vpop.permute.xlu0 %3250
        %3252 = vrot.lane.b32.xlu0 %v3201, 64
        %v3253 = vpop.permute.xlu0 %3252
        %3254 = vrot.lane.b32.xlu0 %v3202, 64
        %v3255 = vpop.permute.xlu0 %3254
        %3256 = vrot.lane.b32.xlu0 %v3203, 64
        %v3257 = vpop.permute.xlu0 %3256
        %v3276 = vmul.f32 %v2935, %v3223
        %v3277 = vmul.f32 %v2937, %v3225
        %v3278 = vmul.f32 %v2939, %v3227
        %v3279 = vmul.f32 %v2941, %v3229
        %v3280 = vmul.f32 %v2943, %v3231
        %v3281 = vmul.f32 %v2945, %v3233
        %v3282 = vmul.f32 %v2947, %v3235
        %v3283 = vmul.f32 %v2949, %v3237
        %v3284 = vmul.f32 %v2951, %v3239
        %v3285 = vmul.f32 %v2953, %v3241
        %v3286 = vmul.f32 %v2955, %v3243
        %v3287 = vmul.f32 %v2957, %v3245
        %v3288 = vmul.f32 %v2959, %v3247
        %v3289 = vmul.f32 %v2961, %v3249
        %v3290 = vmul.f32 %v2963, %v3251
        %v3291 = vmul.f32 %v2965, %v3253
        %v3292 = vmul.f32 %v2967, %v3255
        %v3293 = vmul.f32 %v2969, %v3257
        %s3294 = scalar_lea.vmem %s838, 216 [#allocation3]
        %v3295 = vld [vmem:[%s3294] sm:$0xf]
        %v3296 = vld [vmem:[%s3294 + $0x4] sm:$0xf]
        %v3297 = vld [vmem:[%s3294 + $0x8] sm:$0xf]
        %v3298 = vld [vmem:[%s3294 + $0xc] sm:$0xf]
        %v3299 = vld [vmem:[%s3294 + $0x10] sm:$0xf]
        %v3300 = vld [vmem:[%s3294 + $0x14] sm:$0xf]
        %v3301 = vld [vmem:[%s3294 + $0x18] sm:$0xf]
        %v3302 = vld [vmem:[%s3294 + $0x1c] sm:$0xf]
        %v3303 = vld [vmem:[%s3294 + $0x20] sm:$0xf]
        %v3304 = vld [vmem:[%s3294 + $0x24] sm:$0xf]
        %v3305 = vld [vmem:[%s3294 + $0x28] sm:$0xf]
        %v3306 = vld [vmem:[%s3294 + $0x2c] sm:$0xf]
        %v3307 = vld [vmem:[%s3294 + $0x30] sm:$0xf]
        %v3308 = vld [vmem:[%s3294 + $0x34] sm:$0xf]
        %v3309 = vld [vmem:[%s3294 + $0x38] sm:$0xf]
        %v3310 = vld [vmem:[%s3294 + $0x3c] sm:$0xf]
        %v3311 = vld [vmem:[%s3294 + $0x40] sm:$0xf]
        %v3312 = vld [vmem:[%s3294 + $0x44] sm:$0xf]
        %v3313 = vpack.c.bf16 %v3277, %v3276
        %v3314 = vpack.c.bf16 %v3279, %v3278
        %v3315 = vpack.c.bf16 %v3281, %v3280
        %v3316 = vpack.c.bf16 %v3283, %v3282
        %v3317 = vpack.c.bf16 %v3285, %v3284
        %v3318 = vpack.c.bf16 %v3287, %v3286
        %v3319 = vpack.c.bf16 %v3289, %v3288
        %v3320 = vpack.c.bf16 %v3291, %v3290
        %v3321 = vpack.c.bf16 %v3293, %v3292
        %3331 = vrot.lane.b32.xlu0 %v3313, 32
        %v3332 = vpop.permute.xlu0 %3331
        %3333 = vrot.lane.b32.xlu0 %v3314, 32
        %v3334 = vpop.permute.xlu0 %3333
        %3335 = vrot.lane.b32.xlu0 %v3315, 32
        %v3336 = vpop.permute.xlu0 %3335
        %3337 = vrot.lane.b32.xlu0 %v3316, 32
        %v3338 = vpop.permute.xlu0 %3337
        %3339 = vrot.lane.b32.xlu0 %v3317, 32
        %v3340 = vpop.permute.xlu0 %3339
        %3341 = vrot.lane.b32.xlu0 %v3318, 32
        %v3342 = vpop.permute.xlu0 %3341
        %3343 = vrot.lane.b32.xlu0 %v3319, 32
        %v3344 = vpop.permute.xlu0 %3343
        %3345 = vrot.lane.b32.xlu0 %v3320, 32
        %v3346 = vpop.permute.xlu0 %3345
        %3347 = vrot.lane.b32.xlu0 %v3321, 32
        %v3348 = vpop.permute.xlu0 %3347
        %v3350 = vsel %vm912, %v3332, 0
        %v3353 = vsel %vm912, %v3334, 0
        %v3356 = vsel %vm912, %v3336, 0
        %v3359 = vsel %vm912, %v3338, 0
        %v3362 = vsel %vm912, %v3340, 0
        %v3365 = vsel %vm912, %v3342, 0
        %v3368 = vsel %vm912, %v3344, 0
        %v3371 = vsel %vm912, %v3346, 0
        %v3374 = vsel %vm912, %v3348, 0
        %3376 = vmatprep.subr.bf16.mxu0 0
        %3377 = vmatpush1.bf16.msra.mxu0 0
        %3378 = vmatprep.subr.bf16.mxu0 0
        %3379 = vmatpush1.bf16.msra.mxu0 0
        %3380 = vmatprep.subr.bf16.mxu0 0
        %3381 = vmatpush1.bf16.msra.mxu0 0
        %3382 = vmatprep.subr.bf16.mxu0 0
        %3383 = vmatpush1.bf16.msra.mxu0 0
        %3384 = vmatprep.subr.bf16.mxu0 0
        %3385 = vmatpush1.bf16.msra.mxu0 0
        %3386 = vmatprep.subr.bf16.mxu0 0
        %3387 = vmatpush1.bf16.msra.mxu0 0
        %3388 = vmatprep.subr.bf16.mxu0 0
        %3389 = vmatpush1.bf16.msra.mxu0 %v909
        %3390 = vmatprep.subr.bf16.mxu0 0
        %3391 = vmatpush1.bf16.msra.mxu0 %v908
        %3392 = vmatprep.subr.bf16.mxu0 0
        %3393 = vmatpush2.bf16.msra.mxu0 0
        %3394 = vmatprep.subr.bf16.mxu0 0
        %3395 = vmatpush2.bf16.msra.mxu0 0
        %3396 = vmatprep.subr.bf16.mxu0 0
        %3397 = vmatpush2.bf16.msra.mxu0 0
        %3398 = vmatprep.subr.bf16.mxu0 0
        %3399 = vmatpush2.bf16.msra.mxu0 0
        %3400 = vmatprep.subr.bf16.mxu0 0
        %3401 = vmatpush2.bf16.msra.mxu0 0
        %3402 = vmatprep.subr.bf16.mxu0 0
        %3403 = vmatpush2.bf16.msra.mxu0 0
        %3404 = vmatprep.subr.bf16.mxu0 0
        %3405 = vmatpush2.bf16.msra.mxu0 0
        %3406 = vmatprep.subr.bf16.mxu0 0
        %3407 = vmatpush2.bf16.msra.mxu0 0
        %3408 = vmatprep.mubr.bf16.mxu0 0
        %3409 = vmatmul.mubr.bf16.gmra.mxu0 %v3350
        %v3410 = vpop.f32.mrf.mxu0
        %v3411 = vadd.f32 0.0, %v3410
        %v3412 = vpop.f32.mrf.mxu0
        %v3413 = vpop.f32.mrf.mxu0
        %v3414 = vadd.f32 0.0, %v3413
        %v3415 = vpop.f32.mrf.mxu0
        %3416 = vmatprep.mubr.bf16.mxu0 0
        %3417 = vmatmul.mubr.bf16.gmra.mxu0 %v3353
        %v3418 = vpop.f32.mrf.mxu0
        %v3419 = vadd.f32 0.0, %v3418
        %v3420 = vpop.f32.mrf.mxu0
        %v3421 = vpop.f32.mrf.mxu0
        %v3422 = vadd.f32 0.0, %v3421
        %v3423 = vpop.f32.mrf.mxu0
        %3424 = vmatprep.mubr.bf16.mxu0 0
        %3425 = vmatmul.mubr.bf16.gmra.mxu0 %v3356
        %v3426 = vpop.f32.mrf.mxu0
        %v3427 = vadd.f32 0.0, %v3426
        %v3428 = vpop.f32.mrf.mxu0
        %v3429 = vpop.f32.mrf.mxu0
        %v3430 = vadd.f32 0.0, %v3429
        %v3431 = vpop.f32.mrf.mxu0
        %3432 = vmatprep.mubr.bf16.mxu0 0
        %3433 = vmatmul.mubr.bf16.gmra.mxu0 %v3359
        %v3434 = vpop.f32.mrf.mxu0
        %v3435 = vadd.f32 0.0, %v3434
        %v3436 = vpop.f32.mrf.mxu0
        %v3437 = vpop.f32.mrf.mxu0
        %v3438 = vadd.f32 0.0, %v3437
        %v3439 = vpop.f32.mrf.mxu0
        %3440 = vmatprep.mubr.bf16.mxu0 0
        %3441 = vmatmul.mubr.bf16.gmra.mxu0 %v3362
        %v3442 = vpop.f32.mrf.mxu0
        %v3443 = vadd.f32 0.0, %v3442
        %v3444 = vpop.f32.mrf.mxu0
        %v3445 = vpop.f32.mrf.mxu0
        %v3446 = vadd.f32 0.0, %v3445
        %v3447 = vpop.f32.mrf.mxu0
        %3448 = vmatprep.mubr.bf16.mxu0 0
        %3449 = vmatmul.mubr.bf16.gmra.mxu0 %v3365
        %v3450 = vpop.f32.mrf.mxu0
        %v3451 = vadd.f32 0.0, %v3450
        %v3452 = vpop.f32.mrf.mxu0
        %v3453 = vpop.f32.mrf.mxu0
        %v3454 = vadd.f32 0.0, %v3453
        %v3455 = vpop.f32.mrf.mxu0
        %3456 = vmatprep.mubr.bf16.mxu0 0
        %3457 = vmatmul.mubr.bf16.gmra.mxu0 %v3368
        %v3458 = vpop.f32.mrf.mxu0
        %v3459 = vadd.f32 0.0, %v3458
        %v3460 = vpop.f32.mrf.mxu0
        %v3461 = vpop.f32.mrf.mxu0
        %v3462 = vadd.f32 0.0, %v3461
        %v3463 = vpop.f32.mrf.mxu0
        %3464 = vmatprep.mubr.bf16.mxu0 0
        %3465 = vmatmul.mubr.bf16.gmra.mxu0 %v3371
        %v3466 = vpop.f32.mrf.mxu0
        %v3467 = vadd.f32 0.0, %v3466
        %v3468 = vpop.f32.mrf.mxu0
        %v3469 = vpop.f32.mrf.mxu0
        %v3470 = vadd.f32 0.0, %v3469
        %v3471 = vpop.f32.mrf.mxu0
        %3472 = vmatprep.mubr.bf16.mxu0 0
        %3473 = vmatmul.mubr.bf16.gmra.mxu0 %v3374
        %v3474 = vpop.f32.mrf.mxu0
        %v3475 = vadd.f32 0.0, %v3474
        %v3476 = vpop.f32.mrf.mxu0
        %v3477 = vpop.f32.mrf.mxu0
        %v3478 = vadd.f32 0.0, %v3477
        %v3479 = vpop.f32.mrf.mxu0
        %3480 = vdwg.mxu0
        %v3499 = vunpack.c.l.b16 %v3295
        %v3500 = vunpack.c.l.b16 %v3296
        %v3501 = vunpack.c.l.b16 %v3297
        %v3502 = vunpack.c.l.b16 %v3298
        %v3503 = vunpack.c.l.b16 %v3299
        %v3504 = vunpack.c.l.b16 %v3300
        %v3505 = vunpack.c.l.b16 %v3301
        %v3506 = vunpack.c.l.b16 %v3302
        %v3507 = vunpack.c.l.b16 %v3303
        %v3508 = vunpack.c.l.b16 %v3304
        %v3509 = vunpack.c.l.b16 %v3305
        %v3510 = vunpack.c.l.b16 %v3306
        %v3511 = vunpack.c.l.b16 %v3307
        %v3512 = vunpack.c.l.b16 %v3308
        %v3513 = vunpack.c.l.b16 %v3309
        %v3514 = vunpack.c.l.b16 %v3310
        %v3515 = vunpack.c.l.b16 %v3311
        %v3516 = vunpack.c.l.b16 %v3312
        %v3517 = vpack.c.b16 %v3500, %v3499
        %v3518 = vpack.c.b16 %v3502, %v3501
        %v3519 = vpack.c.b16 %v3504, %v3503
        %v3520 = vpack.c.b16 %v3506, %v3505
        %v3521 = vpack.c.b16 %v3508, %v3507
        %v3522 = vpack.c.b16 %v3510, %v3509
        %v3523 = vpack.c.b16 %v3512, %v3511
        %v3524 = vpack.c.b16 %v3514, %v3513
        %v3525 = vpack.c.b16 %v3516, %v3515
        %v3527 = vsel %vm912, %v3517, 0
        %v3530 = vsel %vm912, %v3518, 0
        %v3533 = vsel %vm912, %v3519, 0
        %v3536 = vsel %vm912, %v3520, 0
        %v3539 = vsel %vm912, %v3521, 0
        %v3542 = vsel %vm912, %v3522, 0
        %v3545 = vsel %vm912, %v3523, 0
        %v3548 = vsel %vm912, %v3524, 0
        %v3551 = vsel %vm912, %v3525, 0
        %3553 = vmatprep.subr.bf16.mxu0 0
        %3554 = vmatpush1.bf16.msra.mxu0 0
        %3555 = vmatprep.subr.bf16.mxu0 0
        %3556 = vmatpush1.bf16.msra.mxu0 0
        %3557 = vmatprep.subr.bf16.mxu0 0
        %3558 = vmatpush1.bf16.msra.mxu0 0
        %3559 = vmatprep.subr.bf16.mxu0 0
        %3560 = vmatpush1.bf16.msra.mxu0 0
        %3561 = vmatprep.subr.bf16.mxu0 0
        %3562 = vmatpush1.bf16.msra.mxu0 0
        %3563 = vmatprep.subr.bf16.mxu0 0
        %3564 = vmatpush1.bf16.msra.mxu0 0
        %3565 = vmatprep.subr.bf16.mxu0 0
        %3566 = vmatpush1.bf16.msra.mxu0 %v1075
        %3567 = vmatprep.subr.bf16.mxu0 0
        %3568 = vmatpush1.bf16.msra.mxu0 %v1074
        %3569 = vmatprep.subr.bf16.mxu0 0
        %3570 = vmatpush2.bf16.msra.mxu0 0
        %3571 = vmatprep.subr.bf16.mxu0 0
        %3572 = vmatpush2.bf16.msra.mxu0 0
        %3573 = vmatprep.subr.bf16.mxu0 0
        %3574 = vmatpush2.bf16.msra.mxu0 0
        %3575 = vmatprep.subr.bf16.mxu0 0
        %3576 = vmatpush2.bf16.msra.mxu0 0
        %3577 = vmatprep.subr.bf16.mxu0 0
        %3578 = vmatpush2.bf16.msra.mxu0 0
        %3579 = vmatprep.subr.bf16.mxu0 0
        %3580 = vmatpush2.bf16.msra.mxu0 0
        %3581 = vmatprep.subr.bf16.mxu0 0
        %3582 = vmatpush2.bf16.msra.mxu0 0
        %3583 = vmatprep.subr.bf16.mxu0 0
        %3584 = vmatpush2.bf16.msra.mxu0 0
        %3585 = vmatprep.mubr.bf16.mxu0 0
        %3586 = vmatmul.mubr.bf16.gmra.mxu0 %v3527
        %v3587 = vpop.f32.mrf.mxu0
        %v3588 = vadd.f32 %v3411, %v3587
        %v3589 = vpop.f32.mrf.mxu0
        %v3590 = vpop.f32.mrf.mxu0
        %v3591 = vadd.f32 %v3414, %v3590
        %v3592 = vpop.f32.mrf.mxu0
        %3593 = vmatprep.mubr.bf16.mxu0 0
        %3594 = vmatmul.mubr.bf16.gmra.mxu0 %v3530
        %v3595 = vpop.f32.mrf.mxu0
        %v3596 = vadd.f32 %v3419, %v3595
        %v3597 = vpop.f32.mrf.mxu0
        %v3598 = vpop.f32.mrf.mxu0
        %v3599 = vadd.f32 %v3422, %v3598
        %v3600 = vpop.f32.mrf.mxu0
        %3601 = vmatprep.mubr.bf16.mxu0 0
        %3602 = vmatmul.mubr.bf16.gmra.mxu0 %v3533
        %v3603 = vpop.f32.mrf.mxu0
        %v3604 = vadd.f32 %v3427, %v3603
        %v3605 = vpop.f32.mrf.mxu0
        %v3606 = vpop.f32.mrf.mxu0
        %v3607 = vadd.f32 %v3430, %v3606
        %v3608 = vpop.f32.mrf.mxu0
        %3609 = vmatprep.mubr.bf16.mxu0 0
        %3610 = vmatmul.mubr.bf16.gmra.mxu0 %v3536
        %v3611 = vpop.f32.mrf.mxu0
        %v3612 = vadd.f32 %v3435, %v3611
        %v3613 = vpop.f32.mrf.mxu0
        %v3614 = vpop.f32.mrf.mxu0
        %v3615 = vadd.f32 %v3438, %v3614
        %v3616 = vpop.f32.mrf.mxu0
        %3617 = vmatprep.mubr.bf16.mxu0 0
        %3618 = vmatmul.mubr.bf16.gmra.mxu0 %v3539
        %v3619 = vpop.f32.mrf.mxu0
        %v3620 = vadd.f32 %v3443, %v3619
        %v3621 = vpop.f32.mrf.mxu0
        %v3622 = vpop.f32.mrf.mxu0
        %v3623 = vadd.f32 %v3446, %v3622
        %v3624 = vpop.f32.mrf.mxu0
        %3625 = vmatprep.mubr.bf16.mxu0 0
        %3626 = vmatmul.mubr.bf16.gmra.mxu0 %v3542
        %v3627 = vpop.f32.mrf.mxu0
        %v3628 = vadd.f32 %v3451, %v3627
        %v3629 = vpop.f32.mrf.mxu0
        %v3630 = vpop.f32.mrf.mxu0
        %v3631 = vadd.f32 %v3454, %v3630
        %v3632 = vpop.f32.mrf.mxu0
        %3633 = vmatprep.mubr.bf16.mxu0 0
        %3634 = vmatmul.mubr.bf16.gmra.mxu0 %v3545
        %v3635 = vpop.f32.mrf.mxu0
        %v3636 = vadd.f32 %v3459, %v3635
        %v3637 = vpop.f32.mrf.mxu0
        %v3638 = vpop.f32.mrf.mxu0
        %v3639 = vadd.f32 %v3462, %v3638
        %v3640 = vpop.f32.mrf.mxu0
        %3641 = vmatprep.mubr.bf16.mxu0 0
        %3642 = vmatmul.mubr.bf16.gmra.mxu0 %v3548
        %v3643 = vpop.f32.mrf.mxu0
        %v3644 = vadd.f32 %v3467, %v3643
        %v3645 = vpop.f32.mrf.mxu0
        %v3646 = vpop.f32.mrf.mxu0
        %v3647 = vadd.f32 %v3470, %v3646
        %v3648 = vpop.f32.mrf.mxu0
        %3649 = vmatprep.mubr.bf16.mxu0 0
        %3650 = vmatmul.mubr.bf16.gmra.mxu0 %v3551
        %v3651 = vpop.f32.mrf.mxu0
        %v3652 = vadd.f32 %v3475, %v3651
        %v3653 = vpop.f32.mrf.mxu0
        %v3654 = vpop.f32.mrf.mxu0
        %v3655 = vadd.f32 %v3478, %v3654
        %v3656 = vpop.f32.mrf.mxu0
        %3657 = vdwg.mxu0
        %v3658 = vadd.f32 %v3588, %v1214
        %v3659 = vadd.f32 %v3591, %v1214
        %v3660 = vadd.f32 %v3596, %v1214
        %v3661 = vadd.f32 %v3599, %v1214
        %v3662 = vadd.f32 %v3604, %v1214
        %v3663 = vadd.f32 %v3607, %v1214
        %v3664 = vadd.f32 %v3612, %v1214
        %v3665 = vadd.f32 %v3615, %v1214
        %v3666 = vadd.f32 %v3620, %v1214
        %v3667 = vadd.f32 %v3623, %v1214
        %v3668 = vadd.f32 %v3628, %v1214
        %v3669 = vadd.f32 %v3631, %v1214
        %v3670 = vadd.f32 %v3636, %v1214
        %v3671 = vadd.f32 %v3639, %v1214
        %v3672 = vadd.f32 %v3644, %v1214
        %v3673 = vadd.f32 %v3647, %v1214
        %v3674 = vadd.f32 %v3652, %v1214
        %v3675 = vadd.f32 %v3655, %v1214
        %v3676 = vxor.u32 %v3658, 2147483648
        %v3677 = vxor.u32 %v3659, 2147483648
        %v3678 = vxor.u32 %v3660, 2147483648
        %v3679 = vxor.u32 %v3661, 2147483648
        %v3680 = vxor.u32 %v3662, 2147483648
        %v3681 = vxor.u32 %v3663, 2147483648
        %v3682 = vxor.u32 %v3664, 2147483648
        %v3683 = vxor.u32 %v3665, 2147483648
        %v3684 = vxor.u32 %v3666, 2147483648
        %v3685 = vxor.u32 %v3667, 2147483648
        %v3686 = vxor.u32 %v3668, 2147483648
        %v3687 = vxor.u32 %v3669, 2147483648
        %v3688 = vxor.u32 %v3670, 2147483648
        %v3689 = vxor.u32 %v3671, 2147483648
        %v3690 = vxor.u32 %v3672, 2147483648
        %v3691 = vxor.u32 %v3673, 2147483648
        %v3692 = vxor.u32 %v3674, 2147483648
        %v3693 = vxor.u32 %v3675, 2147483648
        %v3694 = vmul.f32 %v3676, 1.442695
        %v3695 = vpow.pop %v3694
        %v3696 = vmul.f32 %v3677, 1.442695
        %v3697 = vpow.pop %v3696
        %v3698 = vmul.f32 %v3678, 1.442695
        %v3699 = vpow.pop %v3698
        %v3700 = vmul.f32 %v3679, 1.442695
        %v3701 = vpow.pop %v3700
        %v3702 = vmul.f32 %v3680, 1.442695
        %v3703 = vpow.pop %v3702
        %v3704 = vmul.f32 %v3681, 1.442695
        %v3705 = vpow.pop %v3704
        %v3706 = vmul.f32 %v3682, 1.442695
        %v3707 = vpow.pop %v3706
        %v3708 = vmul.f32 %v3683, 1.442695
        %v3709 = vpow.pop %v3708
        %v3710 = vmul.f32 %v3684, 1.442695
        %v3711 = vpow.pop %v3710
        %v3712 = vmul.f32 %v3685, 1.442695
        %v3713 = vpow.pop %v3712
        %v3714 = vmul.f32 %v3686, 1.442695
        %v3715 = vpow.pop %v3714
        %v3716 = vmul.f32 %v3687, 1.442695
        %v3717 = vpow.pop %v3716
        %v3718 = vmul.f32 %v3688, 1.442695
        %v3719 = vpow.pop %v3718
        %v3720 = vmul.f32 %v3689, 1.442695
        %v3721 = vpow.pop %v3720
        %v3722 = vmul.f32 %v3690, 1.442695
        %v3723 = vpow.pop %v3722
        %v3724 = vmul.f32 %v3691, 1.442695
        %v3725 = vpow.pop %v3724
        %v3726 = vmul.f32 %v3692, 1.442695
        %v3727 = vpow.pop %v3726
        %v3728 = vmul.f32 %v3693, 1.442695
        %v3729 = vpow.pop %v3728
        %v3730 = vadd.f32 %v3695, 1.0
        %v3731 = vadd.f32 %v3697, 1.0
        %v3732 = vadd.f32 %v3699, 1.0
        %v3733 = vadd.f32 %v3701, 1.0
        %v3734 = vadd.f32 %v3703, 1.0
        %v3735 = vadd.f32 %v3705, 1.0
        %v3736 = vadd.f32 %v3707, 1.0
        %v3737 = vadd.f32 %v3709, 1.0
        %v3738 = vadd.f32 %v3711, 1.0
        %v3739 = vadd.f32 %v3713, 1.0
        %v3740 = vadd.f32 %v3715, 1.0
        %v3741 = vadd.f32 %v3717, 1.0
        %v3742 = vadd.f32 %v3719, 1.0
        %v3743 = vadd.f32 %v3721, 1.0
        %v3744 = vadd.f32 %v3723, 1.0
        %v3745 = vadd.f32 %v3725, 1.0
        %v3746 = vadd.f32 %v3727, 1.0
        %v3747 = vadd.f32 %v3729, 1.0
        %v3748 = vrcp.pop %v3730
        %v3749 = vmul.f32 1.0, %v3748
        %v3750 = vrcp.pop %v3731
        %v3751 = vmul.f32 1.0, %v3750
        %v3752 = vrcp.pop %v3732
        %v3753 = vmul.f32 1.0, %v3752
        %v3754 = vrcp.pop %v3733
        %v3755 = vmul.f32 1.0, %v3754
        %v3756 = vrcp.pop %v3734
        %v3757 = vmul.f32 1.0, %v3756
        %v3758 = vrcp.pop %v3735
        %v3759 = vmul.f32 1.0, %v3758
        %v3760 = vrcp.pop %v3736
        %v3761 = vmul.f32 1.0, %v3760
        %v3762 = vrcp.pop %v3737
        %v3763 = vmul.f32 1.0, %v3762
        %v3764 = vrcp.pop %v3738
        %v3765 = vmul.f32 1.0, %v3764
        %v3766 = vrcp.pop %v3739
        %v3767 = vmul.f32 1.0, %v3766
        %v3768 = vrcp.pop %v3740
        %v3769 = vmul.f32 1.0, %v3768
        %v3770 = vrcp.pop %v3741
        %v3771 = vmul.f32 1.0, %v3770
        %v3772 = vrcp.pop %v3742
        %v3773 = vmul.f32 1.0, %v3772
        %v3774 = vrcp.pop %v3743
        %v3775 = vmul.f32 1.0, %v3774
        %v3776 = vrcp.pop %v3744
        %v3777 = vmul.f32 1.0, %v3776
        %v3778 = vrcp.pop %v3745
        %v3779 = vmul.f32 1.0, %v3778
        %v3780 = vrcp.pop %v3746
        %v3781 = vmul.f32 1.0, %v3780
        %v3782 = vrcp.pop %v3747
        %v3783 = vmul.f32 1.0, %v3782
        %v3784 = vtanh.pop %v3658
        %v3785 = vtanh.pop %v3659
        %v3786 = vtanh.pop %v3660
        %v3787 = vtanh.pop %v3661
        %v3788 = vtanh.pop %v3662
        %v3789 = vtanh.pop %v3663
        %v3790 = vtanh.pop %v3664
        %v3791 = vtanh.pop %v3665
        %v3792 = vtanh.pop %v3666
        %v3793 = vtanh.pop %v3667
        %v3794 = vtanh.pop %v3668
        %v3795 = vtanh.pop %v3669
        %v3796 = vtanh.pop %v3670
        %v3797 = vtanh.pop %v3671
        %v3798 = vtanh.pop %v3672
        %v3799 = vtanh.pop %v3673
        %v3800 = vtanh.pop %v3674
        %v3801 = vtanh.pop %v3675
        %v3802 = vmul.f32 %v3749, %v3168
        %v3803 = vmul.f32 %v3751, %v3169
        %v3804 = vmul.f32 %v3753, %v3170
        %v3805 = vmul.f32 %v3755, %v3171
        %v3806 = vmul.f32 %v3757, %v3172
        %v3807 = vmul.f32 %v3759, %v3173
        %v3808 = vmul.f32 %v3761, %v3174
        %v3809 = vmul.f32 %v3763, %v3175
        %v3810 = vmul.f32 %v3765, %v3176
        %v3811 = vmul.f32 %v3767, %v3177
        %v3812 = vmul.f32 %v3769, %v3178
        %v3813 = vmul.f32 %v3771, %v3179
        %v3814 = vmul.f32 %v3773, %v3180
        %v3815 = vmul.f32 %v3775, %v3181
        %v3816 = vmul.f32 %v3777, %v3182
        %v3817 = vmul.f32 %v3779, %v3183
        %v3818 = vmul.f32 %v3781, %v3184
        %v3819 = vmul.f32 %v3783, %v3185
        %3838 = vrot.lane.b32.xlu0 %v3784, 64
        %v3839 = vpop.permute.xlu0 %3838
        %3840 = vrot.lane.b32.xlu0 %v3785, 64
        %v3841 = vpop.permute.xlu0 %3840
        %3842 = vrot.lane.b32.xlu0 %v3786, 64
        %v3843 = vpop.permute.xlu0 %3842
        %3844 = vrot.lane.b32.xlu0 %v3787, 64
        %v3845 = vpop.permute.xlu0 %3844
        %3846 = vrot.lane.b32.xlu0 %v3788, 64
        %v3847 = vpop.permute.xlu0 %3846
        %3848 = vrot.lane.b32.xlu0 %v3789, 64
        %v3849 = vpop.permute.xlu0 %3848
        %3850 = vrot.lane.b32.xlu0 %v3790, 64
        %v3851 = vpop.permute.xlu0 %3850
        %3852 = vrot.lane.b32.xlu0 %v3791, 64
        %v3853 = vpop.permute.xlu0 %3852
        %3854 = vrot.lane.b32.xlu0 %v3792, 64
        %v3855 = vpop.permute.xlu0 %3854
        %3856 = vrot.lane.b32.xlu0 %v3793, 64
        %v3857 = vpop.permute.xlu0 %3856
        %3858 = vrot.lane.b32.xlu0 %v3794, 64
        %v3859 = vpop.permute.xlu0 %3858
        %3860 = vrot.lane.b32.xlu0 %v3795, 64
        %v3861 = vpop.permute.xlu0 %3860
        %3862 = vrot.lane.b32.xlu0 %v3796, 64
        %v3863 = vpop.permute.xlu0 %3862
        %3864 = vrot.lane.b32.xlu0 %v3797, 64
        %v3865 = vpop.permute.xlu0 %3864
        %3866 = vrot.lane.b32.xlu0 %v3798, 64
        %v3867 = vpop.permute.xlu0 %3866
        %3868 = vrot.lane.b32.xlu0 %v3799, 64
        %v3869 = vpop.permute.xlu0 %3868
        %3870 = vrot.lane.b32.xlu0 %v3800, 64
        %v3871 = vpop.permute.xlu0 %3870
        %3872 = vrot.lane.b32.xlu0 %v3801, 64
        %v3873 = vpop.permute.xlu0 %3872
        %v3892 = vmul.f32 %v3749, %v3839
        %v3893 = vmul.f32 %v3751, %v3841
        %v3894 = vmul.f32 %v3753, %v3843
        %v3895 = vmul.f32 %v3755, %v3845
        %v3896 = vmul.f32 %v3757, %v3847
        %v3897 = vmul.f32 %v3759, %v3849
        %v3898 = vmul.f32 %v3761, %v3851
        %v3899 = vmul.f32 %v3763, %v3853
        %v3900 = vmul.f32 %v3765, %v3855
        %v3901 = vmul.f32 %v3767, %v3857
        %v3902 = vmul.f32 %v3769, %v3859
        %v3903 = vmul.f32 %v3771, %v3861
        %v3904 = vmul.f32 %v3773, %v3863
        %v3905 = vmul.f32 %v3775, %v3865
        %v3906 = vmul.f32 %v3777, %v3867
        %v3907 = vmul.f32 %v3779, %v3869
        %v3908 = vmul.f32 %v3781, %v3871
        %v3909 = vmul.f32 %v3783, %v3873
        %3928 = vrot.lane.b32.xlu0 %v3892, 32
        %v3929 = vpop.permute.xlu0 %3928
        %3930 = vrot.lane.b32.xlu0 %v3893, 32
        %v3931 = vpop.permute.xlu0 %3930
        %3932 = vrot.lane.b32.xlu0 %v3894, 32
        %v3933 = vpop.permute.xlu0 %3932
        %3934 = vrot.lane.b32.xlu0 %v3895, 32
        %v3935 = vpop.permute.xlu0 %3934
        %3936 = vrot.lane.b32.xlu0 %v3896, 32
        %v3937 = vpop.permute.xlu0 %3936
        %3938 = vrot.lane.b32.xlu0 %v3897, 32
        %v3939 = vpop.permute.xlu0 %3938
        %3940 = vrot.lane.b32.xlu0 %v3898, 32
        %v3941 = vpop.permute.xlu0 %3940
        %3942 = vrot.lane.b32.xlu0 %v3899, 32
        %v3943 = vpop.permute.xlu0 %3942
        %3944 = vrot.lane.b32.xlu0 %v3900, 32
        %v3945 = vpop.permute.xlu0 %3944
        %3946 = vrot.lane.b32.xlu0 %v3901, 32
        %v3947 = vpop.permute.xlu0 %3946
        %3948 = vrot.lane.b32.xlu0 %v3902, 32
        %v3949 = vpop.permute.xlu0 %3948
        %3950 = vrot.lane.b32.xlu0 %v3903, 32
        %v3951 = vpop.permute.xlu0 %3950
        %3952 = vrot.lane.b32.xlu0 %v3904, 32
        %v3953 = vpop.permute.xlu0 %3952
        %3954 = vrot.lane.b32.xlu0 %v3905, 32
        %v3955 = vpop.permute.xlu0 %3954
        %3956 = vrot.lane.b32.xlu0 %v3906, 32
        %v3957 = vpop.permute.xlu0 %3956
        %3958 = vrot.lane.b32.xlu0 %v3907, 32
        %v3959 = vpop.permute.xlu0 %3958
        %3960 = vrot.lane.b32.xlu0 %v3908, 32
        %v3961 = vpop.permute.xlu0 %3960
        %3962 = vrot.lane.b32.xlu0 %v3909, 32
        %v3963 = vpop.permute.xlu0 %3962
        %v3982 = vadd.f32 %v3802, %v3929
        %v3983 = vadd.f32 %v3803, %v3931
        %v3984 = vadd.f32 %v3804, %v3933
        %v3985 = vadd.f32 %v3805, %v3935
        %v3986 = vadd.f32 %v3806, %v3937
        %v3987 = vadd.f32 %v3807, %v3939
        %v3988 = vadd.f32 %v3808, %v3941
        %v3989 = vadd.f32 %v3809, %v3943
        %v3990 = vadd.f32 %v3810, %v3945
        %v3991 = vadd.f32 %v3811, %v3947
        %v3992 = vadd.f32 %v3812, %v3949
        %v3993 = vadd.f32 %v3813, %v3951
        %v3994 = vadd.f32 %v3814, %v3953
        %v3995 = vadd.f32 %v3815, %v3955
        %v3996 = vadd.f32 %v3816, %v3957
        %v3997 = vadd.f32 %v3817, %v3959
        %v3998 = vadd.f32 %v3818, %v3961
        %v3999 = vadd.f32 %v3819, %v3963
        %v4000 = vtanh.pop %v3982
        %v4001 = vtanh.pop %v3983
        %v4002 = vtanh.pop %v3984
        %v4003 = vtanh.pop %v3985
        %v4004 = vtanh.pop %v3986
        %v4005 = vtanh.pop %v3987
        %v4006 = vtanh.pop %v3988
        %v4007 = vtanh.pop %v3989
        %v4008 = vtanh.pop %v3990
        %v4009 = vtanh.pop %v3991
        %v4010 = vtanh.pop %v3992
        %v4011 = vtanh.pop %v3993
        %v4012 = vtanh.pop %v3994
        %v4013 = vtanh.pop %v3995
        %v4014 = vtanh.pop %v3996
        %v4015 = vtanh.pop %v3997
        %v4016 = vtanh.pop %v3998
        %v4017 = vtanh.pop %v3999
        %4036 = vrot.lane.b32.xlu0 %v4000, 64
        %v4037 = vpop.permute.xlu0 %4036
        %4038 = vrot.lane.b32.xlu0 %v4001, 64
        %v4039 = vpop.permute.xlu0 %4038
        %4040 = vrot.lane.b32.xlu0 %v4002, 64
        %v4041 = vpop.permute.xlu0 %4040
        %4042 = vrot.lane.b32.xlu0 %v4003, 64
        %v4043 = vpop.permute.xlu0 %4042
        %4044 = vrot.lane.b32.xlu0 %v4004, 64
        %v4045 = vpop.permute.xlu0 %4044
        %4046 = vrot.lane.b32.xlu0 %v4005, 64
        %v4047 = vpop.permute.xlu0 %4046
        %4048 = vrot.lane.b32.xlu0 %v4006, 64
        %v4049 = vpop.permute.xlu0 %4048
        %4050 = vrot.lane.b32.xlu0 %v4007, 64
        %v4051 = vpop.permute.xlu0 %4050
        %4052 = vrot.lane.b32.xlu0 %v4008, 64
        %v4053 = vpop.permute.xlu0 %4052
        %4054 = vrot.lane.b32.xlu0 %v4009, 64
        %v4055 = vpop.permute.xlu0 %4054
        %4056 = vrot.lane.b32.xlu0 %v4010, 64
        %v4057 = vpop.permute.xlu0 %4056
        %4058 = vrot.lane.b32.xlu0 %v4011, 64
        %v4059 = vpop.permute.xlu0 %4058
        %4060 = vrot.lane.b32.xlu0 %v4012, 64
        %v4061 = vpop.permute.xlu0 %4060
        %4062 = vrot.lane.b32.xlu0 %v4013, 64
        %v4063 = vpop.permute.xlu0 %4062
        %4064 = vrot.lane.b32.xlu0 %v4014, 64
        %v4065 = vpop.permute.xlu0 %4064
        %4066 = vrot.lane.b32.xlu0 %v4015, 64
        %v4067 = vpop.permute.xlu0 %4066
        %4068 = vrot.lane.b32.xlu0 %v4016, 64
        %v4069 = vpop.permute.xlu0 %4068
        %4070 = vrot.lane.b32.xlu0 %v4017, 64
        %v4071 = vpop.permute.xlu0 %4070
        %v4090 = vmul.f32 %v3749, %v4037
        %v4091 = vmul.f32 %v3751, %v4039
        %v4092 = vmul.f32 %v3753, %v4041
        %v4093 = vmul.f32 %v3755, %v4043
        %v4094 = vmul.f32 %v3757, %v4045
        %v4095 = vmul.f32 %v3759, %v4047
        %v4096 = vmul.f32 %v3761, %v4049
        %v4097 = vmul.f32 %v3763, %v4051
        %v4098 = vmul.f32 %v3765, %v4053
        %v4099 = vmul.f32 %v3767, %v4055
        %v4100 = vmul.f32 %v3769, %v4057
        %v4101 = vmul.f32 %v3771, %v4059
        %v4102 = vmul.f32 %v3773, %v4061
        %v4103 = vmul.f32 %v3775, %v4063
        %v4104 = vmul.f32 %v3777, %v4065
        %v4105 = vmul.f32 %v3779, %v4067
        %v4106 = vmul.f32 %v3781, %v4069
        %v4107 = vmul.f32 %v3783, %v4071
        %s4108 = scalar_lea.vmem %s838, 288 [#allocation3]
        %v4109 = vld [vmem:[%s4108] sm:$0xf]
        %v4110 = vld [vmem:[%s4108 + $0x4] sm:$0xf]
        %v4111 = vld [vmem:[%s4108 + $0x8] sm:$0xf]
        %v4112 = vld [vmem:[%s4108 + $0xc] sm:$0xf]
        %v4113 = vld [vmem:[%s4108 + $0x10] sm:$0xf]
        %v4114 = vld [vmem:[%s4108 + $0x14] sm:$0xf]
        %v4115 = vld [vmem:[%s4108 + $0x18] sm:$0xf]
        %v4116 = vld [vmem:[%s4108 + $0x1c] sm:$0xf]
        %v4117 = vld [vmem:[%s4108 + $0x20] sm:$0xf]
        %v4118 = vld [vmem:[%s4108 + $0x24] sm:$0xf]
        %v4119 = vld [vmem:[%s4108 + $0x28] sm:$0xf]
        %v4120 = vld [vmem:[%s4108 + $0x2c] sm:$0xf]
        %v4121 = vld [vmem:[%s4108 + $0x30] sm:$0xf]
        %v4122 = vld [vmem:[%s4108 + $0x34] sm:$0xf]
        %v4123 = vld [vmem:[%s4108 + $0x38] sm:$0xf]
        %v4124 = vld [vmem:[%s4108 + $0x3c] sm:$0xf]
        %v4125 = vld [vmem:[%s4108 + $0x40] sm:$0xf]
        %v4126 = vld [vmem:[%s4108 + $0x44] sm:$0xf]
        %v4127 = vpack.c.bf16 %v4091, %v4090
        %v4128 = vpack.c.bf16 %v4093, %v4092
        %v4129 = vpack.c.bf16 %v4095, %v4094
        %v4130 = vpack.c.bf16 %v4097, %v4096
        %v4131 = vpack.c.bf16 %v4099, %v4098
        %v4132 = vpack.c.bf16 %v4101, %v4100
        %v4133 = vpack.c.bf16 %v4103, %v4102
        %v4134 = vpack.c.bf16 %v4105, %v4104
        %v4135 = vpack.c.bf16 %v4107, %v4106
        %4145 = vrot.lane.b32.xlu0 %v4127, 32
        %v4146 = vpop.permute.xlu0 %4145
        %4147 = vrot.lane.b32.xlu0 %v4128, 32
        %v4148 = vpop.permute.xlu0 %4147
        %4149 = vrot.lane.b32.xlu0 %v4129, 32
        %v4150 = vpop.permute.xlu0 %4149
        %4151 = vrot.lane.b32.xlu0 %v4130, 32
        %v4152 = vpop.permute.xlu0 %4151
        %4153 = vrot.lane.b32.xlu0 %v4131, 32
        %v4154 = vpop.permute.xlu0 %4153
        %4155 = vrot.lane.b32.xlu0 %v4132, 32
        %v4156 = vpop.permute.xlu0 %4155
        %4157 = vrot.lane.b32.xlu0 %v4133, 32
        %v4158 = vpop.permute.xlu0 %4157
        %4159 = vrot.lane.b32.xlu0 %v4134, 32
        %v4160 = vpop.permute.xlu0 %4159
        %4161 = vrot.lane.b32.xlu0 %v4135, 32
        %v4162 = vpop.permute.xlu0 %4161
        %v4164 = vsel %vm912, %v4146, 0
        %v4167 = vsel %vm912, %v4148, 0
        %v4170 = vsel %vm912, %v4150, 0
        %v4173 = vsel %vm912, %v4152, 0
        %v4176 = vsel %vm912, %v4154, 0
        %v4179 = vsel %vm912, %v4156, 0
        %v4182 = vsel %vm912, %v4158, 0
        %v4185 = vsel %vm912, %v4160, 0
        %v4188 = vsel %vm912, %v4162, 0
        %4190 = vmatprep.subr.bf16.mxu0 0
        %4191 = vmatpush1.bf16.msra.mxu0 0
        %4192 = vmatprep.subr.bf16.mxu0 0
        %4193 = vmatpush1.bf16.msra.mxu0 0
        %4194 = vmatprep.subr.bf16.mxu0 0
        %4195 = vmatpush1.bf16.msra.mxu0 0
        %4196 = vmatprep.subr.bf16.mxu0 0
        %4197 = vmatpush1.bf16.msra.mxu0 0
        %4198 = vmatprep.subr.bf16.mxu0 0
        %4199 = vmatpush1.bf16.msra.mxu0 0
        %4200 = vmatprep.subr.bf16.mxu0 0
        %4201 = vmatpush1.bf16.msra.mxu0 0
        %4202 = vmatprep.subr.bf16.mxu0 0
        %4203 = vmatpush1.bf16.msra.mxu0 %v909
        %4204 = vmatprep.subr.bf16.mxu0 0
        %4205 = vmatpush1.bf16.msra.mxu0 %v908
        %4206 = vmatprep.subr.bf16.mxu0 0
        %4207 = vmatpush2.bf16.msra.mxu0 0
        %4208 = vmatprep.subr.bf16.mxu0 0
        %4209 = vmatpush2.bf16.msra.mxu0 0
        %4210 = vmatprep.subr.bf16.mxu0 0
        %4211 = vmatpush2.bf16.msra.mxu0 0
        %4212 = vmatprep.subr.bf16.mxu0 0
        %4213 = vmatpush2.bf16.msra.mxu0 0
        %4214 = vmatprep.subr.bf16.mxu0 0
        %4215 = vmatpush2.bf16.msra.mxu0 0
        %4216 = vmatprep.subr.bf16.mxu0 0
        %4217 = vmatpush2.bf16.msra.mxu0 0
        %4218 = vmatprep.subr.bf16.mxu0 0
        %4219 = vmatpush2.bf16.msra.mxu0 0
        %4220 = vmatprep.subr.bf16.mxu0 0
        %4221 = vmatpush2.bf16.msra.mxu0 0
        %4222 = vmatprep.mubr.bf16.mxu0 0
        %4223 = vmatmul.mubr.bf16.gmra.mxu0 %v4164
        %v4224 = vpop.f32.mrf.mxu0
        %v4225 = vadd.f32 0.0, %v4224
        %v4226 = vpop.f32.mrf.mxu0
        %v4227 = vpop.f32.mrf.mxu0
        %v4228 = vadd.f32 0.0, %v4227
        %v4229 = vpop.f32.mrf.mxu0
        %4230 = vmatprep.mubr.bf16.mxu0 0
        %4231 = vmatmul.mubr.bf16.gmra.mxu0 %v4167
        %v4232 = vpop.f32.mrf.mxu0
        %v4233 = vadd.f32 0.0, %v4232
        %v4234 = vpop.f32.mrf.mxu0
        %v4235 = vpop.f32.mrf.mxu0
        %v4236 = vadd.f32 0.0, %v4235
        %v4237 = vpop.f32.mrf.mxu0
        %4238 = vmatprep.mubr.bf16.mxu0 0
        %4239 = vmatmul.mubr.bf16.gmra.mxu0 %v4170
        %v4240 = vpop.f32.mrf.mxu0
        %v4241 = vadd.f32 0.0, %v4240
        %v4242 = vpop.f32.mrf.mxu0
        %v4243 = vpop.f32.mrf.mxu0
        %v4244 = vadd.f32 0.0, %v4243
        %v4245 = vpop.f32.mrf.mxu0
        %4246 = vmatprep.mubr.bf16.mxu0 0
        %4247 = vmatmul.mubr.bf16.gmra.mxu0 %v4173
        %v4248 = vpop.f32.mrf.mxu0
        %v4249 = vadd.f32 0.0, %v4248
        %v4250 = vpop.f32.mrf.mxu0
        %v4251 = vpop.f32.mrf.mxu0
        %v4252 = vadd.f32 0.0, %v4251
        %v4253 = vpop.f32.mrf.mxu0
        %4254 = vmatprep.mubr.bf16.mxu0 0
        %4255 = vmatmul.mubr.bf16.gmra.mxu0 %v4176
        %v4256 = vpop.f32.mrf.mxu0
        %v4257 = vadd.f32 0.0, %v4256
        %v4258 = vpop.f32.mrf.mxu0
        %v4259 = vpop.f32.mrf.mxu0
        %v4260 = vadd.f32 0.0, %v4259
        %v4261 = vpop.f32.mrf.mxu0
        %4262 = vmatprep.mubr.bf16.mxu0 0
        %4263 = vmatmul.mubr.bf16.gmra.mxu0 %v4179
        %v4264 = vpop.f32.mrf.mxu0
        %v4265 = vadd.f32 0.0, %v4264
        %v4266 = vpop.f32.mrf.mxu0
        %v4267 = vpop.f32.mrf.mxu0
        %v4268 = vadd.f32 0.0, %v4267
        %v4269 = vpop.f32.mrf.mxu0
        %4270 = vmatprep.mubr.bf16.mxu0 0
        %4271 = vmatmul.mubr.bf16.gmra.mxu0 %v4182
        %v4272 = vpop.f32.mrf.mxu0
        %v4273 = vadd.f32 0.0, %v4272
        %v4274 = vpop.f32.mrf.mxu0
        %v4275 = vpop.f32.mrf.mxu0
        %v4276 = vadd.f32 0.0, %v4275
        %v4277 = vpop.f32.mrf.mxu0
        %4278 = vmatprep.mubr.bf16.mxu0 0
        %4279 = vmatmul.mubr.bf16.gmra.mxu0 %v4185
        %v4280 = vpop.f32.mrf.mxu0
        %v4281 = vadd.f32 0.0, %v4280
        %v4282 = vpop.f32.mrf.mxu0
        %v4283 = vpop.f32.mrf.mxu0
        %v4284 = vadd.f32 0.0, %v4283
        %v4285 = vpop.f32.mrf.mxu0
        %4286 = vmatprep.mubr.bf16.mxu0 0
        %4287 = vmatmul.mubr.bf16.gmra.mxu0 %v4188
        %v4288 = vpop.f32.mrf.mxu0
        %v4289 = vadd.f32 0.0, %v4288
        %v4290 = vpop.f32.mrf.mxu0
        %v4291 = vpop.f32.mrf.mxu0
        %v4292 = vadd.f32 0.0, %v4291
        %v4293 = vpop.f32.mrf.mxu0
        %4294 = vdwg.mxu0
        %v4313 = vunpack.c.l.b16 %v4109
        %v4314 = vunpack.c.l.b16 %v4110
        %v4315 = vunpack.c.l.b16 %v4111
        %v4316 = vunpack.c.l.b16 %v4112
        %v4317 = vunpack.c.l.b16 %v4113
        %v4318 = vunpack.c.l.b16 %v4114
        %v4319 = vunpack.c.l.b16 %v4115
        %v4320 = vunpack.c.l.b16 %v4116
        %v4321 = vunpack.c.l.b16 %v4117
        %v4322 = vunpack.c.l.b16 %v4118
        %v4323 = vunpack.c.l.b16 %v4119
        %v4324 = vunpack.c.l.b16 %v4120
        %v4325 = vunpack.c.l.b16 %v4121
        %v4326 = vunpack.c.l.b16 %v4122
        %v4327 = vunpack.c.l.b16 %v4123
        %v4328 = vunpack.c.l.b16 %v4124
        %v4329 = vunpack.c.l.b16 %v4125
        %v4330 = vunpack.c.l.b16 %v4126
        %v4331 = vpack.c.b16 %v4314, %v4313
        %v4332 = vpack.c.b16 %v4316, %v4315
        %v4333 = vpack.c.b16 %v4318, %v4317
        %v4334 = vpack.c.b16 %v4320, %v4319
        %v4335 = vpack.c.b16 %v4322, %v4321
        %v4336 = vpack.c.b16 %v4324, %v4323
        %v4337 = vpack.c.b16 %v4326, %v4325
        %v4338 = vpack.c.b16 %v4328, %v4327
        %v4339 = vpack.c.b16 %v4330, %v4329
        %v4341 = vsel %vm912, %v4331, 0
        %v4344 = vsel %vm912, %v4332, 0
        %v4347 = vsel %vm912, %v4333, 0
        %v4350 = vsel %vm912, %v4334, 0
        %v4353 = vsel %vm912, %v4335, 0
        %v4356 = vsel %vm912, %v4336, 0
        %v4359 = vsel %vm912, %v4337, 0
        %v4362 = vsel %vm912, %v4338, 0
        %v4365 = vsel %vm912, %v4339, 0
        %4367 = vmatprep.subr.bf16.mxu0 0
        %4368 = vmatpush1.bf16.msra.mxu0 0
        %4369 = vmatprep.subr.bf16.mxu0 0
        %4370 = vmatpush1.bf16.msra.mxu0 0
        %4371 = vmatprep.subr.bf16.mxu0 0
        %4372 = vmatpush1.bf16.msra.mxu0 0
        %4373 = vmatprep.subr.bf16.mxu0 0
        %4374 = vmatpush1.bf16.msra.mxu0 0
        %4375 = vmatprep.subr.bf16.mxu0 0
        %4376 = vmatpush1.bf16.msra.mxu0 0
        %4377 = vmatprep.subr.bf16.mxu0 0
        %4378 = vmatpush1.bf16.msra.mxu0 0
        %4379 = vmatprep.subr.bf16.mxu0 0
        %4380 = vmatpush1.bf16.msra.mxu0 %v1075
        %4381 = vmatprep.subr.bf16.mxu0 0
        %4382 = vmatpush1.bf16.msra.mxu0 %v1074
        %4383 = vmatprep.subr.bf16.mxu0 0
        %4384 = vmatpush2.bf16.msra.mxu0 0
        %4385 = vmatprep.subr.bf16.mxu0 0
        %4386 = vmatpush2.bf16.msra.mxu0 0
        %4387 = vmatprep.subr.bf16.mxu0 0
        %4388 = vmatpush2.bf16.msra.mxu0 0
        %4389 = vmatprep.subr.bf16.mxu0 0
        %4390 = vmatpush2.bf16.msra.mxu0 0
        %4391 = vmatprep.subr.bf16.mxu0 0
        %4392 = vmatpush2.bf16.msra.mxu0 0
        %4393 = vmatprep.subr.bf16.mxu0 0
        %4394 = vmatpush2.bf16.msra.mxu0 0
        %4395 = vmatprep.subr.bf16.mxu0 0
        %4396 = vmatpush2.bf16.msra.mxu0 0
        %4397 = vmatprep.subr.bf16.mxu0 0
        %4398 = vmatpush2.bf16.msra.mxu0 0
        %4399 = vmatprep.mubr.bf16.mxu0 0
        %4400 = vmatmul.mubr.bf16.gmra.mxu0 %v4341
        %v4401 = vpop.f32.mrf.mxu0
        %v4402 = vadd.f32 %v4225, %v4401
        %v4403 = vpop.f32.mrf.mxu0
        %v4404 = vpop.f32.mrf.mxu0
        %v4405 = vadd.f32 %v4228, %v4404
        %v4406 = vpop.f32.mrf.mxu0
        %4407 = vmatprep.mubr.bf16.mxu0 0
        %4408 = vmatmul.mubr.bf16.gmra.mxu0 %v4344
        %v4409 = vpop.f32.mrf.mxu0
        %v4410 = vadd.f32 %v4233, %v4409
        %v4411 = vpop.f32.mrf.mxu0
        %v4412 = vpop.f32.mrf.mxu0
        %v4413 = vadd.f32 %v4236, %v4412
        %v4414 = vpop.f32.mrf.mxu0
        %4415 = vmatprep.mubr.bf16.mxu0 0
        %4416 = vmatmul.mubr.bf16.gmra.mxu0 %v4347
        %v4417 = vpop.f32.mrf.mxu0
        %v4418 = vadd.f32 %v4241, %v4417
        %v4419 = vpop.f32.mrf.mxu0
        %v4420 = vpop.f32.mrf.mxu0
        %v4421 = vadd.f32 %v4244, %v4420
        %v4422 = vpop.f32.mrf.mxu0
        %4423 = vmatprep.mubr.bf16.mxu0 0
        %4424 = vmatmul.mubr.bf16.gmra.mxu0 %v4350
        %v4425 = vpop.f32.mrf.mxu0
        %v4426 = vadd.f32 %v4249, %v4425
        %v4427 = vpop.f32.mrf.mxu0
        %v4428 = vpop.f32.mrf.mxu0
        %v4429 = vadd.f32 %v4252, %v4428
        %v4430 = vpop.f32.mrf.mxu0
        %4431 = vmatprep.mubr.bf16.mxu0 0
        %4432 = vmatmul.mubr.bf16.gmra.mxu0 %v4353
        %v4433 = vpop.f32.mrf.mxu0
        %v4434 = vadd.f32 %v4257, %v4433
        %v4435 = vpop.f32.mrf.mxu0
        %v4436 = vpop.f32.mrf.mxu0
        %v4437 = vadd.f32 %v4260, %v4436
        %v4438 = vpop.f32.mrf.mxu0
        %4439 = vmatprep.mubr.bf16.mxu0 0
        %4440 = vmatmul.mubr.bf16.gmra.mxu0 %v4356
        %v4441 = vpop.f32.mrf.mxu0
        %v4442 = vadd.f32 %v4265, %v4441
        %v4443 = vpop.f32.mrf.mxu0
        %v4444 = vpop.f32.mrf.mxu0
        %v4445 = vadd.f32 %v4268, %v4444
        %v4446 = vpop.f32.mrf.mxu0
        %4447 = vmatprep.mubr.bf16.mxu0 0
        %4448 = vmatmul.mubr.bf16.gmra.mxu0 %v4359
        %v4449 = vpop.f32.mrf.mxu0
        %v4450 = vadd.f32 %v4273, %v4449
        %v4451 = vpop.f32.mrf.mxu0
        %v4452 = vpop.f32.mrf.mxu0
        %v4453 = vadd.f32 %v4276, %v4452
        %v4454 = vpop.f32.mrf.mxu0
        %4455 = vmatprep.mubr.bf16.mxu0 0
        %4456 = vmatmul.mubr.bf16.gmra.mxu0 %v4362
        %v4457 = vpop.f32.mrf.mxu0
        %v4458 = vadd.f32 %v4281, %v4457
        %v4459 = vpop.f32.mrf.mxu0
        %v4460 = vpop.f32.mrf.mxu0
        %v4461 = vadd.f32 %v4284, %v4460
        %v4462 = vpop.f32.mrf.mxu0
        %4463 = vmatprep.mubr.bf16.mxu0 0
        %4464 = vmatmul.mubr.bf16.gmra.mxu0 %v4365
        %v4465 = vpop.f32.mrf.mxu0
        %v4466 = vadd.f32 %v4289, %v4465
        %v4467 = vpop.f32.mrf.mxu0
        %v4468 = vpop.f32.mrf.mxu0
        %v4469 = vadd.f32 %v4292, %v4468
        %v4470 = vpop.f32.mrf.mxu0
        %4471 = vdwg.mxu0
        %v4472 = vadd.f32 %v4402, %v1214
        %v4473 = vadd.f32 %v4405, %v1214
        %v4474 = vadd.f32 %v4410, %v1214
        %v4475 = vadd.f32 %v4413, %v1214
        %v4476 = vadd.f32 %v4418, %v1214
        %v4477 = vadd.f32 %v4421, %v1214
        %v4478 = vadd.f32 %v4426, %v1214
        %v4479 = vadd.f32 %v4429, %v1214
        %v4480 = vadd.f32 %v4434, %v1214
        %v4481 = vadd.f32 %v4437, %v1214
        %v4482 = vadd.f32 %v4442, %v1214
        %v4483 = vadd.f32 %v4445, %v1214
        %v4484 = vadd.f32 %v4450, %v1214
        %v4485 = vadd.f32 %v4453, %v1214
        %v4486 = vadd.f32 %v4458, %v1214
        %v4487 = vadd.f32 %v4461, %v1214
        %v4488 = vadd.f32 %v4466, %v1214
        %v4489 = vadd.f32 %v4469, %v1214
        %v4490 = vxor.u32 %v4472, 2147483648
        %v4491 = vxor.u32 %v4473, 2147483648
        %v4492 = vxor.u32 %v4474, 2147483648
        %v4493 = vxor.u32 %v4475, 2147483648
        %v4494 = vxor.u32 %v4476, 2147483648
        %v4495 = vxor.u32 %v4477, 2147483648
        %v4496 = vxor.u32 %v4478, 2147483648
        %v4497 = vxor.u32 %v4479, 2147483648
        %v4498 = vxor.u32 %v4480, 2147483648
        %v4499 = vxor.u32 %v4481, 2147483648
        %v4500 = vxor.u32 %v4482, 2147483648
        %v4501 = vxor.u32 %v4483, 2147483648
        %v4502 = vxor.u32 %v4484, 2147483648
        %v4503 = vxor.u32 %v4485, 2147483648
        %v4504 = vxor.u32 %v4486, 2147483648
        %v4505 = vxor.u32 %v4487, 2147483648
        %v4506 = vxor.u32 %v4488, 2147483648
        %v4507 = vxor.u32 %v4489, 2147483648
        %v4508 = vmul.f32 %v4490, 1.442695
        %v4509 = vpow.pop %v4508
        %v4510 = vmul.f32 %v4491, 1.442695
        %v4511 = vpow.pop %v4510
        %v4512 = vmul.f32 %v4492, 1.442695
        %v4513 = vpow.pop %v4512
        %v4514 = vmul.f32 %v4493, 1.442695
        %v4515 = vpow.pop %v4514
        %v4516 = vmul.f32 %v4494, 1.442695
        %v4517 = vpow.pop %v4516
        %v4518 = vmul.f32 %v4495, 1.442695
        %v4519 = vpow.pop %v4518
        %v4520 = vmul.f32 %v4496, 1.442695
        %v4521 = vpow.pop %v4520
        %v4522 = vmul.f32 %v4497, 1.442695
        %v4523 = vpow.pop %v4522
        %v4524 = vmul.f32 %v4498, 1.442695
        %v4525 = vpow.pop %v4524
        %v4526 = vmul.f32 %v4499, 1.442695
        %v4527 = vpow.pop %v4526
        %v4528 = vmul.f32 %v4500, 1.442695
        %v4529 = vpow.pop %v4528
        %v4530 = vmul.f32 %v4501, 1.442695
        %v4531 = vpow.pop %v4530
        %v4532 = vmul.f32 %v4502, 1.442695
        %v4533 = vpow.pop %v4532
        %v4534 = vmul.f32 %v4503, 1.442695
        %v4535 = vpow.pop %v4534
        %v4536 = vmul.f32 %v4504, 1.442695
        %v4537 = vpow.pop %v4536
        %v4538 = vmul.f32 %v4505, 1.442695
        %v4539 = vpow.pop %v4538
        %v4540 = vmul.f32 %v4506, 1.442695
        %v4541 = vpow.pop %v4540
        %v4542 = vmul.f32 %v4507, 1.442695
        %v4543 = vpow.pop %v4542
        %v4544 = vadd.f32 %v4509, 1.0
        %v4545 = vadd.f32 %v4511, 1.0
        %v4546 = vadd.f32 %v4513, 1.0
        %v4547 = vadd.f32 %v4515, 1.0
        %v4548 = vadd.f32 %v4517, 1.0
        %v4549 = vadd.f32 %v4519, 1.0
        %v4550 = vadd.f32 %v4521, 1.0
        %v4551 = vadd.f32 %v4523, 1.0
        %v4552 = vadd.f32 %v4525, 1.0
        %v4553 = vadd.f32 %v4527, 1.0
        %v4554 = vadd.f32 %v4529, 1.0
        %v4555 = vadd.f32 %v4531, 1.0
        %v4556 = vadd.f32 %v4533, 1.0
        %v4557 = vadd.f32 %v4535, 1.0
        %v4558 = vadd.f32 %v4537, 1.0
        %v4559 = vadd.f32 %v4539, 1.0
        %v4560 = vadd.f32 %v4541, 1.0
        %v4561 = vadd.f32 %v4543, 1.0
        %v4562 = vrcp.pop %v4544
        %v4563 = vmul.f32 1.0, %v4562
        %v4564 = vrcp.pop %v4545
        %v4565 = vmul.f32 1.0, %v4564
        %v4566 = vrcp.pop %v4546
        %v4567 = vmul.f32 1.0, %v4566
        %v4568 = vrcp.pop %v4547
        %v4569 = vmul.f32 1.0, %v4568
        %v4570 = vrcp.pop %v4548
        %v4571 = vmul.f32 1.0, %v4570
        %v4572 = vrcp.pop %v4549
        %v4573 = vmul.f32 1.0, %v4572
        %v4574 = vrcp.pop %v4550
        %v4575 = vmul.f32 1.0, %v4574
        %v4576 = vrcp.pop %v4551
        %v4577 = vmul.f32 1.0, %v4576
        %v4578 = vrcp.pop %v4552
        %v4579 = vmul.f32 1.0, %v4578
        %v4580 = vrcp.pop %v4553
        %v4581 = vmul.f32 1.0, %v4580
        %v4582 = vrcp.pop %v4554
        %v4583 = vmul.f32 1.0, %v4582
        %v4584 = vrcp.pop %v4555
        %v4585 = vmul.f32 1.0, %v4584
        %v4586 = vrcp.pop %v4556
        %v4587 = vmul.f32 1.0, %v4586
        %v4588 = vrcp.pop %v4557
        %v4589 = vmul.f32 1.0, %v4588
        %v4590 = vrcp.pop %v4558
        %v4591 = vmul.f32 1.0, %v4590
        %v4592 = vrcp.pop %v4559
        %v4593 = vmul.f32 1.0, %v4592
        %v4594 = vrcp.pop %v4560
        %v4595 = vmul.f32 1.0, %v4594
        %v4596 = vrcp.pop %v4561
        %v4597 = vmul.f32 1.0, %v4596
        %v4598 = vtanh.pop %v4472
        %v4599 = vtanh.pop %v4473
        %v4600 = vtanh.pop %v4474
        %v4601 = vtanh.pop %v4475
        %v4602 = vtanh.pop %v4476
        %v4603 = vtanh.pop %v4477
        %v4604 = vtanh.pop %v4478
        %v4605 = vtanh.pop %v4479
        %v4606 = vtanh.pop %v4480
        %v4607 = vtanh.pop %v4481
        %v4608 = vtanh.pop %v4482
        %v4609 = vtanh.pop %v4483
        %v4610 = vtanh.pop %v4484
        %v4611 = vtanh.pop %v4485
        %v4612 = vtanh.pop %v4486
        %v4613 = vtanh.pop %v4487
        %v4614 = vtanh.pop %v4488
        %v4615 = vtanh.pop %v4489
        %v4616 = vmul.f32 %v4563, %v3982
        %v4617 = vmul.f32 %v4565, %v3983
        %v4618 = vmul.f32 %v4567, %v3984
        %v4619 = vmul.f32 %v4569, %v3985
        %v4620 = vmul.f32 %v4571, %v3986
        %v4621 = vmul.f32 %v4573, %v3987
        %v4622 = vmul.f32 %v4575, %v3988
        %v4623 = vmul.f32 %v4577, %v3989
        %v4624 = vmul.f32 %v4579, %v3990
        %v4625 = vmul.f32 %v4581, %v3991
        %v4626 = vmul.f32 %v4583, %v3992
        %v4627 = vmul.f32 %v4585, %v3993
        %v4628 = vmul.f32 %v4587, %v3994
        %v4629 = vmul.f32 %v4589, %v3995
        %v4630 = vmul.f32 %v4591, %v3996
        %v4631 = vmul.f32 %v4593, %v3997
        %v4632 = vmul.f32 %v4595, %v3998
        %v4633 = vmul.f32 %v4597, %v3999
        %4652 = vrot.lane.b32.xlu0 %v4598, 64
        %v4653 = vpop.permute.xlu0 %4652
        %4654 = vrot.lane.b32.xlu0 %v4599, 64
        %v4655 = vpop.permute.xlu0 %4654
        %4656 = vrot.lane.b32.xlu0 %v4600, 64
        %v4657 = vpop.permute.xlu0 %4656
        %4658 = vrot.lane.b32.xlu0 %v4601, 64
        %v4659 = vpop.permute.xlu0 %4658
        %4660 = vrot.lane.b32.xlu0 %v4602, 64
        %v4661 = vpop.permute.xlu0 %4660
        %4662 = vrot.lane.b32.xlu0 %v4603, 64
        %v4663 = vpop.permute.xlu0 %4662
        %4664 = vrot.lane.b32.xlu0 %v4604, 64
        %v4665 = vpop.permute.xlu0 %4664
        %4666 = vrot.lane.b32.xlu0 %v4605, 64
        %v4667 = vpop.permute.xlu0 %4666
        %4668 = vrot.lane.b32.xlu0 %v4606, 64
        %v4669 = vpop.permute.xlu0 %4668
        %4670 = vrot.lane.b32.xlu0 %v4607, 64
        %v4671 = vpop.permute.xlu0 %4670
        %4672 = vrot.lane.b32.xlu0 %v4608, 64
        %v4673 = vpop.permute.xlu0 %4672
        %4674 = vrot.lane.b32.xlu0 %v4609, 64
        %v4675 = vpop.permute.xlu0 %4674
        %4676 = vrot.lane.b32.xlu0 %v4610, 64
        %v4677 = vpop.permute.xlu0 %4676
        %4678 = vrot.lane.b32.xlu0 %v4611, 64
        %v4679 = vpop.permute.xlu0 %4678
        %4680 = vrot.lane.b32.xlu0 %v4612, 64
        %v4681 = vpop.permute.xlu0 %4680
        %4682 = vrot.lane.b32.xlu0 %v4613, 64
        %v4683 = vpop.permute.xlu0 %4682
        %4684 = vrot.lane.b32.xlu0 %v4614, 64
        %v4685 = vpop.permute.xlu0 %4684
        %4686 = vrot.lane.b32.xlu0 %v4615, 64
        %v4687 = vpop.permute.xlu0 %4686
        %v4706 = vmul.f32 %v4563, %v4653
        %v4707 = vmul.f32 %v4565, %v4655
        %v4708 = vmul.f32 %v4567, %v4657
        %v4709 = vmul.f32 %v4569, %v4659
        %v4710 = vmul.f32 %v4571, %v4661
        %v4711 = vmul.f32 %v4573, %v4663
        %v4712 = vmul.f32 %v4575, %v4665
        %v4713 = vmul.f32 %v4577, %v4667
        %v4714 = vmul.f32 %v4579, %v4669
        %v4715 = vmul.f32 %v4581, %v4671
        %v4716 = vmul.f32 %v4583, %v4673
        %v4717 = vmul.f32 %v4585, %v4675
        %v4718 = vmul.f32 %v4587, %v4677
        %v4719 = vmul.f32 %v4589, %v4679
        %v4720 = vmul.f32 %v4591, %v4681
        %v4721 = vmul.f32 %v4593, %v4683
        %v4722 = vmul.f32 %v4595, %v4685
        %v4723 = vmul.f32 %v4597, %v4687
        %4742 = vrot.lane.b32.xlu0 %v4706, 32
        %v4743 = vpop.permute.xlu0 %4742
        %4744 = vrot.lane.b32.xlu0 %v4707, 32
        %v4745 = vpop.permute.xlu0 %4744
        %4746 = vrot.lane.b32.xlu0 %v4708, 32
        %v4747 = vpop.permute.xlu0 %4746
        %4748 = vrot.lane.b32.xlu0 %v4709, 32
        %v4749 = vpop.permute.xlu0 %4748
        %4750 = vrot.lane.b32.xlu0 %v4710, 32
        %v4751 = vpop.permute.xlu0 %4750
        %4752 = vrot.lane.b32.xlu0 %v4711, 32
        %v4753 = vpop.permute.xlu0 %4752
        %4754 = vrot.lane.b32.xlu0 %v4712, 32
        %v4755 = vpop.permute.xlu0 %4754
        %4756 = vrot.lane.b32.xlu0 %v4713, 32
        %v4757 = vpop.permute.xlu0 %4756
        %4758 = vrot.lane.b32.xlu0 %v4714, 32
        %v4759 = vpop.permute.xlu0 %4758
        %4760 = vrot.lane.b32.xlu0 %v4715, 32
        %v4761 = vpop.permute.xlu0 %4760
        %4762 = vrot.lane.b32.xlu0 %v4716, 32
        %v4763 = vpop.permute.xlu0 %4762
        %4764 = vrot.lane.b32.xlu0 %v4717, 32
        %v4765 = vpop.permute.xlu0 %4764
        %4766 = vrot.lane.b32.xlu0 %v4718, 32
        %v4767 = vpop.permute.xlu0 %4766
        %4768 = vrot.lane.b32.xlu0 %v4719, 32
        %v4769 = vpop.permute.xlu0 %4768
        %4770 = vrot.lane.b32.xlu0 %v4720, 32
        %v4771 = vpop.permute.xlu0 %4770
        %4772 = vrot.lane.b32.xlu0 %v4721, 32
        %v4773 = vpop.permute.xlu0 %4772
        %4774 = vrot.lane.b32.xlu0 %v4722, 32
        %v4775 = vpop.permute.xlu0 %4774
        %4776 = vrot.lane.b32.xlu0 %v4723, 32
        %v4777 = vpop.permute.xlu0 %4776
        %v4796 = vadd.f32 %v4616, %v4743
        %v4797 = vadd.f32 %v4617, %v4745
        %v4798 = vadd.f32 %v4618, %v4747
        %v4799 = vadd.f32 %v4619, %v4749
        %v4800 = vadd.f32 %v4620, %v4751
        %v4801 = vadd.f32 %v4621, %v4753
        %v4802 = vadd.f32 %v4622, %v4755
        %v4803 = vadd.f32 %v4623, %v4757
        %v4804 = vadd.f32 %v4624, %v4759
        %v4805 = vadd.f32 %v4625, %v4761
        %v4806 = vadd.f32 %v4626, %v4763
        %v4807 = vadd.f32 %v4627, %v4765
        %v4808 = vadd.f32 %v4628, %v4767
        %v4809 = vadd.f32 %v4629, %v4769
        %v4810 = vadd.f32 %v4630, %v4771
        %v4811 = vadd.f32 %v4631, %v4773
        %v4812 = vadd.f32 %v4632, %v4775
        %v4813 = vadd.f32 %v4633, %v4777
        %v4814 = vtanh.pop %v4796
        %v4815 = vtanh.pop %v4797
        %v4816 = vtanh.pop %v4798
        %v4817 = vtanh.pop %v4799
        %v4818 = vtanh.pop %v4800
        %v4819 = vtanh.pop %v4801
        %v4820 = vtanh.pop %v4802
        %v4821 = vtanh.pop %v4803
        %v4822 = vtanh.pop %v4804
        %v4823 = vtanh.pop %v4805
        %v4824 = vtanh.pop %v4806
        %v4825 = vtanh.pop %v4807
        %v4826 = vtanh.pop %v4808
        %v4827 = vtanh.pop %v4809
        %v4828 = vtanh.pop %v4810
        %v4829 = vtanh.pop %v4811
        %v4830 = vtanh.pop %v4812
        %v4831 = vtanh.pop %v4813
        %4850 = vrot.lane.b32.xlu0 %v4814, 64
        %v4851 = vpop.permute.xlu0 %4850
        %4852 = vrot.lane.b32.xlu0 %v4815, 64
        %v4853 = vpop.permute.xlu0 %4852
        %4854 = vrot.lane.b32.xlu0 %v4816, 64
        %v4855 = vpop.permute.xlu0 %4854
        %4856 = vrot.lane.b32.xlu0 %v4817, 64
        %v4857 = vpop.permute.xlu0 %4856
        %4858 = vrot.lane.b32.xlu0 %v4818, 64
        %v4859 = vpop.permute.xlu0 %4858
        %4860 = vrot.lane.b32.xlu0 %v4819, 64
        %v4861 = vpop.permute.xlu0 %4860
        %4862 = vrot.lane.b32.xlu0 %v4820, 64
        %v4863 = vpop.permute.xlu0 %4862
        %4864 = vrot.lane.b32.xlu0 %v4821, 64
        %v4865 = vpop.permute.xlu0 %4864
        %4866 = vrot.lane.b32.xlu0 %v4822, 64
        %v4867 = vpop.permute.xlu0 %4866
        %4868 = vrot.lane.b32.xlu0 %v4823, 64
        %v4869 = vpop.permute.xlu0 %4868
        %4870 = vrot.lane.b32.xlu0 %v4824, 64
        %v4871 = vpop.permute.xlu0 %4870
        %4872 = vrot.lane.b32.xlu0 %v4825, 64
        %v4873 = vpop.permute.xlu0 %4872
        %4874 = vrot.lane.b32.xlu0 %v4826, 64
        %v4875 = vpop.permute.xlu0 %4874
        %4876 = vrot.lane.b32.xlu0 %v4827, 64
        %v4877 = vpop.permute.xlu0 %4876
        %4878 = vrot.lane.b32.xlu0 %v4828, 64
        %v4879 = vpop.permute.xlu0 %4878
        %4880 = vrot.lane.b32.xlu0 %v4829, 64
        %v4881 = vpop.permute.xlu0 %4880
        %4882 = vrot.lane.b32.xlu0 %v4830, 64
        %v4883 = vpop.permute.xlu0 %4882
        %4884 = vrot.lane.b32.xlu0 %v4831, 64
        %v4885 = vpop.permute.xlu0 %4884
        %v4904 = vmul.f32 %v4563, %v4851
        %v4905 = vmul.f32 %v4565, %v4853
        %v4906 = vmul.f32 %v4567, %v4855
        %v4907 = vmul.f32 %v4569, %v4857
        %v4908 = vmul.f32 %v4571, %v4859
        %v4909 = vmul.f32 %v4573, %v4861
        %v4910 = vmul.f32 %v4575, %v4863
        %v4911 = vmul.f32 %v4577, %v4865
        %v4912 = vmul.f32 %v4579, %v4867
        %v4913 = vmul.f32 %v4581, %v4869
        %v4914 = vmul.f32 %v4583, %v4871
        %v4915 = vmul.f32 %v4585, %v4873
        %v4916 = vmul.f32 %v4587, %v4875
        %v4917 = vmul.f32 %v4589, %v4877
        %v4918 = vmul.f32 %v4591, %v4879
        %v4919 = vmul.f32 %v4593, %v4881
        %v4920 = vmul.f32 %v4595, %v4883
        %v4921 = vmul.f32 %v4597, %v4885
        %s4922 = scalar_lea.vmem %s838, 360 [#allocation3]
        %v4923 = vld [vmem:[%s4922] sm:$0xf]
        %v4924 = vld [vmem:[%s4922 + $0x4] sm:$0xf]
        %v4925 = vld [vmem:[%s4922 + $0x8] sm:$0xf]
        %v4926 = vld [vmem:[%s4922 + $0xc] sm:$0xf]
        %v4927 = vld [vmem:[%s4922 + $0x10] sm:$0xf]
        %v4928 = vld [vmem:[%s4922 + $0x14] sm:$0xf]
        %v4929 = vld [vmem:[%s4922 + $0x18] sm:$0xf]
        %v4930 = vld [vmem:[%s4922 + $0x1c] sm:$0xf]
        %v4931 = vld [vmem:[%s4922 + $0x20] sm:$0xf]
        %v4932 = vld [vmem:[%s4922 + $0x24] sm:$0xf]
        %v4933 = vld [vmem:[%s4922 + $0x28] sm:$0xf]
        %v4934 = vld [vmem:[%s4922 + $0x2c] sm:$0xf]
        %v4935 = vld [vmem:[%s4922 + $0x30] sm:$0xf]
        %v4936 = vld [vmem:[%s4922 + $0x34] sm:$0xf]
        %v4937 = vld [vmem:[%s4922 + $0x38] sm:$0xf]
        %v4938 = vld [vmem:[%s4922 + $0x3c] sm:$0xf]
        %v4939 = vld [vmem:[%s4922 + $0x40] sm:$0xf]
        %v4940 = vld [vmem:[%s4922 + $0x44] sm:$0xf]
        %v4941 = vpack.c.bf16 %v4905, %v4904
        %v4942 = vpack.c.bf16 %v4907, %v4906
        %v4943 = vpack.c.bf16 %v4909, %v4908
        %v4944 = vpack.c.bf16 %v4911, %v4910
        %v4945 = vpack.c.bf16 %v4913, %v4912
        %v4946 = vpack.c.bf16 %v4915, %v4914
        %v4947 = vpack.c.bf16 %v4917, %v4916
        %v4948 = vpack.c.bf16 %v4919, %v4918
        %v4949 = vpack.c.bf16 %v4921, %v4920
        %4959 = vrot.lane.b32.xlu0 %v4941, 32
        %v4960 = vpop.permute.xlu0 %4959
        %4961 = vrot.lane.b32.xlu0 %v4942, 32
        %v4962 = vpop.permute.xlu0 %4961
        %4963 = vrot.lane.b32.xlu0 %v4943, 32
        %v4964 = vpop.permute.xlu0 %4963
        %4965 = vrot.lane.b32.xlu0 %v4944, 32
        %v4966 = vpop.permute.xlu0 %4965
        %4967 = vrot.lane.b32.xlu0 %v4945, 32
        %v4968 = vpop.permute.xlu0 %4967
        %4969 = vrot.lane.b32.xlu0 %v4946, 32
        %v4970 = vpop.permute.xlu0 %4969
        %4971 = vrot.lane.b32.xlu0 %v4947, 32
        %v4972 = vpop.permute.xlu0 %4971
        %4973 = vrot.lane.b32.xlu0 %v4948, 32
        %v4974 = vpop.permute.xlu0 %4973
        %4975 = vrot.lane.b32.xlu0 %v4949, 32
        %v4976 = vpop.permute.xlu0 %4975
        %v4978 = vsel %vm912, %v4960, 0
        %v4981 = vsel %vm912, %v4962, 0
        %v4984 = vsel %vm912, %v4964, 0
        %v4987 = vsel %vm912, %v4966, 0
        %v4990 = vsel %vm912, %v4968, 0
        %v4993 = vsel %vm912, %v4970, 0
        %v4996 = vsel %vm912, %v4972, 0
        %v4999 = vsel %vm912, %v4974, 0
        %v5002 = vsel %vm912, %v4976, 0
        %5004 = vmatprep.subr.bf16.mxu0 0
        %5005 = vmatpush1.bf16.msra.mxu0 0
        %5006 = vmatprep.subr.bf16.mxu0 0
        %5007 = vmatpush1.bf16.msra.mxu0 0
        %5008 = vmatprep.subr.bf16.mxu0 0
        %5009 = vmatpush1.bf16.msra.mxu0 0
        %5010 = vmatprep.subr.bf16.mxu0 0
        %5011 = vmatpush1.bf16.msra.mxu0 0
        %5012 = vmatprep.subr.bf16.mxu0 0
        %5013 = vmatpush1.bf16.msra.mxu0 0
        %5014 = vmatprep.subr.bf16.mxu0 0
        %5015 = vmatpush1.bf16.msra.mxu0 0
        %5016 = vmatprep.subr.bf16.mxu0 0
        %5017 = vmatpush1.bf16.msra.mxu0 %v909
        %5018 = vmatprep.subr.bf16.mxu0 0
        %5019 = vmatpush1.bf16.msra.mxu0 %v908
        %5020 = vmatprep.subr.bf16.mxu0 0
        %5021 = vmatpush2.bf16.msra.mxu0 0
        %5022 = vmatprep.subr.bf16.mxu0 0
        %5023 = vmatpush2.bf16.msra.mxu0 0
        %5024 = vmatprep.subr.bf16.mxu0 0
        %5025 = vmatpush2.bf16.msra.mxu0 0
        %5026 = vmatprep.subr.bf16.mxu0 0
        %5027 = vmatpush2.bf16.msra.mxu0 0
        %5028 = vmatprep.subr.bf16.mxu0 0
        %5029 = vmatpush2.bf16.msra.mxu0 0
        %5030 = vmatprep.subr.bf16.mxu0 0
        %5031 = vmatpush2.bf16.msra.mxu0 0
        %5032 = vmatprep.subr.bf16.mxu0 0
        %5033 = vmatpush2.bf16.msra.mxu0 0
        %5034 = vmatprep.subr.bf16.mxu0 0
        %5035 = vmatpush2.bf16.msra.mxu0 0
        %5036 = vmatprep.mubr.bf16.mxu0 0
        %5037 = vmatmul.mubr.bf16.gmra.mxu0 %v4978
        %v5038 = vpop.f32.mrf.mxu0
        %v5039 = vadd.f32 0.0, %v5038
        %v5040 = vpop.f32.mrf.mxu0
        %v5041 = vpop.f32.mrf.mxu0
        %v5042 = vadd.f32 0.0, %v5041
        %v5043 = vpop.f32.mrf.mxu0
        %5044 = vmatprep.mubr.bf16.mxu0 0
        %5045 = vmatmul.mubr.bf16.gmra.mxu0 %v4981
        %v5046 = vpop.f32.mrf.mxu0
        %v5047 = vadd.f32 0.0, %v5046
        %v5048 = vpop.f32.mrf.mxu0
        %v5049 = vpop.f32.mrf.mxu0
        %v5050 = vadd.f32 0.0, %v5049
        %v5051 = vpop.f32.mrf.mxu0
        %5052 = vmatprep.mubr.bf16.mxu0 0
        %5053 = vmatmul.mubr.bf16.gmra.mxu0 %v4984
        %v5054 = vpop.f32.mrf.mxu0
        %v5055 = vadd.f32 0.0, %v5054
        %v5056 = vpop.f32.mrf.mxu0
        %v5057 = vpop.f32.mrf.mxu0
        %v5058 = vadd.f32 0.0, %v5057
        %v5059 = vpop.f32.mrf.mxu0
        %5060 = vmatprep.mubr.bf16.mxu0 0
        %5061 = vmatmul.mubr.bf16.gmra.mxu0 %v4987
        %v5062 = vpop.f32.mrf.mxu0
        %v5063 = vadd.f32 0.0, %v5062
        %v5064 = vpop.f32.mrf.mxu0
        %v5065 = vpop.f32.mrf.mxu0
        %v5066 = vadd.f32 0.0, %v5065
        %v5067 = vpop.f32.mrf.mxu0
        %5068 = vmatprep.mubr.bf16.mxu0 0
        %5069 = vmatmul.mubr.bf16.gmra.mxu0 %v4990
        %v5070 = vpop.f32.mrf.mxu0
        %v5071 = vadd.f32 0.0, %v5070
        %v5072 = vpop.f32.mrf.mxu0
        %v5073 = vpop.f32.mrf.mxu0
        %v5074 = vadd.f32 0.0, %v5073
        %v5075 = vpop.f32.mrf.mxu0
        %5076 = vmatprep.mubr.bf16.mxu0 0
        %5077 = vmatmul.mubr.bf16.gmra.mxu0 %v4993
        %v5078 = vpop.f32.mrf.mxu0
        %v5079 = vadd.f32 0.0, %v5078
        %v5080 = vpop.f32.mrf.mxu0
        %v5081 = vpop.f32.mrf.mxu0
        %v5082 = vadd.f32 0.0, %v5081
        %v5083 = vpop.f32.mrf.mxu0
        %5084 = vmatprep.mubr.bf16.mxu0 0
        %5085 = vmatmul.mubr.bf16.gmra.mxu0 %v4996
        %v5086 = vpop.f32.mrf.mxu0
        %v5087 = vadd.f32 0.0, %v5086
        %v5088 = vpop.f32.mrf.mxu0
        %v5089 = vpop.f32.mrf.mxu0
        %v5090 = vadd.f32 0.0, %v5089
        %v5091 = vpop.f32.mrf.mxu0
        %5092 = vmatprep.mubr.bf16.mxu0 0
        %5093 = vmatmul.mubr.bf16.gmra.mxu0 %v4999
        %v5094 = vpop.f32.mrf.mxu0
        %v5095 = vadd.f32 0.0, %v5094
        %v5096 = vpop.f32.mrf.mxu0
        %v5097 = vpop.f32.mrf.mxu0
        %v5098 = vadd.f32 0.0, %v5097
        %v5099 = vpop.f32.mrf.mxu0
        %5100 = vmatprep.mubr.bf16.mxu0 0
        %5101 = vmatmul.mubr.bf16.gmra.mxu0 %v5002
        %v5102 = vpop.f32.mrf.mxu0
        %v5103 = vadd.f32 0.0, %v5102
        %v5104 = vpop.f32.mrf.mxu0
        %v5105 = vpop.f32.mrf.mxu0
        %v5106 = vadd.f32 0.0, %v5105
        %v5107 = vpop.f32.mrf.mxu0
        %5108 = vdwg.mxu0
        %v5127 = vunpack.c.l.b16 %v4923
        %v5128 = vunpack.c.l.b16 %v4924
        %v5129 = vunpack.c.l.b16 %v4925
        %v5130 = vunpack.c.l.b16 %v4926
        %v5131 = vunpack.c.l.b16 %v4927
        %v5132 = vunpack.c.l.b16 %v4928
        %v5133 = vunpack.c.l.b16 %v4929
        %v5134 = vunpack.c.l.b16 %v4930
        %v5135 = vunpack.c.l.b16 %v4931
        %v5136 = vunpack.c.l.b16 %v4932
        %v5137 = vunpack.c.l.b16 %v4933
        %v5138 = vunpack.c.l.b16 %v4934
        %v5139 = vunpack.c.l.b16 %v4935
        %v5140 = vunpack.c.l.b16 %v4936
        %v5141 = vunpack.c.l.b16 %v4937
        %v5142 = vunpack.c.l.b16 %v4938
        %v5143 = vunpack.c.l.b16 %v4939
        %v5144 = vunpack.c.l.b16 %v4940
        %v5145 = vpack.c.b16 %v5128, %v5127
        %v5146 = vpack.c.b16 %v5130, %v5129
        %v5147 = vpack.c.b16 %v5132, %v5131
        %v5148 = vpack.c.b16 %v5134, %v5133
        %v5149 = vpack.c.b16 %v5136, %v5135
        %v5150 = vpack.c.b16 %v5138, %v5137
        %v5151 = vpack.c.b16 %v5140, %v5139
        %v5152 = vpack.c.b16 %v5142, %v5141
        %v5153 = vpack.c.b16 %v5144, %v5143
        %v5155 = vsel %vm912, %v5145, 0
        %v5158 = vsel %vm912, %v5146, 0
        %v5161 = vsel %vm912, %v5147, 0
        %v5164 = vsel %vm912, %v5148, 0
        %v5167 = vsel %vm912, %v5149, 0
        %v5170 = vsel %vm912, %v5150, 0
        %v5173 = vsel %vm912, %v5151, 0
        %v5176 = vsel %vm912, %v5152, 0
        %v5179 = vsel %vm912, %v5153, 0
        %5181 = vmatprep.subr.bf16.mxu0 0
        %5182 = vmatpush1.bf16.msra.mxu0 0
        %5183 = vmatprep.subr.bf16.mxu0 0
        %5184 = vmatpush1.bf16.msra.mxu0 0
        %5185 = vmatprep.subr.bf16.mxu0 0
        %5186 = vmatpush1.bf16.msra.mxu0 0
        %5187 = vmatprep.subr.bf16.mxu0 0
        %5188 = vmatpush1.bf16.msra.mxu0 0
        %5189 = vmatprep.subr.bf16.mxu0 0
        %5190 = vmatpush1.bf16.msra.mxu0 0
        %5191 = vmatprep.subr.bf16.mxu0 0
        %5192 = vmatpush1.bf16.msra.mxu0 0
        %5193 = vmatprep.subr.bf16.mxu0 0
        %5194 = vmatpush1.bf16.msra.mxu0 %v1075
        %5195 = vmatprep.subr.bf16.mxu0 0
        %5196 = vmatpush1.bf16.msra.mxu0 %v1074
        %5197 = vmatprep.subr.bf16.mxu0 0
        %5198 = vmatpush2.bf16.msra.mxu0 0
        %5199 = vmatprep.subr.bf16.mxu0 0
        %5200 = vmatpush2.bf16.msra.mxu0 0
        %5201 = vmatprep.subr.bf16.mxu0 0
        %5202 = vmatpush2.bf16.msra.mxu0 0
        %5203 = vmatprep.subr.bf16.mxu0 0
        %5204 = vmatpush2.bf16.msra.mxu0 0
        %5205 = vmatprep.subr.bf16.mxu0 0
        %5206 = vmatpush2.bf16.msra.mxu0 0
        %5207 = vmatprep.subr.bf16.mxu0 0
        %5208 = vmatpush2.bf16.msra.mxu0 0
        %5209 = vmatprep.subr.bf16.mxu0 0
        %5210 = vmatpush2.bf16.msra.mxu0 0
        %5211 = vmatprep.subr.bf16.mxu0 0
        %5212 = vmatpush2.bf16.msra.mxu0 0
        %5213 = vmatprep.mubr.bf16.mxu0 0
        %5214 = vmatmul.mubr.bf16.gmra.mxu0 %v5155
        %v5215 = vpop.f32.mrf.mxu0
        %v5216 = vadd.f32 %v5039, %v5215
        %v5217 = vpop.f32.mrf.mxu0
        %v5218 = vpop.f32.mrf.mxu0
        %v5219 = vadd.f32 %v5042, %v5218
        %v5220 = vpop.f32.mrf.mxu0
        %5221 = vmatprep.mubr.bf16.mxu0 0
        %5222 = vmatmul.mubr.bf16.gmra.mxu0 %v5158
        %v5223 = vpop.f32.mrf.mxu0
        %v5224 = vadd.f32 %v5047, %v5223
        %v5225 = vpop.f32.mrf.mxu0
        %v5226 = vpop.f32.mrf.mxu0
        %v5227 = vadd.f32 %v5050, %v5226
        %v5228 = vpop.f32.mrf.mxu0
        %5229 = vmatprep.mubr.bf16.mxu0 0
        %5230 = vmatmul.mubr.bf16.gmra.mxu0 %v5161
        %v5231 = vpop.f32.mrf.mxu0
        %v5232 = vadd.f32 %v5055, %v5231
        %v5233 = vpop.f32.mrf.mxu0
        %v5234 = vpop.f32.mrf.mxu0
        %v5235 = vadd.f32 %v5058, %v5234
        %v5236 = vpop.f32.mrf.mxu0
        %5237 = vmatprep.mubr.bf16.mxu0 0
        %5238 = vmatmul.mubr.bf16.gmra.mxu0 %v5164
        %v5239 = vpop.f32.mrf.mxu0
        %v5240 = vadd.f32 %v5063, %v5239
        %v5241 = vpop.f32.mrf.mxu0
        %v5242 = vpop.f32.mrf.mxu0
        %v5243 = vadd.f32 %v5066, %v5242
        %v5244 = vpop.f32.mrf.mxu0
        %5245 = vmatprep.mubr.bf16.mxu0 0
        %5246 = vmatmul.mubr.bf16.gmra.mxu0 %v5167
        %v5247 = vpop.f32.mrf.mxu0
        %v5248 = vadd.f32 %v5071, %v5247
        %v5249 = vpop.f32.mrf.mxu0
        %v5250 = vpop.f32.mrf.mxu0
        %v5251 = vadd.f32 %v5074, %v5250
        %v5252 = vpop.f32.mrf.mxu0
        %5253 = vmatprep.mubr.bf16.mxu0 0
        %5254 = vmatmul.mubr.bf16.gmra.mxu0 %v5170
        %v5255 = vpop.f32.mrf.mxu0
        %v5256 = vadd.f32 %v5079, %v5255
        %v5257 = vpop.f32.mrf.mxu0
        %v5258 = vpop.f32.mrf.mxu0
        %v5259 = vadd.f32 %v5082, %v5258
        %v5260 = vpop.f32.mrf.mxu0
        %5261 = vmatprep.mubr.bf16.mxu0 0
        %5262 = vmatmul.mubr.bf16.gmra.mxu0 %v5173
        %v5263 = vpop.f32.mrf.mxu0
        %v5264 = vadd.f32 %v5087, %v5263
        %v5265 = vpop.f32.mrf.mxu0
        %v5266 = vpop.f32.mrf.mxu0
        %v5267 = vadd.f32 %v5090, %v5266
        %v5268 = vpop.f32.mrf.mxu0
        %5269 = vmatprep.mubr.bf16.mxu0 0
        %5270 = vmatmul.mubr.bf16.gmra.mxu0 %v5176
        %v5271 = vpop.f32.mrf.mxu0
        %v5272 = vadd.f32 %v5095, %v5271
        %v5273 = vpop.f32.mrf.mxu0
        %v5274 = vpop.f32.mrf.mxu0
        %v5275 = vadd.f32 %v5098, %v5274
        %v5276 = vpop.f32.mrf.mxu0
        %5277 = vmatprep.mubr.bf16.mxu0 0
        %5278 = vmatmul.mubr.bf16.gmra.mxu0 %v5179
        %v5279 = vpop.f32.mrf.mxu0
        %v5280 = vadd.f32 %v5103, %v5279
        %v5281 = vpop.f32.mrf.mxu0
        %v5282 = vpop.f32.mrf.mxu0
        %v5283 = vadd.f32 %v5106, %v5282
        %v5284 = vpop.f32.mrf.mxu0
        %5285 = vdwg.mxu0
        %v5286 = vadd.f32 %v5216, %v1214
        %v5287 = vadd.f32 %v5219, %v1214
        %v5288 = vadd.f32 %v5224, %v1214
        %v5289 = vadd.f32 %v5227, %v1214
        %v5290 = vadd.f32 %v5232, %v1214
        %v5291 = vadd.f32 %v5235, %v1214
        %v5292 = vadd.f32 %v5240, %v1214
        %v5293 = vadd.f32 %v5243, %v1214
        %v5294 = vadd.f32 %v5248, %v1214
        %v5295 = vadd.f32 %v5251, %v1214
        %v5296 = vadd.f32 %v5256, %v1214
        %v5297 = vadd.f32 %v5259, %v1214
        %v5298 = vadd.f32 %v5264, %v1214
        %v5299 = vadd.f32 %v5267, %v1214
        %v5300 = vadd.f32 %v5272, %v1214
        %v5301 = vadd.f32 %v5275, %v1214
        %v5302 = vadd.f32 %v5280, %v1214
        %v5303 = vadd.f32 %v5283, %v1214
        %v5304 = vxor.u32 %v5286, 2147483648
        %v5305 = vxor.u32 %v5287, 2147483648
        %v5306 = vxor.u32 %v5288, 2147483648
        %v5307 = vxor.u32 %v5289, 2147483648
        %v5308 = vxor.u32 %v5290, 2147483648
        %v5309 = vxor.u32 %v5291, 2147483648
        %v5310 = vxor.u32 %v5292, 2147483648
        %v5311 = vxor.u32 %v5293, 2147483648
        %v5312 = vxor.u32 %v5294, 2147483648
        %v5313 = vxor.u32 %v5295, 2147483648
        %v5314 = vxor.u32 %v5296, 2147483648
        %v5315 = vxor.u32 %v5297, 2147483648
        %v5316 = vxor.u32 %v5298, 2147483648
        %v5317 = vxor.u32 %v5299, 2147483648
        %v5318 = vxor.u32 %v5300, 2147483648
        %v5319 = vxor.u32 %v5301, 2147483648
        %v5320 = vxor.u32 %v5302, 2147483648
        %v5321 = vxor.u32 %v5303, 2147483648
        %v5322 = vmul.f32 %v5304, 1.442695
        %v5323 = vpow.pop %v5322
        %v5324 = vmul.f32 %v5305, 1.442695
        %v5325 = vpow.pop %v5324
        %v5326 = vmul.f32 %v5306, 1.442695
        %v5327 = vpow.pop %v5326
        %v5328 = vmul.f32 %v5307, 1.442695
        %v5329 = vpow.pop %v5328
        %v5330 = vmul.f32 %v5308, 1.442695
        %v5331 = vpow.pop %v5330
        %v5332 = vmul.f32 %v5309, 1.442695
        %v5333 = vpow.pop %v5332
        %v5334 = vmul.f32 %v5310, 1.442695
        %v5335 = vpow.pop %v5334
        %v5336 = vmul.f32 %v5311, 1.442695
        %v5337 = vpow.pop %v5336
        %v5338 = vmul.f32 %v5312, 1.442695
        %v5339 = vpow.pop %v5338
        %v5340 = vmul.f32 %v5313, 1.442695
        %v5341 = vpow.pop %v5340
        %v5342 = vmul.f32 %v5314, 1.442695
        %v5343 = vpow.pop %v5342
        %v5344 = vmul.f32 %v5315, 1.442695
        %v5345 = vpow.pop %v5344
        %v5346 = vmul.f32 %v5316, 1.442695
        %v5347 = vpow.pop %v5346
        %v5348 = vmul.f32 %v5317, 1.442695
        %v5349 = vpow.pop %v5348
        %v5350 = vmul.f32 %v5318, 1.442695
        %v5351 = vpow.pop %v5350
        %v5352 = vmul.f32 %v5319, 1.442695
        %v5353 = vpow.pop %v5352
        %v5354 = vmul.f32 %v5320, 1.442695
        %v5355 = vpow.pop %v5354
        %v5356 = vmul.f32 %v5321, 1.442695
        %v5357 = vpow.pop %v5356
        %v5358 = vadd.f32 %v5323, 1.0
        %v5359 = vadd.f32 %v5325, 1.0
        %v5360 = vadd.f32 %v5327, 1.0
        %v5361 = vadd.f32 %v5329, 1.0
        %v5362 = vadd.f32 %v5331, 1.0
        %v5363 = vadd.f32 %v5333, 1.0
        %v5364 = vadd.f32 %v5335, 1.0
        %v5365 = vadd.f32 %v5337, 1.0
        %v5366 = vadd.f32 %v5339, 1.0
        %v5367 = vadd.f32 %v5341, 1.0
        %v5368 = vadd.f32 %v5343, 1.0
        %v5369 = vadd.f32 %v5345, 1.0
        %v5370 = vadd.f32 %v5347, 1.0
        %v5371 = vadd.f32 %v5349, 1.0
        %v5372 = vadd.f32 %v5351, 1.0
        %v5373 = vadd.f32 %v5353, 1.0
        %v5374 = vadd.f32 %v5355, 1.0
        %v5375 = vadd.f32 %v5357, 1.0
        %v5376 = vrcp.pop %v5358
        %v5377 = vmul.f32 1.0, %v5376
        %v5378 = vrcp.pop %v5359
        %v5379 = vmul.f32 1.0, %v5378
        %v5380 = vrcp.pop %v5360
        %v5381 = vmul.f32 1.0, %v5380
        %v5382 = vrcp.pop %v5361
        %v5383 = vmul.f32 1.0, %v5382
        %v5384 = vrcp.pop %v5362
        %v5385 = vmul.f32 1.0, %v5384
        %v5386 = vrcp.pop %v5363
        %v5387 = vmul.f32 1.0, %v5386
        %v5388 = vrcp.pop %v5364
        %v5389 = vmul.f32 1.0, %v5388
        %v5390 = vrcp.pop %v5365
        %v5391 = vmul.f32 1.0, %v5390
        %v5392 = vrcp.pop %v5366
        %v5393 = vmul.f32 1.0, %v5392
        %v5394 = vrcp.pop %v5367
        %v5395 = vmul.f32 1.0, %v5394
        %v5396 = vrcp.pop %v5368
        %v5397 = vmul.f32 1.0, %v5396
        %v5398 = vrcp.pop %v5369
        %v5399 = vmul.f32 1.0, %v5398
        %v5400 = vrcp.pop %v5370
        %v5401 = vmul.f32 1.0, %v5400
        %v5402 = vrcp.pop %v5371
        %v5403 = vmul.f32 1.0, %v5402
        %v5404 = vrcp.pop %v5372
        %v5405 = vmul.f32 1.0, %v5404
        %v5406 = vrcp.pop %v5373
        %v5407 = vmul.f32 1.0, %v5406
        %v5408 = vrcp.pop %v5374
        %v5409 = vmul.f32 1.0, %v5408
        %v5410 = vrcp.pop %v5375
        %v5411 = vmul.f32 1.0, %v5410
        %v5412 = vtanh.pop %v5286
        %v5413 = vtanh.pop %v5287
        %v5414 = vtanh.pop %v5288
        %v5415 = vtanh.pop %v5289
        %v5416 = vtanh.pop %v5290
        %v5417 = vtanh.pop %v5291
        %v5418 = vtanh.pop %v5292
        %v5419 = vtanh.pop %v5293
        %v5420 = vtanh.pop %v5294
        %v5421 = vtanh.pop %v5295
        %v5422 = vtanh.pop %v5296
        %v5423 = vtanh.pop %v5297
        %v5424 = vtanh.pop %v5298
        %v5425 = vtanh.pop %v5299
        %v5426 = vtanh.pop %v5300
        %v5427 = vtanh.pop %v5301
        %v5428 = vtanh.pop %v5302
        %v5429 = vtanh.pop %v5303
        %v5430 = vmul.f32 %v5377, %v4796
        %v5431 = vmul.f32 %v5379, %v4797
        %v5432 = vmul.f32 %v5381, %v4798
        %v5433 = vmul.f32 %v5383, %v4799
        %v5434 = vmul.f32 %v5385, %v4800
        %v5435 = vmul.f32 %v5387, %v4801
        %v5436 = vmul.f32 %v5389, %v4802
        %v5437 = vmul.f32 %v5391, %v4803
        %v5438 = vmul.f32 %v5393, %v4804
        %v5439 = vmul.f32 %v5395, %v4805
        %v5440 = vmul.f32 %v5397, %v4806
        %v5441 = vmul.f32 %v5399, %v4807
        %v5442 = vmul.f32 %v5401, %v4808
        %v5443 = vmul.f32 %v5403, %v4809
        %v5444 = vmul.f32 %v5405, %v4810
        %v5445 = vmul.f32 %v5407, %v4811
        %v5446 = vmul.f32 %v5409, %v4812
        %v5447 = vmul.f32 %v5411, %v4813
        %5466 = vrot.lane.b32.xlu0 %v5412, 64
        %v5467 = vpop.permute.xlu0 %5466
        %5468 = vrot.lane.b32.xlu0 %v5413, 64
        %v5469 = vpop.permute.xlu0 %5468
        %5470 = vrot.lane.b32.xlu0 %v5414, 64
        %v5471 = vpop.permute.xlu0 %5470
        %5472 = vrot.lane.b32.xlu0 %v5415, 64
        %v5473 = vpop.permute.xlu0 %5472
        %5474 = vrot.lane.b32.xlu0 %v5416, 64
        %v5475 = vpop.permute.xlu0 %5474
        %5476 = vrot.lane.b32.xlu0 %v5417, 64
        %v5477 = vpop.permute.xlu0 %5476
        %5478 = vrot.lane.b32.xlu0 %v5418, 64
        %v5479 = vpop.permute.xlu0 %5478
        %5480 = vrot.lane.b32.xlu0 %v5419, 64
        %v5481 = vpop.permute.xlu0 %5480
        %5482 = vrot.lane.b32.xlu0 %v5420, 64
        %v5483 = vpop.permute.xlu0 %5482
        %5484 = vrot.lane.b32.xlu0 %v5421, 64
        %v5485 = vpop.permute.xlu0 %5484
        %5486 = vrot.lane.b32.xlu0 %v5422, 64
        %v5487 = vpop.permute.xlu0 %5486
        %5488 = vrot.lane.b32.xlu0 %v5423, 64
        %v5489 = vpop.permute.xlu0 %5488
        %5490 = vrot.lane.b32.xlu0 %v5424, 64
        %v5491 = vpop.permute.xlu0 %5490
        %5492 = vrot.lane.b32.xlu0 %v5425, 64
        %v5493 = vpop.permute.xlu0 %5492
        %5494 = vrot.lane.b32.xlu0 %v5426, 64
        %v5495 = vpop.permute.xlu0 %5494
        %5496 = vrot.lane.b32.xlu0 %v5427, 64
        %v5497 = vpop.permute.xlu0 %5496
        %5498 = vrot.lane.b32.xlu0 %v5428, 64
        %v5499 = vpop.permute.xlu0 %5498
        %5500 = vrot.lane.b32.xlu0 %v5429, 64
        %v5501 = vpop.permute.xlu0 %5500
        %v5520 = vmul.f32 %v5377, %v5467
        %v5521 = vmul.f32 %v5379, %v5469
        %v5522 = vmul.f32 %v5381, %v5471
        %v5523 = vmul.f32 %v5383, %v5473
        %v5524 = vmul.f32 %v5385, %v5475
        %v5525 = vmul.f32 %v5387, %v5477
        %v5526 = vmul.f32 %v5389, %v5479
        %v5527 = vmul.f32 %v5391, %v5481
        %v5528 = vmul.f32 %v5393, %v5483
        %v5529 = vmul.f32 %v5395, %v5485
        %v5530 = vmul.f32 %v5397, %v5487
        %v5531 = vmul.f32 %v5399, %v5489
        %v5532 = vmul.f32 %v5401, %v5491
        %v5533 = vmul.f32 %v5403, %v5493
        %v5534 = vmul.f32 %v5405, %v5495
        %v5535 = vmul.f32 %v5407, %v5497
        %v5536 = vmul.f32 %v5409, %v5499
        %v5537 = vmul.f32 %v5411, %v5501
        %5556 = vrot.lane.b32.xlu0 %v5520, 32
        %v5557 = vpop.permute.xlu0 %5556
        %5558 = vrot.lane.b32.xlu0 %v5521, 32
        %v5559 = vpop.permute.xlu0 %5558
        %5560 = vrot.lane.b32.xlu0 %v5522, 32
        %v5561 = vpop.permute.xlu0 %5560
        %5562 = vrot.lane.b32.xlu0 %v5523, 32
        %v5563 = vpop.permute.xlu0 %5562
        %5564 = vrot.lane.b32.xlu0 %v5524, 32
        %v5565 = vpop.permute.xlu0 %5564
        %5566 = vrot.lane.b32.xlu0 %v5525, 32
        %v5567 = vpop.permute.xlu0 %5566
        %5568 = vrot.lane.b32.xlu0 %v5526, 32
        %v5569 = vpop.permute.xlu0 %5568
        %5570 = vrot.lane.b32.xlu0 %v5527, 32
        %v5571 = vpop.permute.xlu0 %5570
        %5572 = vrot.lane.b32.xlu0 %v5528, 32
        %v5573 = vpop.permute.xlu0 %5572
        %5574 = vrot.lane.b32.xlu0 %v5529, 32
        %v5575 = vpop.permute.xlu0 %5574
        %5576 = vrot.lane.b32.xlu0 %v5530, 32
        %v5577 = vpop.permute.xlu0 %5576
        %5578 = vrot.lane.b32.xlu0 %v5531, 32
        %v5579 = vpop.permute.xlu0 %5578
        %5580 = vrot.lane.b32.xlu0 %v5532, 32
        %v5581 = vpop.permute.xlu0 %5580
        %5582 = vrot.lane.b32.xlu0 %v5533, 32
        %v5583 = vpop.permute.xlu0 %5582
        %5584 = vrot.lane.b32.xlu0 %v5534, 32
        %v5585 = vpop.permute.xlu0 %5584
        %5586 = vrot.lane.b32.xlu0 %v5535, 32
        %v5587 = vpop.permute.xlu0 %5586
        %5588 = vrot.lane.b32.xlu0 %v5536, 32
        %v5589 = vpop.permute.xlu0 %5588
        %5590 = vrot.lane.b32.xlu0 %v5537, 32
        %v5591 = vpop.permute.xlu0 %5590
        %v5610 = vadd.f32 %v5430, %v5557
        %v5611 = vadd.f32 %v5431, %v5559
        %v5612 = vadd.f32 %v5432, %v5561
        %v5613 = vadd.f32 %v5433, %v5563
        %v5614 = vadd.f32 %v5434, %v5565
        %v5615 = vadd.f32 %v5435, %v5567
        %v5616 = vadd.f32 %v5436, %v5569
        %v5617 = vadd.f32 %v5437, %v5571
        %v5618 = vadd.f32 %v5438, %v5573
        %v5619 = vadd.f32 %v5439, %v5575
        %v5620 = vadd.f32 %v5440, %v5577
        %v5621 = vadd.f32 %v5441, %v5579
        %v5622 = vadd.f32 %v5442, %v5581
        %v5623 = vadd.f32 %v5443, %v5583
        %v5624 = vadd.f32 %v5444, %v5585
        %v5625 = vadd.f32 %v5445, %v5587
        %v5626 = vadd.f32 %v5446, %v5589
        %v5627 = vadd.f32 %v5447, %v5591
        %v5628 = vtanh.pop %v5610
        %v5629 = vtanh.pop %v5611
        %v5630 = vtanh.pop %v5612
        %v5631 = vtanh.pop %v5613
        %v5632 = vtanh.pop %v5614
        %v5633 = vtanh.pop %v5615
        %v5634 = vtanh.pop %v5616
        %v5635 = vtanh.pop %v5617
        %v5636 = vtanh.pop %v5618
        %v5637 = vtanh.pop %v5619
        %v5638 = vtanh.pop %v5620
        %v5639 = vtanh.pop %v5621
        %v5640 = vtanh.pop %v5622
        %v5641 = vtanh.pop %v5623
        %v5642 = vtanh.pop %v5624
        %v5643 = vtanh.pop %v5625
        %v5644 = vtanh.pop %v5626
        %v5645 = vtanh.pop %v5627
        %5664 = vrot.lane.b32.xlu0 %v5628, 64
        %v5665 = vpop.permute.xlu0 %5664
        %5666 = vrot.lane.b32.xlu0 %v5629, 64
        %v5667 = vpop.permute.xlu0 %5666
        %5668 = vrot.lane.b32.xlu0 %v5630, 64
        %v5669 = vpop.permute.xlu0 %5668
        %5670 = vrot.lane.b32.xlu0 %v5631, 64
        %v5671 = vpop.permute.xlu0 %5670
        %5672 = vrot.lane.b32.xlu0 %v5632, 64
        %v5673 = vpop.permute.xlu0 %5672
        %5674 = vrot.lane.b32.xlu0 %v5633, 64
        %v5675 = vpop.permute.xlu0 %5674
        %5676 = vrot.lane.b32.xlu0 %v5634, 64
        %v5677 = vpop.permute.xlu0 %5676
        %5678 = vrot.lane.b32.xlu0 %v5635, 64
        %v5679 = vpop.permute.xlu0 %5678
        %5680 = vrot.lane.b32.xlu0 %v5636, 64
        %v5681 = vpop.permute.xlu0 %5680
        %5682 = vrot.lane.b32.xlu0 %v5637, 64
        %v5683 = vpop.permute.xlu0 %5682
        %5684 = vrot.lane.b32.xlu0 %v5638, 64
        %v5685 = vpop.permute.xlu0 %5684
        %5686 = vrot.lane.b32.xlu0 %v5639, 64
        %v5687 = vpop.permute.xlu0 %5686
        %5688 = vrot.lane.b32.xlu0 %v5640, 64
        %v5689 = vpop.permute.xlu0 %5688
        %5690 = vrot.lane.b32.xlu0 %v5641, 64
        %v5691 = vpop.permute.xlu0 %5690
        %5692 = vrot.lane.b32.xlu0 %v5642, 64
        %v5693 = vpop.permute.xlu0 %5692
        %5694 = vrot.lane.b32.xlu0 %v5643, 64
        %v5695 = vpop.permute.xlu0 %5694
        %5696 = vrot.lane.b32.xlu0 %v5644, 64
        %v5697 = vpop.permute.xlu0 %5696
        %5698 = vrot.lane.b32.xlu0 %v5645, 64
        %v5699 = vpop.permute.xlu0 %5698
        %v5718 = vmul.f32 %v5377, %v5665
        %v5719 = vmul.f32 %v5379, %v5667
        %v5720 = vmul.f32 %v5381, %v5669
        %v5721 = vmul.f32 %v5383, %v5671
        %v5722 = vmul.f32 %v5385, %v5673
        %v5723 = vmul.f32 %v5387, %v5675
        %v5724 = vmul.f32 %v5389, %v5677
        %v5725 = vmul.f32 %v5391, %v5679
        %v5726 = vmul.f32 %v5393, %v5681
        %v5727 = vmul.f32 %v5395, %v5683
        %v5728 = vmul.f32 %v5397, %v5685
        %v5729 = vmul.f32 %v5399, %v5687
        %v5730 = vmul.f32 %v5401, %v5689
        %v5731 = vmul.f32 %v5403, %v5691
        %v5732 = vmul.f32 %v5405, %v5693
        %v5733 = vmul.f32 %v5407, %v5695
        %v5734 = vmul.f32 %v5409, %v5697
        %v5735 = vmul.f32 %v5411, %v5699
        %s5736 = scalar_lea.vmem %s838, 432 [#allocation3]
        %v5737 = vld [vmem:[%s5736] sm:$0xf]
        %v5738 = vld [vmem:[%s5736 + $0x4] sm:$0xf]
        %v5739 = vld [vmem:[%s5736 + $0x8] sm:$0xf]
        %v5740 = vld [vmem:[%s5736 + $0xc] sm:$0xf]
        %v5741 = vld [vmem:[%s5736 + $0x10] sm:$0xf]
        %v5742 = vld [vmem:[%s5736 + $0x14] sm:$0xf]
        %v5743 = vld [vmem:[%s5736 + $0x18] sm:$0xf]
        %v5744 = vld [vmem:[%s5736 + $0x1c] sm:$0xf]
        %v5745 = vld [vmem:[%s5736 + $0x20] sm:$0xf]
        %v5746 = vld [vmem:[%s5736 + $0x24] sm:$0xf]
        %v5747 = vld [vmem:[%s5736 + $0x28] sm:$0xf]
        %v5748 = vld [vmem:[%s5736 + $0x2c] sm:$0xf]
        %v5749 = vld [vmem:[%s5736 + $0x30] sm:$0xf]
        %v5750 = vld [vmem:[%s5736 + $0x34] sm:$0xf]
        %v5751 = vld [vmem:[%s5736 + $0x38] sm:$0xf]
        %v5752 = vld [vmem:[%s5736 + $0x3c] sm:$0xf]
        %v5753 = vld [vmem:[%s5736 + $0x40] sm:$0xf]
        %v5754 = vld [vmem:[%s5736 + $0x44] sm:$0xf]
        %v5755 = vpack.c.bf16 %v5719, %v5718
        %v5756 = vpack.c.bf16 %v5721, %v5720
        %v5757 = vpack.c.bf16 %v5723, %v5722
        %v5758 = vpack.c.bf16 %v5725, %v5724
        %v5759 = vpack.c.bf16 %v5727, %v5726
        %v5760 = vpack.c.bf16 %v5729, %v5728
        %v5761 = vpack.c.bf16 %v5731, %v5730
        %v5762 = vpack.c.bf16 %v5733, %v5732
        %v5763 = vpack.c.bf16 %v5735, %v5734
        %5773 = vrot.lane.b32.xlu0 %v5755, 32
        %v5774 = vpop.permute.xlu0 %5773
        %5775 = vrot.lane.b32.xlu0 %v5756, 32
        %v5776 = vpop.permute.xlu0 %5775
        %5777 = vrot.lane.b32.xlu0 %v5757, 32
        %v5778 = vpop.permute.xlu0 %5777
        %5779 = vrot.lane.b32.xlu0 %v5758, 32
        %v5780 = vpop.permute.xlu0 %5779
        %5781 = vrot.lane.b32.xlu0 %v5759, 32
        %v5782 = vpop.permute.xlu0 %5781
        %5783 = vrot.lane.b32.xlu0 %v5760, 32
        %v5784 = vpop.permute.xlu0 %5783
        %5785 = vrot.lane.b32.xlu0 %v5761, 32
        %v5786 = vpop.permute.xlu0 %5785
        %5787 = vrot.lane.b32.xlu0 %v5762, 32
        %v5788 = vpop.permute.xlu0 %5787
        %5789 = vrot.lane.b32.xlu0 %v5763, 32
        %v5790 = vpop.permute.xlu0 %5789
        %v5792 = vsel %vm912, %v5774, 0
        %v5795 = vsel %vm912, %v5776, 0
        %v5798 = vsel %vm912, %v5778, 0
        %v5801 = vsel %vm912, %v5780, 0
        %v5804 = vsel %vm912, %v5782, 0
        %v5807 = vsel %vm912, %v5784, 0
        %v5810 = vsel %vm912, %v5786, 0
        %v5813 = vsel %vm912, %v5788, 0
        %v5816 = vsel %vm912, %v5790, 0
        %5818 = vmatprep.subr.bf16.mxu0 0
        %5819 = vmatpush1.bf16.msra.mxu0 0
        %5820 = vmatprep.subr.bf16.mxu0 0
        %5821 = vmatpush1.bf16.msra.mxu0 0
        %5822 = vmatprep.subr.bf16.mxu0 0
        %5823 = vmatpush1.bf16.msra.mxu0 0
        %5824 = vmatprep.subr.bf16.mxu0 0
        %5825 = vmatpush1.bf16.msra.mxu0 0
        %5826 = vmatprep.subr.bf16.mxu0 0
        %5827 = vmatpush1.bf16.msra.mxu0 0
        %5828 = vmatprep.subr.bf16.mxu0 0
        %5829 = vmatpush1.bf16.msra.mxu0 0
        %5830 = vmatprep.subr.bf16.mxu0 0
        %5831 = vmatpush1.bf16.msra.mxu0 %v909
        %5832 = vmatprep.subr.bf16.mxu0 0
        %5833 = vmatpush1.bf16.msra.mxu0 %v908
        %5834 = vmatprep.subr.bf16.mxu0 0
        %5835 = vmatpush2.bf16.msra.mxu0 0
        %5836 = vmatprep.subr.bf16.mxu0 0
        %5837 = vmatpush2.bf16.msra.mxu0 0
        %5838 = vmatprep.subr.bf16.mxu0 0
        %5839 = vmatpush2.bf16.msra.mxu0 0
        %5840 = vmatprep.subr.bf16.mxu0 0
        %5841 = vmatpush2.bf16.msra.mxu0 0
        %5842 = vmatprep.subr.bf16.mxu0 0
        %5843 = vmatpush2.bf16.msra.mxu0 0
        %5844 = vmatprep.subr.bf16.mxu0 0
        %5845 = vmatpush2.bf16.msra.mxu0 0
        %5846 = vmatprep.subr.bf16.mxu0 0
        %5847 = vmatpush2.bf16.msra.mxu0 0
        %5848 = vmatprep.subr.bf16.mxu0 0
        %5849 = vmatpush2.bf16.msra.mxu0 0
        %5850 = vmatprep.mubr.bf16.mxu0 0
        %5851 = vmatmul.mubr.bf16.gmra.mxu0 %v5792
        %v5852 = vpop.f32.mrf.mxu0
        %v5853 = vadd.f32 0.0, %v5852
        %v5854 = vpop.f32.mrf.mxu0
        %v5855 = vpop.f32.mrf.mxu0
        %v5856 = vadd.f32 0.0, %v5855
        %v5857 = vpop.f32.mrf.mxu0
        %5858 = vmatprep.mubr.bf16.mxu0 0
        %5859 = vmatmul.mubr.bf16.gmra.mxu0 %v5795
        %v5860 = vpop.f32.mrf.mxu0
        %v5861 = vadd.f32 0.0, %v5860
        %v5862 = vpop.f32.mrf.mxu0
        %v5863 = vpop.f32.mrf.mxu0
        %v5864 = vadd.f32 0.0, %v5863
        %v5865 = vpop.f32.mrf.mxu0
        %5866 = vmatprep.mubr.bf16.mxu0 0
        %5867 = vmatmul.mubr.bf16.gmra.mxu0 %v5798
        %v5868 = vpop.f32.mrf.mxu0
        %v5869 = vadd.f32 0.0, %v5868
        %v5870 = vpop.f32.mrf.mxu0
        %v5871 = vpop.f32.mrf.mxu0
        %v5872 = vadd.f32 0.0, %v5871
        %v5873 = vpop.f32.mrf.mxu0
        %5874 = vmatprep.mubr.bf16.mxu0 0
        %5875 = vmatmul.mubr.bf16.gmra.mxu0 %v5801
        %v5876 = vpop.f32.mrf.mxu0
        %v5877 = vadd.f32 0.0, %v5876
        %v5878 = vpop.f32.mrf.mxu0
        %v5879 = vpop.f32.mrf.mxu0
        %v5880 = vadd.f32 0.0, %v5879
        %v5881 = vpop.f32.mrf.mxu0
        %5882 = vmatprep.mubr.bf16.mxu0 0
        %5883 = vmatmul.mubr.bf16.gmra.mxu0 %v5804
        %v5884 = vpop.f32.mrf.mxu0
        %v5885 = vadd.f32 0.0, %v5884
        %v5886 = vpop.f32.mrf.mxu0
        %v5887 = vpop.f32.mrf.mxu0
        %v5888 = vadd.f32 0.0, %v5887
        %v5889 = vpop.f32.mrf.mxu0
        %5890 = vmatprep.mubr.bf16.mxu0 0
        %5891 = vmatmul.mubr.bf16.gmra.mxu0 %v5807
        %v5892 = vpop.f32.mrf.mxu0
        %v5893 = vadd.f32 0.0, %v5892
        %v5894 = vpop.f32.mrf.mxu0
        %v5895 = vpop.f32.mrf.mxu0
        %v5896 = vadd.f32 0.0, %v5895
        %v5897 = vpop.f32.mrf.mxu0
        %5898 = vmatprep.mubr.bf16.mxu0 0
        %5899 = vmatmul.mubr.bf16.gmra.mxu0 %v5810
        %v5900 = vpop.f32.mrf.mxu0
        %v5901 = vadd.f32 0.0, %v5900
        %v5902 = vpop.f32.mrf.mxu0
        %v5903 = vpop.f32.mrf.mxu0
        %v5904 = vadd.f32 0.0, %v5903
        %v5905 = vpop.f32.mrf.mxu0
        %5906 = vmatprep.mubr.bf16.mxu0 0
        %5907 = vmatmul.mubr.bf16.gmra.mxu0 %v5813
        %v5908 = vpop.f32.mrf.mxu0
        %v5909 = vadd.f32 0.0, %v5908
        %v5910 = vpop.f32.mrf.mxu0
        %v5911 = vpop.f32.mrf.mxu0
        %v5912 = vadd.f32 0.0, %v5911
        %v5913 = vpop.f32.mrf.mxu0
        %5914 = vmatprep.mubr.bf16.mxu0 0
        %5915 = vmatmul.mubr.bf16.gmra.mxu0 %v5816
        %v5916 = vpop.f32.mrf.mxu0
        %v5917 = vadd.f32 0.0, %v5916
        %v5918 = vpop.f32.mrf.mxu0
        %v5919 = vpop.f32.mrf.mxu0
        %v5920 = vadd.f32 0.0, %v5919
        %v5921 = vpop.f32.mrf.mxu0
        %5922 = vdwg.mxu0
        %v5941 = vunpack.c.l.b16 %v5737
        %v5942 = vunpack.c.l.b16 %v5738
        %v5943 = vunpack.c.l.b16 %v5739
        %v5944 = vunpack.c.l.b16 %v5740
        %v5945 = vunpack.c.l.b16 %v5741
        %v5946 = vunpack.c.l.b16 %v5742
        %v5947 = vunpack.c.l.b16 %v5743
        %v5948 = vunpack.c.l.b16 %v5744
        %v5949 = vunpack.c.l.b16 %v5745
        %v5950 = vunpack.c.l.b16 %v5746
        %v5951 = vunpack.c.l.b16 %v5747
        %v5952 = vunpack.c.l.b16 %v5748
        %v5953 = vunpack.c.l.b16 %v5749
        %v5954 = vunpack.c.l.b16 %v5750
        %v5955 = vunpack.c.l.b16 %v5751
        %v5956 = vunpack.c.l.b16 %v5752
        %v5957 = vunpack.c.l.b16 %v5753
        %v5958 = vunpack.c.l.b16 %v5754
        %v5959 = vpack.c.b16 %v5942, %v5941
        %v5960 = vpack.c.b16 %v5944, %v5943
        %v5961 = vpack.c.b16 %v5946, %v5945
        %v5962 = vpack.c.b16 %v5948, %v5947
        %v5963 = vpack.c.b16 %v5950, %v5949
        %v5964 = vpack.c.b16 %v5952, %v5951
        %v5965 = vpack.c.b16 %v5954, %v5953
        %v5966 = vpack.c.b16 %v5956, %v5955
        %v5967 = vpack.c.b16 %v5958, %v5957
        %v5969 = vsel %vm912, %v5959, 0
        %v5972 = vsel %vm912, %v5960, 0
        %v5975 = vsel %vm912, %v5961, 0
        %v5978 = vsel %vm912, %v5962, 0
        %v5981 = vsel %vm912, %v5963, 0
        %v5984 = vsel %vm912, %v5964, 0
        %v5987 = vsel %vm912, %v5965, 0
        %v5990 = vsel %vm912, %v5966, 0
        %v5993 = vsel %vm912, %v5967, 0
        %5995 = vmatprep.subr.bf16.mxu0 0
        %5996 = vmatpush1.bf16.msra.mxu0 0
        %5997 = vmatprep.subr.bf16.mxu0 0
        %5998 = vmatpush1.bf16.msra.mxu0 0
        %5999 = vmatprep.subr.bf16.mxu0 0
        %6000 = vmatpush1.bf16.msra.mxu0 0
        %6001 = vmatprep.subr.bf16.mxu0 0
        %6002 = vmatpush1.bf16.msra.mxu0 0
        %6003 = vmatprep.subr.bf16.mxu0 0
        %6004 = vmatpush1.bf16.msra.mxu0 0
        %6005 = vmatprep.subr.bf16.mxu0 0
        %6006 = vmatpush1.bf16.msra.mxu0 0
        %6007 = vmatprep.subr.bf16.mxu0 0
        %6008 = vmatpush1.bf16.msra.mxu0 %v1075
        %6009 = vmatprep.subr.bf16.mxu0 0
        %6010 = vmatpush1.bf16.msra.mxu0 %v1074
        %6011 = vmatprep.subr.bf16.mxu0 0
        %6012 = vmatpush2.bf16.msra.mxu0 0
        %6013 = vmatprep.subr.bf16.mxu0 0
        %6014 = vmatpush2.bf16.msra.mxu0 0
        %6015 = vmatprep.subr.bf16.mxu0 0
        %6016 = vmatpush2.bf16.msra.mxu0 0
        %6017 = vmatprep.subr.bf16.mxu0 0
        %6018 = vmatpush2.bf16.msra.mxu0 0
        %6019 = vmatprep.subr.bf16.mxu0 0
        %6020 = vmatpush2.bf16.msra.mxu0 0
        %6021 = vmatprep.subr.bf16.mxu0 0
        %6022 = vmatpush2.bf16.msra.mxu0 0
        %6023 = vmatprep.subr.bf16.mxu0 0
        %6024 = vmatpush2.bf16.msra.mxu0 0
        %6025 = vmatprep.subr.bf16.mxu0 0
        %6026 = vmatpush2.bf16.msra.mxu0 0
        %6027 = vmatprep.mubr.bf16.mxu0 0
        %6028 = vmatmul.mubr.bf16.gmra.mxu0 %v5969
        %v6029 = vpop.f32.mrf.mxu0
        %v6030 = vadd.f32 %v5853, %v6029
        %v6031 = vpop.f32.mrf.mxu0
        %v6032 = vpop.f32.mrf.mxu0
        %v6033 = vadd.f32 %v5856, %v6032
        %v6034 = vpop.f32.mrf.mxu0
        %6035 = vmatprep.mubr.bf16.mxu0 0
        %6036 = vmatmul.mubr.bf16.gmra.mxu0 %v5972
        %v6037 = vpop.f32.mrf.mxu0
        %v6038 = vadd.f32 %v5861, %v6037
        %v6039 = vpop.f32.mrf.mxu0
        %v6040 = vpop.f32.mrf.mxu0
        %v6041 = vadd.f32 %v5864, %v6040
        %v6042 = vpop.f32.mrf.mxu0
        %6043 = vmatprep.mubr.bf16.mxu0 0
        %6044 = vmatmul.mubr.bf16.gmra.mxu0 %v5975
        %v6045 = vpop.f32.mrf.mxu0
        %v6046 = vadd.f32 %v5869, %v6045
        %v6047 = vpop.f32.mrf.mxu0
        %v6048 = vpop.f32.mrf.mxu0
        %v6049 = vadd.f32 %v5872, %v6048
        %v6050 = vpop.f32.mrf.mxu0
        %6051 = vmatprep.mubr.bf16.mxu0 0
        %6052 = vmatmul.mubr.bf16.gmra.mxu0 %v5978
        %v6053 = vpop.f32.mrf.mxu0
        %v6054 = vadd.f32 %v5877, %v6053
        %v6055 = vpop.f32.mrf.mxu0
        %v6056 = vpop.f32.mrf.mxu0
        %v6057 = vadd.f32 %v5880, %v6056
        %v6058 = vpop.f32.mrf.mxu0
        %6059 = vmatprep.mubr.bf16.mxu0 0
        %6060 = vmatmul.mubr.bf16.gmra.mxu0 %v5981
        %v6061 = vpop.f32.mrf.mxu0
        %v6062 = vadd.f32 %v5885, %v6061
        %v6063 = vpop.f32.mrf.mxu0
        %v6064 = vpop.f32.mrf.mxu0
        %v6065 = vadd.f32 %v5888, %v6064
        %v6066 = vpop.f32.mrf.mxu0
        %6067 = vmatprep.mubr.bf16.mxu0 0
        %6068 = vmatmul.mubr.bf16.gmra.mxu0 %v5984
        %v6069 = vpop.f32.mrf.mxu0
        %v6070 = vadd.f32 %v5893, %v6069
        %v6071 = vpop.f32.mrf.mxu0
        %v6072 = vpop.f32.mrf.mxu0
        %v6073 = vadd.f32 %v5896, %v6072
        %v6074 = vpop.f32.mrf.mxu0
        %6075 = vmatprep.mubr.bf16.mxu0 0
        %6076 = vmatmul.mubr.bf16.gmra.mxu0 %v5987
        %v6077 = vpop.f32.mrf.mxu0
        %v6078 = vadd.f32 %v5901, %v6077
        %v6079 = vpop.f32.mrf.mxu0
        %v6080 = vpop.f32.mrf.mxu0
        %v6081 = vadd.f32 %v5904, %v6080
        %v6082 = vpop.f32.mrf.mxu0
        %6083 = vmatprep.mubr.bf16.mxu0 0
        %6084 = vmatmul.mubr.bf16.gmra.mxu0 %v5990
        %v6085 = vpop.f32.mrf.mxu0
        %v6086 = vadd.f32 %v5909, %v6085
        %v6087 = vpop.f32.mrf.mxu0
        %v6088 = vpop.f32.mrf.mxu0
        %v6089 = vadd.f32 %v5912, %v6088
        %v6090 = vpop.f32.mrf.mxu0
        %6091 = vmatprep.mubr.bf16.mxu0 0
        %6092 = vmatmul.mubr.bf16.gmra.mxu0 %v5993
        %v6093 = vpop.f32.mrf.mxu0
        %v6094 = vadd.f32 %v5917, %v6093
        %v6095 = vpop.f32.mrf.mxu0
        %v6096 = vpop.f32.mrf.mxu0
        %v6097 = vadd.f32 %v5920, %v6096
        %v6098 = vpop.f32.mrf.mxu0
        %6099 = vdwg.mxu0
        %v6100 = vadd.f32 %v6030, %v1214
        %v6101 = vadd.f32 %v6033, %v1214
        %v6102 = vadd.f32 %v6038, %v1214
        %v6103 = vadd.f32 %v6041, %v1214
        %v6104 = vadd.f32 %v6046, %v1214
        %v6105 = vadd.f32 %v6049, %v1214
        %v6106 = vadd.f32 %v6054, %v1214
        %v6107 = vadd.f32 %v6057, %v1214
        %v6108 = vadd.f32 %v6062, %v1214
        %v6109 = vadd.f32 %v6065, %v1214
        %v6110 = vadd.f32 %v6070, %v1214
        %v6111 = vadd.f32 %v6073, %v1214
        %v6112 = vadd.f32 %v6078, %v1214
        %v6113 = vadd.f32 %v6081, %v1214
        %v6114 = vadd.f32 %v6086, %v1214
        %v6115 = vadd.f32 %v6089, %v1214
        %v6116 = vadd.f32 %v6094, %v1214
        %v6117 = vadd.f32 %v6097, %v1214
        %v6118 = vxor.u32 %v6100, 2147483648
        %v6119 = vxor.u32 %v6101, 2147483648
        %v6120 = vxor.u32 %v6102, 2147483648
        %v6121 = vxor.u32 %v6103, 2147483648
        %v6122 = vxor.u32 %v6104, 2147483648
        %v6123 = vxor.u32 %v6105, 2147483648
        %v6124 = vxor.u32 %v6106, 2147483648
        %v6125 = vxor.u32 %v6107, 2147483648
        %v6126 = vxor.u32 %v6108, 2147483648
        %v6127 = vxor.u32 %v6109, 2147483648
        %v6128 = vxor.u32 %v6110, 2147483648
        %v6129 = vxor.u32 %v6111, 2147483648
        %v6130 = vxor.u32 %v6112, 2147483648
        %v6131 = vxor.u32 %v6113, 2147483648
        %v6132 = vxor.u32 %v6114, 2147483648
        %v6133 = vxor.u32 %v6115, 2147483648
        %v6134 = vxor.u32 %v6116, 2147483648
        %v6135 = vxor.u32 %v6117, 2147483648
        %v6136 = vmul.f32 %v6118, 1.442695
        %v6137 = vpow.pop %v6136
        %v6138 = vmul.f32 %v6119, 1.442695
        %v6139 = vpow.pop %v6138
        %v6140 = vmul.f32 %v6120, 1.442695
        %v6141 = vpow.pop %v6140
        %v6142 = vmul.f32 %v6121, 1.442695
        %v6143 = vpow.pop %v6142
        %v6144 = vmul.f32 %v6122, 1.442695
        %v6145 = vpow.pop %v6144
        %v6146 = vmul.f32 %v6123, 1.442695
        %v6147 = vpow.pop %v6146
        %v6148 = vmul.f32 %v6124, 1.442695
        %v6149 = vpow.pop %v6148
        %v6150 = vmul.f32 %v6125, 1.442695
        %v6151 = vpow.pop %v6150
        %v6152 = vmul.f32 %v6126, 1.442695
        %v6153 = vpow.pop %v6152
        %v6154 = vmul.f32 %v6127, 1.442695
        %v6155 = vpow.pop %v6154
        %v6156 = vmul.f32 %v6128, 1.442695
        %v6157 = vpow.pop %v6156
        %v6158 = vmul.f32 %v6129, 1.442695
        %v6159 = vpow.pop %v6158
        %v6160 = vmul.f32 %v6130, 1.442695
        %v6161 = vpow.pop %v6160
        %v6162 = vmul.f32 %v6131, 1.442695
        %v6163 = vpow.pop %v6162
        %v6164 = vmul.f32 %v6132, 1.442695
        %v6165 = vpow.pop %v6164
        %v6166 = vmul.f32 %v6133, 1.442695
        %v6167 = vpow.pop %v6166
        %v6168 = vmul.f32 %v6134, 1.442695
        %v6169 = vpow.pop %v6168
        %v6170 = vmul.f32 %v6135, 1.442695
        %v6171 = vpow.pop %v6170
        %v6172 = vadd.f32 %v6137, 1.0
        %v6173 = vadd.f32 %v6139, 1.0
        %v6174 = vadd.f32 %v6141, 1.0
        %v6175 = vadd.f32 %v6143, 1.0
        %v6176 = vadd.f32 %v6145, 1.0
        %v6177 = vadd.f32 %v6147, 1.0
        %v6178 = vadd.f32 %v6149, 1.0
        %v6179 = vadd.f32 %v6151, 1.0
        %v6180 = vadd.f32 %v6153, 1.0
        %v6181 = vadd.f32 %v6155, 1.0
        %v6182 = vadd.f32 %v6157, 1.0
        %v6183 = vadd.f32 %v6159, 1.0
        %v6184 = vadd.f32 %v6161, 1.0
        %v6185 = vadd.f32 %v6163, 1.0
        %v6186 = vadd.f32 %v6165, 1.0
        %v6187 = vadd.f32 %v6167, 1.0
        %v6188 = vadd.f32 %v6169, 1.0
        %v6189 = vadd.f32 %v6171, 1.0
        %v6190 = vrcp.pop %v6172
        %v6191 = vmul.f32 1.0, %v6190
        %v6192 = vrcp.pop %v6173
        %v6193 = vmul.f32 1.0, %v6192
        %v6194 = vrcp.pop %v6174
        %v6195 = vmul.f32 1.0, %v6194
        %v6196 = vrcp.pop %v6175
        %v6197 = vmul.f32 1.0, %v6196
        %v6198 = vrcp.pop %v6176
        %v6199 = vmul.f32 1.0, %v6198
        %v6200 = vrcp.pop %v6177
        %v6201 = vmul.f32 1.0, %v6200
        %v6202 = vrcp.pop %v6178
        %v6203 = vmul.f32 1.0, %v6202
        %v6204 = vrcp.pop %v6179
        %v6205 = vmul.f32 1.0, %v6204
        %v6206 = vrcp.pop %v6180
        %v6207 = vmul.f32 1.0, %v6206
        %v6208 = vrcp.pop %v6181
        %v6209 = vmul.f32 1.0, %v6208
        %v6210 = vrcp.pop %v6182
        %v6211 = vmul.f32 1.0, %v6210
        %v6212 = vrcp.pop %v6183
        %v6213 = vmul.f32 1.0, %v6212
        %v6214 = vrcp.pop %v6184
        %v6215 = vmul.f32 1.0, %v6214
        %v6216 = vrcp.pop %v6185
        %v6217 = vmul.f32 1.0, %v6216
        %v6218 = vrcp.pop %v6186
        %v6219 = vmul.f32 1.0, %v6218
        %v6220 = vrcp.pop %v6187
        %v6221 = vmul.f32 1.0, %v6220
        %v6222 = vrcp.pop %v6188
        %v6223 = vmul.f32 1.0, %v6222
        %v6224 = vrcp.pop %v6189
        %v6225 = vmul.f32 1.0, %v6224
        %v6226 = vtanh.pop %v6100
        %v6227 = vtanh.pop %v6101
        %v6228 = vtanh.pop %v6102
        %v6229 = vtanh.pop %v6103
        %v6230 = vtanh.pop %v6104
        %v6231 = vtanh.pop %v6105
        %v6232 = vtanh.pop %v6106
        %v6233 = vtanh.pop %v6107
        %v6234 = vtanh.pop %v6108
        %v6235 = vtanh.pop %v6109
        %v6236 = vtanh.pop %v6110
        %v6237 = vtanh.pop %v6111
        %v6238 = vtanh.pop %v6112
        %v6239 = vtanh.pop %v6113
        %v6240 = vtanh.pop %v6114
        %v6241 = vtanh.pop %v6115
        %v6242 = vtanh.pop %v6116
        %v6243 = vtanh.pop %v6117
        %v6244 = vmul.f32 %v6191, %v5610
        %v6245 = vmul.f32 %v6193, %v5611
        %v6246 = vmul.f32 %v6195, %v5612
        %v6247 = vmul.f32 %v6197, %v5613
        %v6248 = vmul.f32 %v6199, %v5614
        %v6249 = vmul.f32 %v6201, %v5615
        %v6250 = vmul.f32 %v6203, %v5616
        %v6251 = vmul.f32 %v6205, %v5617
        %v6252 = vmul.f32 %v6207, %v5618
        %v6253 = vmul.f32 %v6209, %v5619
        %v6254 = vmul.f32 %v6211, %v5620
        %v6255 = vmul.f32 %v6213, %v5621
        %v6256 = vmul.f32 %v6215, %v5622
        %v6257 = vmul.f32 %v6217, %v5623
        %v6258 = vmul.f32 %v6219, %v5624
        %v6259 = vmul.f32 %v6221, %v5625
        %v6260 = vmul.f32 %v6223, %v5626
        %v6261 = vmul.f32 %v6225, %v5627
        %6280 = vrot.lane.b32.xlu0 %v6226, 64
        %v6281 = vpop.permute.xlu0 %6280
        %6282 = vrot.lane.b32.xlu0 %v6227, 64
        %v6283 = vpop.permute.xlu0 %6282
        %6284 = vrot.lane.b32.xlu0 %v6228, 64
        %v6285 = vpop.permute.xlu0 %6284
        %6286 = vrot.lane.b32.xlu0 %v6229, 64
        %v6287 = vpop.permute.xlu0 %6286
        %6288 = vrot.lane.b32.xlu0 %v6230, 64
        %v6289 = vpop.permute.xlu0 %6288
        %6290 = vrot.lane.b32.xlu0 %v6231, 64
        %v6291 = vpop.permute.xlu0 %6290
        %6292 = vrot.lane.b32.xlu0 %v6232, 64
        %v6293 = vpop.permute.xlu0 %6292
        %6294 = vrot.lane.b32.xlu0 %v6233, 64
        %v6295 = vpop.permute.xlu0 %6294
        %6296 = vrot.lane.b32.xlu0 %v6234, 64
        %v6297 = vpop.permute.xlu0 %6296
        %6298 = vrot.lane.b32.xlu0 %v6235, 64
        %v6299 = vpop.permute.xlu0 %6298
        %6300 = vrot.lane.b32.xlu0 %v6236, 64
        %v6301 = vpop.permute.xlu0 %6300
        %6302 = vrot.lane.b32.xlu0 %v6237, 64
        %v6303 = vpop.permute.xlu0 %6302
        %6304 = vrot.lane.b32.xlu0 %v6238, 64
        %v6305 = vpop.permute.xlu0 %6304
        %6306 = vrot.lane.b32.xlu0 %v6239, 64
        %v6307 = vpop.permute.xlu0 %6306
        %6308 = vrot.lane.b32.xlu0 %v6240, 64
        %v6309 = vpop.permute.xlu0 %6308
        %6310 = vrot.lane.b32.xlu0 %v6241, 64
        %v6311 = vpop.permute.xlu0 %6310
        %6312 = vrot.lane.b32.xlu0 %v6242, 64
        %v6313 = vpop.permute.xlu0 %6312
        %6314 = vrot.lane.b32.xlu0 %v6243, 64
        %v6315 = vpop.permute.xlu0 %6314
        %v6334 = vmul.f32 %v6191, %v6281
        %v6335 = vmul.f32 %v6193, %v6283
        %v6336 = vmul.f32 %v6195, %v6285
        %v6337 = vmul.f32 %v6197, %v6287
        %v6338 = vmul.f32 %v6199, %v6289
        %v6339 = vmul.f32 %v6201, %v6291
        %v6340 = vmul.f32 %v6203, %v6293
        %v6341 = vmul.f32 %v6205, %v6295
        %v6342 = vmul.f32 %v6207, %v6297
        %v6343 = vmul.f32 %v6209, %v6299
        %v6344 = vmul.f32 %v6211, %v6301
        %v6345 = vmul.f32 %v6213, %v6303
        %v6346 = vmul.f32 %v6215, %v6305
        %v6347 = vmul.f32 %v6217, %v6307
        %v6348 = vmul.f32 %v6219, %v6309
        %v6349 = vmul.f32 %v6221, %v6311
        %v6350 = vmul.f32 %v6223, %v6313
        %v6351 = vmul.f32 %v6225, %v6315
        %6370 = vrot.lane.b32.xlu0 %v6334, 32
        %v6371 = vpop.permute.xlu0 %6370
        %6372 = vrot.lane.b32.xlu0 %v6335, 32
        %v6373 = vpop.permute.xlu0 %6372
        %6374 = vrot.lane.b32.xlu0 %v6336, 32
        %v6375 = vpop.permute.xlu0 %6374
        %6376 = vrot.lane.b32.xlu0 %v6337, 32
        %v6377 = vpop.permute.xlu0 %6376
        %6378 = vrot.lane.b32.xlu0 %v6338, 32
        %v6379 = vpop.permute.xlu0 %6378
        %6380 = vrot.lane.b32.xlu0 %v6339, 32
        %v6381 = vpop.permute.xlu0 %6380
        %6382 = vrot.lane.b32.xlu0 %v6340, 32
        %v6383 = vpop.permute.xlu0 %6382
        %6384 = vrot.lane.b32.xlu0 %v6341, 32
        %v6385 = vpop.permute.xlu0 %6384
        %6386 = vrot.lane.b32.xlu0 %v6342, 32
        %v6387 = vpop.permute.xlu0 %6386
        %6388 = vrot.lane.b32.xlu0 %v6343, 32
        %v6389 = vpop.permute.xlu0 %6388
        %6390 = vrot.lane.b32.xlu0 %v6344, 32
        %v6391 = vpop.permute.xlu0 %6390
        %6392 = vrot.lane.b32.xlu0 %v6345, 32
        %v6393 = vpop.permute.xlu0 %6392
        %6394 = vrot.lane.b32.xlu0 %v6346, 32
        %v6395 = vpop.permute.xlu0 %6394
        %6396 = vrot.lane.b32.xlu0 %v6347, 32
        %v6397 = vpop.permute.xlu0 %6396
        %6398 = vrot.lane.b32.xlu0 %v6348, 32
        %v6399 = vpop.permute.xlu0 %6398
        %6400 = vrot.lane.b32.xlu0 %v6349, 32
        %v6401 = vpop.permute.xlu0 %6400
        %6402 = vrot.lane.b32.xlu0 %v6350, 32
        %v6403 = vpop.permute.xlu0 %6402
        %6404 = vrot.lane.b32.xlu0 %v6351, 32
        %v6405 = vpop.permute.xlu0 %6404
        %v6424 = vadd.f32 %v6244, %v6371
        %v6425 = vadd.f32 %v6245, %v6373
        %v6426 = vadd.f32 %v6246, %v6375
        %v6427 = vadd.f32 %v6247, %v6377
        %v6428 = vadd.f32 %v6248, %v6379
        %v6429 = vadd.f32 %v6249, %v6381
        %v6430 = vadd.f32 %v6250, %v6383
        %v6431 = vadd.f32 %v6251, %v6385
        %v6432 = vadd.f32 %v6252, %v6387
        %v6433 = vadd.f32 %v6253, %v6389
        %v6434 = vadd.f32 %v6254, %v6391
        %v6435 = vadd.f32 %v6255, %v6393
        %v6436 = vadd.f32 %v6256, %v6395
        %v6437 = vadd.f32 %v6257, %v6397
        %v6438 = vadd.f32 %v6258, %v6399
        %v6439 = vadd.f32 %v6259, %v6401
        %v6440 = vadd.f32 %v6260, %v6403
        %v6441 = vadd.f32 %v6261, %v6405
        %v6442 = vtanh.pop %v6424
        %v6443 = vtanh.pop %v6425
        %v6444 = vtanh.pop %v6426
        %v6445 = vtanh.pop %v6427
        %v6446 = vtanh.pop %v6428
        %v6447 = vtanh.pop %v6429
        %v6448 = vtanh.pop %v6430
        %v6449 = vtanh.pop %v6431
        %v6450 = vtanh.pop %v6432
        %v6451 = vtanh.pop %v6433
        %v6452 = vtanh.pop %v6434
        %v6453 = vtanh.pop %v6435
        %v6454 = vtanh.pop %v6436
        %v6455 = vtanh.pop %v6437
        %v6456 = vtanh.pop %v6438
        %v6457 = vtanh.pop %v6439
        %v6458 = vtanh.pop %v6440
        %v6459 = vtanh.pop %v6441
        %6478 = vrot.lane.b32.xlu0 %v6442, 64
        %v6479 = vpop.permute.xlu0 %6478
        %6480 = vrot.lane.b32.xlu0 %v6443, 64
        %v6481 = vpop.permute.xlu0 %6480
        %6482 = vrot.lane.b32.xlu0 %v6444, 64
        %v6483 = vpop.permute.xlu0 %6482
        %6484 = vrot.lane.b32.xlu0 %v6445, 64
        %v6485 = vpop.permute.xlu0 %6484
        %6486 = vrot.lane.b32.xlu0 %v6446, 64
        %v6487 = vpop.permute.xlu0 %6486
        %6488 = vrot.lane.b32.xlu0 %v6447, 64
        %v6489 = vpop.permute.xlu0 %6488
        %6490 = vrot.lane.b32.xlu0 %v6448, 64
        %v6491 = vpop.permute.xlu0 %6490
        %6492 = vrot.lane.b32.xlu0 %v6449, 64
        %v6493 = vpop.permute.xlu0 %6492
        %6494 = vrot.lane.b32.xlu0 %v6450, 64
        %v6495 = vpop.permute.xlu0 %6494
        %6496 = vrot.lane.b32.xlu0 %v6451, 64
        %v6497 = vpop.permute.xlu0 %6496
        %6498 = vrot.lane.b32.xlu0 %v6452, 64
        %v6499 = vpop.permute.xlu0 %6498
        %6500 = vrot.lane.b32.xlu0 %v6453, 64
        %v6501 = vpop.permute.xlu0 %6500
        %6502 = vrot.lane.b32.xlu0 %v6454, 64
        %v6503 = vpop.permute.xlu0 %6502
        %6504 = vrot.lane.b32.xlu0 %v6455, 64
        %v6505 = vpop.permute.xlu0 %6504
        %6506 = vrot.lane.b32.xlu0 %v6456, 64
        %v6507 = vpop.permute.xlu0 %6506
        %6508 = vrot.lane.b32.xlu0 %v6457, 64
        %v6509 = vpop.permute.xlu0 %6508
        %6510 = vrot.lane.b32.xlu0 %v6458, 64
        %v6511 = vpop.permute.xlu0 %6510
        %6512 = vrot.lane.b32.xlu0 %v6459, 64
        %v6513 = vpop.permute.xlu0 %6512
        %v6532 = vmul.f32 %v6191, %v6479
        %v6533 = vmul.f32 %v6193, %v6481
        %v6534 = vmul.f32 %v6195, %v6483
        %v6535 = vmul.f32 %v6197, %v6485
        %v6536 = vmul.f32 %v6199, %v6487
        %v6537 = vmul.f32 %v6201, %v6489
        %v6538 = vmul.f32 %v6203, %v6491
        %v6539 = vmul.f32 %v6205, %v6493
        %v6540 = vmul.f32 %v6207, %v6495
        %v6541 = vmul.f32 %v6209, %v6497
        %v6542 = vmul.f32 %v6211, %v6499
        %v6543 = vmul.f32 %v6213, %v6501
        %v6544 = vmul.f32 %v6215, %v6503
        %v6545 = vmul.f32 %v6217, %v6505
        %v6546 = vmul.f32 %v6219, %v6507
        %v6547 = vmul.f32 %v6221, %v6509
        %v6548 = vmul.f32 %v6223, %v6511
        %v6549 = vmul.f32 %v6225, %v6513
        %s6550 = scalar_lea.vmem %s838, 504 [#allocation3]
        %v6551 = vld [vmem:[%s6550] sm:$0xf]
        %v6552 = vld [vmem:[%s6550 + $0x4] sm:$0xf]
        %v6553 = vld [vmem:[%s6550 + $0x8] sm:$0xf]
        %v6554 = vld [vmem:[%s6550 + $0xc] sm:$0xf]
        %v6555 = vld [vmem:[%s6550 + $0x10] sm:$0xf]
        %v6556 = vld [vmem:[%s6550 + $0x14] sm:$0xf]
        %v6557 = vld [vmem:[%s6550 + $0x18] sm:$0xf]
        %v6558 = vld [vmem:[%s6550 + $0x1c] sm:$0xf]
        %v6559 = vld [vmem:[%s6550 + $0x20] sm:$0xf]
        %v6560 = vld [vmem:[%s6550 + $0x24] sm:$0xf]
        %v6561 = vld [vmem:[%s6550 + $0x28] sm:$0xf]
        %v6562 = vld [vmem:[%s6550 + $0x2c] sm:$0xf]
        %v6563 = vld [vmem:[%s6550 + $0x30] sm:$0xf]
        %v6564 = vld [vmem:[%s6550 + $0x34] sm:$0xf]
        %v6565 = vld [vmem:[%s6550 + $0x38] sm:$0xf]
        %v6566 = vld [vmem:[%s6550 + $0x3c] sm:$0xf]
        %v6567 = vld [vmem:[%s6550 + $0x40] sm:$0xf]
        %v6568 = vld [vmem:[%s6550 + $0x44] sm:$0xf]
        %v6569 = vpack.c.bf16 %v6533, %v6532
        %v6570 = vpack.c.bf16 %v6535, %v6534
        %v6571 = vpack.c.bf16 %v6537, %v6536
        %v6572 = vpack.c.bf16 %v6539, %v6538
        %v6573 = vpack.c.bf16 %v6541, %v6540
        %v6574 = vpack.c.bf16 %v6543, %v6542
        %v6575 = vpack.c.bf16 %v6545, %v6544
        %v6576 = vpack.c.bf16 %v6547, %v6546
        %v6577 = vpack.c.bf16 %v6549, %v6548
        %6587 = vrot.lane.b32.xlu0 %v6569, 32
        %v6588 = vpop.permute.xlu0 %6587
        %6589 = vrot.lane.b32.xlu0 %v6570, 32
        %v6590 = vpop.permute.xlu0 %6589
        %6591 = vrot.lane.b32.xlu0 %v6571, 32
        %v6592 = vpop.permute.xlu0 %6591
        %6593 = vrot.lane.b32.xlu0 %v6572, 32
        %v6594 = vpop.permute.xlu0 %6593
        %6595 = vrot.lane.b32.xlu0 %v6573, 32
        %v6596 = vpop.permute.xlu0 %6595
        %6597 = vrot.lane.b32.xlu0 %v6574, 32
        %v6598 = vpop.permute.xlu0 %6597
        %6599 = vrot.lane.b32.xlu0 %v6575, 32
        %v6600 = vpop.permute.xlu0 %6599
        %6601 = vrot.lane.b32.xlu0 %v6576, 32
        %v6602 = vpop.permute.xlu0 %6601
        %6603 = vrot.lane.b32.xlu0 %v6577, 32
        %v6604 = vpop.permute.xlu0 %6603
        %v6606 = vsel %vm912, %v6588, 0
        %v6609 = vsel %vm912, %v6590, 0
        %v6612 = vsel %vm912, %v6592, 0
        %v6615 = vsel %vm912, %v6594, 0
        %v6618 = vsel %vm912, %v6596, 0
        %v6621 = vsel %vm912, %v6598, 0
        %v6624 = vsel %vm912, %v6600, 0
        %v6627 = vsel %vm912, %v6602, 0
        %v6630 = vsel %vm912, %v6604, 0
        %6632 = vmatprep.subr.bf16.mxu0 0
        %6633 = vmatpush1.bf16.msra.mxu0 0
        %6634 = vmatprep.subr.bf16.mxu0 0
        %6635 = vmatpush1.bf16.msra.mxu0 0
        %6636 = vmatprep.subr.bf16.mxu0 0
        %6637 = vmatpush1.bf16.msra.mxu0 0
        %6638 = vmatprep.subr.bf16.mxu0 0
        %6639 = vmatpush1.bf16.msra.mxu0 0
        %6640 = vmatprep.subr.bf16.mxu0 0
        %6641 = vmatpush1.bf16.msra.mxu0 0
        %6642 = vmatprep.subr.bf16.mxu0 0
        %6643 = vmatpush1.bf16.msra.mxu0 0
        %6644 = vmatprep.subr.bf16.mxu0 0
        %6645 = vmatpush1.bf16.msra.mxu0 %v909
        %6646 = vmatprep.subr.bf16.mxu0 0
        %6647 = vmatpush1.bf16.msra.mxu0 %v908
        %6648 = vmatprep.subr.bf16.mxu0 0
        %6649 = vmatpush2.bf16.msra.mxu0 0
        %6650 = vmatprep.subr.bf16.mxu0 0
        %6651 = vmatpush2.bf16.msra.mxu0 0
        %6652 = vmatprep.subr.bf16.mxu0 0
        %6653 = vmatpush2.bf16.msra.mxu0 0
        %6654 = vmatprep.subr.bf16.mxu0 0
        %6655 = vmatpush2.bf16.msra.mxu0 0
        %6656 = vmatprep.subr.bf16.mxu0 0
        %6657 = vmatpush2.bf16.msra.mxu0 0
        %6658 = vmatprep.subr.bf16.mxu0 0
        %6659 = vmatpush2.bf16.msra.mxu0 0
        %6660 = vmatprep.subr.bf16.mxu0 0
        %6661 = vmatpush2.bf16.msra.mxu0 0
        %6662 = vmatprep.subr.bf16.mxu0 0
        %6663 = vmatpush2.bf16.msra.mxu0 0
        %6664 = vmatprep.mubr.bf16.mxu0 0
        %6665 = vmatmul.mubr.bf16.gmra.mxu0 %v6606
        %v6666 = vpop.f32.mrf.mxu0
        %v6667 = vadd.f32 0.0, %v6666
        %v6668 = vpop.f32.mrf.mxu0
        %v6669 = vpop.f32.mrf.mxu0
        %v6670 = vadd.f32 0.0, %v6669
        %v6671 = vpop.f32.mrf.mxu0
        %6672 = vmatprep.mubr.bf16.mxu0 0
        %6673 = vmatmul.mubr.bf16.gmra.mxu0 %v6609
        %v6674 = vpop.f32.mrf.mxu0
        %v6675 = vadd.f32 0.0, %v6674
        %v6676 = vpop.f32.mrf.mxu0
        %v6677 = vpop.f32.mrf.mxu0
        %v6678 = vadd.f32 0.0, %v6677
        %v6679 = vpop.f32.mrf.mxu0
        %6680 = vmatprep.mubr.bf16.mxu0 0
        %6681 = vmatmul.mubr.bf16.gmra.mxu0 %v6612
        %v6682 = vpop.f32.mrf.mxu0
        %v6683 = vadd.f32 0.0, %v6682
        %v6684 = vpop.f32.mrf.mxu0
        %v6685 = vpop.f32.mrf.mxu0
        %v6686 = vadd.f32 0.0, %v6685
        %v6687 = vpop.f32.mrf.mxu0
        %6688 = vmatprep.mubr.bf16.mxu0 0
        %6689 = vmatmul.mubr.bf16.gmra.mxu0 %v6615
        %v6690 = vpop.f32.mrf.mxu0
        %v6691 = vadd.f32 0.0, %v6690
        %v6692 = vpop.f32.mrf.mxu0
        %v6693 = vpop.f32.mrf.mxu0
        %v6694 = vadd.f32 0.0, %v6693
        %v6695 = vpop.f32.mrf.mxu0
        %6696 = vmatprep.mubr.bf16.mxu0 0
        %6697 = vmatmul.mubr.bf16.gmra.mxu0 %v6618
        %v6698 = vpop.f32.mrf.mxu0
        %v6699 = vadd.f32 0.0, %v6698
        %v6700 = vpop.f32.mrf.mxu0
        %v6701 = vpop.f32.mrf.mxu0
        %v6702 = vadd.f32 0.0, %v6701
        %v6703 = vpop.f32.mrf.mxu0
        %6704 = vmatprep.mubr.bf16.mxu0 0
        %6705 = vmatmul.mubr.bf16.gmra.mxu0 %v6621
        %v6706 = vpop.f32.mrf.mxu0
        %v6707 = vadd.f32 0.0, %v6706
        %v6708 = vpop.f32.mrf.mxu0
        %v6709 = vpop.f32.mrf.mxu0
        %v6710 = vadd.f32 0.0, %v6709
        %v6711 = vpop.f32.mrf.mxu0
        %6712 = vmatprep.mubr.bf16.mxu0 0
        %6713 = vmatmul.mubr.bf16.gmra.mxu0 %v6624
        %v6714 = vpop.f32.mrf.mxu0
        %v6715 = vadd.f32 0.0, %v6714
        %v6716 = vpop.f32.mrf.mxu0
        %v6717 = vpop.f32.mrf.mxu0
        %v6718 = vadd.f32 0.0, %v6717
        %v6719 = vpop.f32.mrf.mxu0
        %6720 = vmatprep.mubr.bf16.mxu0 0
        %6721 = vmatmul.mubr.bf16.gmra.mxu0 %v6627
        %v6722 = vpop.f32.mrf.mxu0
        %v6723 = vadd.f32 0.0, %v6722
        %v6724 = vpop.f32.mrf.mxu0
        %v6725 = vpop.f32.mrf.mxu0
        %v6726 = vadd.f32 0.0, %v6725
        %v6727 = vpop.f32.mrf.mxu0
        %6728 = vmatprep.mubr.bf16.mxu0 0
        %6729 = vmatmul.mubr.bf16.gmra.mxu0 %v6630
        %v6730 = vpop.f32.mrf.mxu0
        %v6731 = vadd.f32 0.0, %v6730
        %v6732 = vpop.f32.mrf.mxu0
        %v6733 = vpop.f32.mrf.mxu0
        %v6734 = vadd.f32 0.0, %v6733
        %v6735 = vpop.f32.mrf.mxu0
        %6736 = vdwg.mxu0
        %v6755 = vunpack.c.l.b16 %v6551
        %v6756 = vunpack.c.l.b16 %v6552
        %v6757 = vunpack.c.l.b16 %v6553
        %v6758 = vunpack.c.l.b16 %v6554
        %v6759 = vunpack.c.l.b16 %v6555
        %v6760 = vunpack.c.l.b16 %v6556
        %v6761 = vunpack.c.l.b16 %v6557
        %v6762 = vunpack.c.l.b16 %v6558
        %v6763 = vunpack.c.l.b16 %v6559
        %v6764 = vunpack.c.l.b16 %v6560
        %v6765 = vunpack.c.l.b16 %v6561
        %v6766 = vunpack.c.l.b16 %v6562
        %v6767 = vunpack.c.l.b16 %v6563
        %v6768 = vunpack.c.l.b16 %v6564
        %v6769 = vunpack.c.l.b16 %v6565
        %v6770 = vunpack.c.l.b16 %v6566
        %v6771 = vunpack.c.l.b16 %v6567
        %v6772 = vunpack.c.l.b16 %v6568
        %v6773 = vpack.c.b16 %v6756, %v6755
        %v6774 = vpack.c.b16 %v6758, %v6757
        %v6775 = vpack.c.b16 %v6760, %v6759
        %v6776 = vpack.c.b16 %v6762, %v6761
        %v6777 = vpack.c.b16 %v6764, %v6763
        %v6778 = vpack.c.b16 %v6766, %v6765
        %v6779 = vpack.c.b16 %v6768, %v6767
        %v6780 = vpack.c.b16 %v6770, %v6769
        %v6781 = vpack.c.b16 %v6772, %v6771
        %v6783 = vsel %vm912, %v6773, 0
        %v6786 = vsel %vm912, %v6774, 0
        %v6789 = vsel %vm912, %v6775, 0
        %v6792 = vsel %vm912, %v6776, 0
        %v6795 = vsel %vm912, %v6777, 0
        %v6798 = vsel %vm912, %v6778, 0
        %v6801 = vsel %vm912, %v6779, 0
        %v6804 = vsel %vm912, %v6780, 0
        %v6807 = vsel %vm912, %v6781, 0
        %6809 = vmatprep.subr.bf16.mxu0 0
        %6810 = vmatpush1.bf16.msra.mxu0 0
        %6811 = vmatprep.subr.bf16.mxu0 0
        %6812 = vmatpush1.bf16.msra.mxu0 0
        %6813 = vmatprep.subr.bf16.mxu0 0
        %6814 = vmatpush1.bf16.msra.mxu0 0
        %6815 = vmatprep.subr.bf16.mxu0 0
        %6816 = vmatpush1.bf16.msra.mxu0 0
        %6817 = vmatprep.subr.bf16.mxu0 0
        %6818 = vmatpush1.bf16.msra.mxu0 0
        %6819 = vmatprep.subr.bf16.mxu0 0
        %6820 = vmatpush1.bf16.msra.mxu0 0
        %6821 = vmatprep.subr.bf16.mxu0 0
        %6822 = vmatpush1.bf16.msra.mxu0 %v1075
        %6823 = vmatprep.subr.bf16.mxu0 0
        %6824 = vmatpush1.bf16.msra.mxu0 %v1074
        %6825 = vmatprep.subr.bf16.mxu0 0
        %6826 = vmatpush2.bf16.msra.mxu0 0
        %6827 = vmatprep.subr.bf16.mxu0 0
        %6828 = vmatpush2.bf16.msra.mxu0 0
        %6829 = vmatprep.subr.bf16.mxu0 0
        %6830 = vmatpush2.bf16.msra.mxu0 0
        %6831 = vmatprep.subr.bf16.mxu0 0
        %6832 = vmatpush2.bf16.msra.mxu0 0
        %6833 = vmatprep.subr.bf16.mxu0 0
        %6834 = vmatpush2.bf16.msra.mxu0 0
        %6835 = vmatprep.subr.bf16.mxu0 0
        %6836 = vmatpush2.bf16.msra.mxu0 0
        %6837 = vmatprep.subr.bf16.mxu0 0
        %6838 = vmatpush2.bf16.msra.mxu0 0
        %6839 = vmatprep.subr.bf16.mxu0 0
        %6840 = vmatpush2.bf16.msra.mxu0 0
        %6841 = vmatprep.mubr.bf16.mxu0 0
        %6842 = vmatmul.mubr.bf16.gmra.mxu0 %v6783
        %v6843 = vpop.f32.mrf.mxu0
        %v6844 = vadd.f32 %v6667, %v6843
        %v6845 = vpop.f32.mrf.mxu0
        %v6846 = vpop.f32.mrf.mxu0
        %v6847 = vadd.f32 %v6670, %v6846
        %v6848 = vpop.f32.mrf.mxu0
        %6849 = vmatprep.mubr.bf16.mxu0 0
        %6850 = vmatmul.mubr.bf16.gmra.mxu0 %v6786
        %v6851 = vpop.f32.mrf.mxu0
        %v6852 = vadd.f32 %v6675, %v6851
        %v6853 = vpop.f32.mrf.mxu0
        %v6854 = vpop.f32.mrf.mxu0
        %v6855 = vadd.f32 %v6678, %v6854
        %v6856 = vpop.f32.mrf.mxu0
        %6857 = vmatprep.mubr.bf16.mxu0 0
        %6858 = vmatmul.mubr.bf16.gmra.mxu0 %v6789
        %v6859 = vpop.f32.mrf.mxu0
        %v6860 = vadd.f32 %v6683, %v6859
        %v6861 = vpop.f32.mrf.mxu0
        %v6862 = vpop.f32.mrf.mxu0
        %v6863 = vadd.f32 %v6686, %v6862
        %v6864 = vpop.f32.mrf.mxu0
        %6865 = vmatprep.mubr.bf16.mxu0 0
        %6866 = vmatmul.mubr.bf16.gmra.mxu0 %v6792
        %v6867 = vpop.f32.mrf.mxu0
        %v6868 = vadd.f32 %v6691, %v6867
        %v6869 = vpop.f32.mrf.mxu0
        %v6870 = vpop.f32.mrf.mxu0
        %v6871 = vadd.f32 %v6694, %v6870
        %v6872 = vpop.f32.mrf.mxu0
        %6873 = vmatprep.mubr.bf16.mxu0 0
        %6874 = vmatmul.mubr.bf16.gmra.mxu0 %v6795
        %v6875 = vpop.f32.mrf.mxu0
        %v6876 = vadd.f32 %v6699, %v6875
        %v6877 = vpop.f32.mrf.mxu0
        %v6878 = vpop.f32.mrf.mxu0
        %v6879 = vadd.f32 %v6702, %v6878
        %v6880 = vpop.f32.mrf.mxu0
        %6881 = vmatprep.mubr.bf16.mxu0 0
        %6882 = vmatmul.mubr.bf16.gmra.mxu0 %v6798
        %v6883 = vpop.f32.mrf.mxu0
        %v6884 = vadd.f32 %v6707, %v6883
        %v6885 = vpop.f32.mrf.mxu0
        %v6886 = vpop.f32.mrf.mxu0
        %v6887 = vadd.f32 %v6710, %v6886
        %v6888 = vpop.f32.mrf.mxu0
        %6889 = vmatprep.mubr.bf16.mxu0 0
        %6890 = vmatmul.mubr.bf16.gmra.mxu0 %v6801
        %v6891 = vpop.f32.mrf.mxu0
        %v6892 = vadd.f32 %v6715, %v6891
        %v6893 = vpop.f32.mrf.mxu0
        %v6894 = vpop.f32.mrf.mxu0
        %v6895 = vadd.f32 %v6718, %v6894
        %v6896 = vpop.f32.mrf.mxu0
        %6897 = vmatprep.mubr.bf16.mxu0 0
        %6898 = vmatmul.mubr.bf16.gmra.mxu0 %v6804
        %v6899 = vpop.f32.mrf.mxu0
        %v6900 = vadd.f32 %v6723, %v6899
        %v6901 = vpop.f32.mrf.mxu0
        %v6902 = vpop.f32.mrf.mxu0
        %v6903 = vadd.f32 %v6726, %v6902
        %v6904 = vpop.f32.mrf.mxu0
        %6905 = vmatprep.mubr.bf16.mxu0 0
        %6906 = vmatmul.mubr.bf16.gmra.mxu0 %v6807
        %v6907 = vpop.f32.mrf.mxu0
        %v6908 = vadd.f32 %v6731, %v6907
        %v6909 = vpop.f32.mrf.mxu0
        %v6910 = vpop.f32.mrf.mxu0
        %v6911 = vadd.f32 %v6734, %v6910
        %v6912 = vpop.f32.mrf.mxu0
        %6913 = vdwg.mxu0
        %v6914 = vadd.f32 %v6844, %v1214
        %v6915 = vadd.f32 %v6847, %v1214
        %v6916 = vadd.f32 %v6852, %v1214
        %v6917 = vadd.f32 %v6855, %v1214
        %v6918 = vadd.f32 %v6860, %v1214
        %v6919 = vadd.f32 %v6863, %v1214
        %v6920 = vadd.f32 %v6868, %v1214
        %v6921 = vadd.f32 %v6871, %v1214
        %v6922 = vadd.f32 %v6876, %v1214
        %v6923 = vadd.f32 %v6879, %v1214
        %v6924 = vadd.f32 %v6884, %v1214
        %v6925 = vadd.f32 %v6887, %v1214
        %v6926 = vadd.f32 %v6892, %v1214
        %v6927 = vadd.f32 %v6895, %v1214
        %v6928 = vadd.f32 %v6900, %v1214
        %v6929 = vadd.f32 %v6903, %v1214
        %v6930 = vadd.f32 %v6908, %v1214
        %v6931 = vadd.f32 %v6911, %v1214
        %v6932 = vxor.u32 %v6914, 2147483648
        %v6933 = vxor.u32 %v6915, 2147483648
        %v6934 = vxor.u32 %v6916, 2147483648
        %v6935 = vxor.u32 %v6917, 2147483648
        %v6936 = vxor.u32 %v6918, 2147483648
        %v6937 = vxor.u32 %v6919, 2147483648
        %v6938 = vxor.u32 %v6920, 2147483648
        %v6939 = vxor.u32 %v6921, 2147483648
        %v6940 = vxor.u32 %v6922, 2147483648
        %v6941 = vxor.u32 %v6923, 2147483648
        %v6942 = vxor.u32 %v6924, 2147483648
        %v6943 = vxor.u32 %v6925, 2147483648
        %v6944 = vxor.u32 %v6926, 2147483648
        %v6945 = vxor.u32 %v6927, 2147483648
        %v6946 = vxor.u32 %v6928, 2147483648
        %v6947 = vxor.u32 %v6929, 2147483648
        %v6948 = vxor.u32 %v6930, 2147483648
        %v6949 = vxor.u32 %v6931, 2147483648
        %v6950 = vmul.f32 %v6932, 1.442695
        %v6951 = vpow.pop %v6950
        %v6952 = vmul.f32 %v6933, 1.442695
        %v6953 = vpow.pop %v6952
        %v6954 = vmul.f32 %v6934, 1.442695
        %v6955 = vpow.pop %v6954
        %v6956 = vmul.f32 %v6935, 1.442695
        %v6957 = vpow.pop %v6956
        %v6958 = vmul.f32 %v6936, 1.442695
        %v6959 = vpow.pop %v6958
        %v6960 = vmul.f32 %v6937, 1.442695
        %v6961 = vpow.pop %v6960
        %v6962 = vmul.f32 %v6938, 1.442695
        %v6963 = vpow.pop %v6962
        %v6964 = vmul.f32 %v6939, 1.442695
        %v6965 = vpow.pop %v6964
        %v6966 = vmul.f32 %v6940, 1.442695
        %v6967 = vpow.pop %v6966
        %v6968 = vmul.f32 %v6941, 1.442695
        %v6969 = vpow.pop %v6968
        %v6970 = vmul.f32 %v6942, 1.442695
        %v6971 = vpow.pop %v6970
        %v6972 = vmul.f32 %v6943, 1.442695
        %v6973 = vpow.pop %v6972
        %v6974 = vmul.f32 %v6944, 1.442695
        %v6975 = vpow.pop %v6974
        %v6976 = vmul.f32 %v6945, 1.442695
        %v6977 = vpow.pop %v6976
        %v6978 = vmul.f32 %v6946, 1.442695
        %v6979 = vpow.pop %v6978
        %v6980 = vmul.f32 %v6947, 1.442695
        %v6981 = vpow.pop %v6980
        %v6982 = vmul.f32 %v6948, 1.442695
        %v6983 = vpow.pop %v6982
        %v6984 = vmul.f32 %v6949, 1.442695
        %v6985 = vpow.pop %v6984
        %v6986 = vadd.f32 %v6951, 1.0
        %v6987 = vadd.f32 %v6953, 1.0
        %v6988 = vadd.f32 %v6955, 1.0
        %v6989 = vadd.f32 %v6957, 1.0
        %v6990 = vadd.f32 %v6959, 1.0
        %v6991 = vadd.f32 %v6961, 1.0
        %v6992 = vadd.f32 %v6963, 1.0
        %v6993 = vadd.f32 %v6965, 1.0
        %v6994 = vadd.f32 %v6967, 1.0
        %v6995 = vadd.f32 %v6969, 1.0
        %v6996 = vadd.f32 %v6971, 1.0
        %v6997 = vadd.f32 %v6973, 1.0
        %v6998 = vadd.f32 %v6975, 1.0
        %v6999 = vadd.f32 %v6977, 1.0
        %v7000 = vadd.f32 %v6979, 1.0
        %v7001 = vadd.f32 %v6981, 1.0
        %v7002 = vadd.f32 %v6983, 1.0
        %v7003 = vadd.f32 %v6985, 1.0
        %v7004 = vrcp.pop %v6986
        %v7005 = vmul.f32 1.0, %v7004
        %v7006 = vrcp.pop %v6987
        %v7007 = vmul.f32 1.0, %v7006
        %v7008 = vrcp.pop %v6988
        %v7009 = vmul.f32 1.0, %v7008
        %v7010 = vrcp.pop %v6989
        %v7011 = vmul.f32 1.0, %v7010
        %v7012 = vrcp.pop %v6990
        %v7013 = vmul.f32 1.0, %v7012
        %v7014 = vrcp.pop %v6991
        %v7015 = vmul.f32 1.0, %v7014
        %v7016 = vrcp.pop %v6992
        %v7017 = vmul.f32 1.0, %v7016
        %v7018 = vrcp.pop %v6993
        %v7019 = vmul.f32 1.0, %v7018
        %v7020 = vrcp.pop %v6994
        %v7021 = vmul.f32 1.0, %v7020
        %v7022 = vrcp.pop %v6995
        %v7023 = vmul.f32 1.0, %v7022
        %v7024 = vrcp.pop %v6996
        %v7025 = vmul.f32 1.0, %v7024
        %v7026 = vrcp.pop %v6997
        %v7027 = vmul.f32 1.0, %v7026
        %v7028 = vrcp.pop %v6998
        %v7029 = vmul.f32 1.0, %v7028
        %v7030 = vrcp.pop %v6999
        %v7031 = vmul.f32 1.0, %v7030
        %v7032 = vrcp.pop %v7000
        %v7033 = vmul.f32 1.0, %v7032
        %v7034 = vrcp.pop %v7001
        %v7035 = vmul.f32 1.0, %v7034
        %v7036 = vrcp.pop %v7002
        %v7037 = vmul.f32 1.0, %v7036
        %v7038 = vrcp.pop %v7003
        %v7039 = vmul.f32 1.0, %v7038
        %v7040 = vtanh.pop %v6914
        %v7041 = vtanh.pop %v6915
        %v7042 = vtanh.pop %v6916
        %v7043 = vtanh.pop %v6917
        %v7044 = vtanh.pop %v6918
        %v7045 = vtanh.pop %v6919
        %v7046 = vtanh.pop %v6920
        %v7047 = vtanh.pop %v6921
        %v7048 = vtanh.pop %v6922
        %v7049 = vtanh.pop %v6923
        %v7050 = vtanh.pop %v6924
        %v7051 = vtanh.pop %v6925
        %v7052 = vtanh.pop %v6926
        %v7053 = vtanh.pop %v6927
        %v7054 = vtanh.pop %v6928
        %v7055 = vtanh.pop %v6929
        %v7056 = vtanh.pop %v6930
        %v7057 = vtanh.pop %v6931
        %v7058 = vmul.f32 %v7005, %v6424
        %v7059 = vmul.f32 %v7007, %v6425
        %v7060 = vmul.f32 %v7009, %v6426
        %v7061 = vmul.f32 %v7011, %v6427
        %v7062 = vmul.f32 %v7013, %v6428
        %v7063 = vmul.f32 %v7015, %v6429
        %v7064 = vmul.f32 %v7017, %v6430
        %v7065 = vmul.f32 %v7019, %v6431
        %v7066 = vmul.f32 %v7021, %v6432
        %v7067 = vmul.f32 %v7023, %v6433
        %v7068 = vmul.f32 %v7025, %v6434
        %v7069 = vmul.f32 %v7027, %v6435
        %v7070 = vmul.f32 %v7029, %v6436
        %v7071 = vmul.f32 %v7031, %v6437
        %v7072 = vmul.f32 %v7033, %v6438
        %v7073 = vmul.f32 %v7035, %v6439
        %v7074 = vmul.f32 %v7037, %v6440
        %v7075 = vmul.f32 %v7039, %v6441
        %7094 = vrot.lane.b32.xlu0 %v7040, 64
        %v7095 = vpop.permute.xlu0 %7094
        %7096 = vrot.lane.b32.xlu0 %v7041, 64
        %v7097 = vpop.permute.xlu0 %7096
        %7098 = vrot.lane.b32.xlu0 %v7042, 64
        %v7099 = vpop.permute.xlu0 %7098
        %7100 = vrot.lane.b32.xlu0 %v7043, 64
        %v7101 = vpop.permute.xlu0 %7100
        %7102 = vrot.lane.b32.xlu0 %v7044, 64
        %v7103 = vpop.permute.xlu0 %7102
        %7104 = vrot.lane.b32.xlu0 %v7045, 64
        %v7105 = vpop.permute.xlu0 %7104
        %7106 = vrot.lane.b32.xlu0 %v7046, 64
        %v7107 = vpop.permute.xlu0 %7106
        %7108 = vrot.lane.b32.xlu0 %v7047, 64
        %v7109 = vpop.permute.xlu0 %7108
        %7110 = vrot.lane.b32.xlu0 %v7048, 64
        %v7111 = vpop.permute.xlu0 %7110
        %7112 = vrot.lane.b32.xlu0 %v7049, 64
        %v7113 = vpop.permute.xlu0 %7112
        %7114 = vrot.lane.b32.xlu0 %v7050, 64
        %v7115 = vpop.permute.xlu0 %7114
        %7116 = vrot.lane.b32.xlu0 %v7051, 64
        %v7117 = vpop.permute.xlu0 %7116
        %7118 = vrot.lane.b32.xlu0 %v7052, 64
        %v7119 = vpop.permute.xlu0 %7118
        %7120 = vrot.lane.b32.xlu0 %v7053, 64
        %v7121 = vpop.permute.xlu0 %7120
        %7122 = vrot.lane.b32.xlu0 %v7054, 64
        %v7123 = vpop.permute.xlu0 %7122
        %7124 = vrot.lane.b32.xlu0 %v7055, 64
        %v7125 = vpop.permute.xlu0 %7124
        %7126 = vrot.lane.b32.xlu0 %v7056, 64
        %v7127 = vpop.permute.xlu0 %7126
        %7128 = vrot.lane.b32.xlu0 %v7057, 64
        %v7129 = vpop.permute.xlu0 %7128
        %v7148 = vmul.f32 %v7005, %v7095
        %v7149 = vmul.f32 %v7007, %v7097
        %v7150 = vmul.f32 %v7009, %v7099
        %v7151 = vmul.f32 %v7011, %v7101
        %v7152 = vmul.f32 %v7013, %v7103
        %v7153 = vmul.f32 %v7015, %v7105
        %v7154 = vmul.f32 %v7017, %v7107
        %v7155 = vmul.f32 %v7019, %v7109
        %v7156 = vmul.f32 %v7021, %v7111
        %v7157 = vmul.f32 %v7023, %v7113
        %v7158 = vmul.f32 %v7025, %v7115
        %v7159 = vmul.f32 %v7027, %v7117
        %v7160 = vmul.f32 %v7029, %v7119
        %v7161 = vmul.f32 %v7031, %v7121
        %v7162 = vmul.f32 %v7033, %v7123
        %v7163 = vmul.f32 %v7035, %v7125
        %v7164 = vmul.f32 %v7037, %v7127
        %v7165 = vmul.f32 %v7039, %v7129
        %7184 = vrot.lane.b32.xlu0 %v7148, 32
        %v7185 = vpop.permute.xlu0 %7184
        %7186 = vrot.lane.b32.xlu0 %v7149, 32
        %v7187 = vpop.permute.xlu0 %7186
        %7188 = vrot.lane.b32.xlu0 %v7150, 32
        %v7189 = vpop.permute.xlu0 %7188
        %7190 = vrot.lane.b32.xlu0 %v7151, 32
        %v7191 = vpop.permute.xlu0 %7190
        %7192 = vrot.lane.b32.xlu0 %v7152, 32
        %v7193 = vpop.permute.xlu0 %7192
        %7194 = vrot.lane.b32.xlu0 %v7153, 32
        %v7195 = vpop.permute.xlu0 %7194
        %7196 = vrot.lane.b32.xlu0 %v7154, 32
        %v7197 = vpop.permute.xlu0 %7196
        %7198 = vrot.lane.b32.xlu0 %v7155, 32
        %v7199 = vpop.permute.xlu0 %7198
        %7200 = vrot.lane.b32.xlu0 %v7156, 32
        %v7201 = vpop.permute.xlu0 %7200
        %7202 = vrot.lane.b32.xlu0 %v7157, 32
        %v7203 = vpop.permute.xlu0 %7202
        %7204 = vrot.lane.b32.xlu0 %v7158, 32
        %v7205 = vpop.permute.xlu0 %7204
        %7206 = vrot.lane.b32.xlu0 %v7159, 32
        %v7207 = vpop.permute.xlu0 %7206
        %7208 = vrot.lane.b32.xlu0 %v7160, 32
        %v7209 = vpop.permute.xlu0 %7208
        %7210 = vrot.lane.b32.xlu0 %v7161, 32
        %v7211 = vpop.permute.xlu0 %7210
        %7212 = vrot.lane.b32.xlu0 %v7162, 32
        %v7213 = vpop.permute.xlu0 %7212
        %7214 = vrot.lane.b32.xlu0 %v7163, 32
        %v7215 = vpop.permute.xlu0 %7214
        %7216 = vrot.lane.b32.xlu0 %v7164, 32
        %v7217 = vpop.permute.xlu0 %7216
        %7218 = vrot.lane.b32.xlu0 %v7165, 32
        %v7219 = vpop.permute.xlu0 %7218
        %v7238 = vadd.f32 %v7058, %v7185
        %v7239 = vadd.f32 %v7059, %v7187
        %v7240 = vadd.f32 %v7060, %v7189
        %v7241 = vadd.f32 %v7061, %v7191
        %v7242 = vadd.f32 %v7062, %v7193
        %v7243 = vadd.f32 %v7063, %v7195
        %v7244 = vadd.f32 %v7064, %v7197
        %v7245 = vadd.f32 %v7065, %v7199
        %v7246 = vadd.f32 %v7066, %v7201
        %v7247 = vadd.f32 %v7067, %v7203
        %v7248 = vadd.f32 %v7068, %v7205
        %v7249 = vadd.f32 %v7069, %v7207
        %v7250 = vadd.f32 %v7070, %v7209
        %v7251 = vadd.f32 %v7071, %v7211
        %v7252 = vadd.f32 %v7072, %v7213
        %v7253 = vadd.f32 %v7073, %v7215
        %v7254 = vadd.f32 %v7074, %v7217
        %v7255 = vadd.f32 %v7075, %v7219
        %v7256 = vtanh.pop %v7238
        %v7257 = vtanh.pop %v7239
        %v7258 = vtanh.pop %v7240
        %v7259 = vtanh.pop %v7241
        %v7260 = vtanh.pop %v7242
        %v7261 = vtanh.pop %v7243
        %v7262 = vtanh.pop %v7244
        %v7263 = vtanh.pop %v7245
        %v7264 = vtanh.pop %v7246
        %v7265 = vtanh.pop %v7247
        %v7266 = vtanh.pop %v7248
        %v7267 = vtanh.pop %v7249
        %v7268 = vtanh.pop %v7250
        %v7269 = vtanh.pop %v7251
        %v7270 = vtanh.pop %v7252
        %v7271 = vtanh.pop %v7253
        %v7272 = vtanh.pop %v7254
        %v7273 = vtanh.pop %v7255
        %7292 = vrot.lane.b32.xlu0 %v7256, 64
        %v7293 = vpop.permute.xlu0 %7292
        %7294 = vrot.lane.b32.xlu0 %v7257, 64
        %v7295 = vpop.permute.xlu0 %7294
        %7296 = vrot.lane.b32.xlu0 %v7258, 64
        %v7297 = vpop.permute.xlu0 %7296
        %7298 = vrot.lane.b32.xlu0 %v7259, 64
        %v7299 = vpop.permute.xlu0 %7298
        %7300 = vrot.lane.b32.xlu0 %v7260, 64
        %v7301 = vpop.permute.xlu0 %7300
        %7302 = vrot.lane.b32.xlu0 %v7261, 64
        %v7303 = vpop.permute.xlu0 %7302
        %7304 = vrot.lane.b32.xlu0 %v7262, 64
        %v7305 = vpop.permute.xlu0 %7304
        %7306 = vrot.lane.b32.xlu0 %v7263, 64
        %v7307 = vpop.permute.xlu0 %7306
        %7308 = vrot.lane.b32.xlu0 %v7264, 64
        %v7309 = vpop.permute.xlu0 %7308
        %7310 = vrot.lane.b32.xlu0 %v7265, 64
        %v7311 = vpop.permute.xlu0 %7310
        %7312 = vrot.lane.b32.xlu0 %v7266, 64
        %v7313 = vpop.permute.xlu0 %7312
        %7314 = vrot.lane.b32.xlu0 %v7267, 64
        %v7315 = vpop.permute.xlu0 %7314
        %7316 = vrot.lane.b32.xlu0 %v7268, 64
        %v7317 = vpop.permute.xlu0 %7316
        %7318 = vrot.lane.b32.xlu0 %v7269, 64
        %v7319 = vpop.permute.xlu0 %7318
        %7320 = vrot.lane.b32.xlu0 %v7270, 64
        %v7321 = vpop.permute.xlu0 %7320
        %7322 = vrot.lane.b32.xlu0 %v7271, 64
        %v7323 = vpop.permute.xlu0 %7322
        %7324 = vrot.lane.b32.xlu0 %v7272, 64
        %v7325 = vpop.permute.xlu0 %7324
        %7326 = vrot.lane.b32.xlu0 %v7273, 64
        %v7327 = vpop.permute.xlu0 %7326
        %v7346 = vmul.f32 %v7005, %v7293
        %v7347 = vmul.f32 %v7007, %v7295
        %v7348 = vmul.f32 %v7009, %v7297
        %v7349 = vmul.f32 %v7011, %v7299
        %v7350 = vmul.f32 %v7013, %v7301
        %v7351 = vmul.f32 %v7015, %v7303
        %v7352 = vmul.f32 %v7017, %v7305
        %v7353 = vmul.f32 %v7019, %v7307
        %v7354 = vmul.f32 %v7021, %v7309
        %v7355 = vmul.f32 %v7023, %v7311
        %v7356 = vmul.f32 %v7025, %v7313
        %v7357 = vmul.f32 %v7027, %v7315
        %v7358 = vmul.f32 %v7029, %v7317
        %v7359 = vmul.f32 %v7031, %v7319
        %v7360 = vmul.f32 %v7033, %v7321
        %v7361 = vmul.f32 %v7035, %v7323
        %v7362 = vmul.f32 %v7037, %v7325
        %v7363 = vmul.f32 %v7039, %v7327
        %v7364 = vld [vmem:[%s4] sm:$0x1]
        %v7366 = vlaneseq
        %v7367 = vshrl.u32 %v7366, 7
        %v7368 = vsub.s32 0, %v7367
        %v7369 = vrot.slane %v7364, %v7368
        %7370 = vrot.lane.b32.xlu0 %v7369, 96
        %v7371 = vpop.permute.xlu0 %7370
        %v7373 = vmul.f32 %v7346, %v7371
        %v7374 = vmul.f32 %v7347, %v7371
        %v7375 = vmul.f32 %v7348, %v7371
        %v7376 = vmul.f32 %v7349, %v7371
        %v7377 = vmul.f32 %v7350, %v7371
        %v7378 = vmul.f32 %v7351, %v7371
        %v7379 = vmul.f32 %v7352, %v7371
        %v7380 = vmul.f32 %v7353, %v7371
        %v7381 = vmul.f32 %v7354, %v7371
        %v7382 = vmul.f32 %v7355, %v7371
        %v7383 = vmul.f32 %v7356, %v7371
        %v7384 = vmul.f32 %v7357, %v7371
        %v7385 = vmul.f32 %v7358, %v7371
        %v7386 = vmul.f32 %v7359, %v7371
        %v7387 = vmul.f32 %v7360, %v7371
        %v7388 = vmul.f32 %v7361, %v7371
        %v7389 = vmul.f32 %v7362, %v7371
        %v7390 = vmul.f32 %v7363, %v7371
        %7409 = vrot.lane.b32.xlu0 %v7373, 32
        %v7410 = vpop.permute.xlu0 %7409
        %7411 = vrot.lane.b32.xlu0 %v7374, 32
        %v7412 = vpop.permute.xlu0 %7411
        %7413 = vrot.lane.b32.xlu0 %v7375, 32
        %v7414 = vpop.permute.xlu0 %7413
        %7415 = vrot.lane.b32.xlu0 %v7376, 32
        %v7416 = vpop.permute.xlu0 %7415
        %7417 = vrot.lane.b32.xlu0 %v7377, 32
        %v7418 = vpop.permute.xlu0 %7417
        %7419 = vrot.lane.b32.xlu0 %v7378, 32
        %v7420 = vpop.permute.xlu0 %7419
        %7421 = vrot.lane.b32.xlu0 %v7379, 32
        %v7422 = vpop.permute.xlu0 %7421
        %7423 = vrot.lane.b32.xlu0 %v7380, 32
        %v7424 = vpop.permute.xlu0 %7423
        %7425 = vrot.lane.b32.xlu0 %v7381, 32
        %v7426 = vpop.permute.xlu0 %7425
        %7427 = vrot.lane.b32.xlu0 %v7382, 32
        %v7428 = vpop.permute.xlu0 %7427
        %7429 = vrot.lane.b32.xlu0 %v7383, 32
        %v7430 = vpop.permute.xlu0 %7429
        %7431 = vrot.lane.b32.xlu0 %v7384, 32
        %v7432 = vpop.permute.xlu0 %7431
        %7433 = vrot.lane.b32.xlu0 %v7385, 32
        %v7434 = vpop.permute.xlu0 %7433
        %7435 = vrot.lane.b32.xlu0 %v7386, 32
        %v7436 = vpop.permute.xlu0 %7435
        %7437 = vrot.lane.b32.xlu0 %v7387, 32
        %v7438 = vpop.permute.xlu0 %7437
        %7439 = vrot.lane.b32.xlu0 %v7388, 32
        %v7440 = vpop.permute.xlu0 %7439
        %7441 = vrot.lane.b32.xlu0 %v7389, 32
        %v7442 = vpop.permute.xlu0 %7441
        %7443 = vrot.lane.b32.xlu0 %v7390, 32
        %v7444 = vpop.permute.xlu0 %7443
        %v7463 = vsel %vm912, %v7410, 0.0
        %7464 = vadd.xlane.f32.xlu0 %v7463
        %v7465 = vpop.xlane.xlu0 %7464
        %v7466 = vsel %vm912, %v7412, 0.0
        %7467 = vadd.xlane.f32.xlu0 %v7466
        %v7468 = vpop.xlane.xlu0 %7467
        %v7469 = vsel %vm912, %v7414, 0.0
        %7470 = vadd.xlane.f32.xlu0 %v7469
        %v7471 = vpop.xlane.xlu0 %7470
        %v7472 = vsel %vm912, %v7416, 0.0
        %7473 = vadd.xlane.f32.xlu0 %v7472
        %v7474 = vpop.xlane.xlu0 %7473
        %v7475 = vsel %vm912, %v7418, 0.0
        %7476 = vadd.xlane.f32.xlu0 %v7475
        %v7477 = vpop.xlane.xlu0 %7476
        %v7478 = vsel %vm912, %v7420, 0.0
        %7479 = vadd.xlane.f32.xlu0 %v7478
        %v7480 = vpop.xlane.xlu0 %7479
        %v7481 = vsel %vm912, %v7422, 0.0
        %7482 = vadd.xlane.f32.xlu0 %v7481
        %v7483 = vpop.xlane.xlu0 %7482
        %v7484 = vsel %vm912, %v7424, 0.0
        %7485 = vadd.xlane.f32.xlu0 %v7484
        %v7486 = vpop.xlane.xlu0 %7485
        %v7487 = vsel %vm912, %v7426, 0.0
        %7488 = vadd.xlane.f32.xlu0 %v7487
        %v7489 = vpop.xlane.xlu0 %7488
        %v7490 = vsel %vm912, %v7428, 0.0
        %7491 = vadd.xlane.f32.xlu0 %v7490
        %v7492 = vpop.xlane.xlu0 %7491
        %v7493 = vsel %vm912, %v7430, 0.0
        %7494 = vadd.xlane.f32.xlu0 %v7493
        %v7495 = vpop.xlane.xlu0 %7494
        %v7496 = vsel %vm912, %v7432, 0.0
        %7497 = vadd.xlane.f32.xlu0 %v7496
        %v7498 = vpop.xlane.xlu0 %7497
        %v7499 = vsel %vm912, %v7434, 0.0
        %7500 = vadd.xlane.f32.xlu0 %v7499
        %v7501 = vpop.xlane.xlu0 %7500
        %v7502 = vsel %vm912, %v7436, 0.0
        %7503 = vadd.xlane.f32.xlu0 %v7502
        %v7504 = vpop.xlane.xlu0 %7503
        %v7505 = vsel %vm912, %v7438, 0.0
        %7506 = vadd.xlane.f32.xlu0 %v7505
        %v7507 = vpop.xlane.xlu0 %7506
        %v7508 = vsel %vm912, %v7440, 0.0
        %7509 = vadd.xlane.f32.xlu0 %v7508
        %v7510 = vpop.xlane.xlu0 %7509
        %v7511 = vsel %vm912, %v7442, 0.0
        %7512 = vadd.xlane.f32.xlu0 %v7511
        %v7513 = vpop.xlane.xlu0 %7512
        %v7514 = vsel %vm912, %v7444, 0.0
        %7515 = vadd.xlane.f32.xlu0 %v7514
        %v7516 = vpop.xlane.xlu0 %7515
        %v7517 = vld [vmem:[#allocation2] sm:$0x1]
        %v7519 = vlaneseq
        %v7520 = vshrl.u32 %v7519, 7
        %v7521 = vsub.s32 0, %v7520
        %v7522 = vrot.slane %v7517, %v7521
        %v7524 = vadd.f32 %v7465, %v7522
        %v7525 = vadd.f32 %v7468, %v7522
        %v7526 = vadd.f32 %v7471, %v7522
        %v7527 = vadd.f32 %v7474, %v7522
        %v7528 = vadd.f32 %v7477, %v7522
        %v7529 = vadd.f32 %v7480, %v7522
        %v7530 = vadd.f32 %v7483, %v7522
        %v7531 = vadd.f32 %v7486, %v7522
        %v7532 = vadd.f32 %v7489, %v7522
        %v7533 = vadd.f32 %v7492, %v7522
        %v7534 = vadd.f32 %v7495, %v7522
        %v7535 = vadd.f32 %v7498, %v7522
        %v7536 = vadd.f32 %v7501, %v7522
        %v7537 = vadd.f32 %v7504, %v7522
        %v7538 = vadd.f32 %v7507, %v7522
        %v7539 = vadd.f32 %v7510, %v7522
        %v7540 = vadd.f32 %v7513, %v7522
        %v7541 = vadd.f32 %v7516, %v7522
        %vm7542 = vcmask 7168
        %7543 = vst.msk [vmem:[%s870] sm:$0xff] %vm7542, %v7524
        %7544 = vst.msk [vmem:[%s870 + $0x8] sm:$0xff] %vm7542, %v7525
        %7545 = vst.msk [vmem:[%s870 + $0x10] sm:$0xff] %vm7542, %v7526
        %7546 = vst.msk [vmem:[%s870 + $0x18] sm:$0xff] %vm7542, %v7527
        %7547 = vst.msk [vmem:[%s870 + $0x20] sm:$0xff] %vm7542, %v7528
        %7548 = vst.msk [vmem:[%s870 + $0x28] sm:$0xff] %vm7542, %v7529
        %7549 = vst.msk [vmem:[%s870 + $0x30] sm:$0xff] %vm7542, %v7530
        %7550 = vst.msk [vmem:[%s870 + $0x38] sm:$0xff] %vm7542, %v7531
        %7551 = vst.msk [vmem:[%s870 + $0x40] sm:$0xff] %vm7542, %v7532
        %7552 = vst.msk [vmem:[%s870 + $0x48] sm:$0xff] %vm7542, %v7533
        %7553 = vst.msk [vmem:[%s870 + $0x50] sm:$0xff] %vm7542, %v7534
        %7554 = vst.msk [vmem:[%s870 + $0x58] sm:$0xff] %vm7542, %v7535
        %7555 = vst.msk [vmem:[%s870 + $0x60] sm:$0xff] %vm7542, %v7536
        %7556 = vst.msk [vmem:[%s870 + $0x68] sm:$0xff] %vm7542, %v7537
        %7557 = vst.msk [vmem:[%s870 + $0x70] sm:$0xff] %vm7542, %v7538
        %7558 = vst.msk [vmem:[%s870 + $0x78] sm:$0xff] %vm7542, %v7539
        %7559 = vst.msk [vmem:[%s870 + $0x80] sm:$0xff] %vm7542, %v7540
        %7560 = vst.msk [vmem:[%s870 + $0x88] sm:$0xff] %vm7542, %v7541
        %s7561 = smul.u32 18, %s19
        %p7562 = scmp.lt.s32.totalorder %s7561, 35
        %s7563 = scalar_select %p7562, %s7561, 35
        %s7564 = smul.addr %s7563, 8
        %s7565 = scalar_lea.vmem %s6, %s7564
        // Predicated region
        $region86: #{model_logits_and_std.1} parent=80 // pred_check
          %p7566 = pneg %p168
        $region87: #{model_logits_and_std.1} parent=80 // pred_check_branch
          %7568 = sbr.rel (%p7566) target = $region89
        $region88: #{model_logits_and_std.1} parent=80 // pred_region
          %s7569 = smul.u32 18, %s19
        $region89: #{model_logits_and_std.1} parent=80 // pred_fallthru
          _
      $region81: #{model_logits_and_std.1} parent=5 // pred_fallthru
        _
      %p7570 = scmp.le.s32.totalorder 2, %s14
      // Predicated region
      $region90: #{model_logits_and_std.1} parent=5 // pred_check
        %p7571 = pneg %p7570
      $region91: #{model_logits_and_std.1} parent=5 // pred_check_branch
        %7573 = sbr.rel (%p7571) target = $region93
      $region92: #{model_logits_and_std.1} parent=5 // pred_region
        %s7574 = ssub.s32 %s14, 2
        // Predicated region
        $region94: #{model_logits_and_std.1} parent=92 // pred_check
          %p7575 = pneg %p174
        $region95: #{model_logits_and_std.1} parent=92 // pred_check_branch
          %7577 = sbr.rel (%p7575) target = $region97
        $region96: #{model_logits_and_std.1} parent=92 // pred_region
          %s7578 = smul.u32 18, %s20
          %p7579 = scmp.lt.s32.totalorder %s7578, 35
          %s7580 = scalar_select %p7579, %s7578, 35
          %s7581 = smul.addr %s7580, 8
          %s7582 = scalar_lea.vmem %s6, %s7581
        $region97: #{model_logits_and_std.1} parent=92 // pred_fallthru
          _
      $region93: #{model_logits_and_std.1} parent=5 // pred_fallthru
        _
    $region6: #{model_logits_and_std.1} parent=1 // loop_footer
      %s18 = sadd.s32 1, %s14
    $region7: #{model_logits_and_std.1} parent=1 // loop_footer_branch
      %13 = sbr.rel target = $region3
    $region8: #{model_logits_and_std.1} parent=1 // loop_exit
      _

</llo_original>
